<compile_context>
chip_gen: v7x
topology: tpu7x:2x2x1
jax: 0.10.0
libtpu: 0.0.40
codegen_flags: <defaults>
</compile_context>

<pallas_src>
import functools
import math

import jax
import jax.numpy as jnp
import numpy as np
from jax.experimental import pallas as pl
from jax.experimental.pallas import tpu as pltpu

# ----------------------------------------------------------------------------
# fixed filter taps (baked as python constants)
# ----------------------------------------------------------------------------
SOBEL_H = (1.0, 0.0, -1.0, 2.0, 0.0, -2.0, 1.0, 0.0, -1.0)
SOBEL_V = (1.0, 2.0, 1.0, 0.0, 0.0, 0.0, -1.0, -2.0, -1.0)

_g1 = [math.exp(-0.5), 1.0, math.exp(-0.5)]
_gs = sum(_g1)
G1 = tuple(v / _gs for v in _g1)
# 3x3 zero-padded gaussian followed by bilinear(0.5, align_corners=False)
# (== 2x2 average pool) collapses into a separable 4-tap stride-2 filter.
# TODO(synk): assumes GaussianSmoothing uses zero padding (not reflection).
K4 = (0.5 * G1[0], 0.5 * (G1[0] + G1[1]), 0.5 * (G1[1] + G1[2]), 0.5 * G1[2])

VMEM_LIMIT = 48 * 1024 * 1024  # <= v7x's 64 MiB physical VMEM


def _cparams(n_grid):
    # TODO(synk): use pltpu.CORE_PARALLEL on the batch axis to use v7x's 2nd TC.
    return pltpu.CompilerParams(dimension_semantics=("parallel",) * n_grid,
                                vmem_limit_bytes=VMEM_LIMIT)


def _round_up(n, m):
    return ((n + m - 1) // m) * m


def _pf_dims(H, W):
    """Padded-flat layout dims: row stride, interior window, exact & padded widths."""
    Wp = W + 2
    Nv = H * Wp
    Npe = (H + 2) * Wp
    Npad = _round_up(Npe + 2, 128)  # +2 so every 3x3 tap window stays in bounds
    return Wp, Nv, Npe, Npad


def _tap_stack(xf, Wp, Nv):
    """Stack the nine 3x3 tap windows along K (sublanes): (C, >=Npe+2) -> (9C, Nv)."""
    wins = []
    for t in range(9):
        off = (t // 3) * Wp + (t % 3)
        wins.append(xf[:, off:off + Nv])
    return jnp.concatenate(wins, axis=0)


# ----------------------------------------------------------------------------
# Pallas kernels
# ----------------------------------------------------------------------------
def _conv_img_kernel(x_ref, w_ref, b_ref, o_ref, m_ref, *, H, W):
    """conv_img: dense 3x3 conv as ONE K=9*Cin matmul + fused spatial mean."""
    Wp, Nv = W + 2, H * (W + 2)
    Cout = b_ref.shape[0]
    Npad = o_ref.shape[2]

    xf = x_ref[0].astype(jnp.float32)                     # (Cin, Npad)
    x9 = _tap_stack(xf, Wp, Nv).astype(jnp.bfloat16)      # (9*Cin, Nv)
    acc = jnp.dot(w_ref[...], x9, preferred_element_type=jnp.float32) + b_ref[...]

    # zero the wrap-around columns so they become the zero halo of the output
    col = jax.lax.broadcasted_iota(jnp.int32, (1, Nv), 1) % Wp
    acc = jnp.where(col < W, acc, 0.0)

    m_ref[0] = jnp.sum(acc, axis=1, keepdims=True) * (1.0 / (H * W))  # lat_embs[0]

    # direct offset stores (no full-width concatenate): halo head, body, tail
    o_ref[0, :, :Wp + 1] = jnp.zeros((Cout, Wp + 1), o_ref.dtype)
    o_ref[0, :, Wp + 1:Wp + 1 + Nv] = acc.astype(o_ref.dtype)
    o_ref[0, :, Wp + 1 + Nv:] = jnp.zeros((Cout, Npad - Wp - 1 - Nv), o_ref.dtype)


def _layer_kernel(x_ref, inj_ref, mwg_ref, mbg_ref, mwb_ref, mbb_ref,
                  w0_ref, b0_ref, w1_ref, b1_ref, dsm_ref, o_ref, m_ref,
                  *, H, W):
    """One full encoder layer, fused (one batch element per grid step):
       SinSobel + instance-norm -> AdaIN-modulated conv0 -> conv1 (+ 1x1
       shortcut in the same matmul) -> gaussian+bilinear(0.5) downsample as one
       matmul with a precomputed operator -> spatial mean.  All intermediates
       stay in VMEM; only the half-res padded-flat bf16 output and the f32
       mean are stored."""
    Wp, Nv = W + 2, H * (W + 2)
    Hh, Wh = H // 2, W // 2
    Cin = x_ref.shape[1]
    Fh = b0_ref.shape[0]

    xf = x_ref[0].astype(jnp.float32)                      # (Cin, Npad_in)

    # ---- SinSobel: sobel taps as lane-offset windows (VPU), sin on the EUP --
    # TODO(synk): exact SinSobel definition not provided; using
    # concat([x, sin(sobel_h * x), sin(sobel_v * x)]).
    gh = jnp.zeros((Cin, Nv), jnp.float32)
    gv = jnp.zeros((Cin, Nv), jnp.float32)
    for t in range(9):
        kh, kv = SOBEL_H[t], SOBEL_V[t]
        if kh == 0.0 and kv == 0.0:
            continue
        off = (t // 3) * Wp + (t % 3)
        sl = xf[:, off:off + Nv]
        if kh != 0.0:
            gh = gh + kh * sl
        if kv != 0.0:
            gv = gv + kv * sl
    xc = xf[:, Wp + 1:Wp + 1 + Nv]                         # centre tap (interior)

    col = jax.lax.broadcasted_iota(jnp.int32, (1, Nv), 1) % Wp
    validf = (col < W).astype(jnp.float32)
    inv_n = 1.0 / float(H * W)

    def inorm(p):  # one-pass masked instance norm (var = E[x^2]-E[x]^2), eps=1e-5
        pm = p * validf
        mu = jnp.sum(pm, axis=1, keepdims=True) * inv_n
        ex2 = jnp.sum(pm * pm, axis=1, keepdims=True) * inv_n
        var = ex2 - mu * mu
        return (p - mu) * jax.lax.rsqrt(var + 1e-5) * validf

    sob = jnp.concatenate([inorm(xc), inorm(jnp.sin(gh)), inorm(jnp.sin(gv))],
                          axis=0)                          # (3*Cin, Nv), halo cols 0

    # ---- latent modulation prologue (tiny VPU reduction, no extra launch) ---
    # TODO(synk): exact MixResidualBlock definition not provided; AdaIN-style.
    inj = inj_ref[0]                                       # (1, lat_size) f32
    scale = 1.0 + jnp.sum(mwg_ref[...] * inj, axis=1, keepdims=True) + mbg_ref[...]
    shift = jnp.sum(mwb_ref[...] * inj, axis=1, keepdims=True) + mbb_ref[...]

    # ---- conv0: single K = 9*(3*Cin) matmul over stacked taps ----
    zpad = jnp.zeros((3 * Cin, Wp + 1), jnp.float32)
    sobf = jnp.concatenate([zpad, sob, zpad], axis=1)      # re-padded flat
    x9 = _tap_stack(sobf, Wp, Nv).astype(jnp.bfloat16)     # (27*Cin, Nv)
    h = jnp.dot(w0_ref[...], x9, preferred_element_type=jnp.float32) + b0_ref[...]
    h = h * scale + shift
    h = jnp.where(h >= 0.0, h, 0.2 * h)
    h = h * validf                                         # zero halo columns

    # ---- conv1 + fused 1x1 shortcut: single K = 9*Fh + 3*Cin matmul ----
    zpad2 = jnp.zeros((Fh, Wp + 1), jnp.float32)
    hf = jnp.concatenate([zpad2, h, zpad2], axis=1)
    h9 = _tap_stack(hf, Wp, Nv)                            # (9*Fh, Nv) f32
    k1 = jnp.concatenate([h9, sob], axis=0).astype(jnp.bfloat16)
    res = jnp.dot(w1_ref[...], k1, preferred_element_type=jnp.float32) + b1_ref[...]

    # ---- gaussian smoothing + bilinear(0.5) + re-pad + mask as ONE matmul ---
    ds = jnp.dot(res.astype(jnp.bfloat16), dsm_ref[...],
                 preferred_element_type=jnp.float32)       # (Cout, Npad_out)

    m_ref[0] = jnp.sum(ds, axis=1, keepdims=True) * (1.0 / (Hh * Wh))
    o_ref[0] = ds.astype(o_ref.dtype)                      # lane-dense full store


def _labs_encoder_kernel(oh_ref, ew_ref, eb_ref, yw_ref, yb_ref, o_ref):
    # TODO(synk): exact LabsEncoder definition not provided; one-hot ->
    # embedding matmul -> yembed_to_lat linear (lr_mul == 1).
    y = jnp.dot(oh_ref[...].astype(jnp.bfloat16), ew_ref[...],
                preferred_element_type=jnp.float32) + eb_ref[...]
    o_ref[...] = jnp.dot(y.astype(jnp.bfloat16), yw_ref[...],
                         preferred_element_type=jnp.float32) + yb_ref[...]


def _out_to_lat_kernel(x_ref, w0_ref, b0_ref, w1_ref, b1_ref, ws_ref, bs_ref,
                       o_ref):
    # TODO(synk): exact LinearResidualBlock definition not provided; using
    # shortcut(x) + fc1(leaky_relu(fc0(x))).
    x = x_ref[...].astype(jnp.bfloat16)
    h = jnp.dot(x, w0_ref[...], preferred_element_type=jnp.float32) + b0_ref[...]
    h = jnp.where(h >= 0.0, h, 0.2 * h)
    h = jnp.dot(h.astype(jnp.bfloat16), w1_ref[...],
                preferred_element_type=jnp.float32) + b1_ref[...]
    s = jnp.dot(x, ws_ref[...], preferred_element_type=jnp.float32) + bs_ref[...]
    o_ref[...] = s + h


# ----------------------------------------------------------------------------
# precomputed downsample operator
# ----------------------------------------------------------------------------
def _ds_matrix(H, W, npad_out):
    """(Nv, npad_out) operator: interior conv output -> smoothed, 2x-downsampled,
    re-padded flat output (zero halo / wrap columns / tail padding baked in)."""
    Wp = W + 2
    Hh, Wh = H // 2, W // 2
    Wph = Wh + 2
    m = np.zeros((H * Wp, npad_out), np.float32)
    for yo in range(Hh):
        for xo in range(Wh):
            k = (yo + 1) * Wph + (xo + 1)
            for a in range(4):
                yi = 2 * yo + a - 1
                if yi < 0 or yi >= H:
                    continue
                for b in range(4):
                    xi = 2 * xo + b - 1
                    if xi < 0 or xi >= W:
                        continue
                    m[yi * Wp + xi, k] += K4[a] * K4[b]
    return m


# ----------------------------------------------------------------------------
# wrappers
# ----------------------------------------------------------------------------
def conv_img_pallas(x_flat, params, *, H, W):
    B, Cin, Npad = x_flat.shape
    Cout = params["conv_img_b"].shape[0]
    return pl.pallas_call(
        functools.partial(_conv_img_kernel, H=H, W=W),
        out_shape=(jax.ShapeDtypeStruct((B, Cout, Npad), jnp.bfloat16),
                   jax.ShapeDtypeStruct((B, Cout, 1), jnp.float32)),
        grid=(B,),
        in_specs=[pl.BlockSpec((1, Cin, Npad), lambda i: (i, 0, 0)),
                  pl.BlockSpec((Cout, 9 * Cin), lambda i: (0, 0)),
                  pl.BlockSpec((Cout, 1), lambda i: (0, 0))],
        out_specs=(pl.BlockSpec((1, Cout, Npad), lambda i: (i, 0, 0)),
                   pl.BlockSpec((1, Cout, 1), lambda i: (i, 0, 0))),
        compiler_params=_cparams(1),
    )(x_flat, params["conv_img_w"], params["conv_img_b"])


def layer_pallas(x_flat, inj3, lp, *, H, W):
    B, Cin, Npad_in = x_flat.shape
    lat = inj3.shape[2]
    Fh = lp["b0"].shape[0]
    Cout = lp["b1"].shape[0]
    Nv = H * (W + 2)
    _, _, _, Npad_out = _pf_dims(H // 2, W // 2)
    return pl.pallas_call(
        functools.partial(_layer_kernel, H=H, W=W),
        out_shape=(jax.ShapeDtypeStruct((B, Cout, Npad_out), jnp.bfloat16),
                   jax.ShapeDtypeStruct((B, Cout, 1), jnp.float32)),
        grid=(B,),
        in_specs=[pl.BlockSpec((1, Cin, Npad_in), lambda i: (i, 0, 0)),
                  pl.BlockSpec((1, 1, lat), lambda i: (i, 0, 0)),
                  pl.BlockSpec((Fh, lat), lambda i: (0, 0)),
                  pl.BlockSpec((Fh, 1), lambda i: (0, 0)),
                  pl.BlockSpec((Fh, lat), lambda i: (0, 0)),
                  pl.BlockSpec((Fh, 1), lambda i: (0, 0)),
                  pl.BlockSpec((Fh, 27 * Cin), lambda i: (0, 0)),
                  pl.BlockSpec((Fh, 1), lambda i: (0, 0)),
                  pl.BlockSpec((Cout, 9 * Fh + 3 * Cin), lambda i: (0, 0)),
                  pl.BlockSpec((Cout, 1), lambda i: (0, 0)),
                  pl.BlockSpec((Nv, Npad_out), lambda i: (0, 0))],
        out_specs=(pl.BlockSpec((1, Cout, Npad_out), lambda i: (i, 0, 0)),
                   pl.BlockSpec((1, Cout, 1), lambda i: (i, 0, 0))),
        compiler_params=_cparams(1),
    )(x_flat, inj3, lp["mod_wg"], lp["mod_bg"], lp["mod_wb"], lp["mod_bb"],
      lp["w0"], lp["b0"], lp["w1"], lp["b1"], lp["dsm"])


def labs_encoder_pallas(onehot, params):
    B, nl = onehot.shape
    Bp = _round_up(max(B, 8), 8)
    if Bp != B:
        onehot = jnp.pad(onehot, ((0, Bp - B), (0, 0)))
    p = params["labs"]
    lat = p["yw"].shape[1]
    out = pl.pallas_call(
        _labs_encoder_kernel,
        out_shape=jax.ShapeDtypeStruct((Bp, lat), jnp.float32),
        grid=(1,),
        in_specs=[pl.BlockSpec((Bp, nl), lambda i: (0, 0)),
                  pl.BlockSpec((nl, lat), lambda i: (0, 0)),
                  pl.BlockSpec((1, lat), lambda i: (0, 0)),
                  pl.BlockSpec((lat, lat), lambda i: (0, 0)),
                  pl.BlockSpec((1, lat), lambda i: (0, 0))],
        out_specs=pl.BlockSpec((Bp, lat), lambda i: (0, 0)),
        compiler_params=_cparams(1),
    )(onehot, p["ew"], p["eb"], p["yw"], p["yb"])
    return out[:B]


def out_to_lat_pallas(x, p):
    B, K = x.shape
    Bp = _round_up(max(B, 8), 8)
    if Bp != B:
        x = jnp.pad(x, ((0, Bp - B), (0, 0)))
    fh = p["w0"].shape[1]
    lat = p["w1"].shape[1]
    out = pl.pallas_call(
        _out_to_lat_kernel,
        out_shape=jax.ShapeDtypeStruct((Bp, lat), jnp.float32),
        grid=(1,),
        in_specs=[pl.BlockSpec((Bp, K), lambda i: (0, 0)),
                  pl.BlockSpec((K, fh), lambda i: (0, 0)),
                  pl.BlockSpec((1, fh), lambda i: (0, 0)),
                  pl.BlockSpec((fh, lat), lambda i: (0, 0)),
                  pl.BlockSpec((1, lat), lambda i: (0, 0)),
                  pl.BlockSpec((K, lat), lambda i: (0, 0)),
                  pl.BlockSpec((1, lat), lambda i: (0, 0))],
        out_specs=pl.BlockSpec((Bp, lat), lambda i: (0, 0)),
        compiler_params=_cparams(1),
    )(x, p["w0"], p["b0"], p["w1"], p["b1"], p["ws"], p["bs"])
    return out[:B]


# ----------------------------------------------------------------------------
# parameters (deterministic synthetic init, pre-stacked / pre-cast ONCE)
# ----------------------------------------------------------------------------
def init_params(key, cfg):
    n_labels, lat_size = cfg["n_labels"], cfg["lat_size"]
    image_size, channels, n_filter = cfg["image_size"], cfg["channels"], cfg["n_filter"]
    n_layers = int(math.log2(image_size)) - 1
    keys = iter(jax.random.split(key, 128))

    def nrm(shape, fan_in):
        return jax.random.normal(next(keys), shape, jnp.float32) / math.sqrt(fan_in)

    def stack3x3(w):  # (3,3,Cin,Cout) -> (Cout, 9*Cin) bf16, tap-major K
        cin, cout = w.shape[2], w.shape[3]
        return jnp.transpose(w.reshape(9 * cin, cout)).astype(jnp.bfloat16)

    p = dict(n_layers=n_layers, n_labels=n_labels, lat_size=lat_size)
    p["conv_img_w"] = stack3x3(nrm((3, 3, channels, n_filter), 9 * channels))
    p["conv_img_b"] = jnp.zeros((n_filter, 1), jnp.float32)

    layers = []
    Hc = Wc = image_size
    for l in range(n_layers):
        Cl = n_filter * (l + 1)
        fin, fout, fhid = 3 * Cl, n_filter * (l + 2), Cl
        mod_w = nrm((lat_size, 2 * fhid), lat_size)
        conv0_w = nrm((3, 3, fin, fhid), 9 * fin)
        conv1_w = nrm((3, 3, fhid, fout), 9 * fhid)
        short_w = nrm((fin, fout), fin)
        _, _, _, npad_out = _pf_dims(Hc // 2, Wc // 2)
        layers.append(dict(
            mod_wg=jnp.transpose(mod_w[:, :fhid]),           # (fhid, lat) f32
            mod_bg=jnp.zeros((fhid, 1), jnp.float32),
            mod_wb=jnp.transpose(mod_w[:, fhid:]),
            mod_bb=jnp.zeros((fhid, 1), jnp.float32),
            w0=stack3x3(conv0_w),                            # (fhid, 27*Cl) bf16
            b0=jnp.zeros((fhid, 1), jnp.float32),
            # conv1 and the 1x1 shortcut share one matmul: K = 9*fhid + 3*Cl
            w1=jnp.concatenate(
                [stack3x3(conv1_w),
                 jnp.transpose(short_w).astype(jnp.bfloat16)], axis=1),
            b1=jnp.zeros((fout, 1), jnp.float32),            # conv1_b + short_b
            dsm=jnp.asarray(_ds_matrix(Hc, Wc, npad_out), jnp.bfloat16),
        ))
        Hc, Wc = Hc // 2, Wc // 2
    p["layers"] = layers

    flat_dim = n_filter * (n_layers + 1) * 4
    fh = max(flat_dim, lat_size)
    p["out_to_lat"] = dict(
        w0=nrm((flat_dim, fh), flat_dim).astype(jnp.bfloat16),
        b0=jnp.zeros((1, fh), jnp.float32),
        w1=nrm((fh, lat_size), fh).astype(jnp.bfloat16),
        b1=jnp.zeros((1, lat_size), jnp.float32),
        ws=nrm((flat_dim, lat_size), flat_dim).astype(jnp.bfloat16),
        bs=jnp.zeros((1, lat_size), jnp.float32))
    p["labs"] = dict(
        ew=nrm((n_labels, lat_size), n_labels).astype(jnp.bfloat16),
        eb=jnp.zeros((1, lat_size), jnp.float32),
        yw=nrm((lat_size, lat_size), lat_size).astype(jnp.bfloat16),
        yb=jnp.zeros((1, lat_size), jnp.float32))
    return p


# ----------------------------------------------------------------------------
# forward pass  (LabsInjectedEncoder.forward)
# ----------------------------------------------------------------------------
def _unpad(x_flat, H, W):
    B, C, _ = x_flat.shape
    Wp = W + 2
    npe = (H + 2) * Wp
    img = x_flat[:, :, :npe].reshape(B, C, H + 2, Wp)
    return img[:, :, 1:H + 1, 1:W + 1].astype(jnp.float32)


def labs_injected_encoder_forward(params, x_nchw, labels):
    B, C0, H, W = x_nchw.shape

    # --- LabsEncoder: inj_lat = labs_encoder(labels) (one fused kernel) ---
    onehot = jax.nn.one_hot(labels, params["n_labels"], dtype=jnp.float32)
    inj_lat = labs_encoder_pallas(onehot, params)            # (B, lat) f32
    inj3 = inj_lat.reshape(B, 1, params["lat_size"])

    # single pad of the network input into the padded-flat bf16 layout
    _, _, Npe, Npad = _pf_dims(H, W)
    xp = jnp.pad(x_nchw.astype(jnp.float32), ((0, 0), (0, 0), (1, 1), (1, 1)))
    x_flat = jnp.pad(xp.reshape(B, C0, Npe),
                     ((0, 0), (0, 0), (0, Npad - Npe))).astype(jnp.bfloat16)

    # --- conv_img (+ fused spatial mean) ---
    out_flat, m0 = conv_img_pallas(x_flat, params, H=H, W=W)
    out_embs = [_unpad(out_flat, H, W)]
    lat_embs = [m0.reshape(B, -1)]

    # --- n_layers x (sobel -> mix-res conv -> gaussian downsample), fused ---
    curH, curW = H, W
    for l in range(params["n_layers"]):
        out_flat, ml = layer_pallas(out_flat, inj3, params["layers"][l],
                                    H=curH, W=curW)
        curH, curW = curH // 2, curW // 2
        out_embs.append(_unpad(out_flat, curH, curW))
        lat_embs.append(ml.reshape(B, -1))

    # --- out_to_lat on the NCHW-order flatten (one fused kernel) ---
    flat = out_embs[-1].reshape(B, -1)
    lat = out_to_lat_pallas(flat, params["out_to_lat"])
    # TODO(synk): auto_reg register_hook is backward-only; no forward equivalent.
    return lat, out_embs, lat_embs


# ----------------------------------------------------------------------------
if __name__ == "__main__":
    cfg = dict(n_labels=5, lat_size=32, image_size=16, ds_size=2,
               channels=4, n_filter=4)          # n_layers = log2(16) - 1 = 3
    key = jax.random.PRNGKey(0)
    kx, kl, kp = jax.random.split(key, 3)
    x = jax.random.normal(kx, (2, cfg["channels"], cfg["image_size"],
                               cfg["image_size"]), jnp.float32)
    labels = jax.random.randint(kl, (2,), 0, cfg["n_labels"])
    params = init_params(kp, cfg)

    fwd = jax.jit(functools.partial(labs_injected_encoder_forward, params))
    lat, out_embs, lat_embs = fwd(x, labels)
    jax.block_until_ready(lat)
    for t in out_embs + lat_embs:
        jax.block_until_ready(t)

    n_layers = params["n_layers"]
    assert lat.shape == (2, cfg["lat_size"])
    assert len(out_embs) == n_layers + 1 and len(lat_embs) == n_layers + 1
    assert out_embs[0].shape == (2, cfg["n_filter"], 16, 16)
    assert out_embs[-1].shape == (2, cfg["n_filter"] * (n_layers + 1), 2, 2)
    assert lat_embs[-1].shape == (2, cfg["n_filter"] * (n_layers + 1))
    assert all(bool(jnp.all(jnp.isfinite(t))) for t in [lat] + lat_embs)
    print("KERNEL_OK")
</pallas_src>

<mosaic_0001>
module attributes {stable_mosaic.version = 11 : i64} {
  func.func @_labs_encoder_kernel(%arg0: i32, %arg1: memref<8x5xf32, #tpu.memory_space<vmem>>, %arg2: memref<5x32xbf16, #tpu.memory_space<vmem>>, %arg3: memref<1x32xf32, #tpu.memory_space<vmem>>, %arg4: memref<32x32xbf16, #tpu.memory_space<vmem>>, %arg5: memref<1x32xf32, #tpu.memory_space<vmem>>, %arg6: memref<8x32xf32, #tpu.memory_space<vmem>>) attributes {dimension_semantics = [#tpu.dimension_semantics<parallel>], iteration_bounds = array<i64: 1>, scalar_prefetch = 0 : i64, scratch_operands = 0 : i64, tpu.core_type = #tpu.core_type<tc>, window_params = [{pipeline_mode = #tpu.pipeline_mode<synchronous>, transform_indices = @transform_0, window_bounds = array<i64: 8, 5>}, {pipeline_mode = #tpu.pipeline_mode<synchronous>, transform_indices = @transform_1, window_bounds = array<i64: 5, 32>}, {pipeline_mode = #tpu.pipeline_mode<synchronous>, transform_indices = @transform_2, window_bounds = array<i64: 1, 32>}, {pipeline_mode = #tpu.pipeline_mode<synchronous>, transform_indices = @transform_3, window_bounds = array<i64: 32, 32>}, {pipeline_mode = #tpu.pipeline_mode<synchronous>, transform_indices = @transform_4, window_bounds = array<i64: 1, 32>}, {pipeline_mode = #tpu.pipeline_mode<synchronous>, transform_indices = @transform_5, window_bounds = array<i64: 8, 32>}]} {
    %c0 = arith.constant 0 : index
    %c0_0 = arith.constant 0 : index
    %0 = vector.load %arg1[%c0, %c0_0] : memref<8x5xf32, #tpu.memory_space<vmem>>, vector<8x5xf32>
    %1 = arith.truncf %0 : vector<8x5xf32> to vector<8x5xbf16>
    %c0_1 = arith.constant 0 : index
    %c0_2 = arith.constant 0 : index
    %2 = vector.load %arg2[%c0_1, %c0_2] : memref<5x32xbf16, #tpu.memory_space<vmem>>, vector<5x32xbf16>
    %cst = arith.constant dense<0.000000e+00> : vector<8x32xf32>
    %3 = tpu.matmul %1, %2, %cst {dimension_numbers = #tpu.dot_dimension_numbers<[1], [0], [0], [1], [0, 0, 1, 1], [], []>} : vector<8x5xbf16>, vector<5x32xbf16>, vector<8x32xf32> -> vector<8x32xf32>
    %c0_3 = arith.constant 0 : index
    %c0_4 = arith.constant 0 : index
    %4 = vector.load %arg3[%c0_3, %c0_4] : memref<1x32xf32, #tpu.memory_space<vmem>>, vector<1x32xf32>
    %5 = vector.broadcast %4 : vector<1x32xf32> to vector<8x32xf32>
    %6 = arith.addf %3, %5 : vector<8x32xf32>
    %7 = arith.truncf %6 : vector<8x32xf32> to vector<8x32xbf16>
    %c0_5 = arith.constant 0 : index
    %c0_6 = arith.constant 0 : index
    %8 = vector.load %arg4[%c0_5, %c0_6] : memref<32x32xbf16, #tpu.memory_space<vmem>>, vector<32x32xbf16>
    %cst_7 = arith.constant dense<0.000000e+00> : vector<8x32xf32>
    %9 = tpu.matmul %7, %8, %cst_7 {dimension_numbers = #tpu.dot_dimension_numbers<[1], [0], [0], [1], [0, 0, 1, 1], [], []>} : vector<8x32xbf16>, vector<32x32xbf16>, vector<8x32xf32> -> vector<8x32xf32>
    %c0_8 = arith.constant 0 : index
    %c0_9 = arith.constant 0 : index
    %10 = vector.load %arg5[%c0_8, %c0_9] : memref<1x32xf32, #tpu.memory_space<vmem>>, vector<1x32xf32>
    %11 = vector.broadcast %10 : vector<1x32xf32> to vector<8x32xf32>
    %12 = arith.addf %9, %11 : vector<8x32xf32>
    %c0_10 = arith.constant 0 : index
    %c0_11 = arith.constant 0 : index
    %13 = vector.load %arg6[%c0_10, %c0_11] : memref<8x32xf32, #tpu.memory_space<vmem>>, vector<8x32xf32>
    tpu.vector_store %arg6[%c0_10, %c0_11], %12 {strides = array<i32>} : memref<8x32xf32, #tpu.memory_space<vmem>>, vector<8x32xf32>,
    return
  }
  func.func @transform_0(%arg0: i32) -> (i32, i32) {
    %c0_i32 = arith.constant 0 : i32
    %c0_i32_0 = arith.constant 0 : i32
    %c0_i32_1 = arith.constant 0 : i32
    return %c0_i32, %c0_i32_0 : i32, i32
  }
  func.func @transform_1(%arg0: i32) -> (i32, i32) {
    %c0_i32 = arith.constant 0 : i32
    %c0_i32_0 = arith.constant 0 : i32
    %c0_i32_1 = arith.constant 0 : i32
    return %c0_i32, %c0_i32_0 : i32, i32
  }
  func.func @transform_2(%arg0: i32) -> (i32, i32) {
    %c0_i32 = arith.constant 0 : i32
    %c0_i32_0 = arith.constant 0 : i32
    %c0_i32_1 = arith.constant 0 : i32
    return %c0_i32, %c0_i32_0 : i32, i32
  }
  func.func @transform_3(%arg0: i32) -> (i32, i32) {
    %c0_i32 = arith.constant 0 : i32
    %c0_i32_0 = arith.constant 0 : i32
    %c0_i32_1 = arith.constant 0 : i32
    return %c0_i32, %c0_i32_0 : i32, i32
  }
  func.func @transform_4(%arg0: i32) -> (i32, i32) {
    %c0_i32 = arith.constant 0 : i32
    %c0_i32_0 = arith.constant 0 : i32
    %c0_i32_1 = arith.constant 0 : i32
    return %c0_i32, %c0_i32_0 : i32, i32
  }
  func.func @transform_5(%arg0: i32) -> (i32, i32) {
    %c0_i32 = arith.constant 0 : i32
    %c0_i32_0 = arith.constant 0 : i32
    %c0_i32_1 = arith.constant 0 : i32
    return %c0_i32, %c0_i32_0 : i32, i32
  }
}

module attributes {stable_mosaic.version = 11 : i64} {
  func.func @_conv_img_kernel(%arg0: i32, %arg1: memref<1x4x384xbf16, #tpu.memory_space<vmem>>, %arg2: memref<4x36xbf16, #tpu.memory_space<vmem>>, %arg3: memref<4x1xf32, #tpu.memory_space<vmem>>, %arg4: memref<1x4x384xbf16, #tpu.memory_space<vmem>>, %arg5: memref<1x4x1xf32, #tpu.memory_space<vmem>>) attributes {dimension_semantics = [#tpu.dimension_semantics<parallel>], iteration_bounds = array<i64: 2>, scalar_prefetch = 0 : i64, scratch_operands = 0 : i64, tpu.core_type = #tpu.core_type<tc>, window_params = [{transform_indices = @transform_0, window_bounds = array<i64: 1, 4, 384>}, {pipeline_mode = #tpu.pipeline_mode<synchronous>, transform_indices = @transform_1, window_bounds = array<i64: 4, 36>}, {pipeline_mode = #tpu.pipeline_mode<synchronous>, transform_indices = @transform_2, window_bounds = array<i64: 4, 1>}, {transform_indices = @transform_3, window_bounds = array<i64: 1, 4, 384>}, {transform_indices = @transform_4, window_bounds = array<i64: 1, 4, 1>}]} {
    %c0 = arith.constant 0 : index
    %c0_0 = arith.constant 0 : index
    %c0_1 = arith.constant 0 : index
    %0 = vector.load %arg1[%c0, %c0_0, %c0_1] : memref<1x4x384xbf16, #tpu.memory_space<vmem>>, vector<1x4x384xbf16>
    %1 = vector.shape_cast %0 : vector<1x4x384xbf16> to vector<4x384xbf16>
    %2 = arith.extf %1 : vector<4x384xbf16> to vector<4x384xf32>
    %3 = vector.extract_strided_slice %2 {offsets = [0, 0], sizes = [4, 288], strides = [1, 1]} : vector<4x384xf32> to vector<4x288xf32>
    %4 = vector.extract_strided_slice %2 {offsets = [0, 1], sizes = [4, 288], strides = [1, 1]} : vector<4x384xf32> to vector<4x288xf32>
    %5 = vector.extract_strided_slice %2 {offsets = [0, 2], sizes = [4, 288], strides = [1, 1]} : vector<4x384xf32> to vector<4x288xf32>
    %6 = vector.extract_strided_slice %2 {offsets = [0, 18], sizes = [4, 288], strides = [1, 1]} : vector<4x384xf32> to vector<4x288xf32>
    %7 = vector.extract_strided_slice %2 {offsets = [0, 19], sizes = [4, 288], strides = [1, 1]} : vector<4x384xf32> to vector<4x288xf32>
    %8 = vector.extract_strided_slice %2 {offsets = [0, 20], sizes = [4, 288], strides = [1, 1]} : vector<4x384xf32> to vector<4x288xf32>
    %9 = vector.extract_strided_slice %2 {offsets = [0, 36], sizes = [4, 288], strides = [1, 1]} : vector<4x384xf32> to vector<4x288xf32>
    %10 = vector.extract_strided_slice %2 {offsets = [0, 37], sizes = [4, 288], strides = [1, 1]} : vector<4x384xf32> to vector<4x288xf32>
    %11 = vector.extract_strided_slice %2 {offsets = [0, 38], sizes = [4, 288], strides = [1, 1]} : vector<4x384xf32> to vector<4x288xf32>
    %12 = tpu.concatenate %3, %4, %5, %6, %7, %8, %9, %10, %11 in 0 : vector<4x288xf32>, vector<4x288xf32>, vector<4x288xf32>, vector<4x288xf32>, vector<4x288xf32>, vector<4x288xf32>, vector<4x288xf32>, vector<4x288xf32>, vector<4x288xf32> -> vector<36x288xf32>
    %13 = arith.truncf %12 : vector<36x288xf32> to vector<36x288xbf16>
    %c0_2 = arith.constant 0 : index
    %c0_3 = arith.constant 0 : index
    %14 = vector.load %arg2[%c0_2, %c0_3] : memref<4x36xbf16, #tpu.memory_space<vmem>>, vector<4x36xbf16>
    %cst = arith.constant dense<0.000000e+00> : vector<4x288xf32>
    %15 = tpu.matmul %14, %13, %cst {dimension_numbers = #tpu.dot_dimension_numbers<[1], [0], [0], [1], [0, 0, 1, 1], [], []>} : vector<4x36xbf16>, vector<36x288xbf16>, vector<4x288xf32> -> vector<4x288xf32>
    %c0_4 = arith.constant 0 : index
    %c0_5 = arith.constant 0 : index
    %16 = vector.load %arg3[%c0_4, %c0_5] : memref<4x1xf32, #tpu.memory_space<vmem>>, vector<4x1xf32>
    %17 = vector.broadcast %16 : vector<4x1xf32> to vector<4x288xf32>
    %18 = arith.addf %15, %17 : vector<4x288xf32>
    %19 = tpu.iota {dimensions = array<i32: 1>} : vector<1x288xi32>
    %c18_i32 = arith.constant 18 : i32
    %c0_i32 = arith.constant 0 : i32
    %20 = arith.cmpi eq, %c18_i32, %c0_i32 : i32
    %c1_i32 = arith.constant 1 : i32
    %21 = arith.select %20, %c1_i32, %c18_i32 : i32
    %22 = vector.broadcast %21 : i32 to vector<1x288xi32>
    %23 = arith.remsi %19, %22 : vector<1x288xi32>
    %c0_i32_6 = arith.constant 0 : i32
    %24 = vector.broadcast %c0_i32_6 : i32 to vector<1x288xi32>
    %25 = arith.cmpi ne, %23, %24 : vector<1x288xi32>
    %c0_i32_7 = arith.constant 0 : i32
    %26 = vector.broadcast %c0_i32_7 : i32 to vector<1x288xi32>
    %27 = arith.cmpi slt, %23, %26 : vector<1x288xi32>
    %c0_i32_8 = arith.constant 0 : i32
    %28 = arith.cmpi slt, %21, %c0_i32_8 : i32
    %29 = vector.broadcast %28 : i1 to vector<1x288xi1>
    %30 = vector.broadcast %29 : vector<1x288xi1> to vector<1x288xi1>
    %31 = arith.xori %27, %30 : vector<1x288xi1>
    %32 = arith.andi %31, %25 : vector<1x288xi1>
    %33 = vector.broadcast %21 : i32 to vector<1x288xi32>
    %34 = arith.addi %23, %33 : vector<1x288xi32>
    %35 = arith.select %32, %34, %23 : vector<1x288xi1>, vector<1x288xi32>
    %c16_i32 = arith.constant 16 : i32
    %36 = vector.broadcast %c16_i32 : i32 to vector<1x288xi32>
    %37 = arith.cmpi slt, %35, %36 : vector<1x288xi32>
    %cst_9 = arith.constant 0.000000e+00 : f32
    %38 = vector.shape_cast %37 : vector<1x288xi1> to vector<1x288xi1>
    %39 = vector.broadcast %38 : vector<1x288xi1> to vector<4x288xi1>
    %40 = vector.broadcast %cst_9 : f32 to vector<4x288xf32>
    %41 = arith.select %39, %18, %40 : vector<4x288xi1>, vector<4x288xf32>
    %cst_10 = arith.constant dense<0.000000e+00> : vector<4xf32>
    %42 = vector.multi_reduction <add>, %41, %cst_10 [1] : vector<4x288xf32> to vector<4xf32>
    %43 = vector.shape_cast %42 : vector<4xf32> to vector<4x1xf32>
    %cst_11 = arith.constant 3.906250e-03 : f32
    %44 = vector.broadcast %cst_11 : f32 to vector<4x1xf32>
    %45 = arith.mulf %43, %44 : vector<4x1xf32>
    %c0_12 = arith.constant 0 : index
    %c0_13 = arith.constant 0 : index
    %c0_14 = arith.constant 0 : index
    %46 = vector.load %arg5[%c0_12, %c0_13, %c0_14] : memref<1x4x1xf32, #tpu.memory_space<vmem>>, vector<1x4x1xf32>
    %47 = vector.shape_cast %46 : vector<1x4x1xf32> to vector<4x1xf32>
    %48 = vector.shape_cast %45 : vector<4x1xf32> to vector<1x4x1xf32>
    tpu.vector_store %arg5[%c0_12, %c0_13, %c0_14], %48 {strides = array<i32>} : memref<1x4x1xf32, #tpu.memory_space<vmem>>, vector<1x4x1xf32>,
    %cst_15 = arith.constant 0.000000e+00 : bf16
    %49 = vector.broadcast %cst_15 : bf16 to vector<4x19xbf16>
    %c0_16 = arith.constant 0 : index
    %c0_17 = arith.constant 0 : index
    %c0_18 = arith.constant 0 : index
    %50 = vector.load %arg4[%c0_16, %c0_17, %c0_18] : memref<1x4x384xbf16, #tpu.memory_space<vmem>>, vector<1x4x19xbf16>
    %51 = vector.shape_cast %50 : vector<1x4x19xbf16> to vector<4x19xbf16>
    %52 = vector.shape_cast %49 : vector<4x19xbf16> to vector<1x4x19xbf16>
    tpu.vector_store %arg4[%c0_16, %c0_17, %c0_18], %52 {strides = array<i32>} : memref<1x4x384xbf16, #tpu.memory_space<vmem>>, vector<1x4x19xbf16>,
    %53 = arith.truncf %41 : vector<4x288xf32> to vector<4x288xbf16>
    %c0_19 = arith.constant 0 : index
    %c0_20 = arith.constant 0 : index
    %c19 = arith.constant 19 : index
    %54 = vector.load %arg4[%c0_19, %c0_20, %c19] : memref<1x4x384xbf16, #tpu.memory_space<vmem>>, vector<1x4x288xbf16>
    %55 = vector.shape_cast %54 : vector<1x4x288xbf16> to vector<4x288xbf16>
    %56 = vector.shape_cast %53 : vector<4x288xbf16> to vector<1x4x288xbf16>
    tpu.vector_store %arg4[%c0_19, %c0_20, %c19], %56 {strides = array<i32>} : memref<1x4x384xbf16, #tpu.memory_space<vmem>>, vector<1x4x288xbf16>,
    %cst_21 = arith.constant 0.000000e+00 : bf16
    %57 = vector.broadcast %cst_21 : bf16 to vector<4x77xbf16>
    %c0_22 = arith.constant 0 : index
    %c0_23 = arith.constant 0 : index
    %c307 = arith.constant 307 : index
    %58 = vector.load %arg4[%c0_22, %c0_23, %c307] : memref<1x4x384xbf16, #tpu.memory_space<vmem>>, vector<1x4x77xbf16>
    %59 = vector.shape_cast %58 : vector<1x4x77xbf16> to vector<4x77xbf16>
    %60 = vector.shape_cast %57 : vector<4x77xbf16> to vector<1x4x77xbf16>
    tpu.vector_store %arg4[%c0_22, %c0_23, %c307], %60 {strides = array<i32>} : memref<1x4x384xbf16, #tpu.memory_space<vmem>>, vector<1x4x77xbf16>,
    return
  }
  func.func @transform_0(%arg0: i32) -> (i32, i32, i32) {
    %c0_i32 = arith.constant 0 : i32
    %c0_i32_0 = arith.constant 0 : i32
    %c0_i32_1 = arith.constant 0 : i32
    return %arg0, %c0_i32, %c0_i32_0 : i32, i32, i32
  }
  func.func @transform_1(%arg0: i32) -> (i32, i32) {
    %c0_i32 = arith.constant 0 : i32
    %c0_i32_0 = arith.constant 0 : i32
    %c0_i32_1 = arith.constant 0 : i32
    return %c0_i32, %c0_i32_0 : i32, i32
  }
  func.func @transform_2(%arg0: i32) -> (i32, i32) {
    %c0_i32 = arith.constant 0 : i32
    %c0_i32_0 = arith.constant 0 : i32
    %c0_i32_1 = arith.constant 0 : i32
    return %c0_i32, %c0_i32_0 : i32, i32
  }
  func.func @transform_3(%arg0: i32) -> (i32, i32, i32) {
    %c0_i32 = arith.constant 0 : i32
    %c0_i32_0 = arith.constant 0 : i32
    %c0_i32_1 = arith.constant 0 : i32
    return %arg0, %c0_i32, %c0_i32_0 : i32, i32, i32
  }
  func.func @transform_4(%arg0: i32) -> (i32, i32, i32) {
    %c0_i32 = arith.constant 0 : i32
    %c0_i32_0 = arith.constant 0 : i32
    %c0_i32_1 = arith.constant 0 : i32
    return %arg0, %c0_i32, %c0_i32_0 : i32, i32, i32
  }
}

module attributes {stable_mosaic.version = 11 : i64} {
  func.func @_layer_kernel(%arg0: i32, %arg1: memref<1x4x384xbf16, #tpu.memory_space<vmem>>, %arg2: memref<1x1x32xf32, #tpu.memory_space<vmem>>, %arg3: memref<4x32xf32, #tpu.memory_space<vmem>>, %arg4: memref<4x1xf32, #tpu.memory_space<vmem>>, %arg5: memref<4x32xf32, #tpu.memory_space<vmem>>, %arg6: memref<4x1xf32, #tpu.memory_space<vmem>>, %arg7: memref<4x108xbf16, #tpu.memory_space<vmem>>, %arg8: memref<4x1xf32, #tpu.memory_space<vmem>>, %arg9: memref<8x48xbf16, #tpu.memory_space<vmem>>, %arg10: memref<8x1xf32, #tpu.memory_space<vmem>>, %arg11: memref<288x128xbf16, #tpu.memory_space<vmem>>, %arg12: memref<1x8x128xbf16, #tpu.memory_space<vmem>>, %arg13: memref<1x8x1xf32, #tpu.memory_space<vmem>>) attributes {dimension_semantics = [#tpu.dimension_semantics<parallel>], iteration_bounds = array<i64: 2>, scalar_prefetch = 0 : i64, scratch_operands = 0 : i64, tpu.core_type = #tpu.core_type<tc>, window_params = [{transform_indices = @transform_0, window_bounds = array<i64: 1, 4, 384>}, {transform_indices = @transform_1, window_bounds = array<i64: 1, 1, 32>}, {pipeline_mode = #tpu.pipeline_mode<synchronous>, transform_indices = @transform_2, window_bounds = array<i64: 4, 32>}, {pipeline_mode = #tpu.pipeline_mode<synchronous>, transform_indices = @transform_3, window_bounds = array<i64: 4, 1>}, {pipeline_mode = #tpu.pipeline_mode<synchronous>, transform_indices = @transform_4, window_bounds = array<i64: 4, 32>}, {pipeline_mode = #tpu.pipeline_mode<synchronous>, transform_indices = @transform_5, window_bounds = array<i64: 4, 1>}, {pipeline_mode = #tpu.pipeline_mode<synchronous>, transform_indices = @transform_6, window_bounds = array<i64: 4, 108>}, {pipeline_mode = #tpu.pipeline_mode<synchronous>, transform_indices = @transform_7, window_bounds = array<i64: 4, 1>}, {pipeline_mode = #tpu.pipeline_mode<synchronous>, transform_indices = @transform_8, window_bounds = array<i64: 8, 48>}, {pipeline_mode = #tpu.pipeline_mode<synchronous>, transform_indices = @transform_9, window_bounds = array<i64: 8, 1>}, {pipeline_mode = #tpu.pipeline_mode<synchronous>, transform_indices = @transform_10, window_bounds = array<i64: 288, 128>}, {transform_indices = @transform_11, window_bounds = array<i64: 1, 8, 128>}, {transform_indices = @transform_12, window_bounds = array<i64: 1, 8, 1>}]} {
    %c0 = arith.constant 0 : index
    %c0_0 = arith.constant 0 : index
    %c0_1 = arith.constant 0 : index
    %0 = vector.load %arg1[%c0, %c0_0, %c0_1] : memref<1x4x384xbf16, #tpu.memory_space<vmem>>, vector<1x4x384xbf16>
    %1 = vector.shape_cast %0 : vector<1x4x384xbf16> to vector<4x384xbf16>
    %2 = arith.extf %1 : vector<4x384xbf16> to vector<4x384xf32>
    %cst = arith.constant 0.000000e+00 : f32
    %3 = vector.broadcast %cst : f32 to vector<4x288xf32>
    %cst_2 = arith.constant 0.000000e+00 : f32
    %4 = vector.broadcast %cst_2 : f32 to vector<4x288xf32>
    %5 = vector.extract_strided_slice %2 {offsets = [0, 0], sizes = [4, 288], strides = [1, 1]} : vector<4x384xf32> to vector<4x288xf32>
    %cst_3 = arith.constant 1.000000e+00 : f32
    %6 = vector.broadcast %cst_3 : f32 to vector<4x288xf32>
    %7 = arith.mulf %6, %5 : vector<4x288xf32>
    %8 = arith.addf %3, %7 : vector<4x288xf32>
    %cst_4 = arith.constant 1.000000e+00 : f32
    %9 = vector.broadcast %cst_4 : f32 to vector<4x288xf32>
    %10 = arith.mulf %9, %5 : vector<4x288xf32>
    %11 = arith.addf %4, %10 : vector<4x288xf32>
    %12 = vector.extract_strided_slice %2 {offsets = [0, 1], sizes = [4, 288], strides = [1, 1]} : vector<4x384xf32> to vector<4x288xf32>
    %cst_5 = arith.constant 2.000000e+00 : f32
    %13 = vector.broadcast %cst_5 : f32 to vector<4x288xf32>
    %14 = arith.mulf %13, %12 : vector<4x288xf32>
    %15 = arith.addf %11, %14 : vector<4x288xf32>
    %16 = vector.extract_strided_slice %2 {offsets = [0, 2], sizes = [4, 288], strides = [1, 1]} : vector<4x384xf32> to vector<4x288xf32>
    %cst_6 = arith.constant -1.000000e+00 : f32
    %17 = vector.broadcast %cst_6 : f32 to vector<4x288xf32>
    %18 = arith.mulf %17, %16 : vector<4x288xf32>
    %19 = arith.addf %8, %18 : vector<4x288xf32>
    %cst_7 = arith.constant 1.000000e+00 : f32
    %20 = vector.broadcast %cst_7 : f32 to vector<4x288xf32>
    %21 = arith.mulf %20, %16 : vector<4x288xf32>
    %22 = arith.addf %15, %21 : vector<4x288xf32>
    %23 = vector.extract_strided_slice %2 {offsets = [0, 18], sizes = [4, 288], strides = [1, 1]} : vector<4x384xf32> to vector<4x288xf32>
    %cst_8 = arith.constant 2.000000e+00 : f32
    %24 = vector.broadcast %cst_8 : f32 to vector<4x288xf32>
    %25 = arith.mulf %24, %23 : vector<4x288xf32>
    %26 = arith.addf %19, %25 : vector<4x288xf32>
    %27 = vector.extract_strided_slice %2 {offsets = [0, 20], sizes = [4, 288], strides = [1, 1]} : vector<4x384xf32> to vector<4x288xf32>
    %cst_9 = arith.constant -2.000000e+00 : f32
    %28 = vector.broadcast %cst_9 : f32 to vector<4x288xf32>
    %29 = arith.mulf %28, %27 : vector<4x288xf32>
    %30 = arith.addf %26, %29 : vector<4x288xf32>
    %31 = vector.extract_strided_slice %2 {offsets = [0, 36], sizes = [4, 288], strides = [1, 1]} : vector<4x384xf32> to vector<4x288xf32>
    %cst_10 = arith.constant 1.000000e+00 : f32
    %32 = vector.broadcast %cst_10 : f32 to vector<4x288xf32>
    %33 = arith.mulf %32, %31 : vector<4x288xf32>
    %34 = arith.addf %30, %33 : vector<4x288xf32>
    %cst_11 = arith.constant -1.000000e+00 : f32
    %35 = vector.broadcast %cst_11 : f32 to vector<4x288xf32>
    %36 = arith.mulf %35, %31 : vector<4x288xf32>
    %37 = arith.addf %22, %36 : vector<4x288xf32>
    %38 = vector.extract_strided_slice %2 {offsets = [0, 37], sizes = [4, 288], strides = [1, 1]} : vector<4x384xf32> to vector<4x288xf32>
    %cst_12 = arith.constant -2.000000e+00 : f32
    %39 = vector.broadcast %cst_12 : f32 to vector<4x288xf32>
    %40 = arith.mulf %39, %38 : vector<4x288xf32>
    %41 = arith.addf %37, %40 : vector<4x288xf32>
    %42 = vector.extract_strided_slice %2 {offsets = [0, 38], sizes = [4, 288], strides = [1, 1]} : vector<4x384xf32> to vector<4x288xf32>
    %cst_13 = arith.constant -1.000000e+00 : f32
    %43 = vector.broadcast %cst_13 : f32 to vector<4x288xf32>
    %44 = arith.mulf %43, %42 : vector<4x288xf32>
    %45 = arith.addf %34, %44 : vector<4x288xf32>
    %cst_14 = arith.constant -1.000000e+00 : f32
    %46 = vector.broadcast %cst_14 : f32 to vector<4x288xf32>
    %47 = arith.mulf %46, %42 : vector<4x288xf32>
    %48 = arith.addf %41, %47 : vector<4x288xf32>
    %49 = vector.extract_strided_slice %2 {offsets = [0, 19], sizes = [4, 288], strides = [1, 1]} : vector<4x384xf32> to vector<4x288xf32>
    %50 = tpu.iota {dimensions = array<i32: 1>} : vector<1x288xi32>
    %c18_i32 = arith.constant 18 : i32
    %c0_i32 = arith.constant 0 : i32
    %51 = arith.cmpi eq, %c18_i32, %c0_i32 : i32
    %c1_i32 = arith.constant 1 : i32
    %52 = arith.select %51, %c1_i32, %c18_i32 : i32
    %53 = vector.broadcast %52 : i32 to vector<1x288xi32>
    %54 = arith.remsi %50, %53 : vector<1x288xi32>
    %c0_i32_15 = arith.constant 0 : i32
    %55 = vector.broadcast %c0_i32_15 : i32 to vector<1x288xi32>
    %56 = arith.cmpi ne, %54, %55 : vector<1x288xi32>
    %c0_i32_16 = arith.constant 0 : i32
    %57 = vector.broadcast %c0_i32_16 : i32 to vector<1x288xi32>
    %58 = arith.cmpi slt, %54, %57 : vector<1x288xi32>
    %c0_i32_17 = arith.constant 0 : i32
    %59 = arith.cmpi slt, %52, %c0_i32_17 : i32
    %60 = vector.broadcast %59 : i1 to vector<1x288xi1>
    %61 = vector.broadcast %60 : vector<1x288xi1> to vector<1x288xi1>
    %62 = arith.xori %58, %61 : vector<1x288xi1>
    %63 = arith.andi %62, %56 : vector<1x288xi1>
    %64 = vector.broadcast %52 : i32 to vector<1x288xi32>
    %65 = arith.addi %54, %64 : vector<1x288xi32>
    %66 = arith.select %63, %65, %54 : vector<1x288xi1>, vector<1x288xi32>
    %c16_i32 = arith.constant 16 : i32
    %67 = vector.broadcast %c16_i32 : i32 to vector<1x288xi32>
    %68 = arith.cmpi slt, %66, %67 : vector<1x288xi32>
    %69 = arith.extui %68 : vector<1x288xi1> to vector<1x288xi32>
    %70 = arith.sitofp %69 : vector<1x288xi32> to vector<1x288xf32>
    %71 = vector.broadcast %70 : vector<1x288xf32> to vector<4x288xf32>
    %72 = arith.mulf %49, %71 : vector<4x288xf32>
    %cst_18 = arith.constant dense<0.000000e+00> : vector<4xf32>
    %73 = vector.multi_reduction <add>, %72, %cst_18 [1] : vector<4x288xf32> to vector<4xf32>
    %74 = vector.shape_cast %73 : vector<4xf32> to vector<4x1xf32>
    %cst_19 = arith.constant 3.906250e-03 : f32
    %75 = vector.broadcast %cst_19 : f32 to vector<4x1xf32>
    %76 = arith.mulf %74, %75 : vector<4x1xf32>
    %77 = arith.mulf %72, %72 : vector<4x288xf32>
    %cst_20 = arith.constant dense<0.000000e+00> : vector<4xf32>
    %78 = vector.multi_reduction <add>, %77, %cst_20 [1] : vector<4x288xf32> to vector<4xf32>
    %79 = vector.shape_cast %78 : vector<4xf32> to vector<4x1xf32>
    %cst_21 = arith.constant 3.906250e-03 : f32
    %80 = vector.broadcast %cst_21 : f32 to vector<4x1xf32>
    %81 = arith.mulf %79, %80 : vector<4x1xf32>
    %82 = arith.mulf %76, %76 : vector<4x1xf32>
    %83 = arith.subf %81, %82 : vector<4x1xf32>
    %84 = vector.broadcast %76 : vector<4x1xf32> to vector<4x288xf32>
    %85 = arith.subf %49, %84 : vector<4x288xf32>
    %cst_22 = arith.constant 9.99999974E-6 : f32
    %86 = vector.broadcast %cst_22 : f32 to vector<4x1xf32>
    %87 = arith.addf %83, %86 : vector<4x1xf32>
    %88 = math.rsqrt %87 : vector<4x1xf32>
    %89 = vector.broadcast %88 : vector<4x1xf32> to vector<4x288xf32>
    %90 = arith.mulf %85, %89 : vector<4x288xf32>
    %91 = vector.broadcast %70 : vector<1x288xf32> to vector<4x288xf32>
    %92 = arith.mulf %90, %91 : vector<4x288xf32>
    %93 = math.sin %45 : vector<4x288xf32>
    %94 = vector.broadcast %70 : vector<1x288xf32> to vector<4x288xf32>
    %95 = arith.mulf %93, %94 : vector<4x288xf32>
    %cst_23 = arith.constant dense<0.000000e+00> : vector<4xf32>
    %96 = vector.multi_reduction <add>, %95, %cst_23 [1] : vector<4x288xf32> to vector<4xf32>
    %97 = vector.shape_cast %96 : vector<4xf32> to vector<4x1xf32>
    %cst_24 = arith.constant 3.906250e-03 : f32
    %98 = vector.broadcast %cst_24 : f32 to vector<4x1xf32>
    %99 = arith.mulf %97, %98 : vector<4x1xf32>
    %100 = arith.mulf %95, %95 : vector<4x288xf32>
    %cst_25 = arith.constant dense<0.000000e+00> : vector<4xf32>
    %101 = vector.multi_reduction <add>, %100, %cst_25 [1] : vector<4x288xf32> to vector<4xf32>
    %102 = vector.shape_cast %101 : vector<4xf32> to vector<4x1xf32>
    %cst_26 = arith.constant 3.906250e-03 : f32
    %103 = vector.broadcast %cst_26 : f32 to vector<4x1xf32>
    %104 = arith.mulf %102, %103 : vector<4x1xf32>
    %105 = arith.mulf %99, %99 : vector<4x1xf32>
    %106 = arith.subf %104, %105 : vector<4x1xf32>
    %107 = vector.broadcast %99 : vector<4x1xf32> to vector<4x288xf32>
    %108 = arith.subf %93, %107 : vector<4x288xf32>
    %cst_27 = arith.constant 9.99999974E-6 : f32
    %109 = vector.broadcast %cst_27 : f32 to vector<4x1xf32>
    %110 = arith.addf %106, %109 : vector<4x1xf32>
    %111 = math.rsqrt %110 : vector<4x1xf32>
    %112 = vector.broadcast %111 : vector<4x1xf32> to vector<4x288xf32>
    %113 = arith.mulf %108, %112 : vector<4x288xf32>
    %114 = vector.broadcast %70 : vector<1x288xf32> to vector<4x288xf32>
    %115 = arith.mulf %113, %114 : vector<4x288xf32>
    %116 = math.sin %48 : vector<4x288xf32>
    %117 = vector.broadcast %70 : vector<1x288xf32> to vector<4x288xf32>
    %118 = arith.mulf %116, %117 : vector<4x288xf32>
    %cst_28 = arith.constant dense<0.000000e+00> : vector<4xf32>
    %119 = vector.multi_reduction <add>, %118, %cst_28 [1] : vector<4x288xf32> to vector<4xf32>
    %120 = vector.shape_cast %119 : vector<4xf32> to vector<4x1xf32>
    %cst_29 = arith.constant 3.906250e-03 : f32
    %121 = vector.broadcast %cst_29 : f32 to vector<4x1xf32>
    %122 = arith.mulf %120, %121 : vector<4x1xf32>
    %123 = arith.mulf %118, %118 : vector<4x288xf32>
    %cst_30 = arith.constant dense<0.000000e+00> : vector<4xf32>
    %124 = vector.multi_reduction <add>, %123, %cst_30 [1] : vector<4x288xf32> to vector<4xf32>
    %125 = vector.shape_cast %124 : vector<4xf32> to vector<4x1xf32>
    %cst_31 = arith.constant 3.906250e-03 : f32
    %126 = vector.broadcast %cst_31 : f32 to vector<4x1xf32>
    %127 = arith.mulf %125, %126 : vector<4x1xf32>
    %128 = arith.mulf %122, %122 : vector<4x1xf32>
    %129 = arith.subf %127, %128 : vector<4x1xf32>
    %130 = vector.broadcast %122 : vector<4x1xf32> to vector<4x288xf32>
    %131 = arith.subf %116, %130 : vector<4x288xf32>
    %cst_32 = arith.constant 9.99999974E-6 : f32
    %132 = vector.broadcast %cst_32 : f32 to vector<4x1xf32>
    %133 = arith.addf %129, %132 : vector<4x1xf32>
    %134 = math.rsqrt %133 : vector<4x1xf32>
    %135 = vector.broadcast %134 : vector<4x1xf32> to vector<4x288xf32>
    %136 = arith.mulf %131, %135 : vector<4x288xf32>
    %137 = vector.broadcast %70 : vector<1x288xf32> to vector<4x288xf32>
    %138 = arith.mulf %136, %137 : vector<4x288xf32>
    %139 = tpu.concatenate %92, %115, %138 in 0 : vector<4x288xf32>, vector<4x288xf32>, vector<4x288xf32> -> vector<12x288xf32>
    %c0_33 = arith.constant 0 : index
    %c0_34 = arith.constant 0 : index
    %c0_35 = arith.constant 0 : index
    %140 = vector.load %arg2[%c0_33, %c0_34, %c0_35] : memref<1x1x32xf32, #tpu.memory_space<vmem>>, vector<1x1x32xf32>
    %141 = vector.shape_cast %140 : vector<1x1x32xf32> to vector<1x32xf32>
    %c0_36 = arith.constant 0 : index
    %c0_37 = arith.constant 0 : index
    %142 = vector.load %arg3[%c0_36, %c0_37] : memref<4x32xf32, #tpu.memory_space<vmem>>, vector<4x32xf32>
    %143 = vector.broadcast %141 : vector<1x32xf32> to vector<4x32xf32>
    %144 = arith.mulf %142, %143 : vector<4x32xf32>
    %cst_38 = arith.constant dense<0.000000e+00> : vector<4xf32>
    %145 = vector.multi_reduction <add>, %144, %cst_38 [1] : vector<4x32xf32> to vector<4xf32>
    %146 = vector.shape_cast %145 : vector<4xf32> to vector<4x1xf32>
    %cst_39 = arith.constant 1.000000e+00 : f32
    %147 = vector.broadcast %cst_39 : f32 to vector<4x1xf32>
    %148 = arith.addf %147, %146 : vector<4x1xf32>
    %c0_40 = arith.constant 0 : index
    %c0_41 = arith.constant 0 : index
    %149 = vector.load %arg4[%c0_40, %c0_41] : memref<4x1xf32, #tpu.memory_space<vmem>>, vector<4x1xf32>
    %150 = arith.addf %148, %149 : vector<4x1xf32>
    %c0_42 = arith.constant 0 : index
    %c0_43 = arith.constant 0 : index
    %151 = vector.load %arg5[%c0_42, %c0_43] : memref<4x32xf32, #tpu.memory_space<vmem>>, vector<4x32xf32>
    %152 = vector.broadcast %141 : vector<1x32xf32> to vector<4x32xf32>
    %153 = arith.mulf %151, %152 : vector<4x32xf32>
    %cst_44 = arith.constant dense<0.000000e+00> : vector<4xf32>
    %154 = vector.multi_reduction <add>, %153, %cst_44 [1] : vector<4x32xf32> to vector<4xf32>
    %155 = vector.shape_cast %154 : vector<4xf32> to vector<4x1xf32>
    %c0_45 = arith.constant 0 : index
    %c0_46 = arith.constant 0 : index
    %156 = vector.load %arg6[%c0_45, %c0_46] : memref<4x1xf32, #tpu.memory_space<vmem>>, vector<4x1xf32>
    %157 = arith.addf %155, %156 : vector<4x1xf32>
    %cst_47 = arith.constant 0.000000e+00 : f32
    %158 = vector.broadcast %cst_47 : f32 to vector<12x19xf32>
    %159 = tpu.concatenate %158, %139, %158 in 1 : vector<12x19xf32>, vector<12x288xf32>, vector<12x19xf32> -> vector<12x326xf32>
    %160 = vector.extract_strided_slice %159 {offsets = [0, 0], sizes = [12, 288], strides = [1, 1]} : vector<12x326xf32> to vector<12x288xf32>
    %161 = vector.extract_strided_slice %159 {offsets = [0, 1], sizes = [12, 288], strides = [1, 1]} : vector<12x326xf32> to vector<12x288xf32>
    %162 = vector.extract_strided_slice %159 {offsets = [0, 2], sizes = [12, 288], strides = [1, 1]} : vector<12x326xf32> to vector<12x288xf32>
    %163 = vector.extract_strided_slice %159 {offsets = [0, 18], sizes = [12, 288], strides = [1, 1]} : vector<12x326xf32> to vector<12x288xf32>
    %164 = vector.extract_strided_slice %159 {offsets = [0, 19], sizes = [12, 288], strides = [1, 1]} : vector<12x326xf32> to vector<12x288xf32>
    %165 = vector.extract_strided_slice %159 {offsets = [0, 20], sizes = [12, 288], strides = [1, 1]} : vector<12x326xf32> to vector<12x288xf32>
    %166 = vector.extract_strided_slice %159 {offsets = [0, 36], sizes = [12, 288], strides = [1, 1]} : vector<12x326xf32> to vector<12x288xf32>
    %167 = vector.extract_strided_slice %159 {offsets = [0, 37], sizes = [12, 288], strides = [1, 1]} : vector<12x326xf32> to vector<12x288xf32>
    %168 = vector.extract_strided_slice %159 {offsets = [0, 38], sizes = [12, 288], strides = [1, 1]} : vector<12x326xf32> to vector<12x288xf32>
    %169 = tpu.concatenate %160, %161, %162, %163, %164, %165, %166, %167, %168 in 0 : vector<12x288xf32>, vector<12x288xf32>, vector<12x288xf32>, vector<12x288xf32>, vector<12x288xf32>, vector<12x288xf32>, vector<12x288xf32>, vector<12x288xf32>, vector<12x288xf32> -> vector<108x288xf32>
    %170 = arith.truncf %169 : vector<108x288xf32> to vector<108x288xbf16>
    %c0_48 = arith.constant 0 : index
    %c0_49 = arith.constant 0 : index
    %171 = vector.load %arg7[%c0_48, %c0_49] : memref<4x108xbf16, #tpu.memory_space<vmem>>, vector<4x108xbf16>
    %cst_50 = arith.constant dense<0.000000e+00> : vector<4x288xf32>
    %172 = tpu.matmul %171, %170, %cst_50 {dimension_numbers = #tpu.dot_dimension_numbers<[1], [0], [0], [1], [0, 0, 1, 1], [], []>} : vector<4x108xbf16>, vector<108x288xbf16>, vector<4x288xf32> -> vector<4x288xf32>
    %c0_51 = arith.constant 0 : index
    %c0_52 = arith.constant 0 : index
    %173 = vector.load %arg8[%c0_51, %c0_52] : memref<4x1xf32, #tpu.memory_space<vmem>>, vector<4x1xf32>
    %174 = vector.broadcast %173 : vector<4x1xf32> to vector<4x288xf32>
    %175 = arith.addf %172, %174 : vector<4x288xf32>
    %176 = vector.broadcast %150 : vector<4x1xf32> to vector<4x288xf32>
    %177 = arith.mulf %175, %176 : vector<4x288xf32>
    %178 = vector.broadcast %157 : vector<4x1xf32> to vector<4x288xf32>
    %179 = arith.addf %177, %178 : vector<4x288xf32>
    %cst_53 = arith.constant 0.000000e+00 : f32
    %180 = vector.broadcast %cst_53 : f32 to vector<4x288xf32>
    %181 = arith.cmpf oge, %179, %180 : vector<4x288xf32>
    %cst_54 = arith.constant 2.000000e-01 : f32
    %182 = vector.broadcast %cst_54 : f32 to vector<4x288xf32>
    %183 = arith.mulf %182, %179 : vector<4x288xf32>
    %184 = arith.select %181, %179, %183 : vector<4x288xi1>, vector<4x288xf32>
    %185 = vector.broadcast %70 : vector<1x288xf32> to vector<4x288xf32>
    %186 = arith.mulf %184, %185 : vector<4x288xf32>
    %cst_55 = arith.constant 0.000000e+00 : f32
    %187 = vector.broadcast %cst_55 : f32 to vector<4x19xf32>
    %188 = tpu.concatenate %187, %186, %187 in 1 : vector<4x19xf32>, vector<4x288xf32>, vector<4x19xf32> -> vector<4x326xf32>
    %189 = vector.extract_strided_slice %188 {offsets = [0, 0], sizes = [4, 288], strides = [1, 1]} : vector<4x326xf32> to vector<4x288xf32>
    %190 = vector.extract_strided_slice %188 {offsets = [0, 1], sizes = [4, 288], strides = [1, 1]} : vector<4x326xf32> to vector<4x288xf32>
    %191 = vector.extract_strided_slice %188 {offsets = [0, 2], sizes = [4, 288], strides = [1, 1]} : vector<4x326xf32> to vector<4x288xf32>
    %192 = vector.extract_strided_slice %188 {offsets = [0, 18], sizes = [4, 288], strides = [1, 1]} : vector<4x326xf32> to vector<4x288xf32>
    %193 = vector.extract_strided_slice %188 {offsets = [0, 19], sizes = [4, 288], strides = [1, 1]} : vector<4x326xf32> to vector<4x288xf32>
    %194 = vector.extract_strided_slice %188 {offsets = [0, 20], sizes = [4, 288], strides = [1, 1]} : vector<4x326xf32> to vector<4x288xf32>
    %195 = vector.extract_strided_slice %188 {offsets = [0, 36], sizes = [4, 288], strides = [1, 1]} : vector<4x326xf32> to vector<4x288xf32>
    %196 = vector.extract_strided_slice %188 {offsets = [0, 37], sizes = [4, 288], strides = [1, 1]} : vector<4x326xf32> to vector<4x288xf32>
    %197 = vector.extract_strided_slice %188 {offsets = [0, 38], sizes = [4, 288], strides = [1, 1]} : vector<4x326xf32> to vector<4x288xf32>
    %198 = tpu.concatenate %189, %190, %191, %192, %193, %194, %195, %196, %197 in 0 : vector<4x288xf32>, vector<4x288xf32>, vector<4x288xf32>, vector<4x288xf32>, vector<4x288xf32>, vector<4x288xf32>, vector<4x288xf32>, vector<4x288xf32>, vector<4x288xf32> -> vector<36x288xf32>
    %199 = tpu.concatenate %198, %139 in 0 : vector<36x288xf32>, vector<12x288xf32> -> vector<48x288xf32>
    %200 = arith.truncf %199 : vector<48x288xf32> to vector<48x288xbf16>
    %c0_56 = arith.constant 0 : index
    %c0_57 = arith.constant 0 : index
    %201 = vector.load %arg9[%c0_56, %c0_57] : memref<8x48xbf16, #tpu.memory_space<vmem>>, vector<8x48xbf16>
    %cst_58 = arith.constant dense<0.000000e+00> : vector<8x288xf32>
    %202 = tpu.matmul %201, %200, %cst_58 {dimension_numbers = #tpu.dot_dimension_numbers<[1], [0], [0], [1], [0, 0, 1, 1], [], []>} : vector<8x48xbf16>, vector<48x288xbf16>, vector<8x288xf32> -> vector<8x288xf32>
    %c0_59 = arith.constant 0 : index
    %c0_60 = arith.constant 0 : index
    %203 = vector.load %arg10[%c0_59, %c0_60] : memref<8x1xf32, #tpu.memory_space<vmem>>, vector<8x1xf32>
    %204 = vector.broadcast %203 : vector<8x1xf32> to vector<8x288xf32>
    %205 = arith.addf %202, %204 : vector<8x288xf32>
    %206 = arith.truncf %205 : vector<8x288xf32> to vector<8x288xbf16>
    %c0_61 = arith.constant 0 : index
    %c0_62 = arith.constant 0 : index
    %207 = vector.load %arg11[%c0_61, %c0_62] : memref<288x128xbf16, #tpu.memory_space<vmem>>, vector<288x128xbf16>
    %cst_63 = arith.constant dense<0.000000e+00> : vector<8x128xf32>
    %208 = tpu.matmul %206, %207, %cst_63 {dimension_numbers = #tpu.dot_dimension_numbers<[1], [0], [0], [1], [0, 0, 1, 1], [], []>} : vector<8x288xbf16>, vector<288x128xbf16>, vector<8x128xf32> -> vector<8x128xf32>
    %cst_64 = arith.constant dense<0.000000e+00> : vector<8xf32>
    %209 = vector.multi_reduction <add>, %208, %cst_64 [1] : vector<8x128xf32> to vector<8xf32>
    %210 = vector.shape_cast %209 : vector<8xf32> to vector<8x1xf32>
    %cst_65 = arith.constant 1.562500e-02 : f32
    %211 = vector.broadcast %cst_65 : f32 to vector<8x1xf32>
    %212 = arith.mulf %210, %211 : vector<8x1xf32>
    %c0_66 = arith.constant 0 : index
    %c0_67 = arith.constant 0 : index
    %c0_68 = arith.constant 0 : index
    %213 = vector.load %arg13[%c0_66, %c0_67, %c0_68] : memref<1x8x1xf32, #tpu.memory_space<vmem>>, vector<1x8x1xf32>
    %214 = vector.shape_cast %213 : vector<1x8x1xf32> to vector<8x1xf32>
    %215 = vector.shape_cast %212 : vector<8x1xf32> to vector<1x8x1xf32>
    tpu.vector_store %arg13[%c0_66, %c0_67, %c0_68], %215 {strides = array<i32>} : memref<1x8x1xf32, #tpu.memory_space<vmem>>, vector<1x8x1xf32>,
    %216 = arith.truncf %208 : vector<8x128xf32> to vector<8x128xbf16>
    %c0_69 = arith.constant 0 : index
    %c0_70 = arith.constant 0 : index
    %c0_71 = arith.constant 0 : index
    %217 = vector.load %arg12[%c0_69, %c0_70, %c0_71] : memref<1x8x128xbf16, #tpu.memory_space<vmem>>, vector<1x8x128xbf16>
    %218 = vector.shape_cast %217 : vector<1x8x128xbf16> to vector<8x128xbf16>
    %219 = vector.shape_cast %216 : vector<8x128xbf16> to vector<1x8x128xbf16>
    tpu.vector_store %arg12[%c0_69, %c0_70, %c0_71], %219 {strides = array<i32>} : memref<1x8x128xbf16, #tpu.memory_space<vmem>>, vector<1x8x128xbf16>,
    return
  }
  func.func @transform_0(%arg0: i32) -> (i32, i32, i32) {
    %c0_i32 = arith.constant 0 : i32
    %c0_i32_0 = arith.constant 0 : i32
    %c0_i32_1 = arith.constant 0 : i32
    return %arg0, %c0_i32, %c0_i32_0 : i32, i32, i32
  }
  func.func @transform_1(%arg0: i32) -> (i32, i32, i32) {
    %c0_i32 = arith.constant 0 : i32
    %c0_i32_0 = arith.constant 0 : i32
    %c0_i32_1 = arith.constant 0 : i32
    return %arg0, %c0_i32, %c0_i32_0 : i32, i32, i32
  }
  func.func @transform_2(%arg0: i32) -> (i32, i32) {
    %c0_i32 = arith.constant 0 : i32
    %c0_i32_0 = arith.constant 0 : i32
    %c0_i32_1 = arith.constant 0 : i32
    return %c0_i32, %c0_i32_0 : i32, i32
  }
  func.func @transform_3(%arg0: i32) -> (i32, i32) {
    %c0_i32 = arith.constant 0 : i32
    %c0_i32_0 = arith.constant 0 : i32
    %c0_i32_1 = arith.constant 0 : i32
    return %c0_i32, %c0_i32_0 : i32, i32
  }
  func.func @transform_4(%arg0: i32) -> (i32, i32) {
    %c0_i32 = arith.constant 0 : i32
    %c0_i32_0 = arith.constant 0 : i32
    %c0_i32_1 = arith.constant 0 : i32
    return %c0_i32, %c0_i32_0 : i32, i32
  }
  func.func @transform_5(%arg0: i32) -> (i32, i32) {
    %c0_i32 = arith.constant 0 : i32
    %c0_i32_0 = arith.constant 0 : i32
    %c0_i32_1 = arith.constant 0 : i32
    return %c0_i32, %c0_i32_0 : i32, i32
  }
  func.func @transform_6(%arg0: i32) -> (i32, i32) {
    %c0_i32 = arith.constant 0 : i32
    %c0_i32_0 = arith.constant 0 : i32
    %c0_i32_1 = arith.constant 0 : i32
    return %c0_i32, %c0_i32_0 : i32, i32
  }
  func.func @transform_7(%arg0: i32) -> (i32, i32) {
    %c0_i32 = arith.constant 0 : i32
    %c0_i32_0 = arith.constant 0 : i32
    %c0_i32_1 = arith.constant 0 : i32
    return %c0_i32, %c0_i32_0 : i32, i32
  }
  func.func @transform_8(%arg0: i32) -> (i32, i32) {
    %c0_i32 = arith.constant 0 : i32
    %c0_i32_0 = arith.constant 0 : i32
    %c0_i32_1 = arith.constant 0 : i32
    return %c0_i32, %c0_i32_0 : i32, i32
  }
  func.func @transform_9(%arg0: i32) -> (i32, i32) {
    %c0_i32 = arith.constant 0 : i32
    %c0_i32_0 = arith.constant 0 : i32
    %c0_i32_1 = arith.constant 0 : i32
    return %c0_i32, %c0_i32_0 : i32, i32
  }
  func.func @transform_10(%arg0: i32) -> (i32, i32) {
    %c0_i32 = arith.constant 0 : i32
    %c0_i32_0 = arith.constant 0 : i32
    %c0_i32_1 = arith.constant 0 : i32
    return %c0_i32, %c0_i32_0 : i32, i32
  }
  func.func @transform_11(%arg0: i32) -> (i32, i32, i32) {
    %c0_i32 = arith.constant 0 : i32
    %c0_i32_0 = arith.constant 0 : i32
    %c0_i32_1 = arith.constant 0 : i32
    return %arg0, %c0_i32, %c0_i32_0 : i32, i32, i32
  }
  func.func @transform_12(%arg0: i32) -> (i32, i32, i32) {
    %c0_i32 = arith.constant 0 : i32
    %c0_i32_0 = arith.constant 0 : i32
    %c0_i32_1 = arith.constant 0 : i32
    return %arg0, %c0_i32, %c0_i32_0 : i32, i32, i32
  }
}

module attributes {stable_mosaic.version = 11 : i64} {
  func.func @_layer_kernel(%arg0: i32, %arg1: memref<1x8x128xbf16, #tpu.memory_space<vmem>>, %arg2: memref<1x1x32xf32, #tpu.memory_space<vmem>>, %arg3: memref<8x32xf32, #tpu.memory_space<vmem>>, %arg4: memref<8x1xf32, #tpu.memory_space<vmem>>, %arg5: memref<8x32xf32, #tpu.memory_space<vmem>>, %arg6: memref<8x1xf32, #tpu.memory_space<vmem>>, %arg7: memref<8x216xbf16, #tpu.memory_space<vmem>>, %arg8: memref<8x1xf32, #tpu.memory_space<vmem>>, %arg9: memref<12x96xbf16, #tpu.memory_space<vmem>>, %arg10: memref<12x1xf32, #tpu.memory_space<vmem>>, %arg11: memref<80x128xbf16, #tpu.memory_space<vmem>>, %arg12: memref<1x12x128xbf16, #tpu.memory_space<vmem>>, %arg13: memref<1x12x1xf32, #tpu.memory_space<vmem>>) attributes {dimension_semantics = [#tpu.dimension_semantics<parallel>], iteration_bounds = array<i64: 2>, scalar_prefetch = 0 : i64, scratch_operands = 0 : i64, tpu.core_type = #tpu.core_type<tc>, window_params = [{transform_indices = @transform_0, window_bounds = array<i64: 1, 8, 128>}, {transform_indices = @transform_1, window_bounds = array<i64: 1, 1, 32>}, {pipeline_mode = #tpu.pipeline_mode<synchronous>, transform_indices = @transform_2, window_bounds = array<i64: 8, 32>}, {pipeline_mode = #tpu.pipeline_mode<synchronous>, transform_indices = @transform_3, window_bounds = array<i64: 8, 1>}, {pipeline_mode = #tpu.pipeline_mode<synchronous>, transform_indices = @transform_4, window_bounds = array<i64: 8, 32>}, {pipeline_mode = #tpu.pipeline_mode<synchronous>, transform_indices = @transform_5, window_bounds = array<i64: 8, 1>}, {pipeline_mode = #tpu.pipeline_mode<synchronous>, transform_indices = @transform_6, window_bounds = array<i64: 8, 216>}, {pipeline_mode = #tpu.pipeline_mode<synchronous>, transform_indices = @transform_7, window_bounds = array<i64: 8, 1>}, {pipeline_mode = #tpu.pipeline_mode<synchronous>, transform_indices = @transform_8, window_bounds = array<i64: 12, 96>}, {pipeline_mode = #tpu.pipeline_mode<synchronous>, transform_indices = @transform_9, window_bounds = array<i64: 12, 1>}, {pipeline_mode = #tpu.pipeline_mode<synchronous>, transform_indices = @transform_10, window_bounds = array<i64: 80, 128>}, {transform_indices = @transform_11, window_bounds = array<i64: 1, 12, 128>}, {transform_indices = @transform_12, window_bounds = array<i64: 1, 12, 1>}]} {
    %c0 = arith.constant 0 : index
    %c0_0 = arith.constant 0 : index
    %c0_1 = arith.constant 0 : index
    %0 = vector.load %arg1[%c0, %c0_0, %c0_1] : memref<1x8x128xbf16, #tpu.memory_space<vmem>>, vector<1x8x128xbf16>
    %1 = vector.shape_cast %0 : vector<1x8x128xbf16> to vector<8x128xbf16>
    %2 = arith.extf %1 : vector<8x128xbf16> to vector<8x128xf32>
    %cst = arith.constant 0.000000e+00 : f32
    %3 = vector.broadcast %cst : f32 to vector<8x80xf32>
    %cst_2 = arith.constant 0.000000e+00 : f32
    %4 = vector.broadcast %cst_2 : f32 to vector<8x80xf32>
    %5 = vector.extract_strided_slice %2 {offsets = [0, 0], sizes = [8, 80], strides = [1, 1]} : vector<8x128xf32> to vector<8x80xf32>
    %cst_3 = arith.constant 1.000000e+00 : f32
    %6 = vector.broadcast %cst_3 : f32 to vector<8x80xf32>
    %7 = arith.mulf %6, %5 : vector<8x80xf32>
    %8 = arith.addf %3, %7 : vector<8x80xf32>
    %cst_4 = arith.constant 1.000000e+00 : f32
    %9 = vector.broadcast %cst_4 : f32 to vector<8x80xf32>
    %10 = arith.mulf %9, %5 : vector<8x80xf32>
    %11 = arith.addf %4, %10 : vector<8x80xf32>
    %12 = vector.extract_strided_slice %2 {offsets = [0, 1], sizes = [8, 80], strides = [1, 1]} : vector<8x128xf32> to vector<8x80xf32>
    %cst_5 = arith.constant 2.000000e+00 : f32
    %13 = vector.broadcast %cst_5 : f32 to vector<8x80xf32>
    %14 = arith.mulf %13, %12 : vector<8x80xf32>
    %15 = arith.addf %11, %14 : vector<8x80xf32>
    %16 = vector.extract_strided_slice %2 {offsets = [0, 2], sizes = [8, 80], strides = [1, 1]} : vector<8x128xf32> to vector<8x80xf32>
    %cst_6 = arith.constant -1.000000e+00 : f32
    %17 = vector.broadcast %cst_6 : f32 to vector<8x80xf32>
    %18 = arith.mulf %17, %16 : vector<8x80xf32>
    %19 = arith.addf %8, %18 : vector<8x80xf32>
    %cst_7 = arith.constant 1.000000e+00 : f32
    %20 = vector.broadcast %cst_7 : f32 to vector<8x80xf32>
    %21 = arith.mulf %20, %16 : vector<8x80xf32>
    %22 = arith.addf %15, %21 : vector<8x80xf32>
    %23 = vector.extract_strided_slice %2 {offsets = [0, 10], sizes = [8, 80], strides = [1, 1]} : vector<8x128xf32> to vector<8x80xf32>
    %cst_8 = arith.constant 2.000000e+00 : f32
    %24 = vector.broadcast %cst_8 : f32 to vector<8x80xf32>
    %25 = arith.mulf %24, %23 : vector<8x80xf32>
    %26 = arith.addf %19, %25 : vector<8x80xf32>
    %27 = vector.extract_strided_slice %2 {offsets = [0, 12], sizes = [8, 80], strides = [1, 1]} : vector<8x128xf32> to vector<8x80xf32>
    %cst_9 = arith.constant -2.000000e+00 : f32
    %28 = vector.broadcast %cst_9 : f32 to vector<8x80xf32>
    %29 = arith.mulf %28, %27 : vector<8x80xf32>
    %30 = arith.addf %26, %29 : vector<8x80xf32>
    %31 = vector.extract_strided_slice %2 {offsets = [0, 20], sizes = [8, 80], strides = [1, 1]} : vector<8x128xf32> to vector<8x80xf32>
    %cst_10 = arith.constant 1.000000e+00 : f32
    %32 = vector.broadcast %cst_10 : f32 to vector<8x80xf32>
    %33 = arith.mulf %32, %31 : vector<8x80xf32>
    %34 = arith.addf %30, %33 : vector<8x80xf32>
    %cst_11 = arith.constant -1.000000e+00 : f32
    %35 = vector.broadcast %cst_11 : f32 to vector<8x80xf32>
    %36 = arith.mulf %35, %31 : vector<8x80xf32>
    %37 = arith.addf %22, %36 : vector<8x80xf32>
    %38 = vector.extract_strided_slice %2 {offsets = [0, 21], sizes = [8, 80], strides = [1, 1]} : vector<8x128xf32> to vector<8x80xf32>
    %cst_12 = arith.constant -2.000000e+00 : f32
    %39 = vector.broadcast %cst_12 : f32 to vector<8x80xf32>
    %40 = arith.mulf %39, %38 : vector<8x80xf32>
    %41 = arith.addf %37, %40 : vector<8x80xf32>
    %42 = vector.extract_strided_slice %2 {offsets = [0, 22], sizes = [8, 80], strides = [1, 1]} : vector<8x128xf32> to vector<8x80xf32>
    %cst_13 = arith.constant -1.000000e+00 : f32
    %43 = vector.broadcast %cst_13 : f32 to vector<8x80xf32>
    %44 = arith.mulf %43, %42 : vector<8x80xf32>
    %45 = arith.addf %34, %44 : vector<8x80xf32>
    %cst_14 = arith.constant -1.000000e+00 : f32
    %46 = vector.broadcast %cst_14 : f32 to vector<8x80xf32>
    %47 = arith.mulf %46, %42 : vector<8x80xf32>
    %48 = arith.addf %41, %47 : vector<8x80xf32>
    %49 = vector.extract_strided_slice %2 {offsets = [0, 11], sizes = [8, 80], strides = [1, 1]} : vector<8x128xf32> to vector<8x80xf32>
    %50 = tpu.iota {dimensions = array<i32: 1>} : vector<1x80xi32>
    %c10_i32 = arith.constant 10 : i32
    %c0_i32 = arith.constant 0 : i32
    %51 = arith.cmpi eq, %c10_i32, %c0_i32 : i32
    %c1_i32 = arith.constant 1 : i32
    %52 = arith.select %51, %c1_i32, %c10_i32 : i32
    %53 = vector.broadcast %52 : i32 to vector<1x80xi32>
    %54 = arith.remsi %50, %53 : vector<1x80xi32>
    %c0_i32_15 = arith.constant 0 : i32
    %55 = vector.broadcast %c0_i32_15 : i32 to vector<1x80xi32>
    %56 = arith.cmpi ne, %54, %55 : vector<1x80xi32>
    %c0_i32_16 = arith.constant 0 : i32
    %57 = vector.broadcast %c0_i32_16 : i32 to vector<1x80xi32>
    %58 = arith.cmpi slt, %54, %57 : vector<1x80xi32>
    %c0_i32_17 = arith.constant 0 : i32
    %59 = arith.cmpi slt, %52, %c0_i32_17 : i32
    %60 = vector.broadcast %59 : i1 to vector<1x80xi1>
    %61 = vector.broadcast %60 : vector<1x80xi1> to vector<1x80xi1>
    %62 = arith.xori %58, %61 : vector<1x80xi1>
    %63 = arith.andi %62, %56 : vector<1x80xi1>
    %64 = vector.broadcast %52 : i32 to vector<1x80xi32>
    %65 = arith.addi %54, %64 : vector<1x80xi32>
    %66 = arith.select %63, %65, %54 : vector<1x80xi1>, vector<1x80xi32>
    %c8_i32 = arith.constant 8 : i32
    %67 = vector.broadcast %c8_i32 : i32 to vector<1x80xi32>
    %68 = arith.cmpi slt, %66, %67 : vector<1x80xi32>
    %69 = arith.extui %68 : vector<1x80xi1> to vector<1x80xi32>
    %70 = arith.sitofp %69 : vector<1x80xi32> to vector<1x80xf32>
    %71 = vector.broadcast %70 : vector<1x80xf32> to vector<8x80xf32>
    %72 = arith.mulf %49, %71 : vector<8x80xf32>
    %cst_18 = arith.constant dense<0.000000e+00> : vector<8xf32>
    %73 = vector.multi_reduction <add>, %72, %cst_18 [1] : vector<8x80xf32> to vector<8xf32>
    %74 = vector.shape_cast %73 : vector<8xf32> to vector<8x1xf32>
    %cst_19 = arith.constant 1.562500e-02 : f32
    %75 = vector.broadcast %cst_19 : f32 to vector<8x1xf32>
    %76 = arith.mulf %74, %75 : vector<8x1xf32>
    %77 = arith.mulf %72, %72 : vector<8x80xf32>
    %cst_20 = arith.constant dense<0.000000e+00> : vector<8xf32>
    %78 = vector.multi_reduction <add>, %77, %cst_20 [1] : vector<8x80xf32> to vector<8xf32>
    %79 = vector.shape_cast %78 : vector<8xf32> to vector<8x1xf32>
    %cst_21 = arith.constant 1.562500e-02 : f32
    %80 = vector.broadcast %cst_21 : f32 to vector<8x1xf32>
    %81 = arith.mulf %79, %80 : vector<8x1xf32>
    %82 = arith.mulf %76, %76 : vector<8x1xf32>
    %83 = arith.subf %81, %82 : vector<8x1xf32>
    %84 = vector.broadcast %76 : vector<8x1xf32> to vector<8x80xf32>
    %85 = arith.subf %49, %84 : vector<8x80xf32>
    %cst_22 = arith.constant 9.99999974E-6 : f32
    %86 = vector.broadcast %cst_22 : f32 to vector<8x1xf32>
    %87 = arith.addf %83, %86 : vector<8x1xf32>
    %88 = math.rsqrt %87 : vector<8x1xf32>
    %89 = vector.broadcast %88 : vector<8x1xf32> to vector<8x80xf32>
    %90 = arith.mulf %85, %89 : vector<8x80xf32>
    %91 = vector.broadcast %70 : vector<1x80xf32> to vector<8x80xf32>
    %92 = arith.mulf %90, %91 : vector<8x80xf32>
    %93 = math.sin %45 : vector<8x80xf32>
    %94 = vector.broadcast %70 : vector<1x80xf32> to vector<8x80xf32>
    %95 = arith.mulf %93, %94 : vector<8x80xf32>
    %cst_23 = arith.constant dense<0.000000e+00> : vector<8xf32>
    %96 = vector.multi_reduction <add>, %95, %cst_23 [1] : vector<8x80xf32> to vector<8xf32>
    %97 = vector.shape_cast %96 : vector<8xf32> to vector<8x1xf32>
    %cst_24 = arith.constant 1.562500e-02 : f32
    %98 = vector.broadcast %cst_24 : f32 to vector<8x1xf32>
    %99 = arith.mulf %97, %98 : vector<8x1xf32>
    %100 = arith.mulf %95, %95 : vector<8x80xf32>
    %cst_25 = arith.constant dense<0.000000e+00> : vector<8xf32>
    %101 = vector.multi_reduction <add>, %100, %cst_25 [1] : vector<8x80xf32> to vector<8xf32>
    %102 = vector.shape_cast %101 : vector<8xf32> to vector<8x1xf32>
    %cst_26 = arith.constant 1.562500e-02 : f32
    %103 = vector.broadcast %cst_26 : f32 to vector<8x1xf32>
    %104 = arith.mulf %102, %103 : vector<8x1xf32>
    %105 = arith.mulf %99, %99 : vector<8x1xf32>
    %106 = arith.subf %104, %105 : vector<8x1xf32>
    %107 = vector.broadcast %99 : vector<8x1xf32> to vector<8x80xf32>
    %108 = arith.subf %93, %107 : vector<8x80xf32>
    %cst_27 = arith.constant 9.99999974E-6 : f32
    %109 = vector.broadcast %cst_27 : f32 to vector<8x1xf32>
    %110 = arith.addf %106, %109 : vector<8x1xf32>
    %111 = math.rsqrt %110 : vector<8x1xf32>
    %112 = vector.broadcast %111 : vector<8x1xf32> to vector<8x80xf32>
    %113 = arith.mulf %108, %112 : vector<8x80xf32>
    %114 = vector.broadcast %70 : vector<1x80xf32> to vector<8x80xf32>
    %115 = arith.mulf %113, %114 : vector<8x80xf32>
    %116 = math.sin %48 : vector<8x80xf32>
    %117 = vector.broadcast %70 : vector<1x80xf32> to vector<8x80xf32>
    %118 = arith.mulf %116, %117 : vector<8x80xf32>
    %cst_28 = arith.constant dense<0.000000e+00> : vector<8xf32>
    %119 = vector.multi_reduction <add>, %118, %cst_28 [1] : vector<8x80xf32> to vector<8xf32>
    %120 = vector.shape_cast %119 : vector<8xf32> to vector<8x1xf32>
    %cst_29 = arith.constant 1.562500e-02 : f32
    %121 = vector.broadcast %cst_29 : f32 to vector<8x1xf32>
    %122 = arith.mulf %120, %121 : vector<8x1xf32>
    %123 = arith.mulf %118, %118 : vector<8x80xf32>
    %cst_30 = arith.constant dense<0.000000e+00> : vector<8xf32>
    %124 = vector.multi_reduction <add>, %123, %cst_30 [1] : vector<8x80xf32> to vector<8xf32>
    %125 = vector.shape_cast %124 : vector<8xf32> to vector<8x1xf32>
    %cst_31 = arith.constant 1.562500e-02 : f32
    %126 = vector.broadcast %cst_31 : f32 to vector<8x1xf32>
    %127 = arith.mulf %125, %126 : vector<8x1xf32>
    %128 = arith.mulf %122, %122 : vector<8x1xf32>
    %129 = arith.subf %127, %128 : vector<8x1xf32>
    %130 = vector.broadcast %122 : vector<8x1xf32> to vector<8x80xf32>
    %131 = arith.subf %116, %130 : vector<8x80xf32>
    %cst_32 = arith.constant 9.99999974E-6 : f32
    %132 = vector.broadcast %cst_32 : f32 to vector<8x1xf32>
    %133 = arith.addf %129, %132 : vector<8x1xf32>
    %134 = math.rsqrt %133 : vector<8x1xf32>
    %135 = vector.broadcast %134 : vector<8x1xf32> to vector<8x80xf32>
    %136 = arith.mulf %131, %135 : vector<8x80xf32>
    %137 = vector.broadcast %70 : vector<1x80xf32> to vector<8x80xf32>
    %138 = arith.mulf %136, %137 : vector<8x80xf32>
    %139 = tpu.concatenate %92, %115, %138 in 0 : vector<8x80xf32>, vector<8x80xf32>, vector<8x80xf32> -> vector<24x80xf32>
    %c0_33 = arith.constant 0 : index
    %c0_34 = arith.constant 0 : index
    %c0_35 = arith.constant 0 : index
    %140 = vector.load %arg2[%c0_33, %c0_34, %c0_35] : memref<1x1x32xf32, #tpu.memory_space<vmem>>, vector<1x1x32xf32>
    %141 = vector.shape_cast %140 : vector<1x1x32xf32> to vector<1x32xf32>
    %c0_36 = arith.constant 0 : index
    %c0_37 = arith.constant 0 : index
    %142 = vector.load %arg3[%c0_36, %c0_37] : memref<8x32xf32, #tpu.memory_space<vmem>>, vector<8x32xf32>
    %143 = vector.broadcast %141 : vector<1x32xf32> to vector<8x32xf32>
    %144 = arith.mulf %142, %143 : vector<8x32xf32>
    %cst_38 = arith.constant dense<0.000000e+00> : vector<8xf32>
    %145 = vector.multi_reduction <add>, %144, %cst_38 [1] : vector<8x32xf32> to vector<8xf32>
    %146 = vector.shape_cast %145 : vector<8xf32> to vector<8x1xf32>
    %cst_39 = arith.constant 1.000000e+00 : f32
    %147 = vector.broadcast %cst_39 : f32 to vector<8x1xf32>
    %148 = arith.addf %147, %146 : vector<8x1xf32>
    %c0_40 = arith.constant 0 : index
    %c0_41 = arith.constant 0 : index
    %149 = vector.load %arg4[%c0_40, %c0_41] : memref<8x1xf32, #tpu.memory_space<vmem>>, vector<8x1xf32>
    %150 = arith.addf %148, %149 : vector<8x1xf32>
    %c0_42 = arith.constant 0 : index
    %c0_43 = arith.constant 0 : index
    %151 = vector.load %arg5[%c0_42, %c0_43] : memref<8x32xf32, #tpu.memory_space<vmem>>, vector<8x32xf32>
    %152 = vector.broadcast %141 : vector<1x32xf32> to vector<8x32xf32>
    %153 = arith.mulf %151, %152 : vector<8x32xf32>
    %cst_44 = arith.constant dense<0.000000e+00> : vector<8xf32>
    %154 = vector.multi_reduction <add>, %153, %cst_44 [1] : vector<8x32xf32> to vector<8xf32>
    %155 = vector.shape_cast %154 : vector<8xf32> to vector<8x1xf32>
    %c0_45 = arith.constant 0 : index
    %c0_46 = arith.constant 0 : index
    %156 = vector.load %arg6[%c0_45, %c0_46] : memref<8x1xf32, #tpu.memory_space<vmem>>, vector<8x1xf32>
    %157 = arith.addf %155, %156 : vector<8x1xf32>
    %cst_47 = arith.constant 0.000000e+00 : f32
    %158 = vector.broadcast %cst_47 : f32 to vector<24x11xf32>
    %159 = tpu.concatenate %158, %139, %158 in 1 : vector<24x11xf32>, vector<24x80xf32>, vector<24x11xf32> -> vector<24x102xf32>
    %160 = vector.extract_strided_slice %159 {offsets = [0, 0], sizes = [24, 80], strides = [1, 1]} : vector<24x102xf32> to vector<24x80xf32>
    %161 = vector.extract_strided_slice %159 {offsets = [0, 1], sizes = [24, 80], strides = [1, 1]} : vector<24x102xf32> to vector<24x80xf32>
    %162 = vector.extract_strided_slice %159 {offsets = [0, 2], sizes = [24, 80], strides = [1, 1]} : vector<24x102xf32> to vector<24x80xf32>
    %163 = vector.extract_strided_slice %159 {offsets = [0, 10], sizes = [24, 80], strides = [1, 1]} : vector<24x102xf32> to vector<24x80xf32>
    %164 = vector.extract_strided_slice %159 {offsets = [0, 11], sizes = [24, 80], strides = [1, 1]} : vector<24x102xf32> to vector<24x80xf32>
    %165 = vector.extract_strided_slice %159 {offsets = [0, 12], sizes = [24, 80], strides = [1, 1]} : vector<24x102xf32> to vector<24x80xf32>
    %166 = vector.extract_strided_slice %159 {offsets = [0, 20], sizes = [24, 80], strides = [1, 1]} : vector<24x102xf32> to vector<24x80xf32>
    %167 = vector.extract_strided_slice %159 {offsets = [0, 21], sizes = [24, 80], strides = [1, 1]} : vector<24x102xf32> to vector<24x80xf32>
    %168 = vector.extract_strided_slice %159 {offsets = [0, 22], sizes = [24, 80], strides = [1, 1]} : vector<24x102xf32> to vector<24x80xf32>
    %169 = tpu.concatenate %160, %161, %162, %163, %164, %165, %166, %167, %168 in 0 : vector<24x80xf32>, vector<24x80xf32>, vector<24x80xf32>, vector<24x80xf32>, vector<24x80xf32>, vector<24x80xf32>, vector<24x80xf32>, vector<24x80xf32>, vector<24x80xf32> -> vector<216x80xf32>
    %170 = arith.truncf %169 : vector<216x80xf32> to vector<216x80xbf16>
    %c0_48 = arith.constant 0 : index
    %c0_49 = arith.constant 0 : index
    %171 = vector.load %arg7[%c0_48, %c0_49] : memref<8x216xbf16, #tpu.memory_space<vmem>>, vector<8x216xbf16>
    %cst_50 = arith.constant dense<0.000000e+00> : vector<8x80xf32>
    %172 = tpu.matmul %171, %170, %cst_50 {dimension_numbers = #tpu.dot_dimension_numbers<[1], [0], [0], [1], [0, 0, 1, 1], [], []>} : vector<8x216xbf16>, vector<216x80xbf16>, vector<8x80xf32> -> vector<8x80xf32>
    %c0_51 = arith.constant 0 : index
    %c0_52 = arith.constant 0 : index
    %173 = vector.load %arg8[%c0_51, %c0_52] : memref<8x1xf32, #tpu.memory_space<vmem>>, vector<8x1xf32>
    %174 = vector.broadcast %173 : vector<8x1xf32> to vector<8x80xf32>
    %175 = arith.addf %172, %174 : vector<8x80xf32>
    %176 = vector.broadcast %150 : vector<8x1xf32> to vector<8x80xf32>
    %177 = arith.mulf %175, %176 : vector<8x80xf32>
    %178 = vector.broadcast %157 : vector<8x1xf32> to vector<8x80xf32>
    %179 = arith.addf %177, %178 : vector<8x80xf32>
    %cst_53 = arith.constant 0.000000e+00 : f32
    %180 = vector.broadcast %cst_53 : f32 to vector<8x80xf32>
    %181 = arith.cmpf oge, %179, %180 : vector<8x80xf32>
    %cst_54 = arith.constant 2.000000e-01 : f32
    %182 = vector.broadcast %cst_54 : f32 to vector<8x80xf32>
    %183 = arith.mulf %182, %179 : vector<8x80xf32>
    %184 = arith.select %181, %179, %183 : vector<8x80xi1>, vector<8x80xf32>
    %185 = vector.broadcast %70 : vector<1x80xf32> to vector<8x80xf32>
    %186 = arith.mulf %184, %185 : vector<8x80xf32>
    %cst_55 = arith.constant 0.000000e+00 : f32
    %187 = vector.broadcast %cst_55 : f32 to vector<8x11xf32>
    %188 = tpu.concatenate %187, %186, %187 in 1 : vector<8x11xf32>, vector<8x80xf32>, vector<8x11xf32> -> vector<8x102xf32>
    %189 = vector.extract_strided_slice %188 {offsets = [0, 0], sizes = [8, 80], strides = [1, 1]} : vector<8x102xf32> to vector<8x80xf32>
    %190 = vector.extract_strided_slice %188 {offsets = [0, 1], sizes = [8, 80], strides = [1, 1]} : vector<8x102xf32> to vector<8x80xf32>
    %191 = vector.extract_strided_slice %188 {offsets = [0, 2], sizes = [8, 80], strides = [1, 1]} : vector<8x102xf32> to vector<8x80xf32>
    %192 = vector.extract_strided_slice %188 {offsets = [0, 10], sizes = [8, 80], strides = [1, 1]} : vector<8x102xf32> to vector<8x80xf32>
    %193 = vector.extract_strided_slice %188 {offsets = [0, 11], sizes = [8, 80], strides = [1, 1]} : vector<8x102xf32> to vector<8x80xf32>
    %194 = vector.extract_strided_slice %188 {offsets = [0, 12], sizes = [8, 80], strides = [1, 1]} : vector<8x102xf32> to vector<8x80xf32>
    %195 = vector.extract_strided_slice %188 {offsets = [0, 20], sizes = [8, 80], strides = [1, 1]} : vector<8x102xf32> to vector<8x80xf32>
    %196 = vector.extract_strided_slice %188 {offsets = [0, 21], sizes = [8, 80], strides = [1, 1]} : vector<8x102xf32> to vector<8x80xf32>
    %197 = vector.extract_strided_slice %188 {offsets = [0, 22], sizes = [8, 80], strides = [1, 1]} : vector<8x102xf32> to vector<8x80xf32>
    %198 = tpu.concatenate %189, %190, %191, %192, %193, %194, %195, %196, %197 in 0 : vector<8x80xf32>, vector<8x80xf32>, vector<8x80xf32>, vector<8x80xf32>, vector<8x80xf32>, vector<8x80xf32>, vector<8x80xf32>, vector<8x80xf32>, vector<8x80xf32> -> vector<72x80xf32>
    %199 = tpu.concatenate %198, %139 in 0 : vector<72x80xf32>, vector<24x80xf32> -> vector<96x80xf32>
    %200 = arith.truncf %199 : vector<96x80xf32> to vector<96x80xbf16>
    %c0_56 = arith.constant 0 : index
    %c0_57 = arith.constant 0 : index
    %201 = vector.load %arg9[%c0_56, %c0_57] : memref<12x96xbf16, #tpu.memory_space<vmem>>, vector<12x96xbf16>
    %cst_58 = arith.constant dense<0.000000e+00> : vector<12x80xf32>
    %202 = tpu.matmul %201, %200, %cst_58 {dimension_numbers = #tpu.dot_dimension_numbers<[1], [0], [0], [1], [0, 0, 1, 1], [], []>} : vector<12x96xbf16>, vector<96x80xbf16>, vector<12x80xf32> -> vector<12x80xf32>
    %c0_59 = arith.constant 0 : index
    %c0_60 = arith.constant 0 : index
    %203 = vector.load %arg10[%c0_59, %c0_60] : memref<12x1xf32, #tpu.memory_space<vmem>>, vector<12x1xf32>
    %204 = vector.broadcast %203 : vector<12x1xf32> to vector<12x80xf32>
    %205 = arith.addf %202, %204 : vector<12x80xf32>
    %206 = arith.truncf %205 : vector<12x80xf32> to vector<12x80xbf16>
    %c0_61 = arith.constant 0 : index
    %c0_62 = arith.constant 0 : index
    %207 = vector.load %arg11[%c0_61, %c0_62] : memref<80x128xbf16, #tpu.memory_space<vmem>>, vector<80x128xbf16>
    %cst_63 = arith.constant dense<0.000000e+00> : vector<12x128xf32>
    %208 = tpu.matmul %206, %207, %cst_63 {dimension_numbers = #tpu.dot_dimension_numbers<[1], [0], [0], [1], [0, 0, 1, 1], [], []>} : vector<12x80xbf16>, vector<80x128xbf16>, vector<12x128xf32> -> vector<12x128xf32>
    %cst_64 = arith.constant dense<0.000000e+00> : vector<12xf32>
    %209 = vector.multi_reduction <add>, %208, %cst_64 [1] : vector<12x128xf32> to vector<12xf32>
    %210 = vector.shape_cast %209 : vector<12xf32> to vector<12x1xf32>
    %cst_65 = arith.constant 6.250000e-02 : f32
    %211 = vector.broadcast %cst_65 : f32 to vector<12x1xf32>
    %212 = arith.mulf %210, %211 : vector<12x1xf32>
    %c0_66 = arith.constant 0 : index
    %c0_67 = arith.constant 0 : index
    %c0_68 = arith.constant 0 : index
    %213 = vector.load %arg13[%c0_66, %c0_67, %c0_68] : memref<1x12x1xf32, #tpu.memory_space<vmem>>, vector<1x12x1xf32>
    %214 = vector.shape_cast %213 : vector<1x12x1xf32> to vector<12x1xf32>
    %215 = vector.shape_cast %212 : vector<12x1xf32> to vector<1x12x1xf32>
    tpu.vector_store %arg13[%c0_66, %c0_67, %c0_68], %215 {strides = array<i32>} : memref<1x12x1xf32, #tpu.memory_space<vmem>>, vector<1x12x1xf32>,
    %216 = arith.truncf %208 : vector<12x128xf32> to vector<12x128xbf16>
    %c0_69 = arith.constant 0 : index
    %c0_70 = arith.constant 0 : index
    %c0_71 = arith.constant 0 : index
    %217 = vector.load %arg12[%c0_69, %c0_70, %c0_71] : memref<1x12x128xbf16, #tpu.memory_space<vmem>>, vector<1x12x128xbf16>
    %218 = vector.shape_cast %217 : vector<1x12x128xbf16> to vector<12x128xbf16>
    %219 = vector.shape_cast %216 : vector<12x128xbf16> to vector<1x12x128xbf16>
    tpu.vector_store %arg12[%c0_69, %c0_70, %c0_71], %219 {strides = array<i32>} : memref<1x12x128xbf16, #tpu.memory_space<vmem>>, vector<1x12x128xbf16>,
    return
  }
  func.func @transform_0(%arg0: i32) -> (i32, i32, i32) {
    %c0_i32 = arith.constant 0 : i32
    %c0_i32_0 = arith.constant 0 : i32
    %c0_i32_1 = arith.constant 0 : i32
    return %arg0, %c0_i32, %c0_i32_0 : i32, i32, i32
  }
  func.func @transform_1(%arg0: i32) -> (i32, i32, i32) {
    %c0_i32 = arith.constant 0 : i32
    %c0_i32_0 = arith.constant 0 : i32
    %c0_i32_1 = arith.constant 0 : i32
    return %arg0, %c0_i32, %c0_i32_0 : i32, i32, i32
  }
  func.func @transform_2(%arg0: i32) -> (i32, i32) {
    %c0_i32 = arith.constant 0 : i32
    %c0_i32_0 = arith.constant 0 : i32
    %c0_i32_1 = arith.constant 0 : i32
    return %c0_i32, %c0_i32_0 : i32, i32
  }
  func.func @transform_3(%arg0: i32) -> (i32, i32) {
    %c0_i32 = arith.constant 0 : i32
    %c0_i32_0 = arith.constant 0 : i32
    %c0_i32_1 = arith.constant 0 : i32
    return %c0_i32, %c0_i32_0 : i32, i32
  }
  func.func @transform_4(%arg0: i32) -> (i32, i32) {
    %c0_i32 = arith.constant 0 : i32
    %c0_i32_0 = arith.constant 0 : i32
    %c0_i32_1 = arith.constant 0 : i32
    return %c0_i32, %c0_i32_0 : i32, i32
  }
  func.func @transform_5(%arg0: i32) -> (i32, i32) {
    %c0_i32 = arith.constant 0 : i32
    %c0_i32_0 = arith.constant 0 : i32
    %c0_i32_1 = arith.constant 0 : i32
    return %c0_i32, %c0_i32_0 : i32, i32
  }
  func.func @transform_6(%arg0: i32) -> (i32, i32) {
    %c0_i32 = arith.constant 0 : i32
    %c0_i32_0 = arith.constant 0 : i32
    %c0_i32_1 = arith.constant 0 : i32
    return %c0_i32, %c0_i32_0 : i32, i32
  }
  func.func @transform_7(%arg0: i32) -> (i32, i32) {
    %c0_i32 = arith.constant 0 : i32
    %c0_i32_0 = arith.constant 0 : i32
    %c0_i32_1 = arith.constant 0 : i32
    return %c0_i32, %c0_i32_0 : i32, i32
  }
  func.func @transform_8(%arg0: i32) -> (i32, i32) {
    %c0_i32 = arith.constant 0 : i32
    %c0_i32_0 = arith.constant 0 : i32
    %c0_i32_1 = arith.constant 0 : i32
    return %c0_i32, %c0_i32_0 : i32, i32
  }
  func.func @transform_9(%arg0: i32) -> (i32, i32) {
    %c0_i32 = arith.constant 0 : i32
    %c0_i32_0 = arith.constant 0 : i32
    %c0_i32_1 = arith.constant 0 : i32
    return %c0_i32, %c0_i32_0 : i32, i32
  }
  func.func @transform_10(%arg0: i32) -> (i32, i32) {
    %c0_i32 = arith.constant 0 : i32
    %c0_i32_0 = arith.constant 0 : i32
    %c0_i32_1 = arith.constant 0 : i32
    return %c0_i32, %c0_i32_0 : i32, i32
  }
  func.func @transform_11(%arg0: i32) -> (i32, i32, i32) {
    %c0_i32 = arith.constant 0 : i32
    %c0_i32_0 = arith.constant 0 : i32
    %c0_i32_1 = arith.constant 0 : i32
    return %arg0, %c0_i32, %c0_i32_0 : i32, i32, i32
  }
  func.func @transform_12(%arg0: i32) -> (i32, i32, i32) {
    %c0_i32 = arith.constant 0 : i32
    %c0_i32_0 = arith.constant 0 : i32
    %c0_i32_1 = arith.constant 0 : i32
    return %arg0, %c0_i32, %c0_i32_0 : i32, i32, i32
  }
}

module attributes {stable_mosaic.version = 11 : i64} {
  func.func @_layer_kernel(%arg0: i32, %arg1: memref<1x12x128xbf16, #tpu.memory_space<vmem>>, %arg2: memref<1x1x32xf32, #tpu.memory_space<vmem>>, %arg3: memref<12x32xf32, #tpu.memory_space<vmem>>, %arg4: memref<12x1xf32, #tpu.memory_space<vmem>>, %arg5: memref<12x32xf32, #tpu.memory_space<vmem>>, %arg6: memref<12x1xf32, #tpu.memory_space<vmem>>, %arg7: memref<12x324xbf16, #tpu.memory_space<vmem>>, %arg8: memref<12x1xf32, #tpu.memory_space<vmem>>, %arg9: memref<16x144xbf16, #tpu.memory_space<vmem>>, %arg10: memref<16x1xf32, #tpu.memory_space<vmem>>, %arg11: memref<24x128xbf16, #tpu.memory_space<vmem>>, %arg12: memref<1x16x128xbf16, #tpu.memory_space<vmem>>, %arg13: memref<1x16x1xf32, #tpu.memory_space<vmem>>) attributes {dimension_semantics = [#tpu.dimension_semantics<parallel>], iteration_bounds = array<i64: 2>, scalar_prefetch = 0 : i64, scratch_operands = 0 : i64, tpu.core_type = #tpu.core_type<tc>, window_params = [{transform_indices = @transform_0, window_bounds = array<i64: 1, 12, 128>}, {transform_indices = @transform_1, window_bounds = array<i64: 1, 1, 32>}, {pipeline_mode = #tpu.pipeline_mode<synchronous>, transform_indices = @transform_2, window_bounds = array<i64: 12, 32>}, {pipeline_mode = #tpu.pipeline_mode<synchronous>, transform_indices = @transform_3, window_bounds = array<i64: 12, 1>}, {pipeline_mode = #tpu.pipeline_mode<synchronous>, transform_indices = @transform_4, window_bounds = array<i64: 12, 32>}, {pipeline_mode = #tpu.pipeline_mode<synchronous>, transform_indices = @transform_5, window_bounds = array<i64: 12, 1>}, {pipeline_mode = #tpu.pipeline_mode<synchronous>, transform_indices = @transform_6, window_bounds = array<i64: 12, 324>}, {pipeline_mode = #tpu.pipeline_mode<synchronous>, transform_indices = @transform_7, window_bounds = array<i64: 12, 1>}, {pipeline_mode = #tpu.pipeline_mode<synchronous>, transform_indices = @transform_8, window_bounds = array<i64: 16, 144>}, {pipeline_mode = #tpu.pipeline_mode<synchronous>, transform_indices = @transform_9, window_bounds = array<i64: 16, 1>}, {pipeline_mode = #tpu.pipeline_mode<synchronous>, transform_indices = @transform_10, window_bounds = array<i64: 24, 128>}, {transform_indices = @transform_11, window_bounds = array<i64: 1, 16, 128>}, {transform_indices = @transform_12, window_bounds = array<i64: 1, 16, 1>}]} {
    %c0 = arith.constant 0 : index
    %c0_0 = arith.constant 0 : index
    %c0_1 = arith.constant 0 : index
    %0 = vector.load %arg1[%c0, %c0_0, %c0_1] : memref<1x12x128xbf16, #tpu.memory_space<vmem>>, vector<1x12x128xbf16>
    %1 = vector.shape_cast %0 : vector<1x12x128xbf16> to vector<12x128xbf16>
    %2 = arith.extf %1 : vector<12x128xbf16> to vector<12x128xf32>
    %cst = arith.constant 0.000000e+00 : f32
    %3 = vector.broadcast %cst : f32 to vector<12x24xf32>
    %cst_2 = arith.constant 0.000000e+00 : f32
    %4 = vector.broadcast %cst_2 : f32 to vector<12x24xf32>
    %5 = vector.extract_strided_slice %2 {offsets = [0, 0], sizes = [12, 24], strides = [1, 1]} : vector<12x128xf32> to vector<12x24xf32>
    %cst_3 = arith.constant 1.000000e+00 : f32
    %6 = vector.broadcast %cst_3 : f32 to vector<12x24xf32>
    %7 = arith.mulf %6, %5 : vector<12x24xf32>
    %8 = arith.addf %3, %7 : vector<12x24xf32>
    %cst_4 = arith.constant 1.000000e+00 : f32
    %9 = vector.broadcast %cst_4 : f32 to vector<12x24xf32>
    %10 = arith.mulf %9, %5 : vector<12x24xf32>
    %11 = arith.addf %4, %10 : vector<12x24xf32>
    %12 = vector.extract_strided_slice %2 {offsets = [0, 1], sizes = [12, 24], strides = [1, 1]} : vector<12x128xf32> to vector<12x24xf32>
    %cst_5 = arith.constant 2.000000e+00 : f32
    %13 = vector.broadcast %cst_5 : f32 to vector<12x24xf32>
    %14 = arith.mulf %13, %12 : vector<12x24xf32>
    %15 = arith.addf %11, %14 : vector<12x24xf32>
    %16 = vector.extract_strided_slice %2 {offsets = [0, 2], sizes = [12, 24], strides = [1, 1]} : vector<12x128xf32> to vector<12x24xf32>
    %cst_6 = arith.constant -1.000000e+00 : f32
    %17 = vector.broadcast %cst_6 : f32 to vector<12x24xf32>
    %18 = arith.mulf %17, %16 : vector<12x24xf32>
    %19 = arith.addf %8, %18 : vector<12x24xf32>
    %cst_7 = arith.constant 1.000000e+00 : f32
    %20 = vector.broadcast %cst_7 : f32 to vector<12x24xf32>
    %21 = arith.mulf %20, %16 : vector<12x24xf32>
    %22 = arith.addf %15, %21 : vector<12x24xf32>
    %23 = vector.extract_strided_slice %2 {offsets = [0, 6], sizes = [12, 24], strides = [1, 1]} : vector<12x128xf32> to vector<12x24xf32>
    %cst_8 = arith.constant 2.000000e+00 : f32
    %24 = vector.broadcast %cst_8 : f32 to vector<12x24xf32>
    %25 = arith.mulf %24, %23 : vector<12x24xf32>
    %26 = arith.addf %19, %25 : vector<12x24xf32>
    %27 = vector.extract_strided_slice %2 {offsets = [0, 8], sizes = [12, 24], strides = [1, 1]} : vector<12x128xf32> to vector<12x24xf32>
    %cst_9 = arith.constant -2.000000e+00 : f32
    %28 = vector.broadcast %cst_9 : f32 to vector<12x24xf32>
    %29 = arith.mulf %28, %27 : vector<12x24xf32>
    %30 = arith.addf %26, %29 : vector<12x24xf32>
    %31 = vector.extract_strided_slice %2 {offsets = [0, 12], sizes = [12, 24], strides = [1, 1]} : vector<12x128xf32> to vector<12x24xf32>
    %cst_10 = arith.constant 1.000000e+00 : f32
    %32 = vector.broadcast %cst_10 : f32 to vector<12x24xf32>
    %33 = arith.mulf %32, %31 : vector<12x24xf32>
    %34 = arith.addf %30, %33 : vector<12x24xf32>
    %cst_11 = arith.constant -1.000000e+00 : f32
    %35 = vector.broadcast %cst_11 : f32 to vector<12x24xf32>
    %36 = arith.mulf %35, %31 : vector<12x24xf32>
    %37 = arith.addf %22, %36 : vector<12x24xf32>
    %38 = vector.extract_strided_slice %2 {offsets = [0, 13], sizes = [12, 24], strides = [1, 1]} : vector<12x128xf32> to vector<12x24xf32>
    %cst_12 = arith.constant -2.000000e+00 : f32
    %39 = vector.broadcast %cst_12 : f32 to vector<12x24xf32>
    %40 = arith.mulf %39, %38 : vector<12x24xf32>
    %41 = arith.addf %37, %40 : vector<12x24xf32>
    %42 = vector.extract_strided_slice %2 {offsets = [0, 14], sizes = [12, 24], strides = [1, 1]} : vector<12x128xf32> to vector<12x24xf32>
    %cst_13 = arith.constant -1.000000e+00 : f32
    %43 = vector.broadcast %cst_13 : f32 to vector<12x24xf32>
    %44 = arith.mulf %43, %42 : vector<12x24xf32>
    %45 = arith.addf %34, %44 : vector<12x24xf32>
    %cst_14 = arith.constant -1.000000e+00 : f32
    %46 = vector.broadcast %cst_14 : f32 to vector<12x24xf32>
    %47 = arith.mulf %46, %42 : vector<12x24xf32>
    %48 = arith.addf %41, %47 : vector<12x24xf32>
    %49 = vector.extract_strided_slice %2 {offsets = [0, 7], sizes = [12, 24], strides = [1, 1]} : vector<12x128xf32> to vector<12x24xf32>
    %50 = tpu.iota {dimensions = array<i32: 1>} : vector<1x24xi32>
    %c6_i32 = arith.constant 6 : i32
    %c0_i32 = arith.constant 0 : i32
    %51 = arith.cmpi eq, %c6_i32, %c0_i32 : i32
    %c1_i32 = arith.constant 1 : i32
    %52 = arith.select %51, %c1_i32, %c6_i32 : i32
    %53 = vector.broadcast %52 : i32 to vector<1x24xi32>
    %54 = arith.remsi %50, %53 : vector<1x24xi32>
    %c0_i32_15 = arith.constant 0 : i32
    %55 = vector.broadcast %c0_i32_15 : i32 to vector<1x24xi32>
    %56 = arith.cmpi ne, %54, %55 : vector<1x24xi32>
    %c0_i32_16 = arith.constant 0 : i32
    %57 = vector.broadcast %c0_i32_16 : i32 to vector<1x24xi32>
    %58 = arith.cmpi slt, %54, %57 : vector<1x24xi32>
    %c0_i32_17 = arith.constant 0 : i32
    %59 = arith.cmpi slt, %52, %c0_i32_17 : i32
    %60 = vector.broadcast %59 : i1 to vector<1x24xi1>
    %61 = vector.broadcast %60 : vector<1x24xi1> to vector<1x24xi1>
    %62 = arith.xori %58, %61 : vector<1x24xi1>
    %63 = arith.andi %62, %56 : vector<1x24xi1>
    %64 = vector.broadcast %52 : i32 to vector<1x24xi32>
    %65 = arith.addi %54, %64 : vector<1x24xi32>
    %66 = arith.select %63, %65, %54 : vector<1x24xi1>, vector<1x24xi32>
    %c4_i32 = arith.constant 4 : i32
    %67 = vector.broadcast %c4_i32 : i32 to vector<1x24xi32>
    %68 = arith.cmpi slt, %66, %67 : vector<1x24xi32>
    %69 = arith.extui %68 : vector<1x24xi1> to vector<1x24xi32>
    %70 = arith.sitofp %69 : vector<1x24xi32> to vector<1x24xf32>
    %71 = vector.broadcast %70 : vector<1x24xf32> to vector<12x24xf32>
    %72 = arith.mulf %49, %71 : vector<12x24xf32>
    %cst_18 = arith.constant dense<0.000000e+00> : vector<12xf32>
    %73 = vector.multi_reduction <add>, %72, %cst_18 [1] : vector<12x24xf32> to vector<12xf32>
    %74 = vector.shape_cast %73 : vector<12xf32> to vector<12x1xf32>
    %cst_19 = arith.constant 6.250000e-02 : f32
    %75 = vector.broadcast %cst_19 : f32 to vector<12x1xf32>
    %76 = arith.mulf %74, %75 : vector<12x1xf32>
    %77 = arith.mulf %72, %72 : vector<12x24xf32>
    %cst_20 = arith.constant dense<0.000000e+00> : vector<12xf32>
    %78 = vector.multi_reduction <add>, %77, %cst_20 [1] : vector<12x24xf32> to vector<12xf32>
    %79 = vector.shape_cast %78 : vector<12xf32> to vector<12x1xf32>
    %cst_21 = arith.constant 6.250000e-02 : f32
    %80 = vector.broadcast %cst_21 : f32 to vector<12x1xf32>
    %81 = arith.mulf %79, %80 : vector<12x1xf32>
    %82 = arith.mulf %76, %76 : vector<12x1xf32>
    %83 = arith.subf %81, %82 : vector<12x1xf32>
    %84 = vector.broadcast %76 : vector<12x1xf32> to vector<12x24xf32>
    %85 = arith.subf %49, %84 : vector<12x24xf32>
    %cst_22 = arith.constant 9.99999974E-6 : f32
    %86 = vector.broadcast %cst_22 : f32 to vector<12x1xf32>
    %87 = arith.addf %83, %86 : vector<12x1xf32>
    %88 = math.rsqrt %87 : vector<12x1xf32>
    %89 = vector.broadcast %88 : vector<12x1xf32> to vector<12x24xf32>
    %90 = arith.mulf %85, %89 : vector<12x24xf32>
    %91 = vector.broadcast %70 : vector<1x24xf32> to vector<12x24xf32>
    %92 = arith.mulf %90, %91 : vector<12x24xf32>
    %93 = math.sin %45 : vector<12x24xf32>
    %94 = vector.broadcast %70 : vector<1x24xf32> to vector<12x24xf32>
    %95 = arith.mulf %93, %94 : vector<12x24xf32>
    %cst_23 = arith.constant dense<0.000000e+00> : vector<12xf32>
    %96 = vector.multi_reduction <add>, %95, %cst_23 [1] : vector<12x24xf32> to vector<12xf32>
    %97 = vector.shape_cast %96 : vector<12xf32> to vector<12x1xf32>
    %cst_24 = arith.constant 6.250000e-02 : f32
    %98 = vector.broadcast %cst_24 : f32 to vector<12x1xf32>
    %99 = arith.mulf %97, %98 : vector<12x1xf32>
    %100 = arith.mulf %95, %95 : vector<12x24xf32>
    %cst_25 = arith.constant dense<0.000000e+00> : vector<12xf32>
    %101 = vector.multi_reduction <add>, %100, %cst_25 [1] : vector<12x24xf32> to vector<12xf32>
    %102 = vector.shape_cast %101 : vector<12xf32> to vector<12x1xf32>
    %cst_26 = arith.constant 6.250000e-02 : f32
    %103 = vector.broadcast %cst_26 : f32 to vector<12x1xf32>
    %104 = arith.mulf %102, %103 : vector<12x1xf32>
    %105 = arith.mulf %99, %99 : vector<12x1xf32>
    %106 = arith.subf %104, %105 : vector<12x1xf32>
    %107 = vector.broadcast %99 : vector<12x1xf32> to vector<12x24xf32>
    %108 = arith.subf %93, %107 : vector<12x24xf32>
    %cst_27 = arith.constant 9.99999974E-6 : f32
    %109 = vector.broadcast %cst_27 : f32 to vector<12x1xf32>
    %110 = arith.addf %106, %109 : vector<12x1xf32>
    %111 = math.rsqrt %110 : vector<12x1xf32>
    %112 = vector.broadcast %111 : vector<12x1xf32> to vector<12x24xf32>
    %113 = arith.mulf %108, %112 : vector<12x24xf32>
    %114 = vector.broadcast %70 : vector<1x24xf32> to vector<12x24xf32>
    %115 = arith.mulf %113, %114 : vector<12x24xf32>
    %116 = math.sin %48 : vector<12x24xf32>
    %117 = vector.broadcast %70 : vector<1x24xf32> to vector<12x24xf32>
    %118 = arith.mulf %116, %117 : vector<12x24xf32>
    %cst_28 = arith.constant dense<0.000000e+00> : vector<12xf32>
    %119 = vector.multi_reduction <add>, %118, %cst_28 [1] : vector<12x24xf32> to vector<12xf32>
    %120 = vector.shape_cast %119 : vector<12xf32> to vector<12x1xf32>
    %cst_29 = arith.constant 6.250000e-02 : f32
    %121 = vector.broadcast %cst_29 : f32 to vector<12x1xf32>
    %122 = arith.mulf %120, %121 : vector<12x1xf32>
    %123 = arith.mulf %118, %118 : vector<12x24xf32>
    %cst_30 = arith.constant dense<0.000000e+00> : vector<12xf32>
    %124 = vector.multi_reduction <add>, %123, %cst_30 [1] : vector<12x24xf32> to vector<12xf32>
    %125 = vector.shape_cast %124 : vector<12xf32> to vector<12x1xf32>
    %cst_31 = arith.constant 6.250000e-02 : f32
    %126 = vector.broadcast %cst_31 : f32 to vector<12x1xf32>
    %127 = arith.mulf %125, %126 : vector<12x1xf32>
    %128 = arith.mulf %122, %122 : vector<12x1xf32>
    %129 = arith.subf %127, %128 : vector<12x1xf32>
    %130 = vector.broadcast %122 : vector<12x1xf32> to vector<12x24xf32>
    %131 = arith.subf %116, %130 : vector<12x24xf32>
    %cst_32 = arith.constant 9.99999974E-6 : f32
    %132 = vector.broadcast %cst_32 : f32 to vector<12x1xf32>
    %133 = arith.addf %129, %132 : vector<12x1xf32>
    %134 = math.rsqrt %133 : vector<12x1xf32>
    %135 = vector.broadcast %134 : vector<12x1xf32> to vector<12x24xf32>
    %136 = arith.mulf %131, %135 : vector<12x24xf32>
    %137 = vector.broadcast %70 : vector<1x24xf32> to vector<12x24xf32>
    %138 = arith.mulf %136, %137 : vector<12x24xf32>
    %139 = tpu.concatenate %92, %115, %138 in 0 : vector<12x24xf32>, vector<12x24xf32>, vector<12x24xf32> -> vector<36x24xf32>
    %c0_33 = arith.constant 0 : index
    %c0_34 = arith.constant 0 : index
    %c0_35 = arith.constant 0 : index
    %140 = vector.load %arg2[%c0_33, %c0_34, %c0_35] : memref<1x1x32xf32, #tpu.memory_space<vmem>>, vector<1x1x32xf32>
    %141 = vector.shape_cast %140 : vector<1x1x32xf32> to vector<1x32xf32>
    %c0_36 = arith.constant 0 : index
    %c0_37 = arith.constant 0 : index
    %142 = vector.load %arg3[%c0_36, %c0_37] : memref<12x32xf32, #tpu.memory_space<vmem>>, vector<12x32xf32>
    %143 = vector.broadcast %141 : vector<1x32xf32> to vector<12x32xf32>
    %144 = arith.mulf %142, %143 : vector<12x32xf32>
    %cst_38 = arith.constant dense<0.000000e+00> : vector<12xf32>
    %145 = vector.multi_reduction <add>, %144, %cst_38 [1] : vector<12x32xf32> to vector<12xf32>
    %146 = vector.shape_cast %145 : vector<12xf32> to vector<12x1xf32>
    %cst_39 = arith.constant 1.000000e+00 : f32
    %147 = vector.broadcast %cst_39 : f32 to vector<12x1xf32>
    %148 = arith.addf %147, %146 : vector<12x1xf32>
    %c0_40 = arith.constant 0 : index
    %c0_41 = arith.constant 0 : index
    %149 = vector.load %arg4[%c0_40, %c0_41] : memref<12x1xf32, #tpu.memory_space<vmem>>, vector<12x1xf32>
    %150 = arith.addf %148, %149 : vector<12x1xf32>
    %c0_42 = arith.constant 0 : index
    %c0_43 = arith.constant 0 : index
    %151 = vector.load %arg5[%c0_42, %c0_43] : memref<12x32xf32, #tpu.memory_space<vmem>>, vector<12x32xf32>
    %152 = vector.broadcast %141 : vector<1x32xf32> to vector<12x32xf32>
    %153 = arith.mulf %151, %152 : vector<12x32xf32>
    %cst_44 = arith.constant dense<0.000000e+00> : vector<12xf32>
    %154 = vector.multi_reduction <add>, %153, %cst_44 [1] : vector<12x32xf32> to vector<12xf32>
    %155 = vector.shape_cast %154 : vector<12xf32> to vector<12x1xf32>
    %c0_45 = arith.constant 0 : index
    %c0_46 = arith.constant 0 : index
    %156 = vector.load %arg6[%c0_45, %c0_46] : memref<12x1xf32, #tpu.memory_space<vmem>>, vector<12x1xf32>
    %157 = arith.addf %155, %156 : vector<12x1xf32>
    %cst_47 = arith.constant 0.000000e+00 : f32
    %158 = vector.broadcast %cst_47 : f32 to vector<36x7xf32>
    %159 = tpu.concatenate %158, %139, %158 in 1 : vector<36x7xf32>, vector<36x24xf32>, vector<36x7xf32> -> vector<36x38xf32>
    %160 = vector.extract_strided_slice %159 {offsets = [0, 0], sizes = [36, 24], strides = [1, 1]} : vector<36x38xf32> to vector<36x24xf32>
    %161 = vector.extract_strided_slice %159 {offsets = [0, 1], sizes = [36, 24], strides = [1, 1]} : vector<36x38xf32> to vector<36x24xf32>
    %162 = vector.extract_strided_slice %159 {offsets = [0, 2], sizes = [36, 24], strides = [1, 1]} : vector<36x38xf32> to vector<36x24xf32>
    %163 = vector.extract_strided_slice %159 {offsets = [0, 6], sizes = [36, 24], strides = [1, 1]} : vector<36x38xf32> to vector<36x24xf32>
    %164 = vector.extract_strided_slice %159 {offsets = [0, 7], sizes = [36, 24], strides = [1, 1]} : vector<36x38xf32> to vector<36x24xf32>
    %165 = vector.extract_strided_slice %159 {offsets = [0, 8], sizes = [36, 24], strides = [1, 1]} : vector<36x38xf32> to vector<36x24xf32>
    %166 = vector.extract_strided_slice %159 {offsets = [0, 12], sizes = [36, 24], strides = [1, 1]} : vector<36x38xf32> to vector<36x24xf32>
    %167 = vector.extract_strided_slice %159 {offsets = [0, 13], sizes = [36, 24], strides = [1, 1]} : vector<36x38xf32> to vector<36x24xf32>
    %168 = vector.extract_strided_slice %159 {offsets = [0, 14], sizes = [36, 24], strides = [1, 1]} : vector<36x38xf32> to vector<36x24xf32>
    %169 = tpu.concatenate %160, %161, %162, %163, %164, %165, %166, %167, %168 in 0 : vector<36x24xf32>, vector<36x24xf32>, vector<36x24xf32>, vector<36x24xf32>, vector<36x24xf32>, vector<36x24xf32>, vector<36x24xf32>, vector<36x24xf32>, vector<36x24xf32> -> vector<324x24xf32>
    %170 = arith.truncf %169 : vector<324x24xf32> to vector<324x24xbf16>
    %c0_48 = arith.constant 0 : index
    %c0_49 = arith.constant 0 : index
    %171 = vector.load %arg7[%c0_48, %c0_49] : memref<12x324xbf16, #tpu.memory_space<vmem>>, vector<12x324xbf16>
    %cst_50 = arith.constant dense<0.000000e+00> : vector<12x24xf32>
    %172 = tpu.matmul %171, %170, %cst_50 {dimension_numbers = #tpu.dot_dimension_numbers<[1], [0], [0], [1], [0, 0, 1, 1], [], []>} : vector<12x324xbf16>, vector<324x24xbf16>, vector<12x24xf32> -> vector<12x24xf32>
    %c0_51 = arith.constant 0 : index
    %c0_52 = arith.constant 0 : index
    %173 = vector.load %arg8[%c0_51, %c0_52] : memref<12x1xf32, #tpu.memory_space<vmem>>, vector<12x1xf32>
    %174 = vector.broadcast %173 : vector<12x1xf32> to vector<12x24xf32>
    %175 = arith.addf %172, %174 : vector<12x24xf32>
    %176 = vector.broadcast %150 : vector<12x1xf32> to vector<12x24xf32>
    %177 = arith.mulf %175, %176 : vector<12x24xf32>
    %178 = vector.broadcast %157 : vector<12x1xf32> to vector<12x24xf32>
    %179 = arith.addf %177, %178 : vector<12x24xf32>
    %cst_53 = arith.constant 0.000000e+00 : f32
    %180 = vector.broadcast %cst_53 : f32 to vector<12x24xf32>
    %181 = arith.cmpf oge, %179, %180 : vector<12x24xf32>
    %cst_54 = arith.constant 2.000000e-01 : f32
    %182 = vector.broadcast %cst_54 : f32 to vector<12x24xf32>
    %183 = arith.mulf %182, %179 : vector<12x24xf32>
    %184 = arith.select %181, %179, %183 : vector<12x24xi1>, vector<12x24xf32>
    %185 = vector.broadcast %70 : vector<1x24xf32> to vector<12x24xf32>
    %186 = arith.mulf %184, %185 : vector<12x24xf32>
    %cst_55 = arith.constant 0.000000e+00 : f32
    %187 = vector.broadcast %cst_55 : f32 to vector<12x7xf32>
    %188 = tpu.concatenate %187, %186, %187 in 1 : vector<12x7xf32>, vector<12x24xf32>, vector<12x7xf32> -> vector<12x38xf32>
    %189 = vector.extract_strided_slice %188 {offsets = [0, 0], sizes = [12, 24], strides = [1, 1]} : vector<12x38xf32> to vector<12x24xf32>
    %190 = vector.extract_strided_slice %188 {offsets = [0, 1], sizes = [12, 24], strides = [1, 1]} : vector<12x38xf32> to vector<12x24xf32>
    %191 = vector.extract_strided_slice %188 {offsets = [0, 2], sizes = [12, 24], strides = [1, 1]} : vector<12x38xf32> to vector<12x24xf32>
    %192 = vector.extract_strided_slice %188 {offsets = [0, 6], sizes = [12, 24], strides = [1, 1]} : vector<12x38xf32> to vector<12x24xf32>
    %193 = vector.extract_strided_slice %188 {offsets = [0, 7], sizes = [12, 24], strides = [1, 1]} : vector<12x38xf32> to vector<12x24xf32>
    %194 = vector.extract_strided_slice %188 {offsets = [0, 8], sizes = [12, 24], strides = [1, 1]} : vector<12x38xf32> to vector<12x24xf32>
    %195 = vector.extract_strided_slice %188 {offsets = [0, 12], sizes = [12, 24], strides = [1, 1]} : vector<12x38xf32> to vector<12x24xf32>
    %196 = vector.extract_strided_slice %188 {offsets = [0, 13], sizes = [12, 24], strides = [1, 1]} : vector<12x38xf32> to vector<12x24xf32>
    %197 = vector.extract_strided_slice %188 {offsets = [0, 14], sizes = [12, 24], strides = [1, 1]} : vector<12x38xf32> to vector<12x24xf32>
    %198 = tpu.concatenate %189, %190, %191, %192, %193, %194, %195, %196, %197 in 0 : vector<12x24xf32>, vector<12x24xf32>, vector<12x24xf32>, vector<12x24xf32>, vector<12x24xf32>, vector<12x24xf32>, vector<12x24xf32>, vector<12x24xf32>, vector<12x24xf32> -> vector<108x24xf32>
    %199 = tpu.concatenate %198, %139 in 0 : vector<108x24xf32>, vector<36x24xf32> -> vector<144x24xf32>
    %200 = arith.truncf %199 : vector<144x24xf32> to vector<144x24xbf16>
    %c0_56 = arith.constant 0 : index
    %c0_57 = arith.constant 0 : index
    %201 = vector.load %arg9[%c0_56, %c0_57] : memref<16x144xbf16, #tpu.memory_space<vmem>>, vector<16x144xbf16>
    %cst_58 = arith.constant dense<0.000000e+00> : vector<16x24xf32>
    %202 = tpu.matmul %201, %200, %cst_58 {dimension_numbers = #tpu.dot_dimension_numbers<[1], [0], [0], [1], [0, 0, 1, 1], [], []>} : vector<16x144xbf16>, vector<144x24xbf16>, vector<16x24xf32> -> vector<16x24xf32>
    %c0_59 = arith.constant 0 : index
    %c0_60 = arith.constant 0 : index
    %203 = vector.load %arg10[%c0_59, %c0_60] : memref<16x1xf32, #tpu.memory_space<vmem>>, vector<16x1xf32>
    %204 = vector.broadcast %203 : vector<16x1xf32> to vector<16x24xf32>
    %205 = arith.addf %202, %204 : vector<16x24xf32>
    %206 = arith.truncf %205 : vector<16x24xf32> to vector<16x24xbf16>
    %c0_61 = arith.constant 0 : index
    %c0_62 = arith.constant 0 : index
    %207 = vector.load %arg11[%c0_61, %c0_62] : memref<24x128xbf16, #tpu.memory_space<vmem>>, vector<24x128xbf16>
    %cst_63 = arith.constant dense<0.000000e+00> : vector<16x128xf32>
    %208 = tpu.matmul %206, %207, %cst_63 {dimension_numbers = #tpu.dot_dimension_numbers<[1], [0], [0], [1], [0, 0, 1, 1], [], []>} : vector<16x24xbf16>, vector<24x128xbf16>, vector<16x128xf32> -> vector<16x128xf32>
    %cst_64 = arith.constant dense<0.000000e+00> : vector<16xf32>
    %209 = vector.multi_reduction <add>, %208, %cst_64 [1] : vector<16x128xf32> to vector<16xf32>
    %210 = vector.shape_cast %209 : vector<16xf32> to vector<16x1xf32>
    %cst_65 = arith.constant 2.500000e-01 : f32
    %211 = vector.broadcast %cst_65 : f32 to vector<16x1xf32>
    %212 = arith.mulf %210, %211 : vector<16x1xf32>
    %c0_66 = arith.constant 0 : index
    %c0_67 = arith.constant 0 : index
    %c0_68 = arith.constant 0 : index
    %213 = vector.load %arg13[%c0_66, %c0_67, %c0_68] : memref<1x16x1xf32, #tpu.memory_space<vmem>>, vector<1x16x1xf32>
    %214 = vector.shape_cast %213 : vector<1x16x1xf32> to vector<16x1xf32>
    %215 = vector.shape_cast %212 : vector<16x1xf32> to vector<1x16x1xf32>
    tpu.vector_store %arg13[%c0_66, %c0_67, %c0_68], %215 {strides = array<i32>} : memref<1x16x1xf32, #tpu.memory_space<vmem>>, vector<1x16x1xf32>,
    %216 = arith.truncf %208 : vector<16x128xf32> to vector<16x128xbf16>
    %c0_69 = arith.constant 0 : index
    %c0_70 = arith.constant 0 : index
    %c0_71 = arith.constant 0 : index
    %217 = vector.load %arg12[%c0_69, %c0_70, %c0_71] : memref<1x16x128xbf16, #tpu.memory_space<vmem>>, vector<1x16x128xbf16>
    %218 = vector.shape_cast %217 : vector<1x16x128xbf16> to vector<16x128xbf16>
    %219 = vector.shape_cast %216 : vector<16x128xbf16> to vector<1x16x128xbf16>
    tpu.vector_store %arg12[%c0_69, %c0_70, %c0_71], %219 {strides = array<i32>} : memref<1x16x128xbf16, #tpu.memory_space<vmem>>, vector<1x16x128xbf16>,
    return
  }
  func.func @transform_0(%arg0: i32) -> (i32, i32, i32) {
    %c0_i32 = arith.constant 0 : i32
    %c0_i32_0 = arith.constant 0 : i32
    %c0_i32_1 = arith.constant 0 : i32
    return %arg0, %c0_i32, %c0_i32_0 : i32, i32, i32
  }
  func.func @transform_1(%arg0: i32) -> (i32, i32, i32) {
    %c0_i32 = arith.constant 0 : i32
    %c0_i32_0 = arith.constant 0 : i32
    %c0_i32_1 = arith.constant 0 : i32
    return %arg0, %c0_i32, %c0_i32_0 : i32, i32, i32
  }
  func.func @transform_2(%arg0: i32) -> (i32, i32) {
    %c0_i32 = arith.constant 0 : i32
    %c0_i32_0 = arith.constant 0 : i32
    %c0_i32_1 = arith.constant 0 : i32
    return %c0_i32, %c0_i32_0 : i32, i32
  }
  func.func @transform_3(%arg0: i32) -> (i32, i32) {
    %c0_i32 = arith.constant 0 : i32
    %c0_i32_0 = arith.constant 0 : i32
    %c0_i32_1 = arith.constant 0 : i32
    return %c0_i32, %c0_i32_0 : i32, i32
  }
  func.func @transform_4(%arg0: i32) -> (i32, i32) {
    %c0_i32 = arith.constant 0 : i32
    %c0_i32_0 = arith.constant 0 : i32
    %c0_i32_1 = arith.constant 0 : i32
    return %c0_i32, %c0_i32_0 : i32, i32
  }
  func.func @transform_5(%arg0: i32) -> (i32, i32) {
    %c0_i32 = arith.constant 0 : i32
    %c0_i32_0 = arith.constant 0 : i32
    %c0_i32_1 = arith.constant 0 : i32
    return %c0_i32, %c0_i32_0 : i32, i32
  }
  func.func @transform_6(%arg0: i32) -> (i32, i32) {
    %c0_i32 = arith.constant 0 : i32
    %c0_i32_0 = arith.constant 0 : i32
    %c0_i32_1 = arith.constant 0 : i32
    return %c0_i32, %c0_i32_0 : i32, i32
  }
  func.func @transform_7(%arg0: i32) -> (i32, i32) {
    %c0_i32 = arith.constant 0 : i32
    %c0_i32_0 = arith.constant 0 : i32
    %c0_i32_1 = arith.constant 0 : i32
    return %c0_i32, %c0_i32_0 : i32, i32
  }
  func.func @transform_8(%arg0: i32) -> (i32, i32) {
    %c0_i32 = arith.constant 0 : i32
    %c0_i32_0 = arith.constant 0 : i32
    %c0_i32_1 = arith.constant 0 : i32
    return %c0_i32, %c0_i32_0 : i32, i32
  }
  func.func @transform_9(%arg0: i32) -> (i32, i32) {
    %c0_i32 = arith.constant 0 : i32
    %c0_i32_0 = arith.constant 0 : i32
    %c0_i32_1 = arith.constant 0 : i32
    return %c0_i32, %c0_i32_0 : i32, i32
  }
  func.func @transform_10(%arg0: i32) -> (i32, i32) {
    %c0_i32 = arith.constant 0 : i32
    %c0_i32_0 = arith.constant 0 : i32
    %c0_i32_1 = arith.constant 0 : i32
    return %c0_i32, %c0_i32_0 : i32, i32
  }
  func.func @transform_11(%arg0: i32) -> (i32, i32, i32) {
    %c0_i32 = arith.constant 0 : i32
    %c0_i32_0 = arith.constant 0 : i32
    %c0_i32_1 = arith.constant 0 : i32
    return %arg0, %c0_i32, %c0_i32_0 : i32, i32, i32
  }
  func.func @transform_12(%arg0: i32) -> (i32, i32, i32) {
    %c0_i32 = arith.constant 0 : i32
    %c0_i32_0 = arith.constant 0 : i32
    %c0_i32_1 = arith.constant 0 : i32
    return %arg0, %c0_i32, %c0_i32_0 : i32, i32, i32
  }
}

module attributes {stable_mosaic.version = 11 : i64} {
  func.func @_out_to_lat_kernel(%arg0: i32, %arg1: memref<8x64xf32, #tpu.memory_space<vmem>>, %arg2: memref<64x64xbf16, #tpu.memory_space<vmem>>, %arg3: memref<1x64xf32, #tpu.memory_space<vmem>>, %arg4: memref<64x32xbf16, #tpu.memory_space<vmem>>, %arg5: memref<1x32xf32, #tpu.memory_space<vmem>>, %arg6: memref<64x32xbf16, #tpu.memory_space<vmem>>, %arg7: memref<1x32xf32, #tpu.memory_space<vmem>>, %arg8: memref<8x32xf32, #tpu.memory_space<vmem>>) attributes {dimension_semantics = [#tpu.dimension_semantics<parallel>], iteration_bounds = array<i64: 1>, scalar_prefetch = 0 : i64, scratch_operands = 0 : i64, tpu.core_type = #tpu.core_type<tc>, window_params = [{pipeline_mode = #tpu.pipeline_mode<synchronous>, transform_indices = @transform_0, window_bounds = array<i64: 8, 64>}, {pipeline_mode = #tpu.pipeline_mode<synchronous>, transform_indices = @transform_1, window_bounds = array<i64: 64, 64>}, {pipeline_mode = #tpu.pipeline_mode<synchronous>, transform_indices = @transform_2, window_bounds = array<i64: 1, 64>}, {pipeline_mode = #tpu.pipeline_mode<synchronous>, transform_indices = @transform_3, window_bounds = array<i64: 64, 32>}, {pipeline_mode = #tpu.pipeline_mode<synchronous>, transform_indices = @transform_4, window_bounds = array<i64: 1, 32>}, {pipeline_mode = #tpu.pipeline_mode<synchronous>, transform_indices = @transform_5, window_bounds = array<i64: 64, 32>}, {pipeline_mode = #tpu.pipeline_mode<synchronous>, transform_indices = @transform_6, window_bounds = array<i64: 1, 32>}, {pipeline_mode = #tpu.pipeline_mode<synchronous>, transform_indices = @transform_7, window_bounds = array<i64: 8, 32>}]} {
    %c0 = arith.constant 0 : index
    %c0_0 = arith.constant 0 : index
    %0 = vector.load %arg1[%c0, %c0_0] : memref<8x64xf32, #tpu.memory_space<vmem>>, vector<8x64xf32>
    %1 = arith.truncf %0 : vector<8x64xf32> to vector<8x64xbf16>
    %c0_1 = arith.constant 0 : index
    %c0_2 = arith.constant 0 : index
    %2 = vector.load %arg2[%c0_1, %c0_2] : memref<64x64xbf16, #tpu.memory_space<vmem>>, vector<64x64xbf16>
    %cst = arith.constant dense<0.000000e+00> : vector<8x64xf32>
    %3 = tpu.matmul %1, %2, %cst {dimension_numbers = #tpu.dot_dimension_numbers<[1], [0], [0], [1], [0, 0, 1, 1], [], []>} : vector<8x64xbf16>, vector<64x64xbf16>, vector<8x64xf32> -> vector<8x64xf32>
    %c0_3 = arith.constant 0 : index
    %c0_4 = arith.constant 0 : index
    %4 = vector.load %arg3[%c0_3, %c0_4] : memref<1x64xf32, #tpu.memory_space<vmem>>, vector<1x64xf32>
    %5 = vector.broadcast %4 : vector<1x64xf32> to vector<8x64xf32>
    %6 = arith.addf %3, %5 : vector<8x64xf32>
    %cst_5 = arith.constant 0.000000e+00 : f32
    %7 = vector.broadcast %cst_5 : f32 to vector<8x64xf32>
    %8 = arith.cmpf oge, %6, %7 : vector<8x64xf32>
    %cst_6 = arith.constant 2.000000e-01 : f32
    %9 = vector.broadcast %cst_6 : f32 to vector<8x64xf32>
    %10 = arith.mulf %9, %6 : vector<8x64xf32>
    %11 = arith.select %8, %6, %10 : vector<8x64xi1>, vector<8x64xf32>
    %12 = arith.truncf %11 : vector<8x64xf32> to vector<8x64xbf16>
    %c0_7 = arith.constant 0 : index
    %c0_8 = arith.constant 0 : index
    %13 = vector.load %arg4[%c0_7, %c0_8] : memref<64x32xbf16, #tpu.memory_space<vmem>>, vector<64x32xbf16>
    %cst_9 = arith.constant dense<0.000000e+00> : vector<8x32xf32>
    %14 = tpu.matmul %12, %13, %cst_9 {dimension_numbers = #tpu.dot_dimension_numbers<[1], [0], [0], [1], [0, 0, 1, 1], [], []>} : vector<8x64xbf16>, vector<64x32xbf16>, vector<8x32xf32> -> vector<8x32xf32>
    %c0_10 = arith.constant 0 : index
    %c0_11 = arith.constant 0 : index
    %15 = vector.load %arg5[%c0_10, %c0_11] : memref<1x32xf32, #tpu.memory_space<vmem>>, vector<1x32xf32>
    %16 = vector.broadcast %15 : vector<1x32xf32> to vector<8x32xf32>
    %17 = arith.addf %14, %16 : vector<8x32xf32>
    %c0_12 = arith.constant 0 : index
    %c0_13 = arith.constant 0 : index
    %18 = vector.load %arg6[%c0_12, %c0_13] : memref<64x32xbf16, #tpu.memory_space<vmem>>, vector<64x32xbf16>
    %cst_14 = arith.constant dense<0.000000e+00> : vector<8x32xf32>
    %19 = tpu.matmul %1, %18, %cst_14 {dimension_numbers = #tpu.dot_dimension_numbers<[1], [0], [0], [1], [0, 0, 1, 1], [], []>} : vector<8x64xbf16>, vector<64x32xbf16>, vector<8x32xf32> -> vector<8x32xf32>
    %c0_15 = arith.constant 0 : index
    %c0_16 = arith.constant 0 : index
    %20 = vector.load %arg7[%c0_15, %c0_16] : memref<1x32xf32, #tpu.memory_space<vmem>>, vector<1x32xf32>
    %21 = vector.broadcast %20 : vector<1x32xf32> to vector<8x32xf32>
    %22 = arith.addf %19, %21 : vector<8x32xf32>
    %23 = arith.addf %22, %17 : vector<8x32xf32>
    %c0_17 = arith.constant 0 : index
    %c0_18 = arith.constant 0 : index
    %24 = vector.load %arg8[%c0_17, %c0_18] : memref<8x32xf32, #tpu.memory_space<vmem>>, vector<8x32xf32>
    tpu.vector_store %arg8[%c0_17, %c0_18], %23 {strides = array<i32>} : memref<8x32xf32, #tpu.memory_space<vmem>>, vector<8x32xf32>,
    return
  }
  func.func @transform_0(%arg0: i32) -> (i32, i32) {
    %c0_i32 = arith.constant 0 : i32
    %c0_i32_0 = arith.constant 0 : i32
    %c0_i32_1 = arith.constant 0 : i32
    return %c0_i32, %c0_i32_0 : i32, i32
  }
  func.func @transform_1(%arg0: i32) -> (i32, i32) {
    %c0_i32 = arith.constant 0 : i32
    %c0_i32_0 = arith.constant 0 : i32
    %c0_i32_1 = arith.constant 0 : i32
    return %c0_i32, %c0_i32_0 : i32, i32
  }
  func.func @transform_2(%arg0: i32) -> (i32, i32) {
    %c0_i32 = arith.constant 0 : i32
    %c0_i32_0 = arith.constant 0 : i32
    %c0_i32_1 = arith.constant 0 : i32
    return %c0_i32, %c0_i32_0 : i32, i32
  }
  func.func @transform_3(%arg0: i32) -> (i32, i32) {
    %c0_i32 = arith.constant 0 : i32
    %c0_i32_0 = arith.constant 0 : i32
    %c0_i32_1 = arith.constant 0 : i32
    return %c0_i32, %c0_i32_0 : i32, i32
  }
  func.func @transform_4(%arg0: i32) -> (i32, i32) {
    %c0_i32 = arith.constant 0 : i32
    %c0_i32_0 = arith.constant 0 : i32
    %c0_i32_1 = arith.constant 0 : i32
    return %c0_i32, %c0_i32_0 : i32, i32
  }
  func.func @transform_5(%arg0: i32) -> (i32, i32) {
    %c0_i32 = arith.constant 0 : i32
    %c0_i32_0 = arith.constant 0 : i32
    %c0_i32_1 = arith.constant 0 : i32
    return %c0_i32, %c0_i32_0 : i32, i32
  }
  func.func @transform_6(%arg0: i32) -> (i32, i32) {
    %c0_i32 = arith.constant 0 : i32
    %c0_i32_0 = arith.constant 0 : i32
    %c0_i32_1 = arith.constant 0 : i32
    return %c0_i32, %c0_i32_0 : i32, i32
  }
  func.func @transform_7(%arg0: i32) -> (i32, i32) {
    %c0_i32 = arith.constant 0 : i32
    %c0_i32_0 = arith.constant 0 : i32
    %c0_i32_1 = arith.constant 0 : i32
    return %c0_i32, %c0_i32_0 : i32, i32
  }
}

</mosaic_0001>

<llo_original>
// kernel: labs_injected_encoder_forward.6
$region0: #{labs_injected_encoder_forward.6}
  #allocation0 [shape = 'u32[]', space=smem, size = 0x4, offset = 0x4, fixed_abs, tag = 'smem constant byte address 0x4 - core index']
  #allocation1 [shape = 'u32[144,128]{1,0:T(1,128)}', space=vmem, size = 0x12000, scoped, tag = 'internal scratch']
  %s0 = inlined_call_operand.vmem [shape: f32[8,5], index: 0, kind: input, shape index: {}]
  %s1 = inlined_call_operand.vmem [shape: bf16[5,32], index: 1, kind: input, shape index: {}]
  %s2 = inlined_call_operand.vmem [shape: f32[1,32], index: 2, kind: input, shape index: {}, may-alias: {2,4}]
  %s3 = inlined_call_operand.vmem [shape: bf16[32,32], index: 3, kind: input, shape index: {}]
  %s4 = inlined_call_operand.vmem [shape: f32[1,32], index: 4, kind: input, shape index: {}, may-alias: {2,4}]
  %s5 = inlined_call_operand.vmem [shape: f32[8,32], index: 5, kind: output, shape index: {}]
  %s6 = sld [smem:[#allocation0]]
  $region30: #{labs_injected_encoder_forward.6} parent=0
    _
  %s8 = ssub.s32 1, %s6
  %s9 = scalar_select 0, %s8, %s6
  // Predicated region
  $region2: #{labs_injected_encoder_forward.6} parent=0 // pred_check
    _
  $region3: #{labs_injected_encoder_forward.6} parent=0 // pred_check_branch
    %11 = sbr.rel (0) target = $region5
  $region4: #{labs_injected_encoder_forward.6} parent=0 // pred_region
    _
  $region5: #{labs_injected_encoder_forward.6} parent=0 // pred_fallthru
    _
  // Predicated region
  $region6: #{labs_injected_encoder_forward.6} parent=0 // pred_check
    _
  $region7: #{labs_injected_encoder_forward.6} parent=0 // pred_check_branch
    %13 = sbr.rel (0) target = $region9
  $region8: #{labs_injected_encoder_forward.6} parent=0 // pred_region
    _
  $region9: #{labs_injected_encoder_forward.6} parent=0 // pred_fallthru
    _
  // Predicated region
  $region10: #{labs_injected_encoder_forward.6} parent=0 // pred_check
    _
  $region11: #{labs_injected_encoder_forward.6} parent=0 // pred_check_branch
    %15 = sbr.rel (0) target = $region13
  $region12: #{labs_injected_encoder_forward.6} parent=0 // pred_region
    _
  $region13: #{labs_injected_encoder_forward.6} parent=0 // pred_fallthru
    _
  // Predicated region
  $region14: #{labs_injected_encoder_forward.6} parent=0 // pred_check
    _
  $region15: #{labs_injected_encoder_forward.6} parent=0 // pred_check_branch
    %17 = sbr.rel (0) target = $region17
  $region16: #{labs_injected_encoder_forward.6} parent=0 // pred_region
    _
  $region17: #{labs_injected_encoder_forward.6} parent=0 // pred_fallthru
    _
  // Predicated region
  $region18: #{labs_injected_encoder_forward.6} parent=0 // pred_check
    _
  $region19: #{labs_injected_encoder_forward.6} parent=0 // pred_check_branch
    %19 = sbr.rel (0) target = $region21
  $region20: #{labs_injected_encoder_forward.6} parent=0 // pred_region
    _
  $region21: #{labs_injected_encoder_forward.6} parent=0 // pred_fallthru
    _
  %v21 = vld [vmem:[%s0] sm:$0xff]
  %v22 = vpack.c.bf16 %v21, %v21
  %v23 = vld [vmem:[%s1] sm:$0x7]
  %v24 = vld [vmem:[%s2] sm:$0x1]
  %v26 = vlaneseq
  %v27 = vshrl.u32 %v26, 7
  %v28 = vsub.s32 0, %v27
  %v29 = vrot.slane %v24, %v28
  %vm31 = vcmask 39936
  %v33 = vsel %vm31, %v22, 0
  %vm35 = vcmask 1041408
  %vm36 = vcmask 1042432
  %v37 = vsel %vm35, 4294967295, 65535
  %v38 = vsel %vm36, %v37, 0
  %v40 = vand.u32 %v23, %v38
  %42 = vmatprep.subr.bf16.mxu0 0
  %43 = vmatpush1.bf16.msra.mxu0 %v40
  %44 = vmatprep.subr.bf16.mxu0 0
  %45 = vmatpush1.bf16.msra.mxu0 0
  %46 = vmatprep.subr.bf16.mxu0 0
  %47 = vmatpush1.bf16.msra.mxu0 0
  %48 = vmatprep.subr.bf16.mxu0 0
  %49 = vmatpush1.bf16.msra.mxu0 0
  %50 = vmatprep.subr.bf16.mxu0 0
  %51 = vmatpush1.bf16.msra.mxu0 0
  %52 = vmatprep.subr.bf16.mxu0 0
  %53 = vmatpush1.bf16.msra.mxu0 0
  %54 = vmatprep.subr.bf16.mxu0 0
  %55 = vmatpush1.bf16.msra.mxu0 0
  %56 = vmatprep.subr.bf16.mxu0 0
  %57 = vmatpush1.bf16.msra.mxu0 0
  %58 = vmatprep.subr.bf16.mxu0 0
  %59 = vmatpush1.bf16.msra.mxu0 0
  %60 = vmatprep.subr.bf16.mxu0 0
  %61 = vmatpush1.bf16.msra.mxu0 0
  %62 = vmatprep.subr.bf16.mxu0 0
  %63 = vmatpush1.bf16.msra.mxu0 0
  %64 = vmatprep.subr.bf16.mxu0 0
  %65 = vmatpush1.bf16.msra.mxu0 0
  %66 = vmatprep.subr.bf16.mxu0 0
  %67 = vmatpush1.bf16.msra.mxu0 0
  %68 = vmatprep.subr.bf16.mxu0 0
  %69 = vmatpush1.bf16.msra.mxu0 0
  %70 = vmatprep.subr.bf16.mxu0 0
  %71 = vmatpush1.bf16.msra.mxu0 0
  %72 = vmatprep.subr.bf16.mxu0 0
  %73 = vmatpush1.bf16.msra.mxu0 0
  %74 = vmatprep.mubr.bf16.mxu0 0
  %75 = vmatmul.mubr.bf16.gmra.mrb[0].mxu0 %v33
  %v76 = vpop.f32.mrb[0].mxu0
  %v77 = vadd.f32 %v29, %v76
  %v78 = vpop.f32.mrb[0].mxu0
  %v79 = vpop.f32.mrb[0].mxu0
  %v80 = vpop.f32.mrb[0].mxu0
  %81 = vdwg.mxu0
  %v82 = vpack.c.bf16 %v77, %v77
  %v83 = vld [vmem:[%s3] sm:$0xf]
  %v84 = vld [vmem:[%s3 + $0x4] sm:$0xf]
  %v85 = vld [vmem:[%s3 + $0x8] sm:$0xf]
  %v86 = vld [vmem:[%s3 + $0xc] sm:$0xf]
  %v87 = vld [vmem:[%s4] sm:$0x1]
  %v89 = vlaneseq
  %v90 = vshrl.u32 %v89, 7
  %v91 = vsub.s32 0, %v90
  %v92 = vrot.slane %v87, %v91
  %v98 = vunpack.c.l.b16 %v83
  %v99 = vunpack.c.l.b16 %v84
  %v100 = vunpack.c.l.b16 %v85
  %v101 = vunpack.c.l.b16 %v86
  %v102 = vpack.c.b16 %v99, %v98
  %v103 = vpack.c.b16 %v101, %v100
  %vm106 = vcmask 261120
  %v108 = vsel %vm106, %v82, 0
  %110 = vmatprep.subr.bf16.mxu0 0
  %111 = vmatpush1.bf16.msra.mxu0 %v102
  %112 = vmatprep.subr.bf16.mxu0 0
  %113 = vmatpush1.bf16.msra.mxu0 %v103
  %114 = vmatprep.subr.bf16.mxu0 0
  %115 = vmatpush1.bf16.msra.mxu0 0
  %116 = vmatprep.subr.bf16.mxu0 0
  %117 = vmatpush1.bf16.msra.mxu0 0
  %118 = vmatprep.subr.bf16.mxu0 0
  %119 = vmatpush1.bf16.msra.mxu0 0
  %120 = vmatprep.subr.bf16.mxu0 0
  %121 = vmatpush1.bf16.msra.mxu0 0
  %122 = vmatprep.subr.bf16.mxu0 0
  %123 = vmatpush1.bf16.msra.mxu0 0
  %124 = vmatprep.subr.bf16.mxu0 0
  %125 = vmatpush1.bf16.msra.mxu0 0
  %126 = vmatprep.subr.bf16.mxu0 0
  %127 = vmatpush1.bf16.msra.mxu0 0
  %128 = vmatprep.subr.bf16.mxu0 0
  %129 = vmatpush1.bf16.msra.mxu0 0
  %130 = vmatprep.subr.bf16.mxu0 0
  %131 = vmatpush1.bf16.msra.mxu0 0
  %132 = vmatprep.subr.bf16.mxu0 0
  %133 = vmatpush1.bf16.msra.mxu0 0
  %134 = vmatprep.subr.bf16.mxu0 0
  %135 = vmatpush1.bf16.msra.mxu0 0
  %136 = vmatprep.subr.bf16.mxu0 0
  %137 = vmatpush1.bf16.msra.mxu0 0
  %138 = vmatprep.subr.bf16.mxu0 0
  %139 = vmatpush1.bf16.msra.mxu0 0
  %140 = vmatprep.subr.bf16.mxu0 0
  %141 = vmatpush1.bf16.msra.mxu0 0
  %142 = vmatprep.mubr.bf16.mxu0 0
  %143 = vmatmul.mubr.bf16.gmra.mrb[0].mxu0 %v108
  %v144 = vpop.f32.mrb[0].mxu0
  %v145 = vadd.f32 %v92, %v144
  %v146 = vpop.f32.mrb[0].mxu0
  %v147 = vpop.f32.mrb[0].mxu0
  %v148 = vpop.f32.mrb[0].mxu0
  %149 = vdwg.mxu0
  %150 = vst.msk [vmem:[%s5] sm:$0xff] %vm106, %v145
  // Predicated region
  $region22: #{labs_injected_encoder_forward.6} parent=0 // pred_check
    _
  $region23: #{labs_injected_encoder_forward.6} parent=0 // pred_check_branch
    %152 = sbr.rel (0) target = $region25
  $region24: #{labs_injected_encoder_forward.6} parent=0 // pred_region
    _
  $region25: #{labs_injected_encoder_forward.6} parent=0 // pred_fallthru
    _
  // Predicated region
  $region26: #{labs_injected_encoder_forward.6} parent=0 // pred_check
    _
  $region27: #{labs_injected_encoder_forward.6} parent=0 // pred_check_branch
    %154 = sbr.rel (0) target = $region29
  $region28: #{labs_injected_encoder_forward.6} parent=0 // pred_region
    _
  $region29: #{labs_injected_encoder_forward.6} parent=0 // pred_fallthru
    _

// kernel: labs_injected_encoder_forward.7
$region0: #{labs_injected_encoder_forward.7}
  #allocation0 [shape = 'u32[]', space=smem, size = 0x4, offset = 0x4, fixed_abs, tag = 'smem constant byte address 0x4 - core index']
  #allocation1 [shape = 'u32[144,128]{1,0:T(1,128)}', space=vmem, size = 0x12000, scoped, tag = 'internal scratch']
  %s0 = inlined_call_operand.vmem [shape: bf16[2,4,384], index: 0, kind: input, shape index: {}]
  %s1 = inlined_call_operand.vmem [shape: bf16[4,36], index: 1, kind: input, shape index: {}]
  %s2 = inlined_call_operand.vmem [shape: f32[4,1], index: 2, kind: input, shape index: {}]
  %s3 = inlined_call_operand.vmem [shape: bf16[2,4,384], index: 3, kind: output, shape index: {0}]
  %s4 = inlined_call_operand.vmem [shape: f32[2,4,1], index: 4, kind: output, shape index: {1}]
  %5 = xla_tuple %s3, %s4
  %s6 = sld [smem:[#allocation0]]
  $region53: #{labs_injected_encoder_forward.7} parent=0
    _
  %s8 = ssub.s32 1, %s6
  %s9 = scalar_select 0, %s8, %s6
  loop: start=0, step=1, limit=4
  $region2: #{labs_injected_encoder_forward.7} parent=0 // loop_pre_header
    _
  $region3: #{labs_injected_encoder_forward.7} parent=0 // loop_header
    %s11 = sphi 0, %s15
    %p12 = scmp.ge.s32.totalorder %s11, 4
    %s21 = sphi 0, %s23
    %s24 = sphi 0, %s21
    %s25 = sphi 0, %s24
    %s41 = sphi 0, %s25
    %s45 = sphi 0, %s45
    %s47 = sphi 0, %s45
    %s48 = sphi 0, %s47
    %s62 = sphi 0, %s48
    %s66 = sphi 0, %s66
    %s68 = sphi 0, %s66
    %s69 = sphi 0, %s68
    %s83 = sphi 0, %s69
    %s89 = sphi 0, %s91
    %s92 = sphi 0, %s89
    %s93 = sphi 0, %s92
    %s109 = sphi 0, %s93
    %s115 = sphi 0, %s117
    %s118 = sphi 0, %s115
    %s119 = sphi 0, %s118
    %s135 = sphi 0, %s119
  $region4: #{labs_injected_encoder_forward.7} parent=0 // loop_header_branch
    %14 = sbr.rel (%p12) target = $region8
  $region5: #{labs_injected_encoder_forward.7} parent=0 // loop_body
    %s16 = ssub.s32 %s11, 1
    %s17 = ssub.s32 %s11, 2
    %s18 = sadd.s32 %s11, 1
    %s19 = ssub.s32 %s11, %s18
    %p20 = scmp.eq.s32.totalorder %s19, 0
    %s22 = sadd.s32 %s21, 1
    %s23 = scalar_select %p20, %s21, %s22
    %p26 = pneg %p20
    %p27 = scmp.eq.s32.totalorder %s11, 1
    %p28 = por %p26, %p27
    %p29 = scmp.ne.s32.totalorder %s21, %s24
    %p30 = scmp.eq.s32.totalorder %s11, 0
    %p31 = por %p29, %p30
    %p32 = scmp.ne.s32.totalorder %s21, %s24
    %p33 = scmp.eq.s32.totalorder %s16, 1
    %p34 = por %p32, %p33
    %p35 = scmp.ne.s32.totalorder %s24, %s25
    %p36 = scmp.eq.s32.totalorder %s16, 0
    %p37 = por %p35, %p36
    %p38 = scmp.ne.s32.totalorder %s24, %s25
    %p39 = scmp.eq.s32.totalorder %s17, 1
    %p40 = por %p38, %p39
    %p42 = scmp.ne.s32.totalorder %s25, %s41
    %p43 = scmp.eq.s32.totalorder %s17, 0
    %p44 = por %p42, %p43
    %s46 = sadd.s32 %s45, 1
    %p49 = scmp.eq.s32.totalorder %s11, 1
    %p50 = scmp.ne.s32.totalorder %s45, %s47
    %p51 = scmp.eq.s32.totalorder %s11, 0
    %p52 = por %p50, %p51
    %p53 = scmp.ne.s32.totalorder %s45, %s47
    %p54 = scmp.eq.s32.totalorder %s16, 1
    %p55 = por %p53, %p54
    %p56 = scmp.ne.s32.totalorder %s47, %s48
    %p57 = scmp.eq.s32.totalorder %s16, 0
    %p58 = por %p56, %p57
    %p59 = scmp.ne.s32.totalorder %s47, %s48
    %p60 = scmp.eq.s32.totalorder %s17, 1
    %p61 = por %p59, %p60
    %p63 = scmp.ne.s32.totalorder %s48, %s62
    %p64 = scmp.eq.s32.totalorder %s17, 0
    %p65 = por %p63, %p64
    %s67 = sadd.s32 %s66, 1
    %p70 = scmp.eq.s32.totalorder %s11, 1
    %p71 = scmp.ne.s32.totalorder %s66, %s68
    %p72 = scmp.eq.s32.totalorder %s11, 0
    %p73 = por %p71, %p72
    %p74 = scmp.ne.s32.totalorder %s66, %s68
    %p75 = scmp.eq.s32.totalorder %s16, 1
    %p76 = por %p74, %p75
    %p77 = scmp.ne.s32.totalorder %s68, %s69
    %p78 = scmp.eq.s32.totalorder %s16, 0
    %p79 = por %p77, %p78
    %p80 = scmp.ne.s32.totalorder %s68, %s69
    %p81 = scmp.eq.s32.totalorder %s17, 1
    %p82 = por %p80, %p81
    %p84 = scmp.ne.s32.totalorder %s69, %s83
    %p85 = scmp.eq.s32.totalorder %s17, 0
    %p86 = por %p84, %p85
    %s87 = ssub.s32 %s11, %s18
    %p88 = scmp.eq.s32.totalorder %s87, 0
    %s90 = sadd.s32 %s89, 1
    %s91 = scalar_select %p88, %s89, %s90
    %p94 = pneg %p88
    %p95 = scmp.eq.s32.totalorder %s11, 1
    %p96 = por %p94, %p95
    %p97 = scmp.ne.s32.totalorder %s89, %s92
    %p98 = scmp.eq.s32.totalorder %s11, 0
    %p99 = por %p97, %p98
    %p100 = scmp.ne.s32.totalorder %s89, %s92
    %p101 = scmp.eq.s32.totalorder %s16, 1
    %p102 = por %p100, %p101
    %p103 = scmp.ne.s32.totalorder %s92, %s93
    %p104 = scmp.eq.s32.totalorder %s16, 0
    %p105 = por %p103, %p104
    %p106 = scmp.ne.s32.totalorder %s92, %s93
    %p107 = scmp.eq.s32.totalorder %s17, 1
    %p108 = por %p106, %p107
    %p110 = scmp.ne.s32.totalorder %s93, %s109
    %p111 = scmp.eq.s32.totalorder %s17, 0
    %p112 = por %p110, %p111
    %s113 = ssub.s32 %s11, %s18
    %p114 = scmp.eq.s32.totalorder %s113, 0
    %s116 = sadd.s32 %s115, 1
    %s117 = scalar_select %p114, %s115, %s116
    %p120 = pneg %p114
    %p121 = scmp.eq.s32.totalorder %s11, 1
    %p122 = por %p120, %p121
    %p123 = scmp.ne.s32.totalorder %s115, %s118
    %p124 = scmp.eq.s32.totalorder %s11, 0
    %p125 = por %p123, %p124
    %p126 = scmp.ne.s32.totalorder %s115, %s118
    %p127 = scmp.eq.s32.totalorder %s16, 1
    %p128 = por %p126, %p127
    %p129 = scmp.ne.s32.totalorder %s118, %s119
    %p130 = scmp.eq.s32.totalorder %s16, 0
    %p131 = por %p129, %p130
    %p132 = scmp.ne.s32.totalorder %s118, %s119
    %p133 = scmp.eq.s32.totalorder %s17, 1
    %p134 = por %p132, %p133
    %p136 = scmp.ne.s32.totalorder %s119, %s135
    %p137 = scmp.eq.s32.totalorder %s17, 0
    %p138 = por %p136, %p137
    %p139 = scmp.le.s32.totalorder 1, %s11
    %p140 = scmp.lt.s32.totalorder %s11, 3
    %p141 = pnand %p139, %p140
    %p142 = pneg %p141
    // Predicated region
    $region9: #{labs_injected_encoder_forward.7} parent=5 // pred_check
      _
    $region10: #{labs_injected_encoder_forward.7} parent=5 // pred_check_branch
      %144 = sbr.rel (%p141) target = $region12
    $region11: #{labs_injected_encoder_forward.7} parent=5 // pred_region
      %s145 = ssub.s32 %s11, 1
      // Predicated region
      $region13: #{labs_injected_encoder_forward.7} parent=11 // pred_check
        %p146 = pneg %p58
      $region14: #{labs_injected_encoder_forward.7} parent=11 // pred_check_branch
        %148 = sbr.rel (%p146) target = $region16
      $region15: #{labs_injected_encoder_forward.7} parent=11 // pred_region
        _
      $region16: #{labs_injected_encoder_forward.7} parent=11 // pred_fallthru
        _
      // Predicated region
      $region17: #{labs_injected_encoder_forward.7} parent=11 // pred_check
        %p149 = pneg %p79
      $region18: #{labs_injected_encoder_forward.7} parent=11 // pred_check_branch
        %151 = sbr.rel (%p149) target = $region20
      $region19: #{labs_injected_encoder_forward.7} parent=11 // pred_region
        _
      $region20: #{labs_injected_encoder_forward.7} parent=11 // pred_fallthru
        _
    $region12: #{labs_injected_encoder_forward.7} parent=5 // pred_fallthru
      _
    %p152 = scmp.lt.s32.totalorder %s11, 2
    // Predicated region
    $region21: #{labs_injected_encoder_forward.7} parent=5 // pred_check
      %p153 = pneg %p152
    $region22: #{labs_injected_encoder_forward.7} parent=5 // pred_check_branch
      %155 = sbr.rel (%p153) target = $region24
    $region23: #{labs_injected_encoder_forward.7} parent=5 // pred_region
      // Predicated region
      $region25: #{labs_injected_encoder_forward.7} parent=23 // pred_check
        %p156 = pneg %p31
      $region26: #{labs_injected_encoder_forward.7} parent=23 // pred_check_branch
        %158 = sbr.rel (%p156) target = $region28
      $region27: #{labs_injected_encoder_forward.7} parent=23 // pred_region
        %p159 = scmp.lt.s32.totalorder %s11, 1
        %s160 = scalar_select %p159, %s11, 1
        %s161 = smul.addr %s160, 3
        %s162 = smul.addr %s161, 2
        %s163 = scalar_lea.vmem %s0, %s162
      $region28: #{labs_injected_encoder_forward.7} parent=23 // pred_fallthru
        _
    $region24: #{labs_injected_encoder_forward.7} parent=5 // pred_fallthru
      _
    %p164 = scmp.le.s32.totalorder 1, %s11
    %p165 = scmp.lt.s32.totalorder %s11, 3
    %p166 = pnand %p164, %p165
    %p167 = pneg %p166
    // Predicated region
    $region29: #{labs_injected_encoder_forward.7} parent=5 // pred_check
      _
    $region30: #{labs_injected_encoder_forward.7} parent=5 // pred_check_branch
      %169 = sbr.rel (%p166) target = $region32
    $region31: #{labs_injected_encoder_forward.7} parent=5 // pred_region
      %s170 = ssub.s32 %s11, 1
      %p171 = scmp.lt.s32.totalorder %s16, 1
      %s172 = scalar_select %p171, %s16, 1
      %s173 = smul.addr %s172, 3
      %s174 = smul.addr %s173, 2
      %s175 = scalar_lea.vmem %s0, %s174
      %p176 = pneg %p37
      %p177 = pneg %p34
      %p178 = pneg %p58
      %p179 = pneg %p55
      %p180 = pneg %p79
      %p181 = pneg %p76
      %p182 = pneg %p105
      %p183 = pneg %p102
      %p184 = scmp.lt.s32.totalorder %s16, 1
      %s185 = scalar_select %p184, %s16, 1
      %s186 = smul.addr %s185, 3
      %s187 = smul.addr %s186, 2
      %s188 = scalar_lea.vmem %s3, %s187
      %p189 = pneg %p131
      %p190 = pneg %p128
      %p191 = scmp.lt.s32.totalorder %s16, 1
      %s192 = scalar_select %p191, %s16, 1
      %s193 = smul.addr %s192, 4
      %s194 = scalar_lea.vmem %s4, %s193
      %p195 = scmp.lt.s32.totalorder %s16, 1
      %s196 = scalar_select %p195, %s16, 1
      %s197 = smul.addr %s196, 3
      %s198 = smul.addr %s197, 2
      %s199 = scalar_lea.vmem %s0, %s198
      %p200 = scmp.lt.s32.totalorder %s16, 1
      %s201 = scalar_select %p200, %s16, 1
      %s202 = smul.addr %s201, 3
      %s203 = smul.addr %s202, 2
      %s204 = scalar_lea.vmem %s3, %s203
      %p205 = scmp.lt.s32.totalorder %s16, 1
      %s206 = scalar_select %p205, %s16, 1
      %s207 = smul.addr %s206, 4
      %s208 = scalar_lea.vmem %s4, %s207
      %v210 = vld [vmem:[%s199] sm:$0x3f]
      %v211 = vunpack.c.l.bf16 %v210
      %v212 = vunpack.c.h.bf16 %v210
      %v215 = vcombine.high %v211, %v211
      %v217 = vcombine.low %v211, %v211
      %v218 = vcombine.low %v212, %v212
      %219 = vrot.lane.b32.xlu0 %v217, 127
      %v220 = vpop.permute.xlu0 %219
      %221 = vrot.lane.b32.xlu0 %v211, 127
      %v222 = vpop.permute.xlu0 %221
      %223 = vrot.lane.b32.xlu0 %v218, 127
      %v224 = vpop.permute.xlu0 %223
      %vm225 = vcmask 1039360
      %v226 = vsel %vm225, %v220, %v222
      %v227 = vsel %vm225, %v222, %v224
      %231 = vrot.lane.b32.xlu0 %v211, 126
      %v232 = vpop.permute.xlu0 %231
      %233 = vrot.lane.b32.xlu0 %v215, 126
      %v234 = vpop.permute.xlu0 %233
      %235 = vrot.lane.b32.xlu0 %v212, 126
      %v236 = vpop.permute.xlu0 %235
      %vm237 = vcmask 1031168
      %v238 = vsel %vm237, %v232, %v234
      %v239 = vsel %vm237, %v234, %v236
      %243 = vrot.lane.b32.xlu0 %v217, 110
      %v244 = vpop.permute.xlu0 %243
      %245 = vrot.lane.b32.xlu0 %v211, 110
      %v246 = vpop.permute.xlu0 %245
      %247 = vrot.lane.b32.xlu0 %v218, 110
      %v248 = vpop.permute.xlu0 %247
      %vm249 = vcmask 900096
      %v250 = vsel %vm249, %v244, %v246
      %v251 = vsel %vm249, %v246, %v248
      %255 = vrot.lane.b32.xlu0 %v211, 109
      %v256 = vpop.permute.xlu0 %255
      %257 = vrot.lane.b32.xlu0 %v215, 109
      %v258 = vpop.permute.xlu0 %257
      %259 = vrot.lane.b32.xlu0 %v212, 109
      %v260 = vpop.permute.xlu0 %259
      %vm261 = vcmask 891904
      %v262 = vsel %vm261, %v256, %v258
      %v263 = vsel %vm261, %v258, %v260
      %267 = vrot.lane.b32.xlu0 %v217, 108
      %v268 = vpop.permute.xlu0 %267
      %269 = vrot.lane.b32.xlu0 %v211, 108
      %v270 = vpop.permute.xlu0 %269
      %271 = vrot.lane.b32.xlu0 %v218, 108
      %v272 = vpop.permute.xlu0 %271
      %vm273 = vcmask 883712
      %v274 = vsel %vm273, %v268, %v270
      %v275 = vsel %vm273, %v270, %v272
      %279 = vrot.lane.b32.xlu0 %v211, 92
      %v280 = vpop.permute.xlu0 %279
      %281 = vrot.lane.b32.xlu0 %v215, 92
      %v282 = vpop.permute.xlu0 %281
      %283 = vrot.lane.b32.xlu0 %v212, 92
      %v284 = vpop.permute.xlu0 %283
      %vm285 = vcmask 752640
      %v286 = vsel %vm285, %v280, %v282
      %v287 = vsel %vm285, %v282, %v284
      %291 = vrot.lane.b32.xlu0 %v217, 91
      %v292 = vpop.permute.xlu0 %291
      %293 = vrot.lane.b32.xlu0 %v211, 91
      %v294 = vpop.permute.xlu0 %293
      %295 = vrot.lane.b32.xlu0 %v218, 91
      %v296 = vpop.permute.xlu0 %295
      %vm297 = vcmask 744448
      %v298 = vsel %vm297, %v292, %v294
      %v299 = vsel %vm297, %v294, %v296
      %303 = vrot.lane.b32.xlu0 %v211, 90
      %v304 = vpop.permute.xlu0 %303
      %305 = vrot.lane.b32.xlu0 %v215, 90
      %v306 = vpop.permute.xlu0 %305
      %307 = vrot.lane.b32.xlu0 %v212, 90
      %v308 = vpop.permute.xlu0 %307
      %vm309 = vcmask 736256
      %v310 = vsel %vm309, %v304, %v306
      %v311 = vsel %vm309, %v306, %v308
      %vm315 = vcmask 1043456
      %v316 = vsel %vm315, %v211, %v226
      %v317 = vsel %vm315, %v215, %v227
      %v318 = vsel %vm315, %v212, %v224
      %v319 = vsel %vm315, %v238, %v250
      %v320 = vsel %vm315, %v239, %v251
      %v321 = vsel %vm315, %v236, %v248
      %v322 = vsel %vm315, %v262, %v274
      %v323 = vsel %vm315, %v263, %v275
      %v324 = vsel %vm315, %v260, %v272
      %v325 = vsel %vm315, %v286, %v298
      %v326 = vsel %vm315, %v287, %v299
      %v327 = vsel %vm315, %v284, %v296
      %v328 = vpack.c.bf16 %v319, %v316
      %v329 = vpack.c.bf16 %v320, %v317
      %v330 = vpack.c.bf16 %v321, %v318
      %v331 = vpack.c.bf16 %v325, %v322
      %v332 = vpack.c.bf16 %v326, %v323
      %v333 = vpack.c.bf16 %v327, %v324
      %v334 = vpack.c.bf16 %v310, %v310
      %v335 = vpack.c.bf16 %v311, %v311
      %v336 = vpack.c.bf16 %v308, %v308
      %v337 = vld [vmem:[%s1] sm:$0x3]
      %v338 = vld [vmem:[%s2] sm:$0xf]
      %340 = vset.pattern.permute.xlu0 0
      %341 = vperm.xlu0 %340, %v338
      %v342 = vpop.permute.xlu0 %341
      %vm344 = vcmask 293888
      %v346 = vsel %vm344, %v337, 0
      %vm348 = vcmask 1041408
      %v350 = vsel %vm348, %v334, 0
      %v353 = vsel %vm348, %v335, 0
      %v356 = vsel %vm348, %v336, 0
      %358 = vmatprep.subr.bf16.mxu0 %v329
      %359 = vmatpush1.bf16.msra.mxu0 %v328
      %360 = vmatprep.subr.bf16.mxu0 %v332
      %361 = vmatpush1.bf16.msra.mxu0 %v331
      %362 = vmatprep.subr.bf16.mxu0 %v353
      %363 = vmatpush1.bf16.msra.mxu0 %v350
      %364 = vmatprep.subr.bf16.mxu0 0
      %365 = vmatpush1.bf16.msra.mxu0 0
      %366 = vmatprep.subr.bf16.mxu0 0
      %367 = vmatpush1.bf16.msra.mxu0 0
      %368 = vmatprep.subr.bf16.mxu0 0
      %369 = vmatpush1.bf16.msra.mxu0 0
      %370 = vmatprep.subr.bf16.mxu0 0
      %371 = vmatpush1.bf16.msra.mxu0 0
      %372 = vmatprep.subr.bf16.mxu0 0
      %373 = vmatpush1.bf16.msra.mxu0 0
      %374 = vmatprep.subr.bf16.mxu0 0
      %375 = vmatpush1.bf16.msra.mxu0 0
      %376 = vmatprep.subr.bf16.mxu0 0
      %377 = vmatpush1.bf16.msra.mxu0 0
      %378 = vmatprep.subr.bf16.mxu0 0
      %379 = vmatpush1.bf16.msra.mxu0 0
      %380 = vmatprep.subr.bf16.mxu0 0
      %381 = vmatpush1.bf16.msra.mxu0 0
      %382 = vmatprep.subr.bf16.mxu0 0
      %383 = vmatpush1.bf16.msra.mxu0 0
      %384 = vmatprep.subr.bf16.mxu0 0
      %385 = vmatpush1.bf16.msra.mxu0 0
      %386 = vmatprep.subr.bf16.mxu0 0
      %387 = vmatpush1.bf16.msra.mxu0 0
      %388 = vmatprep.subr.bf16.mxu0 0
      %389 = vmatpush1.bf16.msra.mxu0 0
      %390 = vmatprep.mubr.bf16.mxu0 0
      %391 = vmatmul.mubr.bf16.gmra.mrb[0].mxu0 %v346
      %v392 = vpop.f32.mrb[0].mxu0
      %v393 = vadd.f32 %v342, %v392
      %v394 = vpop.f32.mrb[0].mxu0
      %v395 = vadd.f32 %v342, %v394
      %v396 = vpop.f32.mrb[0].mxu0
      %v397 = vpop.f32.mrb[0].mxu0
      %398 = vdwg.mxu0
      %399 = vmatprep.subr.bf16.mxu0 0
      %400 = vmatpush1.bf16.msra.mxu0 %v330
      %401 = vmatprep.subr.bf16.mxu0 0
      %402 = vmatpush1.bf16.msra.mxu0 %v333
      %403 = vmatprep.subr.bf16.mxu0 0
      %404 = vmatpush1.bf16.msra.mxu0 %v356
      %405 = vmatprep.subr.bf16.mxu0 0
      %406 = vmatpush1.bf16.msra.mxu0 0
      %407 = vmatprep.subr.bf16.mxu0 0
      %408 = vmatpush1.bf16.msra.mxu0 0
      %409 = vmatprep.subr.bf16.mxu0 0
      %410 = vmatpush1.bf16.msra.mxu0 0
      %411 = vmatprep.subr.bf16.mxu0 0
      %412 = vmatpush1.bf16.msra.mxu0 0
      %413 = vmatprep.subr.bf16.mxu0 0
      %414 = vmatpush1.bf16.msra.mxu0 0
      %415 = vmatprep.subr.bf16.mxu0 0
      %416 = vmatpush1.bf16.msra.mxu0 0
      %417 = vmatprep.subr.bf16.mxu0 0
      %418 = vmatpush1.bf16.msra.mxu0 0
      %419 = vmatprep.subr.bf16.mxu0 0
      %420 = vmatpush1.bf16.msra.mxu0 0
      %421 = vmatprep.subr.bf16.mxu0 0
      %422 = vmatpush1.bf16.msra.mxu0 0
      %423 = vmatprep.subr.bf16.mxu0 0
      %424 = vmatpush1.bf16.msra.mxu0 0
      %425 = vmatprep.subr.bf16.mxu0 0
      %426 = vmatpush1.bf16.msra.mxu0 0
      %427 = vmatprep.subr.bf16.mxu0 0
      %428 = vmatpush1.bf16.msra.mxu0 0
      %429 = vmatprep.subr.bf16.mxu0 0
      %430 = vmatpush1.bf16.msra.mxu0 0
      %431 = vmatprep.mubr.bf16.mxu0 0
      %432 = vmatmul.mubr.bf16.gmra.mrb[0].mxu0 %v346
      %v433 = vpop.f32.mrb[0].mxu0
      %v434 = vadd.f32 %v342, %v433
      %v435 = vpop.f32.mrb[0].mxu0
      %v436 = vpop.f32.mrb[0].mxu0
      %v437 = vpop.f32.mrb[0].mxu0
      %438 = vdwg.mxu0
      %v439 = vlaneseq
      %v440 = vand.u32 %v439, 127
      %v441 = vadd.s32 %v440, 128
      %v442 = vadd.s32 %v440, 256
      %vm443 = vcmp.lt.s32.totalorder %v440, 0
      %v444 = vsub.s32 0, %v440
      %v445 = vsel %vm443, %v444, %v440
      %v446 = vmul.u32.u64.compose %v445, 3817748708
      %v447 = vextract.low.u32 %v446
      %v448 = vextract.high.u32 %v446
      %v449 = vshrl.u32 %v448, 4
      %v450 = vmul.u32 %v449, 18
      %v451 = vsub.s32 %v445, %v450
      %v452 = vsub.s32 0, %v451
      %v453 = vsel %vm443, %v452, %v451
      %vm454 = vcmp.lt.s32.totalorder %v441, 0
      %v455 = vsub.s32 0, %v441
      %v456 = vsel %vm454, %v455, %v441
      %v457 = vmul.u32.u64.compose %v456, 3817748708
      %v458 = vextract.low.u32 %v457
      %v459 = vextract.high.u32 %v457
      %v460 = vshrl.u32 %v459, 4
      %v461 = vmul.u32 %v460, 18
      %v462 = vsub.s32 %v456, %v461
      %v463 = vsub.s32 0, %v462
      %v464 = vsel %vm454, %v463, %v462
      %vm465 = vcmp.lt.s32.totalorder %v442, 0
      %v466 = vsub.s32 0, %v442
      %v467 = vsel %vm465, %v466, %v442
      %v468 = vmul.u32.u64.compose %v467, 3817748708
      %v469 = vextract.low.u32 %v468
      %v470 = vextract.high.u32 %v468
      %v471 = vshrl.u32 %v470, 4
      %v472 = vmul.u32 %v471, 18
      %v473 = vsub.s32 %v467, %v472
      %v474 = vsub.s32 0, %v473
      %v475 = vsel %vm465, %v474, %v473
      %vm476 = vcmp.ne.s32.totalorder %v453, 0
      %vm477 = vcmp.ne.s32.totalorder %v464, 0
      %vm478 = vcmp.ne.s32.totalorder %v475, 0
      %vm479 = vcmp.lt.s32.totalorder %v453, 0
      %vm480 = vcmp.lt.s32.totalorder %v464, 0
      %vm481 = vcmp.lt.s32.totalorder %v475, 0
      %vm482 = vmand %vm479, %vm476
      %vm483 = vmand %vm480, %vm477
      %vm484 = vmand %vm481, %vm478
      %v485 = vadd.s32 %v453, 18
      %v486 = vadd.s32 %v464, 18
      %v487 = vadd.s32 %v475, 18
      %v488 = vsel %vm482, %v485, %v453
      %v489 = vsel %vm483, %v486, %v464
      %v490 = vsel %vm484, %v487, %v475
      %vm491 = vcmp.lt.s32.totalorder %v488, 16
      %vm492 = vcmp.lt.s32.totalorder %v489, 16
      %vm493 = vcmp.lt.s32.totalorder %v490, 16
      %v494 = vsel %vm491, 1, 0
      %v495 = vsel %vm492, 1, 0
      %v496 = vsel %vm493, 1, 0
      %vm497 = vcmp.eq.s32.totalorder %v494, 1
      %vm498 = vcmp.eq.s32.totalorder %v495, 1
      %vm499 = vcmp.eq.s32.totalorder %v496, 1
      %v500 = vsel %vm497, %v393, 0.0
      %v501 = vsel %vm498, %v395, 0.0
      %v502 = vsel %vm499, %v434, 0.0
      %v503 = vsel %vm315, %v500, 0.0
      %v504 = vsel %vm315, %v501, 0.0
      %v505 = vadd.f32 %v503, %v504
      %vm506 = vcmask 257024
      %v507 = vsel %vm506, %v502, 0.0
      %v508 = vadd.f32 %v505, %v507
      %509 = vadd.xlane.f32.xlu0 %v508
      %v510 = vpop.xlane.xlu0 %509
      %v511 = vmul.f32 %v510, 0.00390625
      %vm512 = vcmask 3072
      %513 = vst.msk [vmem:[%s208] sm:$0xf] %vm512, %v511
      %vm514 = vcmask 148480
      %515 = vst.msk [vmem:[%s204] sm:$0x3] %vm514, 0
      %v516 = vpack.c.bf16 %v500, %v500
      %v517 = vpack.c.bf16 %v501, %v501
      %v518 = vpack.c.bf16 %v502, %v502
      %v522 = vcombine.low %v516, %v517
      %v524 = vunpack.c.l.s4 1983009808
      %v525 = vunpack.c.0.s8 %v524
      %v526 = vlaneseq
      %v527 = vshrl.u32 %v526, 7
      %v528 = vsub.s32 %v525, %v527
      %v529 = vrot.slane %v522, %v528
      %v531 = vunpack.c.l.s4 1983009808
      %v532 = vunpack.c.0.s8 %v531
      %v533 = vlaneseq
      %v534 = vshrl.u32 %v533, 7
      %v535 = vsub.s32 %v532, %v534
      %v536 = vrot.slane %v518, %v535
      %v537 = vcombine.low %v529, %v536
      %538 = vrot.lane.b32.xlu0 %v537, 19
      %v539 = vpop.permute.xlu0 %538
      %v540 = vrot.slane %v539, 6
      %vm541 = vcmask 154624
      %v542 = vsel %vm541, %v540, %v539
      %vm544 = vcmask 1041560
      %vm545 = vcmask 1043458
      %vm546 = vmor %vm545, %vm544
      %vm547 = vcmask 414724
      %vm548 = vmor %vm547, %vm546
      %549 = vst.msk [vmem:[%s204] sm:$0x3f] %vm548, %v542
      %vm550 = vcmask 1041816
      %551 = vst.msk [vmem:[%s204 + $0x4] sm:$0x3] %vm550, 0
      %p552 = scmp.lt.s32.totalorder %s16, 1
      %s553 = scalar_select %p552, %s16, 1
      %s554 = smul.addr %s553, 3
      %s555 = smul.addr %s554, 2
      %s556 = scalar_lea.vmem %s3, %s555
      %p557 = scmp.lt.s32.totalorder %s16, 1
      %s558 = scalar_select %p557, %s16, 1
      %s559 = smul.addr %s558, 4
      %s560 = scalar_lea.vmem %s4, %s559
      // Predicated region
      $region33: #{labs_injected_encoder_forward.7} parent=31 // pred_check
        %p561 = pneg %p102
      $region34: #{labs_injected_encoder_forward.7} parent=31 // pred_check_branch
        %563 = sbr.rel (%p561) target = $region36
      $region35: #{labs_injected_encoder_forward.7} parent=31 // pred_region
        _
      $region36: #{labs_injected_encoder_forward.7} parent=31 // pred_fallthru
        _
      // Predicated region
      $region37: #{labs_injected_encoder_forward.7} parent=31 // pred_check
        %p564 = pneg %p128
      $region38: #{labs_injected_encoder_forward.7} parent=31 // pred_check_branch
        %566 = sbr.rel (%p564) target = $region40
      $region39: #{labs_injected_encoder_forward.7} parent=31 // pred_region
        _
      $region40: #{labs_injected_encoder_forward.7} parent=31 // pred_fallthru
        _
    $region32: #{labs_injected_encoder_forward.7} parent=5 // pred_fallthru
      _
    %p567 = scmp.le.s32.totalorder 2, %s11
    // Predicated region
    $region41: #{labs_injected_encoder_forward.7} parent=5 // pred_check
      %p568 = pneg %p567
    $region42: #{labs_injected_encoder_forward.7} parent=5 // pred_check_branch
      %570 = sbr.rel (%p568) target = $region44
    $region43: #{labs_injected_encoder_forward.7} parent=5 // pred_region
      %s571 = ssub.s32 %s11, 2
      // Predicated region
      $region45: #{labs_injected_encoder_forward.7} parent=43 // pred_check
        %p572 = pneg %p108
      $region46: #{labs_injected_encoder_forward.7} parent=43 // pred_check_branch
        %574 = sbr.rel (%p572) target = $region48
      $region47: #{labs_injected_encoder_forward.7} parent=43 // pred_region
        %p575 = scmp.lt.s32.totalorder %s17, 1
        %s576 = scalar_select %p575, %s17, 1
        %s577 = smul.addr %s576, 3
        %s578 = smul.addr %s577, 2
        %s579 = scalar_lea.vmem %s3, %s578
      $region48: #{labs_injected_encoder_forward.7} parent=43 // pred_fallthru
        _
      // Predicated region
      $region49: #{labs_injected_encoder_forward.7} parent=43 // pred_check
        %p580 = pneg %p134
      $region50: #{labs_injected_encoder_forward.7} parent=43 // pred_check_branch
        %582 = sbr.rel (%p580) target = $region52
      $region51: #{labs_injected_encoder_forward.7} parent=43 // pred_region
        %p583 = scmp.lt.s32.totalorder %s17, 1
        %s584 = scalar_select %p583, %s17, 1
        %s585 = smul.addr %s584, 4
        %s586 = scalar_lea.vmem %s4, %s585
      $region52: #{labs_injected_encoder_forward.7} parent=43 // pred_fallthru
        _
    $region44: #{labs_injected_encoder_forward.7} parent=5 // pred_fallthru
      _
  $region6: #{labs_injected_encoder_forward.7} parent=0 // loop_footer
    %s15 = sadd.s32 1, %s11
  $region7: #{labs_injected_encoder_forward.7} parent=0 // loop_footer_branch
    %10 = sbr.rel target = $region3
  $region8: #{labs_injected_encoder_forward.7} parent=0 // loop_exit
    _

// kernel: labs_injected_encoder_forward.9
$region0: #{labs_injected_encoder_forward.9}
  #allocation0 [shape = 'u32[]', space=smem, size = 0x4, offset = 0x4, fixed_abs, tag = 'smem constant byte address 0x4 - core index']
  #allocation1 [shape = 'u32[144,128]{1,0:T(1,128)}', space=vmem, size = 0x12000, scoped, tag = 'internal scratch']
  %s0 = inlined_call_operand.vmem [shape: bf16[2,8,128], index: 0, kind: input, shape index: {}]
  %s1 = inlined_call_operand.vmem [shape: f32[2,1,32], index: 1, kind: input, shape index: {}]
  %s2 = inlined_call_operand.vmem [shape: f32[8,32], index: 2, kind: input, shape index: {}]
  %s3 = inlined_call_operand.vmem [shape: f32[8,1], index: 3, kind: input, shape index: {}, may-alias: {3,5,7}]
  %s4 = inlined_call_operand.vmem [shape: f32[8,32], index: 4, kind: input, shape index: {}]
  %s5 = inlined_call_operand.vmem [shape: f32[8,1], index: 5, kind: input, shape index: {}, may-alias: {3,5,7}]
  %s6 = inlined_call_operand.vmem [shape: bf16[8,216], index: 6, kind: input, shape index: {}]
  %s7 = inlined_call_operand.vmem [shape: f32[8,1], index: 7, kind: input, shape index: {}, may-alias: {3,5,7}]
  %s8 = inlined_call_operand.vmem [shape: bf16[12,96], index: 8, kind: input, shape index: {}]
  %s9 = inlined_call_operand.vmem [shape: f32[12,1], index: 9, kind: input, shape index: {}]
  %s10 = inlined_call_operand.vmem [shape: bf16[80,128], index: 10, kind: input, shape index: {}]
  %s11 = inlined_call_operand.vmem [shape: bf16[2,12,128], index: 11, kind: output, shape index: {0}]
  %s12 = inlined_call_operand.vmem [shape: f32[2,12,1], index: 12, kind: output, shape index: {1}]
  %13 = xla_tuple %s11, %s12
  %s14 = sld [smem:[#allocation0]]
  $region85: #{labs_injected_encoder_forward.9} parent=0
    _
  %s16 = ssub.s32 1, %s14
  %s17 = scalar_select 0, %s16, %s14
  loop: start=0, step=1, limit=4
  $region2: #{labs_injected_encoder_forward.9} parent=0 // loop_pre_header
    _
  $region3: #{labs_injected_encoder_forward.9} parent=0 // loop_header
    %s19 = sphi 0, %s23
    %p20 = scmp.ge.s32.totalorder %s19, 4
    %s29 = sphi 0, %s31
    %s32 = sphi 0, %s29
    %s33 = sphi 0, %s32
    %s49 = sphi 0, %s33
    %s55 = sphi 0, %s57
    %s58 = sphi 0, %s55
    %s59 = sphi 0, %s58
    %s75 = sphi 0, %s59
    %s79 = sphi 0, %s79
    %s81 = sphi 0, %s79
    %s82 = sphi 0, %s81
    %s96 = sphi 0, %s82
    %s100 = sphi 0, %s100
    %s102 = sphi 0, %s100
    %s103 = sphi 0, %s102
    %s117 = sphi 0, %s103
    %s121 = sphi 0, %s121
    %s123 = sphi 0, %s121
    %s124 = sphi 0, %s123
    %s138 = sphi 0, %s124
    %s142 = sphi 0, %s142
    %s144 = sphi 0, %s142
    %s145 = sphi 0, %s144
    %s159 = sphi 0, %s145
    %s163 = sphi 0, %s163
    %s165 = sphi 0, %s163
    %s166 = sphi 0, %s165
    %s180 = sphi 0, %s166
    %s184 = sphi 0, %s184
    %s186 = sphi 0, %s184
    %s187 = sphi 0, %s186
    %s201 = sphi 0, %s187
    %s205 = sphi 0, %s205
    %s207 = sphi 0, %s205
    %s208 = sphi 0, %s207
    %s222 = sphi 0, %s208
    %s226 = sphi 0, %s226
    %s228 = sphi 0, %s226
    %s229 = sphi 0, %s228
    %s243 = sphi 0, %s229
    %s247 = sphi 0, %s247
    %s249 = sphi 0, %s247
    %s250 = sphi 0, %s249
    %s264 = sphi 0, %s250
    %s270 = sphi 0, %s272
    %s273 = sphi 0, %s270
    %s274 = sphi 0, %s273
    %s290 = sphi 0, %s274
    %s296 = sphi 0, %s298
    %s299 = sphi 0, %s296
    %s300 = sphi 0, %s299
    %s316 = sphi 0, %s300
  $region4: #{labs_injected_encoder_forward.9} parent=0 // loop_header_branch
    %22 = sbr.rel (%p20) target = $region8
  $region5: #{labs_injected_encoder_forward.9} parent=0 // loop_body
    %s24 = ssub.s32 %s19, 1
    %s25 = ssub.s32 %s19, 2
    %s26 = sadd.s32 %s19, 1
    %s27 = ssub.s32 %s19, %s26
    %p28 = scmp.eq.s32.totalorder %s27, 0
    %s30 = sadd.s32 %s29, 1
    %s31 = scalar_select %p28, %s29, %s30
    %p34 = pneg %p28
    %p35 = scmp.eq.s32.totalorder %s19, 1
    %p36 = por %p34, %p35
    %p37 = scmp.ne.s32.totalorder %s29, %s32
    %p38 = scmp.eq.s32.totalorder %s19, 0
    %p39 = por %p37, %p38
    %p40 = scmp.ne.s32.totalorder %s29, %s32
    %p41 = scmp.eq.s32.totalorder %s24, 1
    %p42 = por %p40, %p41
    %p43 = scmp.ne.s32.totalorder %s32, %s33
    %p44 = scmp.eq.s32.totalorder %s24, 0
    %p45 = por %p43, %p44
    %p46 = scmp.ne.s32.totalorder %s32, %s33
    %p47 = scmp.eq.s32.totalorder %s25, 1
    %p48 = por %p46, %p47
    %p50 = scmp.ne.s32.totalorder %s33, %s49
    %p51 = scmp.eq.s32.totalorder %s25, 0
    %p52 = por %p50, %p51
    %s53 = ssub.s32 %s19, %s26
    %p54 = scmp.eq.s32.totalorder %s53, 0
    %s56 = sadd.s32 %s55, 1
    %s57 = scalar_select %p54, %s55, %s56
    %p60 = pneg %p54
    %p61 = scmp.eq.s32.totalorder %s19, 1
    %p62 = por %p60, %p61
    %p63 = scmp.ne.s32.totalorder %s55, %s58
    %p64 = scmp.eq.s32.totalorder %s19, 0
    %p65 = por %p63, %p64
    %p66 = scmp.ne.s32.totalorder %s55, %s58
    %p67 = scmp.eq.s32.totalorder %s24, 1
    %p68 = por %p66, %p67
    %p69 = scmp.ne.s32.totalorder %s58, %s59
    %p70 = scmp.eq.s32.totalorder %s24, 0
    %p71 = por %p69, %p70
    %p72 = scmp.ne.s32.totalorder %s58, %s59
    %p73 = scmp.eq.s32.totalorder %s25, 1
    %p74 = por %p72, %p73
    %p76 = scmp.ne.s32.totalorder %s59, %s75
    %p77 = scmp.eq.s32.totalorder %s25, 0
    %p78 = por %p76, %p77
    %s80 = sadd.s32 %s79, 1
    %p83 = scmp.eq.s32.totalorder %s19, 1
    %p84 = scmp.ne.s32.totalorder %s79, %s81
    %p85 = scmp.eq.s32.totalorder %s19, 0
    %p86 = por %p84, %p85
    %p87 = scmp.ne.s32.totalorder %s79, %s81
    %p88 = scmp.eq.s32.totalorder %s24, 1
    %p89 = por %p87, %p88
    %p90 = scmp.ne.s32.totalorder %s81, %s82
    %p91 = scmp.eq.s32.totalorder %s24, 0
    %p92 = por %p90, %p91
    %p93 = scmp.ne.s32.totalorder %s81, %s82
    %p94 = scmp.eq.s32.totalorder %s25, 1
    %p95 = por %p93, %p94
    %p97 = scmp.ne.s32.totalorder %s82, %s96
    %p98 = scmp.eq.s32.totalorder %s25, 0
    %p99 = por %p97, %p98
    %s101 = sadd.s32 %s100, 1
    %p104 = scmp.eq.s32.totalorder %s19, 1
    %p105 = scmp.ne.s32.totalorder %s100, %s102
    %p106 = scmp.eq.s32.totalorder %s19, 0
    %p107 = por %p105, %p106
    %p108 = scmp.ne.s32.totalorder %s100, %s102
    %p109 = scmp.eq.s32.totalorder %s24, 1
    %p110 = por %p108, %p109
    %p111 = scmp.ne.s32.totalorder %s102, %s103
    %p112 = scmp.eq.s32.totalorder %s24, 0
    %p113 = por %p111, %p112
    %p114 = scmp.ne.s32.totalorder %s102, %s103
    %p115 = scmp.eq.s32.totalorder %s25, 1
    %p116 = por %p114, %p115
    %p118 = scmp.ne.s32.totalorder %s103, %s117
    %p119 = scmp.eq.s32.totalorder %s25, 0
    %p120 = por %p118, %p119
    %s122 = sadd.s32 %s121, 1
    %p125 = scmp.eq.s32.totalorder %s19, 1
    %p126 = scmp.ne.s32.totalorder %s121, %s123
    %p127 = scmp.eq.s32.totalorder %s19, 0
    %p128 = por %p126, %p127
    %p129 = scmp.ne.s32.totalorder %s121, %s123
    %p130 = scmp.eq.s32.totalorder %s24, 1
    %p131 = por %p129, %p130
    %p132 = scmp.ne.s32.totalorder %s123, %s124
    %p133 = scmp.eq.s32.totalorder %s24, 0
    %p134 = por %p132, %p133
    %p135 = scmp.ne.s32.totalorder %s123, %s124
    %p136 = scmp.eq.s32.totalorder %s25, 1
    %p137 = por %p135, %p136
    %p139 = scmp.ne.s32.totalorder %s124, %s138
    %p140 = scmp.eq.s32.totalorder %s25, 0
    %p141 = por %p139, %p140
    %s143 = sadd.s32 %s142, 1
    %p146 = scmp.eq.s32.totalorder %s19, 1
    %p147 = scmp.ne.s32.totalorder %s142, %s144
    %p148 = scmp.eq.s32.totalorder %s19, 0
    %p149 = por %p147, %p148
    %p150 = scmp.ne.s32.totalorder %s142, %s144
    %p151 = scmp.eq.s32.totalorder %s24, 1
    %p152 = por %p150, %p151
    %p153 = scmp.ne.s32.totalorder %s144, %s145
    %p154 = scmp.eq.s32.totalorder %s24, 0
    %p155 = por %p153, %p154
    %p156 = scmp.ne.s32.totalorder %s144, %s145
    %p157 = scmp.eq.s32.totalorder %s25, 1
    %p158 = por %p156, %p157
    %p160 = scmp.ne.s32.totalorder %s145, %s159
    %p161 = scmp.eq.s32.totalorder %s25, 0
    %p162 = por %p160, %p161
    %s164 = sadd.s32 %s163, 1
    %p167 = scmp.eq.s32.totalorder %s19, 1
    %p168 = scmp.ne.s32.totalorder %s163, %s165
    %p169 = scmp.eq.s32.totalorder %s19, 0
    %p170 = por %p168, %p169
    %p171 = scmp.ne.s32.totalorder %s163, %s165
    %p172 = scmp.eq.s32.totalorder %s24, 1
    %p173 = por %p171, %p172
    %p174 = scmp.ne.s32.totalorder %s165, %s166
    %p175 = scmp.eq.s32.totalorder %s24, 0
    %p176 = por %p174, %p175
    %p177 = scmp.ne.s32.totalorder %s165, %s166
    %p178 = scmp.eq.s32.totalorder %s25, 1
    %p179 = por %p177, %p178
    %p181 = scmp.ne.s32.totalorder %s166, %s180
    %p182 = scmp.eq.s32.totalorder %s25, 0
    %p183 = por %p181, %p182
    %s185 = sadd.s32 %s184, 1
    %p188 = scmp.eq.s32.totalorder %s19, 1
    %p189 = scmp.ne.s32.totalorder %s184, %s186
    %p190 = scmp.eq.s32.totalorder %s19, 0
    %p191 = por %p189, %p190
    %p192 = scmp.ne.s32.totalorder %s184, %s186
    %p193 = scmp.eq.s32.totalorder %s24, 1
    %p194 = por %p192, %p193
    %p195 = scmp.ne.s32.totalorder %s186, %s187
    %p196 = scmp.eq.s32.totalorder %s24, 0
    %p197 = por %p195, %p196
    %p198 = scmp.ne.s32.totalorder %s186, %s187
    %p199 = scmp.eq.s32.totalorder %s25, 1
    %p200 = por %p198, %p199
    %p202 = scmp.ne.s32.totalorder %s187, %s201
    %p203 = scmp.eq.s32.totalorder %s25, 0
    %p204 = por %p202, %p203
    %s206 = sadd.s32 %s205, 1
    %p209 = scmp.eq.s32.totalorder %s19, 1
    %p210 = scmp.ne.s32.totalorder %s205, %s207
    %p211 = scmp.eq.s32.totalorder %s19, 0
    %p212 = por %p210, %p211
    %p213 = scmp.ne.s32.totalorder %s205, %s207
    %p214 = scmp.eq.s32.totalorder %s24, 1
    %p215 = por %p213, %p214
    %p216 = scmp.ne.s32.totalorder %s207, %s208
    %p217 = scmp.eq.s32.totalorder %s24, 0
    %p218 = por %p216, %p217
    %p219 = scmp.ne.s32.totalorder %s207, %s208
    %p220 = scmp.eq.s32.totalorder %s25, 1
    %p221 = por %p219, %p220
    %p223 = scmp.ne.s32.totalorder %s208, %s222
    %p224 = scmp.eq.s32.totalorder %s25, 0
    %p225 = por %p223, %p224
    %s227 = sadd.s32 %s226, 1
    %p230 = scmp.eq.s32.totalorder %s19, 1
    %p231 = scmp.ne.s32.totalorder %s226, %s228
    %p232 = scmp.eq.s32.totalorder %s19, 0
    %p233 = por %p231, %p232
    %p234 = scmp.ne.s32.totalorder %s226, %s228
    %p235 = scmp.eq.s32.totalorder %s24, 1
    %p236 = por %p234, %p235
    %p237 = scmp.ne.s32.totalorder %s228, %s229
    %p238 = scmp.eq.s32.totalorder %s24, 0
    %p239 = por %p237, %p238
    %p240 = scmp.ne.s32.totalorder %s228, %s229
    %p241 = scmp.eq.s32.totalorder %s25, 1
    %p242 = por %p240, %p241
    %p244 = scmp.ne.s32.totalorder %s229, %s243
    %p245 = scmp.eq.s32.totalorder %s25, 0
    %p246 = por %p244, %p245
    %s248 = sadd.s32 %s247, 1
    %p251 = scmp.eq.s32.totalorder %s19, 1
    %p252 = scmp.ne.s32.totalorder %s247, %s249
    %p253 = scmp.eq.s32.totalorder %s19, 0
    %p254 = por %p252, %p253
    %p255 = scmp.ne.s32.totalorder %s247, %s249
    %p256 = scmp.eq.s32.totalorder %s24, 1
    %p257 = por %p255, %p256
    %p258 = scmp.ne.s32.totalorder %s249, %s250
    %p259 = scmp.eq.s32.totalorder %s24, 0
    %p260 = por %p258, %p259
    %p261 = scmp.ne.s32.totalorder %s249, %s250
    %p262 = scmp.eq.s32.totalorder %s25, 1
    %p263 = por %p261, %p262
    %p265 = scmp.ne.s32.totalorder %s250, %s264
    %p266 = scmp.eq.s32.totalorder %s25, 0
    %p267 = por %p265, %p266
    %s268 = ssub.s32 %s19, %s26
    %p269 = scmp.eq.s32.totalorder %s268, 0
    %s271 = sadd.s32 %s270, 1
    %s272 = scalar_select %p269, %s270, %s271
    %p275 = pneg %p269
    %p276 = scmp.eq.s32.totalorder %s19, 1
    %p277 = por %p275, %p276
    %p278 = scmp.ne.s32.totalorder %s270, %s273
    %p279 = scmp.eq.s32.totalorder %s19, 0
    %p280 = por %p278, %p279
    %p281 = scmp.ne.s32.totalorder %s270, %s273
    %p282 = scmp.eq.s32.totalorder %s24, 1
    %p283 = por %p281, %p282
    %p284 = scmp.ne.s32.totalorder %s273, %s274
    %p285 = scmp.eq.s32.totalorder %s24, 0
    %p286 = por %p284, %p285
    %p287 = scmp.ne.s32.totalorder %s273, %s274
    %p288 = scmp.eq.s32.totalorder %s25, 1
    %p289 = por %p287, %p288
    %p291 = scmp.ne.s32.totalorder %s274, %s290
    %p292 = scmp.eq.s32.totalorder %s25, 0
    %p293 = por %p291, %p292
    %s294 = ssub.s32 %s19, %s26
    %p295 = scmp.eq.s32.totalorder %s294, 0
    %s297 = sadd.s32 %s296, 1
    %s298 = scalar_select %p295, %s296, %s297
    %p301 = pneg %p295
    %p302 = scmp.eq.s32.totalorder %s19, 1
    %p303 = por %p301, %p302
    %p304 = scmp.ne.s32.totalorder %s296, %s299
    %p305 = scmp.eq.s32.totalorder %s19, 0
    %p306 = por %p304, %p305
    %p307 = scmp.ne.s32.totalorder %s296, %s299
    %p308 = scmp.eq.s32.totalorder %s24, 1
    %p309 = por %p307, %p308
    %p310 = scmp.ne.s32.totalorder %s299, %s300
    %p311 = scmp.eq.s32.totalorder %s24, 0
    %p312 = por %p310, %p311
    %p313 = scmp.ne.s32.totalorder %s299, %s300
    %p314 = scmp.eq.s32.totalorder %s25, 1
    %p315 = por %p313, %p314
    %p317 = scmp.ne.s32.totalorder %s300, %s316
    %p318 = scmp.eq.s32.totalorder %s25, 0
    %p319 = por %p317, %p318
    %p320 = scmp.le.s32.totalorder 1, %s19
    %p321 = scmp.lt.s32.totalorder %s19, 3
    %p322 = pnand %p320, %p321
    %p323 = pneg %p322
    // Predicated region
    $region9: #{labs_injected_encoder_forward.9} parent=5 // pred_check
      _
    $region10: #{labs_injected_encoder_forward.9} parent=5 // pred_check_branch
      %325 = sbr.rel (%p322) target = $region12
    $region11: #{labs_injected_encoder_forward.9} parent=5 // pred_region
      %s326 = ssub.s32 %s19, 1
      // Predicated region
      $region13: #{labs_injected_encoder_forward.9} parent=11 // pred_check
        %p327 = pneg %p92
      $region14: #{labs_injected_encoder_forward.9} parent=11 // pred_check_branch
        %329 = sbr.rel (%p327) target = $region16
      $region15: #{labs_injected_encoder_forward.9} parent=11 // pred_region
        _
      $region16: #{labs_injected_encoder_forward.9} parent=11 // pred_fallthru
        _
      // Predicated region
      $region17: #{labs_injected_encoder_forward.9} parent=11 // pred_check
        %p330 = pneg %p113
      $region18: #{labs_injected_encoder_forward.9} parent=11 // pred_check_branch
        %332 = sbr.rel (%p330) target = $region20
      $region19: #{labs_injected_encoder_forward.9} parent=11 // pred_region
        _
      $region20: #{labs_injected_encoder_forward.9} parent=11 // pred_fallthru
        _
      // Predicated region
      $region21: #{labs_injected_encoder_forward.9} parent=11 // pred_check
        %p333 = pneg %p134
      $region22: #{labs_injected_encoder_forward.9} parent=11 // pred_check_branch
        %335 = sbr.rel (%p333) target = $region24
      $region23: #{labs_injected_encoder_forward.9} parent=11 // pred_region
        _
      $region24: #{labs_injected_encoder_forward.9} parent=11 // pred_fallthru
        _
      // Predicated region
      $region25: #{labs_injected_encoder_forward.9} parent=11 // pred_check
        %p336 = pneg %p155
      $region26: #{labs_injected_encoder_forward.9} parent=11 // pred_check_branch
        %338 = sbr.rel (%p336) target = $region28
      $region27: #{labs_injected_encoder_forward.9} parent=11 // pred_region
        _
      $region28: #{labs_injected_encoder_forward.9} parent=11 // pred_fallthru
        _
      // Predicated region
      $region29: #{labs_injected_encoder_forward.9} parent=11 // pred_check
        %p339 = pneg %p176
      $region30: #{labs_injected_encoder_forward.9} parent=11 // pred_check_branch
        %341 = sbr.rel (%p339) target = $region32
      $region31: #{labs_injected_encoder_forward.9} parent=11 // pred_region
        _
      $region32: #{labs_injected_encoder_forward.9} parent=11 // pred_fallthru
        _
      // Predicated region
      $region33: #{labs_injected_encoder_forward.9} parent=11 // pred_check
        %p342 = pneg %p197
      $region34: #{labs_injected_encoder_forward.9} parent=11 // pred_check_branch
        %344 = sbr.rel (%p342) target = $region36
      $region35: #{labs_injected_encoder_forward.9} parent=11 // pred_region
        _
      $region36: #{labs_injected_encoder_forward.9} parent=11 // pred_fallthru
        _
      // Predicated region
      $region37: #{labs_injected_encoder_forward.9} parent=11 // pred_check
        %p345 = pneg %p218
      $region38: #{labs_injected_encoder_forward.9} parent=11 // pred_check_branch
        %347 = sbr.rel (%p345) target = $region40
      $region39: #{labs_injected_encoder_forward.9} parent=11 // pred_region
        _
      $region40: #{labs_injected_encoder_forward.9} parent=11 // pred_fallthru
        _
      // Predicated region
      $region41: #{labs_injected_encoder_forward.9} parent=11 // pred_check
        %p348 = pneg %p239
      $region42: #{labs_injected_encoder_forward.9} parent=11 // pred_check_branch
        %350 = sbr.rel (%p348) target = $region44
      $region43: #{labs_injected_encoder_forward.9} parent=11 // pred_region
        _
      $region44: #{labs_injected_encoder_forward.9} parent=11 // pred_fallthru
        _
      // Predicated region
      $region45: #{labs_injected_encoder_forward.9} parent=11 // pred_check
        %p351 = pneg %p260
      $region46: #{labs_injected_encoder_forward.9} parent=11 // pred_check_branch
        %353 = sbr.rel (%p351) target = $region48
      $region47: #{labs_injected_encoder_forward.9} parent=11 // pred_region
        _
      $region48: #{labs_injected_encoder_forward.9} parent=11 // pred_fallthru
        _
    $region12: #{labs_injected_encoder_forward.9} parent=5 // pred_fallthru
      _
    %p354 = scmp.lt.s32.totalorder %s19, 2
    // Predicated region
    $region49: #{labs_injected_encoder_forward.9} parent=5 // pred_check
      %p355 = pneg %p354
    $region50: #{labs_injected_encoder_forward.9} parent=5 // pred_check_branch
      %357 = sbr.rel (%p355) target = $region52
    $region51: #{labs_injected_encoder_forward.9} parent=5 // pred_region
      // Predicated region
      $region53: #{labs_injected_encoder_forward.9} parent=51 // pred_check
        %p358 = pneg %p39
      $region54: #{labs_injected_encoder_forward.9} parent=51 // pred_check_branch
        %360 = sbr.rel (%p358) target = $region56
      $region55: #{labs_injected_encoder_forward.9} parent=51 // pred_region
        %p361 = scmp.lt.s32.totalorder %s19, 1
        %s362 = scalar_select %p361, %s19, 1
        %s363 = smul.addr %s362, 4
        %s364 = scalar_lea.vmem %s0, %s363
      $region56: #{labs_injected_encoder_forward.9} parent=51 // pred_fallthru
        _
      // Predicated region
      $region57: #{labs_injected_encoder_forward.9} parent=51 // pred_check
        %p365 = pneg %p65
      $region58: #{labs_injected_encoder_forward.9} parent=51 // pred_check_branch
        %367 = sbr.rel (%p365) target = $region60
      $region59: #{labs_injected_encoder_forward.9} parent=51 // pred_region
        %p368 = scmp.lt.s32.totalorder %s19, 1
        %s369 = scalar_select %p368, %s19, 1
        %s370 = scalar_lea.vmem %s1, %s369
      $region60: #{labs_injected_encoder_forward.9} parent=51 // pred_fallthru
        _
    $region52: #{labs_injected_encoder_forward.9} parent=5 // pred_fallthru
      _
    %p371 = scmp.le.s32.totalorder 1, %s19
    %p372 = scmp.lt.s32.totalorder %s19, 3
    %p373 = pnand %p371, %p372
    %p374 = pneg %p373
    // Predicated region
    $region61: #{labs_injected_encoder_forward.9} parent=5 // pred_check
      _
    $region62: #{labs_injected_encoder_forward.9} parent=5 // pred_check_branch
      %376 = sbr.rel (%p373) target = $region64
    $region63: #{labs_injected_encoder_forward.9} parent=5 // pred_region
      %s377 = ssub.s32 %s19, 1
      %p378 = scmp.lt.s32.totalorder %s24, 1
      %s379 = scalar_select %p378, %s24, 1
      %s380 = smul.addr %s379, 4
      %s381 = scalar_lea.vmem %s0, %s380
      %p382 = pneg %p45
      %p383 = pneg %p42
      %p384 = scmp.lt.s32.totalorder %s24, 1
      %s385 = scalar_select %p384, %s24, 1
      %s386 = scalar_lea.vmem %s1, %s385
      %p387 = pneg %p71
      %p388 = pneg %p68
      %p389 = pneg %p92
      %p390 = pneg %p89
      %p391 = pneg %p113
      %p392 = pneg %p110
      %p393 = pneg %p134
      %p394 = pneg %p131
      %p395 = pneg %p155
      %p396 = pneg %p152
      %p397 = pneg %p176
      %p398 = pneg %p173
      %p399 = pneg %p197
      %p400 = pneg %p194
      %p401 = pneg %p218
      %p402 = pneg %p215
      %p403 = pneg %p239
      %p404 = pneg %p236
      %p405 = pneg %p260
      %p406 = pneg %p257
      %p407 = pneg %p286
      %p408 = pneg %p283
      %p409 = scmp.lt.s32.totalorder %s24, 1
      %s410 = scalar_select %p409, %s24, 1
      %s411 = smul.addr %s410, 2
      %s412 = smul.addr %s411, 4
      %s413 = scalar_lea.vmem %s11, %s412
      %p414 = pneg %p312
      %p415 = pneg %p309
      %p416 = scmp.lt.s32.totalorder %s24, 1
      %s417 = scalar_select %p416, %s24, 1
      %s418 = smul.addr %s417, 2
      %s419 = smul.addr %s418, 8
      %s420 = scalar_lea.vmem %s12, %s419
      %p421 = scmp.lt.s32.totalorder %s24, 1
      %s422 = scalar_select %p421, %s24, 1
      %s423 = smul.addr %s422, 4
      %s424 = scalar_lea.vmem %s0, %s423
      %p425 = scmp.lt.s32.totalorder %s24, 1
      %s426 = scalar_select %p425, %s24, 1
      %s427 = scalar_lea.vmem %s1, %s426
      %p428 = scmp.lt.s32.totalorder %s24, 1
      %s429 = scalar_select %p428, %s24, 1
      %s430 = smul.addr %s429, 2
      %s431 = smul.addr %s430, 4
      %s432 = scalar_lea.vmem %s11, %s431
      %p433 = scmp.lt.s32.totalorder %s24, 1
      %s434 = scalar_select %p433, %s24, 1
      %s435 = smul.addr %s434, 2
      %s436 = smul.addr %s435, 8
      %s437 = scalar_lea.vmem %s12, %s436
      %v439 = vld [vmem:[%s424] sm:$0xf]
      %v440 = vunpack.c.l.bf16 %v439
      %v441 = vadd.f32 %v440, 0.0
      %v442 = vmul.f32 %v440, 2.0
      %444 = vrot.lane.b32.xlu0 %v442, 127
      %v445 = vpop.permute.xlu0 %444
      %v447 = vadd.f32 %v441, %v445
      %v448 = vmul.f32 %v440, -1.0
      %450 = vrot.lane.b32.xlu0 %v448, 126
      %v451 = vpop.permute.xlu0 %450
      %v453 = vadd.f32 %v441, %v451
      %455 = vrot.lane.b32.xlu0 %v440, 126
      %v456 = vpop.permute.xlu0 %455
      %v458 = vadd.f32 %v447, %v456
      %459 = vrot.lane.b32.xlu0 %v442, 118
      %v460 = vpop.permute.xlu0 %459
      %v462 = vadd.f32 %v453, %v460
      %v463 = vmul.f32 %v440, -2.0
      %465 = vrot.lane.b32.xlu0 %v463, 116
      %v466 = vpop.permute.xlu0 %465
      %v468 = vadd.f32 %v462, %v466
      %469 = vrot.lane.b32.xlu0 %v440, 108
      %v470 = vpop.permute.xlu0 %469
      %v472 = vadd.f32 %v468, %v470
      %473 = vrot.lane.b32.xlu0 %v448, 108
      %v474 = vpop.permute.xlu0 %473
      %v476 = vadd.f32 %v458, %v474
      %477 = vrot.lane.b32.xlu0 %v463, 107
      %v478 = vpop.permute.xlu0 %477
      %v480 = vadd.f32 %v476, %v478
      %481 = vrot.lane.b32.xlu0 %v448, 106
      %v482 = vpop.permute.xlu0 %481
      %v484 = vadd.f32 %v472, %v482
      %v485 = vadd.f32 %v480, %v482
      %v486 = vlaneseq
      %v487 = vand.u32 %v486, 127
      %vm488 = vcmp.lt.s32.totalorder %v487, 0
      %v489 = vsub.s32 0, %v487
      %v490 = vsel %vm488, %v489, %v487
      %v491 = vmul.u32.u64.compose %v490, 3435973837
      %v492 = vextract.low.u32 %v491
      %v493 = vextract.high.u32 %v491
      %v494 = vshrl.u32 %v493, 3
      %v495 = vmul.u32 %v494, 10
      %v496 = vsub.s32 %v490, %v495
      %v497 = vsub.s32 0, %v496
      %v498 = vsel %vm488, %v497, %v496
      %vm499 = vcmp.ne.s32.totalorder %v498, 0
      %vm500 = vcmp.lt.s32.totalorder %v498, 0
      %vm501 = vmand %vm500, %vm499
      %v502 = vadd.s32 %v498, 10
      %v503 = vsel %vm501, %v502, %v498
      %vm504 = vcmp.lt.s32.totalorder %v503, 8
      %v505 = vsel %vm504, 1, 0
      %v506 = vcvt.s32.f32 %v505
      %508 = vrot.lane.b32.xlu0 %v506, 11
      %v509 = vpop.permute.xlu0 %508
      %v511 = vmul.f32 %v440, %v509
      %513 = vrot.lane.b32.xlu0 %v511, 117
      %v514 = vpop.permute.xlu0 %513
      %vm516 = vcmask 654336
      %v517 = vsel %vm516, %v514, 0.0
      %518 = vadd.xlane.f32.xlu0 %v517
      %v519 = vpop.xlane.xlu0 %518
      %v520 = vmul.f32 %v519, 0.015625
      %v521 = vmul.f32 %v511, %v511
      %523 = vrot.lane.b32.xlu0 %v521, 117
      %v524 = vpop.permute.xlu0 %523
      %v526 = vsel %vm516, %v524, 0.0
      %527 = vadd.xlane.f32.xlu0 %v526
      %v528 = vpop.xlane.xlu0 %527
      %v529 = vmul.f32 %v528, 0.015625
      %v530 = vmul.f32 %v520, %v520
      %v531 = vsub.f32 %v529, %v530
      %v532 = vsub.f32 %v440, %v520
      %v533 = vadd.f32 %v531, 1e-05
      %v534 = vrsqrt.pop %v533
      %v535 = vmul.f32 %v532, %v534
      %v536 = vmul.f32 %v535, %v509
      %v537 = vand.u32 2147483647, %v484
      %vm538 = vcmp.le.f32.partialorder %v537, 0.7853982
      %vm539 = vcmp.lt.s32.totalorder %v484, 0
      %v540 = vand.u32 %v484, 2139095040
      %v541 = vshrl.u32 %v540, 23
      %v542 = vsub.s32 %v541, 127
      %v543 = vand.u32 2147483647, %v484
      %v544 = vand.u32 %v543, 8388607
      %v545 = vor.u32 %v544, 8388608
      %v546 = vsub.s32 0, %v545
      %v547 = vadd.s32 %v542, 1
      %vm548 = vcmp.gt.s32.totalorder %v547, 0
      %v549 = vsel %vm548, %v547, 0
      %v550 = vshrl.u32 %v549, 5
      %v551 = vand.u32 %v549, 31
      %v552 = vsub.s32 32, %v551
      %v553 = vshrl.u32 683565275, %v552
      %v554 = vshll.u32 683565275, %v551
      %v555 = vshrl.u32 2475754826, %v552
      %v556 = vor.u32 %v554, %v555
      %v557 = vshll.u32 2475754826, %v551
      %v558 = vshrl.u32 2131351028, %v552
      %v559 = vor.u32 %v557, %v558
      %v560 = vshll.u32 2131351028, %v551
      %v561 = vshrl.u32 2102212464, %v552
      %v562 = vor.u32 %v560, %v561
      %v563 = vshll.u32 2102212464, %v551
      %v564 = vshrl.u32 920167782, %v552
      %v565 = vor.u32 %v563, %v564
      %v566 = vshll.u32 920167782, %v551
      %v567 = vshrl.u32 1326507024, %v552
      %v568 = vor.u32 %v566, %v567
      %vm569 = vcmp.lt.s32.totalorder %v550, 1
      %vm570 = vcmp.lt.s32.totalorder %v550, 2
      %vm571 = vcmp.lt.s32.totalorder %v550, 3
      %vm572 = vcmp.lt.s32.totalorder %v550, 4
      %v573 = vsel %vm569, %v553, %v556
      %v574 = vsel %vm572, %v562, 2102212464
      %v575 = vsel %vm571, %v559, %v574
      %v576 = vsel %vm570, %v573, %v575
      %v577 = vsel %vm569, %v556, %v559
      %v578 = vsel %vm572, %v565, 920167782
      %v579 = vsel %vm571, %v562, %v578
      %v580 = vsel %vm570, %v577, %v579
      %v581 = vsel %vm569, %v559, %v562
      %v582 = vsel %vm572, %v568, 1326507024
      %v583 = vsel %vm571, %v565, %v582
      %v584 = vsel %vm570, %v581, %v583
      %v585 = vshll.u32 %v545, 8
      %v586 = vmul.u32.u64.compose %v585, %v584
      %v587 = vextract.low.u32 %v586
      %v588 = vextract.high.u32 %v586
      %v589 = vmul.u32.u64.compose %v585, %v580
      %v590 = vextract.low.u32 %v589
      %v591 = vextract.high.u32 %v589
      %v592 = vmul.u32 %v585, %v576
      %v593 = vadd.s32 %v588, %v590
      %vm594 = vc.u32 %v588, %v590
      %v595 = vadd.s32 %v591, 1
      %v596 = vsel %vm594, %v595, %v591
      %v597 = vadd.s32 %v592, %v596
      %v598 = vadd.s32 %v597, 536870912
      %v599 = vshrl.u32 %v598, 30
      %v600 = vshll.u32 %v599, 30
      %v601 = vsub.s32 %v597, %v600
      %vm602 = vcmp.lt.s32.totalorder %v601, 0
      %v603 = vsub.s32 0, %v601
      %v604 = vsel %vm602, %v603, %v601
      %v605 = vclz %v604
      %v606 = vsub.s32 %v605, 2
      %vm607 = vcmp.gt.s32.totalorder 0, %v606
      %v608 = vsel %vm607, 0, %v606
      %v609 = vsub.s32 32, %v608
      %v610 = vshll.u32 %v601, %v608
      %v611 = vshrl.u32 %v593, %v609
      %v612 = vor.u32 %v610, %v611
      %v613 = vsub.s32 4294967266, %v608
      %v614 = vadd.s32 %v613, 127
      %v615 = vshll.u32 %v614, 23
      %v616 = vor.u32 4788187, %v615
      %v617 = vand.u32 2147483647, %v616
      %v619 = vcvt.s32.f32 %v612
      %v620 = vmul.f32 %v619, %v617
      %v621 = vxor.u32 %v620, 2147483648
      %v622 = vsel %vm539, %v621, %v620
      %v623 = vsub.s32 4, %v599
      %v624 = vsel %vm539, %v623, %v599
      %v625 = vsel %vm538, %v484, %v622
      %v626 = vsel %vm538, 0, %v624
      %v627 = vcosq.f32.pop %v625
      %v628 = vsinq.f32.pop %v625
      %vm629 = vweird.f32 %v484
      %v630 = vadd.s32 %v626, 3
      %v631 = vand.u32 %v630, 3
      %vm632 = vcmp.lt.s32.totalorder %v631, 2
      %vm633 = vcmp.eq.s32.totalorder %v631, 0
      %v634 = vxor.u32 %v628, 2147483648
      %v635 = vsel %vm633, %v627, %v634
      %vm636 = vcmp.eq.s32.totalorder %v631, 2
      %v637 = vxor.u32 %v627, 2147483648
      %v638 = vsel %vm636, %v637, %v628
      %v639 = vsel %vm632, %v635, %v638
      %v640 = vsel %vm629, nan, %v639
      %v641 = vmul.f32 %v640, %v506
      %v642 = vsel %vm516, %v641, 0.0
      %643 = vadd.xlane.f32.xlu0 %v642
      %v644 = vpop.xlane.xlu0 %643
      %v645 = vmul.f32 %v644, 0.015625
      %v646 = vmul.f32 %v641, %v641
      %v647 = vsel %vm516, %v646, 0.0
      %648 = vadd.xlane.f32.xlu0 %v647
      %v649 = vpop.xlane.xlu0 %648
      %v650 = vmul.f32 %v649, 0.015625
      %v651 = vmul.f32 %v645, %v645
      %v652 = vsub.f32 %v650, %v651
      %v653 = vsub.f32 %v640, %v645
      %v654 = vadd.f32 %v652, 1e-05
      %v655 = vrsqrt.pop %v654
      %v656 = vmul.f32 %v653, %v655
      %v657 = vmul.f32 %v656, %v506
      %v658 = vand.u32 2147483647, %v485
      %vm659 = vcmp.le.f32.partialorder %v658, 0.7853982
      %vm660 = vcmp.lt.s32.totalorder %v485, 0
      %v661 = vand.u32 %v485, 2139095040
      %v662 = vshrl.u32 %v661, 23
      %v663 = vsub.s32 %v662, 127
      %v664 = vand.u32 2147483647, %v485
      %v665 = vand.u32 %v664, 8388607
      %v666 = vor.u32 %v665, 8388608
      %v667 = vsub.s32 0, %v666
      %v668 = vadd.s32 %v663, 1
      %vm669 = vcmp.gt.s32.totalorder %v668, 0
      %v670 = vsel %vm669, %v668, 0
      %v671 = vshrl.u32 %v670, 5
      %v672 = vand.u32 %v670, 31
      %v673 = vsub.s32 32, %v672
      %v674 = vshrl.u32 683565275, %v673
      %v675 = vshll.u32 683565275, %v672
      %v676 = vshrl.u32 2475754826, %v673
      %v677 = vor.u32 %v675, %v676
      %v678 = vshll.u32 2475754826, %v672
      %v679 = vshrl.u32 2131351028, %v673
      %v680 = vor.u32 %v678, %v679
      %v681 = vshll.u32 2131351028, %v672
      %v682 = vshrl.u32 2102212464, %v673
      %v683 = vor.u32 %v681, %v682
      %v684 = vshll.u32 2102212464, %v672
      %v685 = vshrl.u32 920167782, %v673
      %v686 = vor.u32 %v684, %v685
      %v687 = vshll.u32 920167782, %v672
      %v688 = vshrl.u32 1326507024, %v673
      %v689 = vor.u32 %v687, %v688
      %vm690 = vcmp.lt.s32.totalorder %v671, 1
      %vm691 = vcmp.lt.s32.totalorder %v671, 2
      %vm692 = vcmp.lt.s32.totalorder %v671, 3
      %vm693 = vcmp.lt.s32.totalorder %v671, 4
      %v694 = vsel %vm690, %v674, %v677
      %v695 = vsel %vm693, %v683, 2102212464
      %v696 = vsel %vm692, %v680, %v695
      %v697 = vsel %vm691, %v694, %v696
      %v698 = vsel %vm690, %v677, %v680
      %v699 = vsel %vm693, %v686, 920167782
      %v700 = vsel %vm692, %v683, %v699
      %v701 = vsel %vm691, %v698, %v700
      %v702 = vsel %vm690, %v680, %v683
      %v703 = vsel %vm693, %v689, 1326507024
      %v704 = vsel %vm692, %v686, %v703
      %v705 = vsel %vm691, %v702, %v704
      %v706 = vshll.u32 %v666, 8
      %v707 = vmul.u32.u64.compose %v706, %v705
      %v708 = vextract.low.u32 %v707
      %v709 = vextract.high.u32 %v707
      %v710 = vmul.u32.u64.compose %v706, %v701
      %v711 = vextract.low.u32 %v710
      %v712 = vextract.high.u32 %v710
      %v713 = vmul.u32 %v706, %v697
      %v714 = vadd.s32 %v709, %v711
      %vm715 = vc.u32 %v709, %v711
      %v716 = vadd.s32 %v712, 1
      %v717 = vsel %vm715, %v716, %v712
      %v718 = vadd.s32 %v713, %v717
      %v719 = vadd.s32 %v718, 536870912
      %v720 = vshrl.u32 %v719, 30
      %v721 = vshll.u32 %v720, 30
      %v722 = vsub.s32 %v718, %v721
      %vm723 = vcmp.lt.s32.totalorder %v722, 0
      %v724 = vsub.s32 0, %v722
      %v725 = vsel %vm723, %v724, %v722
      %v726 = vclz %v725
      %v727 = vsub.s32 %v726, 2
      %vm728 = vcmp.gt.s32.totalorder 0, %v727
      %v729 = vsel %vm728, 0, %v727
      %v730 = vsub.s32 32, %v729
      %v731 = vshll.u32 %v722, %v729
      %v732 = vshrl.u32 %v714, %v730
      %v733 = vor.u32 %v731, %v732
      %v734 = vsub.s32 4294967266, %v729
      %v735 = vadd.s32 %v734, 127
      %v736 = vshll.u32 %v735, 23
      %v737 = vor.u32 4788187, %v736
      %v738 = vand.u32 2147483647, %v737
      %v740 = vcvt.s32.f32 %v733
      %v741 = vmul.f32 %v740, %v738
      %v742 = vxor.u32 %v741, 2147483648
      %v743 = vsel %vm660, %v742, %v741
      %v744 = vsub.s32 4, %v720
      %v745 = vsel %vm660, %v744, %v720
      %v746 = vsel %vm659, %v485, %v743
      %v747 = vsel %vm659, 0, %v745
      %v748 = vcosq.f32.pop %v746
      %v749 = vsinq.f32.pop %v746
      %vm750 = vweird.f32 %v485
      %v751 = vadd.s32 %v747, 3
      %v752 = vand.u32 %v751, 3
      %vm753 = vcmp.lt.s32.totalorder %v752, 2
      %vm754 = vcmp.eq.s32.totalorder %v752, 0
      %v755 = vxor.u32 %v749, 2147483648
      %v756 = vsel %vm754, %v748, %v755
      %vm757 = vcmp.eq.s32.totalorder %v752, 2
      %v758 = vxor.u32 %v748, 2147483648
      %v759 = vsel %vm757, %v758, %v749
      %v760 = vsel %vm753, %v756, %v759
      %v761 = vsel %vm750, nan, %v760
      %v762 = vmul.f32 %v761, %v506
      %v763 = vsel %vm516, %v762, 0.0
      %764 = vadd.xlane.f32.xlu0 %v763
      %v765 = vpop.xlane.xlu0 %764
      %v766 = vmul.f32 %v765, 0.015625
      %v767 = vmul.f32 %v762, %v762
      %v768 = vsel %vm516, %v767, 0.0
      %769 = vadd.xlane.f32.xlu0 %v768
      %v770 = vpop.xlane.xlu0 %769
      %v771 = vmul.f32 %v770, 0.015625
      %v772 = vmul.f32 %v766, %v766
      %v773 = vsub.f32 %v771, %v772
      %v774 = vsub.f32 %v761, %v766
      %v775 = vadd.f32 %v773, 1e-05
      %v776 = vrsqrt.pop %v775
      %v777 = vmul.f32 %v774, %v776
      %v778 = vmul.f32 %v777, %v506
      %780 = vrot.lane.b32.xlu0 %v657, 11
      %v781 = vpop.permute.xlu0 %780
      %784 = vrot.lane.b32.xlu0 %v778, 11
      %v785 = vpop.permute.xlu0 %784
      %v787 = vld [vmem:[%s427] sm:$0x1]
      %v788 = vld [vmem:[%s2] sm:$0xff]
      %v790 = vlaneseq
      %v791 = vshrl.u32 %v790, 7
      %v792 = vsub.s32 0, %v791
      %v793 = vrot.slane %v787, %v792
      %v795 = vmul.f32 %v788, %v793
      %vm796 = vcmask 261120
      %v797 = vsel %vm796, %v795, 0.0
      %798 = vadd.xlane.f32.xlu0 %v797
      %v799 = vpop.xlane.xlu0 %798
      %v800 = vadd.f32 %v799, 1.0
      %v801 = vld [vmem:[%s3] sm:$0xff]
      %v802 = vadd.f32 %v800, %v801
      %v803 = vld [vmem:[%s4] sm:$0xff]
      %v804 = vmul.f32 %v803, %v793
      %v805 = vsel %vm796, %v804, 0.0
      %806 = vadd.xlane.f32.xlu0 %v805
      %v807 = vpop.xlane.xlu0 %806
      %v808 = vld [vmem:[%s5] sm:$0xff]
      %v809 = vadd.f32 %v807, %v808
      %vm810 = vcmask 89088
      %v811 = vsel %vm810, 0.0, %v536
      %v812 = vsel %vm810, 0.0, %v781
      %v813 = vsel %vm810, 0.0, %v785
      %vm814 = vcmask 744448
      %v815 = vsel %vm814, %v811, 0.0
      %v816 = vsel %vm814, %v812, 0.0
      %v817 = vsel %vm814, %v813, 0.0
      %821 = vrot.lane.b32.xlu0 %v815, 127
      %v822 = vpop.permute.xlu0 %821
      %823 = vrot.lane.b32.xlu0 %v816, 127
      %v824 = vpop.permute.xlu0 %823
      %825 = vrot.lane.b32.xlu0 %v817, 127
      %v826 = vpop.permute.xlu0 %825
      %830 = vrot.lane.b32.xlu0 %v815, 126
      %v831 = vpop.permute.xlu0 %830
      %832 = vrot.lane.b32.xlu0 %v816, 126
      %v833 = vpop.permute.xlu0 %832
      %834 = vrot.lane.b32.xlu0 %v817, 126
      %v835 = vpop.permute.xlu0 %834
      %839 = vrot.lane.b32.xlu0 %v815, 118
      %v840 = vpop.permute.xlu0 %839
      %841 = vrot.lane.b32.xlu0 %v816, 118
      %v842 = vpop.permute.xlu0 %841
      %843 = vrot.lane.b32.xlu0 %v817, 118
      %v844 = vpop.permute.xlu0 %843
      %848 = vrot.lane.b32.xlu0 %v815, 117
      %v849 = vpop.permute.xlu0 %848
      %850 = vrot.lane.b32.xlu0 %v816, 117
      %v851 = vpop.permute.xlu0 %850
      %852 = vrot.lane.b32.xlu0 %v817, 117
      %v853 = vpop.permute.xlu0 %852
      %857 = vrot.lane.b32.xlu0 %v815, 116
      %v858 = vpop.permute.xlu0 %857
      %859 = vrot.lane.b32.xlu0 %v816, 116
      %v860 = vpop.permute.xlu0 %859
      %861 = vrot.lane.b32.xlu0 %v817, 116
      %v862 = vpop.permute.xlu0 %861
      %866 = vrot.lane.b32.xlu0 %v815, 108
      %v867 = vpop.permute.xlu0 %866
      %868 = vrot.lane.b32.xlu0 %v816, 108
      %v869 = vpop.permute.xlu0 %868
      %870 = vrot.lane.b32.xlu0 %v817, 108
      %v871 = vpop.permute.xlu0 %870
      %875 = vrot.lane.b32.xlu0 %v815, 107
      %v876 = vpop.permute.xlu0 %875
      %877 = vrot.lane.b32.xlu0 %v816, 107
      %v878 = vpop.permute.xlu0 %877
      %879 = vrot.lane.b32.xlu0 %v817, 107
      %v880 = vpop.permute.xlu0 %879
      %884 = vrot.lane.b32.xlu0 %v815, 106
      %v885 = vpop.permute.xlu0 %884
      %886 = vrot.lane.b32.xlu0 %v816, 106
      %v887 = vpop.permute.xlu0 %886
      %888 = vrot.lane.b32.xlu0 %v817, 106
      %v889 = vpop.permute.xlu0 %888
      %v893 = vpack.c.bf16 %v816, %v815
      %v894 = vpack.c.bf16 %v822, %v817
      %v895 = vpack.c.bf16 %v826, %v824
      %v896 = vpack.c.bf16 %v833, %v831
      %v897 = vpack.c.bf16 %v840, %v835
      %v898 = vpack.c.bf16 %v844, %v842
      %v899 = vpack.c.bf16 %v851, %v849
      %v900 = vpack.c.bf16 %v858, %v853
      %v901 = vpack.c.bf16 %v862, %v860
      %v902 = vpack.c.bf16 %v869, %v867
      %v903 = vpack.c.bf16 %v876, %v871
      %v904 = vpack.c.bf16 %v880, %v878
      %v905 = vpack.c.bf16 %v887, %v885
      %v906 = vpack.c.bf16 %v889, %v889
      %v907 = vld [vmem:[%s6] sm:$0xff]
      %v908 = vld [vmem:[%s7] sm:$0xff]
      %910 = vset.pattern.permute.xlu0 0
      %911 = vperm.xlu0 %910, %v908
      %v912 = vpop.permute.xlu0 %911
      %v915 = vunpack.c.l.b16 %v907
      %v916 = vunpack.c.h.b16 %v907
      %v917 = vpack.c.b16 %v915, %v915
      %v918 = vpack.c.b16 %v916, %v916
      %vm920 = vcmask 719872
      %v922 = vsel %vm920, %v918, 0
      %vm924 = vcmask 1043456
      %v926 = vsel %vm924, %v906, 0
      %928 = vmatprep.subr.bf16.mxu0 0
      %929 = vmatpush1.bf16.msra.mxu0 %v893
      %930 = vmatprep.subr.bf16.mxu0 0
      %931 = vmatpush1.bf16.msra.mxu0 %v894
      %932 = vmatprep.subr.bf16.mxu0 0
      %933 = vmatpush1.bf16.msra.mxu0 %v895
      %934 = vmatprep.subr.bf16.mxu0 0
      %935 = vmatpush1.bf16.msra.mxu0 %v896
      %936 = vmatprep.subr.bf16.mxu0 0
      %937 = vmatpush1.bf16.msra.mxu0 %v897
      %938 = vmatprep.subr.bf16.mxu0 0
      %939 = vmatpush1.bf16.msra.mxu0 %v898
      %940 = vmatprep.subr.bf16.mxu0 0
      %941 = vmatpush1.bf16.msra.mxu0 %v899
      %942 = vmatprep.subr.bf16.mxu0 0
      %943 = vmatpush1.bf16.msra.mxu0 %v900
      %944 = vmatprep.subr.bf16.mxu0 0
      %945 = vmatpush1.bf16.msra.mxu0 %v901
      %946 = vmatprep.subr.bf16.mxu0 0
      %947 = vmatpush1.bf16.msra.mxu0 %v902
      %948 = vmatprep.subr.bf16.mxu0 0
      %949 = vmatpush1.bf16.msra.mxu0 %v903
      %950 = vmatprep.subr.bf16.mxu0 0
      %951 = vmatpush1.bf16.msra.mxu0 %v904
      %952 = vmatprep.subr.bf16.mxu0 0
      %953 = vmatpush1.bf16.msra.mxu0 %v905
      %954 = vmatprep.subr.bf16.mxu0 0
      %955 = vmatpush1.bf16.msra.mxu0 %v926
      %956 = vmatprep.subr.bf16.mxu0 0
      %957 = vmatpush1.bf16.msra.mxu0 0
      %958 = vmatprep.subr.bf16.mxu0 0
      %959 = vmatpush1.bf16.msra.mxu0 0
      %960 = vmatprep.mubr.bf16.mxu0 %v922
      %961 = vmatmul.mubr.bf16.gmra.mrb[0].mxu0 %v917
      %v962 = vpop.f32.mrb[0].mxu0
      %v963 = vadd.f32 %v912, %v962
      %v964 = vpop.f32.mrb[0].mxu0
      %v965 = vpop.f32.mrb[0].mxu0
      %v966 = vpop.f32.mrb[0].mxu0
      %967 = vdwg.mxu0
      %969 = vset.pattern.permute.xlu0 0
      %970 = vperm.xlu0 %969, %v802
      %v971 = vpop.permute.xlu0 %970
      %v973 = vmul.f32 %v963, %v971
      %975 = vset.pattern.permute.xlu0 0
      %976 = vperm.xlu0 %975, %v809
      %v977 = vpop.permute.xlu0 %976
      %v979 = vadd.f32 %v973, %v977
      %vm980 = vcmp.ge.f32.partialorder %v979, 0.0
      %v981 = vmul.f32 %v979, 0.2
      %v982 = vsel %vm980, %v979, %v981
      %v983 = vmul.f32 %v982, %v506
      %985 = vrot.lane.b32.xlu0 %v983, 11
      %v986 = vpop.permute.xlu0 %985
      %v988 = vsel %vm810, 0.0, %v986
      %v989 = vsel %vm814, %v988, 0.0
      %991 = vrot.lane.b32.xlu0 %v989, 127
      %v992 = vpop.permute.xlu0 %991
      %994 = vrot.lane.b32.xlu0 %v989, 126
      %v995 = vpop.permute.xlu0 %994
      %997 = vrot.lane.b32.xlu0 %v989, 118
      %v998 = vpop.permute.xlu0 %997
      %1000 = vrot.lane.b32.xlu0 %v989, 117
      %v1001 = vpop.permute.xlu0 %1000
      %1003 = vrot.lane.b32.xlu0 %v989, 116
      %v1004 = vpop.permute.xlu0 %1003
      %1006 = vrot.lane.b32.xlu0 %v989, 108
      %v1007 = vpop.permute.xlu0 %1006
      %1009 = vrot.lane.b32.xlu0 %v989, 107
      %v1010 = vpop.permute.xlu0 %1009
      %1012 = vrot.lane.b32.xlu0 %v989, 106
      %v1013 = vpop.permute.xlu0 %1012
      %1016 = vrot.lane.b32.xlu0 %v536, 117
      %v1017 = vpop.permute.xlu0 %1016
      %1018 = vrot.lane.b32.xlu0 %v781, 117
      %v1019 = vpop.permute.xlu0 %1018
      %1020 = vrot.lane.b32.xlu0 %v785, 117
      %v1021 = vpop.permute.xlu0 %1020
      %v1025 = vpack.c.bf16 %v992, %v989
      %v1026 = vpack.c.bf16 %v998, %v995
      %v1027 = vpack.c.bf16 %v1004, %v1001
      %v1028 = vpack.c.bf16 %v1010, %v1007
      %v1029 = vpack.c.bf16 %v1017, %v1013
      %v1030 = vpack.c.bf16 %v1021, %v1019
      %v1031 = vld [vmem:[%s8] sm:$0xf]
      %v1032 = vld [vmem:[%s8 + $0x4] sm:$0x3]
      %v1033 = vld [vmem:[%s9] sm:$0xff]
      %v1034 = vld [vmem:[%s9 + $0x8] sm:$0xf]
      %1036 = vset.pattern.permute.xlu0 0
      %1037 = vperm.xlu0 %1036, %v1033
      %v1038 = vpop.permute.xlu0 %1037
      %1041 = vset.pattern.permute.xlu0 0
      %1042 = vperm.xlu0 %1041, %v1034
      %v1043 = vpop.permute.xlu0 %1042
      %v1047 = vunpack.c.l.b16 %v1031
      %v1048 = vunpack.c.l.b16 %v1032
      %v1049 = vpack.c.b16 %v1048, %v1047
      %vm1050 = vcmask 785408
      %v1052 = vsel %vm1050, %v1049, 0
      %1054 = vmatprep.subr.bf16.mxu0 0
      %1055 = vmatpush1.bf16.msra.mxu0 %v1025
      %1056 = vmatprep.subr.bf16.mxu0 0
      %1057 = vmatpush1.bf16.msra.mxu0 %v1026
      %1058 = vmatprep.subr.bf16.mxu0 0
      %1059 = vmatpush1.bf16.msra.mxu0 %v1027
      %1060 = vmatprep.subr.bf16.mxu0 0
      %1061 = vmatpush1.bf16.msra.mxu0 %v1028
      %1062 = vmatprep.subr.bf16.mxu0 0
      %1063 = vmatpush1.bf16.msra.mxu0 %v1029
      %1064 = vmatprep.subr.bf16.mxu0 0
      %1065 = vmatpush1.bf16.msra.mxu0 %v1030
      %1066 = vmatprep.subr.bf16.mxu0 0
      %1067 = vmatpush1.bf16.msra.mxu0 0
      %1068 = vmatprep.subr.bf16.mxu0 0
      %1069 = vmatpush1.bf16.msra.mxu0 0
      %1070 = vmatprep.subr.bf16.mxu0 0
      %1071 = vmatpush1.bf16.msra.mxu0 0
      %1072 = vmatprep.subr.bf16.mxu0 0
      %1073 = vmatpush1.bf16.msra.mxu0 0
      %1074 = vmatprep.subr.bf16.mxu0 0
      %1075 = vmatpush1.bf16.msra.mxu0 0
      %1076 = vmatprep.subr.bf16.mxu0 0
      %1077 = vmatpush1.bf16.msra.mxu0 0
      %1078 = vmatprep.subr.bf16.mxu0 0
      %1079 = vmatpush1.bf16.msra.mxu0 0
      %1080 = vmatprep.subr.bf16.mxu0 0
      %1081 = vmatpush1.bf16.msra.mxu0 0
      %1082 = vmatprep.subr.bf16.mxu0 0
      %1083 = vmatpush1.bf16.msra.mxu0 0
      %1084 = vmatprep.subr.bf16.mxu0 0
      %1085 = vmatpush1.bf16.msra.mxu0 0
      %1086 = vmatprep.mubr.bf16.mxu0 0
      %1087 = vmatmul.mubr.bf16.gmra.mrb[0].mxu0 %v1052
      %v1088 = vpop.f32.mrb[0].mxu0
      %v1089 = vadd.f32 %v1038, %v1088
      %v1090 = vpop.f32.mrb[0].mxu0
      %v1091 = vpop.f32.mrb[0].mxu0
      %v1092 = vadd.f32 %v1043, %v1091
      %v1093 = vpop.f32.mrb[0].mxu0
      %1094 = vdwg.mxu0
      %v1095 = vpack.c.bf16 %v1092, %v1089
      %v1096 = vld [vmem:[%s10] sm:$0xf]
      %v1097 = vld [vmem:[%s10 + $0x4] sm:$0xf]
      %v1098 = vld [vmem:[%s10 + $0x8] sm:$0xf]
      %v1099 = vld [vmem:[%s10 + $0xc] sm:$0xf]
      %v1100 = vld [vmem:[%s10 + $0x10] sm:$0xf]
      %v1101 = vld [vmem:[%s10 + $0x14] sm:$0xf]
      %v1102 = vld [vmem:[%s10 + $0x18] sm:$0xf]
      %v1103 = vld [vmem:[%s10 + $0x1c] sm:$0xf]
      %v1104 = vld [vmem:[%s10 + $0x20] sm:$0xf]
      %v1105 = vld [vmem:[%s10 + $0x24] sm:$0xf]
      %v1116 = vunpack.c.l.b16 %v1096
      %v1117 = vunpack.c.l.b16 %v1097
      %v1118 = vunpack.c.l.b16 %v1098
      %v1119 = vunpack.c.l.b16 %v1099
      %v1120 = vunpack.c.l.b16 %v1100
      %v1121 = vunpack.c.l.b16 %v1101
      %v1122 = vunpack.c.l.b16 %v1102
      %v1123 = vunpack.c.l.b16 %v1103
      %v1124 = vunpack.c.l.b16 %v1104
      %v1125 = vunpack.c.l.b16 %v1105
      %v1126 = vpack.c.b16 %v1117, %v1116
      %v1127 = vpack.c.b16 %v1119, %v1118
      %v1128 = vpack.c.b16 %v1121, %v1120
      %v1129 = vpack.c.b16 %v1123, %v1122
      %v1130 = vpack.c.b16 %v1125, %v1124
      %v1137 = vsel %vm516, %v1095, 0
      %1139 = vmatprep.subr.bf16.mxu0 0
      %1140 = vmatpush1.bf16.msra.mxu0 %v1126
      %1141 = vmatprep.subr.bf16.mxu0 0
      %1142 = vmatpush1.bf16.msra.mxu0 %v1127
      %1143 = vmatprep.subr.bf16.mxu0 0
      %1144 = vmatpush1.bf16.msra.mxu0 %v1128
      %1145 = vmatprep.subr.bf16.mxu0 0
      %1146 = vmatpush1.bf16.msra.mxu0 %v1129
      %1147 = vmatprep.subr.bf16.mxu0 0
      %1148 = vmatpush1.bf16.msra.mxu0 %v1130
      %1149 = vmatprep.subr.bf16.mxu0 0
      %1150 = vmatpush1.bf16.msra.mxu0 0
      %1151 = vmatprep.subr.bf16.mxu0 0
      %1152 = vmatpush1.bf16.msra.mxu0 0
      %1153 = vmatprep.subr.bf16.mxu0 0
      %1154 = vmatpush1.bf16.msra.mxu0 0
      %1155 = vmatprep.subr.bf16.mxu0 0
      %1156 = vmatpush1.bf16.msra.mxu0 0
      %1157 = vmatprep.subr.bf16.mxu0 0
      %1158 = vmatpush1.bf16.msra.mxu0 0
      %1159 = vmatprep.subr.bf16.mxu0 0
      %1160 = vmatpush1.bf16.msra.mxu0 0
      %1161 = vmatprep.subr.bf16.mxu0 0
      %1162 = vmatpush1.bf16.msra.mxu0 0
      %1163 = vmatprep.subr.bf16.mxu0 0
      %1164 = vmatpush1.bf16.msra.mxu0 0
      %1165 = vmatprep.subr.bf16.mxu0 0
      %1166 = vmatpush1.bf16.msra.mxu0 0
      %1167 = vmatprep.subr.bf16.mxu0 0
      %1168 = vmatpush1.bf16.msra.mxu0 0
      %1169 = vmatprep.subr.bf16.mxu0 0
      %1170 = vmatpush1.bf16.msra.mxu0 0
      %1171 = vmatprep.mubr.bf16.mxu0 0
      %1172 = vmatmul.mubr.bf16.gmra.mrb[0].mxu0 %v1137
      %v1173 = vpop.f32.mrb[0].mxu0
      %v1174 = vadd.f32 0.0, %v1173
      %v1175 = vpop.f32.mrb[0].mxu0
      %v1176 = vpop.f32.mrb[0].mxu0
      %v1177 = vadd.f32 0.0, %v1176
      %v1178 = vpop.f32.mrb[0].mxu0
      %1179 = vdwg.mxu0
      %1180 = vadd.xlane.f32.xlu0 %v1174
      %v1181 = vpop.xlane.xlu0 %1180
      %v1182 = vsel %vm924, %v1177, 0.0
      %1183 = vadd.xlane.f32.xlu0 %v1182
      %v1184 = vpop.xlane.xlu0 %1183
      %v1185 = vmul.f32 %v1181, 0.0625
      %v1186 = vmul.f32 %v1184, 0.0625
      %vm1187 = vcmask 7168
      %1188 = vst.msk [vmem:[%s437] sm:$0xff] %vm1187, %v1185
      %vm1189 = vcmask 3072
      %1190 = vst.msk [vmem:[%s437 + $0x8] sm:$0xf] %vm1189, %v1186
      %v1191 = vpack.c.bf16 %v1177, %v1174
      %v1193 = vunpack.c.l.b16 %v1191
      %v1194 = vunpack.c.h.b16 %v1191
      %v1195 = vpack.c.b16 %v1193, %v1193
      %v1196 = vpack.c.b16 %v1194, %v1194
      %1199 = vst [vmem:[%s432] sm:$0xf] %v1195
      %1200 = vst [vmem:[%s432 + $0x4] sm:$0x3] %v1196
      %p1201 = scmp.lt.s32.totalorder %s24, 1
      %s1202 = scalar_select %p1201, %s24, 1
      %s1203 = smul.addr %s1202, 2
      %s1204 = smul.addr %s1203, 4
      %s1205 = scalar_lea.vmem %s11, %s1204
      %p1206 = scmp.lt.s32.totalorder %s24, 1
      %s1207 = scalar_select %p1206, %s24, 1
      %s1208 = smul.addr %s1207, 2
      %s1209 = smul.addr %s1208, 8
      %s1210 = scalar_lea.vmem %s12, %s1209
      // Predicated region
      $region65: #{labs_injected_encoder_forward.9} parent=63 // pred_check
        %p1211 = pneg %p283
      $region66: #{labs_injected_encoder_forward.9} parent=63 // pred_check_branch
        %1213 = sbr.rel (%p1211) target = $region68
      $region67: #{labs_injected_encoder_forward.9} parent=63 // pred_region
        _
      $region68: #{labs_injected_encoder_forward.9} parent=63 // pred_fallthru
        _
      // Predicated region
      $region69: #{labs_injected_encoder_forward.9} parent=63 // pred_check
        %p1214 = pneg %p309
      $region70: #{labs_injected_encoder_forward.9} parent=63 // pred_check_branch
        %1216 = sbr.rel (%p1214) target = $region72
      $region71: #{labs_injected_encoder_forward.9} parent=63 // pred_region
        _
      $region72: #{labs_injected_encoder_forward.9} parent=63 // pred_fallthru
        _
    $region64: #{labs_injected_encoder_forward.9} parent=5 // pred_fallthru
      _
    %p1217 = scmp.le.s32.totalorder 2, %s19
    // Predicated region
    $region73: #{labs_injected_encoder_forward.9} parent=5 // pred_check
      %p1218 = pneg %p1217
    $region74: #{labs_injected_encoder_forward.9} parent=5 // pred_check_branch
      %1220 = sbr.rel (%p1218) target = $region76
    $region75: #{labs_injected_encoder_forward.9} parent=5 // pred_region
      %s1221 = ssub.s32 %s19, 2
      // Predicated region
      $region77: #{labs_injected_encoder_forward.9} parent=75 // pred_check
        %p1222 = pneg %p289
      $region78: #{labs_injected_encoder_forward.9} parent=75 // pred_check_branch
        %1224 = sbr.rel (%p1222) target = $region80
      $region79: #{labs_injected_encoder_forward.9} parent=75 // pred_region
        %p1225 = scmp.lt.s32.totalorder %s25, 1
        %s1226 = scalar_select %p1225, %s25, 1
        %s1227 = smul.addr %s1226, 2
        %s1228 = smul.addr %s1227, 4
        %s1229 = scalar_lea.vmem %s11, %s1228
      $region80: #{labs_injected_encoder_forward.9} parent=75 // pred_fallthru
        _
      // Predicated region
      $region81: #{labs_injected_encoder_forward.9} parent=75 // pred_check
        %p1230 = pneg %p315
      $region82: #{labs_injected_encoder_forward.9} parent=75 // pred_check_branch
        %1232 = sbr.rel (%p1230) target = $region84
      $region83: #{labs_injected_encoder_forward.9} parent=75 // pred_region
        %p1233 = scmp.lt.s32.totalorder %s25, 1
        %s1234 = scalar_select %p1233, %s25, 1
        %s1235 = smul.addr %s1234, 2
        %s1236 = smul.addr %s1235, 8
        %s1237 = scalar_lea.vmem %s12, %s1236
      $region84: #{labs_injected_encoder_forward.9} parent=75 // pred_fallthru
        _
    $region76: #{labs_injected_encoder_forward.9} parent=5 // pred_fallthru
      _
  $region6: #{labs_injected_encoder_forward.9} parent=0 // loop_footer
    %s23 = sadd.s32 1, %s19
  $region7: #{labs_injected_encoder_forward.9} parent=0 // loop_footer_branch
    %18 = sbr.rel target = $region3
  $region8: #{labs_injected_encoder_forward.9} parent=0 // loop_exit
    _

// kernel: labs_injected_encoder_forward.8
$region0: #{labs_injected_encoder_forward.8}
  #allocation0 [shape = 'u32[]', space=smem, size = 0x4, offset = 0x4, fixed_abs, tag = 'smem constant byte address 0x4 - core index']
  #allocation1 [shape = 'u32[144,128]{1,0:T(1,128)}', space=vmem, size = 0x12000, scoped, tag = 'internal scratch']
  %s0 = inlined_call_operand.vmem [shape: bf16[2,4,384], index: 0, kind: input, shape index: {}]
  %s1 = inlined_call_operand.vmem [shape: f32[2,1,32], index: 1, kind: input, shape index: {}]
  %s2 = inlined_call_operand.vmem [shape: f32[4,32], index: 2, kind: input, shape index: {}]
  %s3 = inlined_call_operand.vmem [shape: f32[4,1], index: 3, kind: input, shape index: {}, may-alias: {3,5,7}]
  %s4 = inlined_call_operand.vmem [shape: f32[4,32], index: 4, kind: input, shape index: {}]
  %s5 = inlined_call_operand.vmem [shape: f32[4,1], index: 5, kind: input, shape index: {}, may-alias: {3,5,7}]
  %s6 = inlined_call_operand.vmem [shape: bf16[4,108], index: 6, kind: input, shape index: {}]
  %s7 = inlined_call_operand.vmem [shape: f32[4,1], index: 7, kind: input, shape index: {}, may-alias: {3,5,7}]
  %s8 = inlined_call_operand.vmem [shape: bf16[8,48], index: 8, kind: input, shape index: {}]
  %s9 = inlined_call_operand.vmem [shape: f32[8,1], index: 9, kind: input, shape index: {}]
  %s10 = inlined_call_operand.vmem [shape: bf16[288,128], index: 10, kind: input, shape index: {}]
  %s11 = inlined_call_operand.vmem [shape: bf16[2,8,128], index: 11, kind: output, shape index: {0}]
  %s12 = inlined_call_operand.vmem [shape: f32[2,8,1], index: 12, kind: output, shape index: {1}]
  %13 = xla_tuple %s11, %s12
  %s14 = sld [smem:[#allocation0]]
  $region85: #{labs_injected_encoder_forward.8} parent=0
    _
  %s16 = ssub.s32 1, %s14
  %s17 = scalar_select 0, %s16, %s14
  loop: start=0, step=1, limit=4
  $region2: #{labs_injected_encoder_forward.8} parent=0 // loop_pre_header
    _
  $region3: #{labs_injected_encoder_forward.8} parent=0 // loop_header
    %s19 = sphi 0, %s23
    %p20 = scmp.ge.s32.totalorder %s19, 4
    %s29 = sphi 0, %s31
    %s32 = sphi 0, %s29
    %s33 = sphi 0, %s32
    %s49 = sphi 0, %s33
    %s55 = sphi 0, %s57
    %s58 = sphi 0, %s55
    %s59 = sphi 0, %s58
    %s75 = sphi 0, %s59
    %s79 = sphi 0, %s79
    %s81 = sphi 0, %s79
    %s82 = sphi 0, %s81
    %s96 = sphi 0, %s82
    %s100 = sphi 0, %s100
    %s102 = sphi 0, %s100
    %s103 = sphi 0, %s102
    %s117 = sphi 0, %s103
    %s121 = sphi 0, %s121
    %s123 = sphi 0, %s121
    %s124 = sphi 0, %s123
    %s138 = sphi 0, %s124
    %s142 = sphi 0, %s142
    %s144 = sphi 0, %s142
    %s145 = sphi 0, %s144
    %s159 = sphi 0, %s145
    %s163 = sphi 0, %s163
    %s165 = sphi 0, %s163
    %s166 = sphi 0, %s165
    %s180 = sphi 0, %s166
    %s184 = sphi 0, %s184
    %s186 = sphi 0, %s184
    %s187 = sphi 0, %s186
    %s201 = sphi 0, %s187
    %s205 = sphi 0, %s205
    %s207 = sphi 0, %s205
    %s208 = sphi 0, %s207
    %s222 = sphi 0, %s208
    %s226 = sphi 0, %s226
    %s228 = sphi 0, %s226
    %s229 = sphi 0, %s228
    %s243 = sphi 0, %s229
    %s247 = sphi 0, %s247
    %s249 = sphi 0, %s247
    %s250 = sphi 0, %s249
    %s264 = sphi 0, %s250
    %s270 = sphi 0, %s272
    %s273 = sphi 0, %s270
    %s274 = sphi 0, %s273
    %s290 = sphi 0, %s274
    %s296 = sphi 0, %s298
    %s299 = sphi 0, %s296
    %s300 = sphi 0, %s299
    %s316 = sphi 0, %s300
  $region4: #{labs_injected_encoder_forward.8} parent=0 // loop_header_branch
    %22 = sbr.rel (%p20) target = $region8
  $region5: #{labs_injected_encoder_forward.8} parent=0 // loop_body
    %s24 = ssub.s32 %s19, 1
    %s25 = ssub.s32 %s19, 2
    %s26 = sadd.s32 %s19, 1
    %s27 = ssub.s32 %s19, %s26
    %p28 = scmp.eq.s32.totalorder %s27, 0
    %s30 = sadd.s32 %s29, 1
    %s31 = scalar_select %p28, %s29, %s30
    %p34 = pneg %p28
    %p35 = scmp.eq.s32.totalorder %s19, 1
    %p36 = por %p34, %p35
    %p37 = scmp.ne.s32.totalorder %s29, %s32
    %p38 = scmp.eq.s32.totalorder %s19, 0
    %p39 = por %p37, %p38
    %p40 = scmp.ne.s32.totalorder %s29, %s32
    %p41 = scmp.eq.s32.totalorder %s24, 1
    %p42 = por %p40, %p41
    %p43 = scmp.ne.s32.totalorder %s32, %s33
    %p44 = scmp.eq.s32.totalorder %s24, 0
    %p45 = por %p43, %p44
    %p46 = scmp.ne.s32.totalorder %s32, %s33
    %p47 = scmp.eq.s32.totalorder %s25, 1
    %p48 = por %p46, %p47
    %p50 = scmp.ne.s32.totalorder %s33, %s49
    %p51 = scmp.eq.s32.totalorder %s25, 0
    %p52 = por %p50, %p51
    %s53 = ssub.s32 %s19, %s26
    %p54 = scmp.eq.s32.totalorder %s53, 0
    %s56 = sadd.s32 %s55, 1
    %s57 = scalar_select %p54, %s55, %s56
    %p60 = pneg %p54
    %p61 = scmp.eq.s32.totalorder %s19, 1
    %p62 = por %p60, %p61
    %p63 = scmp.ne.s32.totalorder %s55, %s58
    %p64 = scmp.eq.s32.totalorder %s19, 0
    %p65 = por %p63, %p64
    %p66 = scmp.ne.s32.totalorder %s55, %s58
    %p67 = scmp.eq.s32.totalorder %s24, 1
    %p68 = por %p66, %p67
    %p69 = scmp.ne.s32.totalorder %s58, %s59
    %p70 = scmp.eq.s32.totalorder %s24, 0
    %p71 = por %p69, %p70
    %p72 = scmp.ne.s32.totalorder %s58, %s59
    %p73 = scmp.eq.s32.totalorder %s25, 1
    %p74 = por %p72, %p73
    %p76 = scmp.ne.s32.totalorder %s59, %s75
    %p77 = scmp.eq.s32.totalorder %s25, 0
    %p78 = por %p76, %p77
    %s80 = sadd.s32 %s79, 1
    %p83 = scmp.eq.s32.totalorder %s19, 1
    %p84 = scmp.ne.s32.totalorder %s79, %s81
    %p85 = scmp.eq.s32.totalorder %s19, 0
    %p86 = por %p84, %p85
    %p87 = scmp.ne.s32.totalorder %s79, %s81
    %p88 = scmp.eq.s32.totalorder %s24, 1
    %p89 = por %p87, %p88
    %p90 = scmp.ne.s32.totalorder %s81, %s82
    %p91 = scmp.eq.s32.totalorder %s24, 0
    %p92 = por %p90, %p91
    %p93 = scmp.ne.s32.totalorder %s81, %s82
    %p94 = scmp.eq.s32.totalorder %s25, 1
    %p95 = por %p93, %p94
    %p97 = scmp.ne.s32.totalorder %s82, %s96
    %p98 = scmp.eq.s32.totalorder %s25, 0
    %p99 = por %p97, %p98
    %s101 = sadd.s32 %s100, 1
    %p104 = scmp.eq.s32.totalorder %s19, 1
    %p105 = scmp.ne.s32.totalorder %s100, %s102
    %p106 = scmp.eq.s32.totalorder %s19, 0
    %p107 = por %p105, %p106
    %p108 = scmp.ne.s32.totalorder %s100, %s102
    %p109 = scmp.eq.s32.totalorder %s24, 1
    %p110 = por %p108, %p109
    %p111 = scmp.ne.s32.totalorder %s102, %s103
    %p112 = scmp.eq.s32.totalorder %s24, 0
    %p113 = por %p111, %p112
    %p114 = scmp.ne.s32.totalorder %s102, %s103
    %p115 = scmp.eq.s32.totalorder %s25, 1
    %p116 = por %p114, %p115
    %p118 = scmp.ne.s32.totalorder %s103, %s117
    %p119 = scmp.eq.s32.totalorder %s25, 0
    %p120 = por %p118, %p119
    %s122 = sadd.s32 %s121, 1
    %p125 = scmp.eq.s32.totalorder %s19, 1
    %p126 = scmp.ne.s32.totalorder %s121, %s123
    %p127 = scmp.eq.s32.totalorder %s19, 0
    %p128 = por %p126, %p127
    %p129 = scmp.ne.s32.totalorder %s121, %s123
    %p130 = scmp.eq.s32.totalorder %s24, 1
    %p131 = por %p129, %p130
    %p132 = scmp.ne.s32.totalorder %s123, %s124
    %p133 = scmp.eq.s32.totalorder %s24, 0
    %p134 = por %p132, %p133
    %p135 = scmp.ne.s32.totalorder %s123, %s124
    %p136 = scmp.eq.s32.totalorder %s25, 1
    %p137 = por %p135, %p136
    %p139 = scmp.ne.s32.totalorder %s124, %s138
    %p140 = scmp.eq.s32.totalorder %s25, 0
    %p141 = por %p139, %p140
    %s143 = sadd.s32 %s142, 1
    %p146 = scmp.eq.s32.totalorder %s19, 1
    %p147 = scmp.ne.s32.totalorder %s142, %s144
    %p148 = scmp.eq.s32.totalorder %s19, 0
    %p149 = por %p147, %p148
    %p150 = scmp.ne.s32.totalorder %s142, %s144
    %p151 = scmp.eq.s32.totalorder %s24, 1
    %p152 = por %p150, %p151
    %p153 = scmp.ne.s32.totalorder %s144, %s145
    %p154 = scmp.eq.s32.totalorder %s24, 0
    %p155 = por %p153, %p154
    %p156 = scmp.ne.s32.totalorder %s144, %s145
    %p157 = scmp.eq.s32.totalorder %s25, 1
    %p158 = por %p156, %p157
    %p160 = scmp.ne.s32.totalorder %s145, %s159
    %p161 = scmp.eq.s32.totalorder %s25, 0
    %p162 = por %p160, %p161
    %s164 = sadd.s32 %s163, 1
    %p167 = scmp.eq.s32.totalorder %s19, 1
    %p168 = scmp.ne.s32.totalorder %s163, %s165
    %p169 = scmp.eq.s32.totalorder %s19, 0
    %p170 = por %p168, %p169
    %p171 = scmp.ne.s32.totalorder %s163, %s165
    %p172 = scmp.eq.s32.totalorder %s24, 1
    %p173 = por %p171, %p172
    %p174 = scmp.ne.s32.totalorder %s165, %s166
    %p175 = scmp.eq.s32.totalorder %s24, 0
    %p176 = por %p174, %p175
    %p177 = scmp.ne.s32.totalorder %s165, %s166
    %p178 = scmp.eq.s32.totalorder %s25, 1
    %p179 = por %p177, %p178
    %p181 = scmp.ne.s32.totalorder %s166, %s180
    %p182 = scmp.eq.s32.totalorder %s25, 0
    %p183 = por %p181, %p182
    %s185 = sadd.s32 %s184, 1
    %p188 = scmp.eq.s32.totalorder %s19, 1
    %p189 = scmp.ne.s32.totalorder %s184, %s186
    %p190 = scmp.eq.s32.totalorder %s19, 0
    %p191 = por %p189, %p190
    %p192 = scmp.ne.s32.totalorder %s184, %s186
    %p193 = scmp.eq.s32.totalorder %s24, 1
    %p194 = por %p192, %p193
    %p195 = scmp.ne.s32.totalorder %s186, %s187
    %p196 = scmp.eq.s32.totalorder %s24, 0
    %p197 = por %p195, %p196
    %p198 = scmp.ne.s32.totalorder %s186, %s187
    %p199 = scmp.eq.s32.totalorder %s25, 1
    %p200 = por %p198, %p199
    %p202 = scmp.ne.s32.totalorder %s187, %s201
    %p203 = scmp.eq.s32.totalorder %s25, 0
    %p204 = por %p202, %p203
    %s206 = sadd.s32 %s205, 1
    %p209 = scmp.eq.s32.totalorder %s19, 1
    %p210 = scmp.ne.s32.totalorder %s205, %s207
    %p211 = scmp.eq.s32.totalorder %s19, 0
    %p212 = por %p210, %p211
    %p213 = scmp.ne.s32.totalorder %s205, %s207
    %p214 = scmp.eq.s32.totalorder %s24, 1
    %p215 = por %p213, %p214
    %p216 = scmp.ne.s32.totalorder %s207, %s208
    %p217 = scmp.eq.s32.totalorder %s24, 0
    %p218 = por %p216, %p217
    %p219 = scmp.ne.s32.totalorder %s207, %s208
    %p220 = scmp.eq.s32.totalorder %s25, 1
    %p221 = por %p219, %p220
    %p223 = scmp.ne.s32.totalorder %s208, %s222
    %p224 = scmp.eq.s32.totalorder %s25, 0
    %p225 = por %p223, %p224
    %s227 = sadd.s32 %s226, 1
    %p230 = scmp.eq.s32.totalorder %s19, 1
    %p231 = scmp.ne.s32.totalorder %s226, %s228
    %p232 = scmp.eq.s32.totalorder %s19, 0
    %p233 = por %p231, %p232
    %p234 = scmp.ne.s32.totalorder %s226, %s228
    %p235 = scmp.eq.s32.totalorder %s24, 1
    %p236 = por %p234, %p235
    %p237 = scmp.ne.s32.totalorder %s228, %s229
    %p238 = scmp.eq.s32.totalorder %s24, 0
    %p239 = por %p237, %p238
    %p240 = scmp.ne.s32.totalorder %s228, %s229
    %p241 = scmp.eq.s32.totalorder %s25, 1
    %p242 = por %p240, %p241
    %p244 = scmp.ne.s32.totalorder %s229, %s243
    %p245 = scmp.eq.s32.totalorder %s25, 0
    %p246 = por %p244, %p245
    %s248 = sadd.s32 %s247, 1
    %p251 = scmp.eq.s32.totalorder %s19, 1
    %p252 = scmp.ne.s32.totalorder %s247, %s249
    %p253 = scmp.eq.s32.totalorder %s19, 0
    %p254 = por %p252, %p253
    %p255 = scmp.ne.s32.totalorder %s247, %s249
    %p256 = scmp.eq.s32.totalorder %s24, 1
    %p257 = por %p255, %p256
    %p258 = scmp.ne.s32.totalorder %s249, %s250
    %p259 = scmp.eq.s32.totalorder %s24, 0
    %p260 = por %p258, %p259
    %p261 = scmp.ne.s32.totalorder %s249, %s250
    %p262 = scmp.eq.s32.totalorder %s25, 1
    %p263 = por %p261, %p262
    %p265 = scmp.ne.s32.totalorder %s250, %s264
    %p266 = scmp.eq.s32.totalorder %s25, 0
    %p267 = por %p265, %p266
    %s268 = ssub.s32 %s19, %s26
    %p269 = scmp.eq.s32.totalorder %s268, 0
    %s271 = sadd.s32 %s270, 1
    %s272 = scalar_select %p269, %s270, %s271
    %p275 = pneg %p269
    %p276 = scmp.eq.s32.totalorder %s19, 1
    %p277 = por %p275, %p276
    %p278 = scmp.ne.s32.totalorder %s270, %s273
    %p279 = scmp.eq.s32.totalorder %s19, 0
    %p280 = por %p278, %p279
    %p281 = scmp.ne.s32.totalorder %s270, %s273
    %p282 = scmp.eq.s32.totalorder %s24, 1
    %p283 = por %p281, %p282
    %p284 = scmp.ne.s32.totalorder %s273, %s274
    %p285 = scmp.eq.s32.totalorder %s24, 0
    %p286 = por %p284, %p285
    %p287 = scmp.ne.s32.totalorder %s273, %s274
    %p288 = scmp.eq.s32.totalorder %s25, 1
    %p289 = por %p287, %p288
    %p291 = scmp.ne.s32.totalorder %s274, %s290
    %p292 = scmp.eq.s32.totalorder %s25, 0
    %p293 = por %p291, %p292
    %s294 = ssub.s32 %s19, %s26
    %p295 = scmp.eq.s32.totalorder %s294, 0
    %s297 = sadd.s32 %s296, 1
    %s298 = scalar_select %p295, %s296, %s297
    %p301 = pneg %p295
    %p302 = scmp.eq.s32.totalorder %s19, 1
    %p303 = por %p301, %p302
    %p304 = scmp.ne.s32.totalorder %s296, %s299
    %p305 = scmp.eq.s32.totalorder %s19, 0
    %p306 = por %p304, %p305
    %p307 = scmp.ne.s32.totalorder %s296, %s299
    %p308 = scmp.eq.s32.totalorder %s24, 1
    %p309 = por %p307, %p308
    %p310 = scmp.ne.s32.totalorder %s299, %s300
    %p311 = scmp.eq.s32.totalorder %s24, 0
    %p312 = por %p310, %p311
    %p313 = scmp.ne.s32.totalorder %s299, %s300
    %p314 = scmp.eq.s32.totalorder %s25, 1
    %p315 = por %p313, %p314
    %p317 = scmp.ne.s32.totalorder %s300, %s316
    %p318 = scmp.eq.s32.totalorder %s25, 0
    %p319 = por %p317, %p318
    %p320 = scmp.le.s32.totalorder 1, %s19
    %p321 = scmp.lt.s32.totalorder %s19, 3
    %p322 = pnand %p320, %p321
    %p323 = pneg %p322
    // Predicated region
    $region9: #{labs_injected_encoder_forward.8} parent=5 // pred_check
      _
    $region10: #{labs_injected_encoder_forward.8} parent=5 // pred_check_branch
      %325 = sbr.rel (%p322) target = $region12
    $region11: #{labs_injected_encoder_forward.8} parent=5 // pred_region
      %s326 = ssub.s32 %s19, 1
      // Predicated region
      $region13: #{labs_injected_encoder_forward.8} parent=11 // pred_check
        %p327 = pneg %p92
      $region14: #{labs_injected_encoder_forward.8} parent=11 // pred_check_branch
        %329 = sbr.rel (%p327) target = $region16
      $region15: #{labs_injected_encoder_forward.8} parent=11 // pred_region
        _
      $region16: #{labs_injected_encoder_forward.8} parent=11 // pred_fallthru
        _
      // Predicated region
      $region17: #{labs_injected_encoder_forward.8} parent=11 // pred_check
        %p330 = pneg %p113
      $region18: #{labs_injected_encoder_forward.8} parent=11 // pred_check_branch
        %332 = sbr.rel (%p330) target = $region20
      $region19: #{labs_injected_encoder_forward.8} parent=11 // pred_region
        _
      $region20: #{labs_injected_encoder_forward.8} parent=11 // pred_fallthru
        _
      // Predicated region
      $region21: #{labs_injected_encoder_forward.8} parent=11 // pred_check
        %p333 = pneg %p134
      $region22: #{labs_injected_encoder_forward.8} parent=11 // pred_check_branch
        %335 = sbr.rel (%p333) target = $region24
      $region23: #{labs_injected_encoder_forward.8} parent=11 // pred_region
        _
      $region24: #{labs_injected_encoder_forward.8} parent=11 // pred_fallthru
        _
      // Predicated region
      $region25: #{labs_injected_encoder_forward.8} parent=11 // pred_check
        %p336 = pneg %p155
      $region26: #{labs_injected_encoder_forward.8} parent=11 // pred_check_branch
        %338 = sbr.rel (%p336) target = $region28
      $region27: #{labs_injected_encoder_forward.8} parent=11 // pred_region
        _
      $region28: #{labs_injected_encoder_forward.8} parent=11 // pred_fallthru
        _
      // Predicated region
      $region29: #{labs_injected_encoder_forward.8} parent=11 // pred_check
        %p339 = pneg %p176
      $region30: #{labs_injected_encoder_forward.8} parent=11 // pred_check_branch
        %341 = sbr.rel (%p339) target = $region32
      $region31: #{labs_injected_encoder_forward.8} parent=11 // pred_region
        _
      $region32: #{labs_injected_encoder_forward.8} parent=11 // pred_fallthru
        _
      // Predicated region
      $region33: #{labs_injected_encoder_forward.8} parent=11 // pred_check
        %p342 = pneg %p197
      $region34: #{labs_injected_encoder_forward.8} parent=11 // pred_check_branch
        %344 = sbr.rel (%p342) target = $region36
      $region35: #{labs_injected_encoder_forward.8} parent=11 // pred_region
        _
      $region36: #{labs_injected_encoder_forward.8} parent=11 // pred_fallthru
        _
      // Predicated region
      $region37: #{labs_injected_encoder_forward.8} parent=11 // pred_check
        %p345 = pneg %p218
      $region38: #{labs_injected_encoder_forward.8} parent=11 // pred_check_branch
        %347 = sbr.rel (%p345) target = $region40
      $region39: #{labs_injected_encoder_forward.8} parent=11 // pred_region
        _
      $region40: #{labs_injected_encoder_forward.8} parent=11 // pred_fallthru
        _
      // Predicated region
      $region41: #{labs_injected_encoder_forward.8} parent=11 // pred_check
        %p348 = pneg %p239
      $region42: #{labs_injected_encoder_forward.8} parent=11 // pred_check_branch
        %350 = sbr.rel (%p348) target = $region44
      $region43: #{labs_injected_encoder_forward.8} parent=11 // pred_region
        _
      $region44: #{labs_injected_encoder_forward.8} parent=11 // pred_fallthru
        _
      // Predicated region
      $region45: #{labs_injected_encoder_forward.8} parent=11 // pred_check
        %p351 = pneg %p260
      $region46: #{labs_injected_encoder_forward.8} parent=11 // pred_check_branch
        %353 = sbr.rel (%p351) target = $region48
      $region47: #{labs_injected_encoder_forward.8} parent=11 // pred_region
        _
      $region48: #{labs_injected_encoder_forward.8} parent=11 // pred_fallthru
        _
    $region12: #{labs_injected_encoder_forward.8} parent=5 // pred_fallthru
      _
    %p354 = scmp.lt.s32.totalorder %s19, 2
    // Predicated region
    $region49: #{labs_injected_encoder_forward.8} parent=5 // pred_check
      %p355 = pneg %p354
    $region50: #{labs_injected_encoder_forward.8} parent=5 // pred_check_branch
      %357 = sbr.rel (%p355) target = $region52
    $region51: #{labs_injected_encoder_forward.8} parent=5 // pred_region
      // Predicated region
      $region53: #{labs_injected_encoder_forward.8} parent=51 // pred_check
        %p358 = pneg %p39
      $region54: #{labs_injected_encoder_forward.8} parent=51 // pred_check_branch
        %360 = sbr.rel (%p358) target = $region56
      $region55: #{labs_injected_encoder_forward.8} parent=51 // pred_region
        %p361 = scmp.lt.s32.totalorder %s19, 1
        %s362 = scalar_select %p361, %s19, 1
        %s363 = smul.addr %s362, 3
        %s364 = smul.addr %s363, 2
        %s365 = scalar_lea.vmem %s0, %s364
      $region56: #{labs_injected_encoder_forward.8} parent=51 // pred_fallthru
        _
      // Predicated region
      $region57: #{labs_injected_encoder_forward.8} parent=51 // pred_check
        %p366 = pneg %p65
      $region58: #{labs_injected_encoder_forward.8} parent=51 // pred_check_branch
        %368 = sbr.rel (%p366) target = $region60
      $region59: #{labs_injected_encoder_forward.8} parent=51 // pred_region
        %p369 = scmp.lt.s32.totalorder %s19, 1
        %s370 = scalar_select %p369, %s19, 1
        %s371 = scalar_lea.vmem %s1, %s370
      $region60: #{labs_injected_encoder_forward.8} parent=51 // pred_fallthru
        _
    $region52: #{labs_injected_encoder_forward.8} parent=5 // pred_fallthru
      _
    %p372 = scmp.le.s32.totalorder 1, %s19
    %p373 = scmp.lt.s32.totalorder %s19, 3
    %p374 = pnand %p372, %p373
    %p375 = pneg %p374
    // Predicated region
    $region61: #{labs_injected_encoder_forward.8} parent=5 // pred_check
      _
    $region62: #{labs_injected_encoder_forward.8} parent=5 // pred_check_branch
      %377 = sbr.rel (%p374) target = $region64
    $region63: #{labs_injected_encoder_forward.8} parent=5 // pred_region
      %s378 = ssub.s32 %s19, 1
      %p379 = scmp.lt.s32.totalorder %s24, 1
      %s380 = scalar_select %p379, %s24, 1
      %s381 = smul.addr %s380, 3
      %s382 = smul.addr %s381, 2
      %s383 = scalar_lea.vmem %s0, %s382
      %p384 = pneg %p45
      %p385 = pneg %p42
      %p386 = scmp.lt.s32.totalorder %s24, 1
      %s387 = scalar_select %p386, %s24, 1
      %s388 = scalar_lea.vmem %s1, %s387
      %p389 = pneg %p71
      %p390 = pneg %p68
      %p391 = pneg %p92
      %p392 = pneg %p89
      %p393 = pneg %p113
      %p394 = pneg %p110
      %p395 = pneg %p134
      %p396 = pneg %p131
      %p397 = pneg %p155
      %p398 = pneg %p152
      %p399 = pneg %p176
      %p400 = pneg %p173
      %p401 = pneg %p197
      %p402 = pneg %p194
      %p403 = pneg %p218
      %p404 = pneg %p215
      %p405 = pneg %p239
      %p406 = pneg %p236
      %p407 = pneg %p260
      %p408 = pneg %p257
      %p409 = pneg %p286
      %p410 = pneg %p283
      %p411 = scmp.lt.s32.totalorder %s24, 1
      %s412 = scalar_select %p411, %s24, 1
      %s413 = smul.addr %s412, 4
      %s414 = scalar_lea.vmem %s11, %s413
      %p415 = pneg %p312
      %p416 = pneg %p309
      %p417 = scmp.lt.s32.totalorder %s24, 1
      %s418 = scalar_select %p417, %s24, 1
      %s419 = smul.addr %s418, 8
      %s420 = scalar_lea.vmem %s12, %s419
      %p421 = scmp.lt.s32.totalorder %s24, 1
      %s422 = scalar_select %p421, %s24, 1
      %s423 = smul.addr %s422, 3
      %s424 = smul.addr %s423, 2
      %s425 = scalar_lea.vmem %s0, %s424
      %p426 = scmp.lt.s32.totalorder %s24, 1
      %s427 = scalar_select %p426, %s24, 1
      %s428 = scalar_lea.vmem %s1, %s427
      %p429 = scmp.lt.s32.totalorder %s24, 1
      %s430 = scalar_select %p429, %s24, 1
      %s431 = smul.addr %s430, 4
      %s432 = scalar_lea.vmem %s11, %s431
      %p433 = scmp.lt.s32.totalorder %s24, 1
      %s434 = scalar_select %p433, %s24, 1
      %s435 = smul.addr %s434, 8
      %s436 = scalar_lea.vmem %s12, %s435
      %v438 = vld [vmem:[%s425] sm:$0x3f]
      %v439 = vunpack.c.l.bf16 %v438
      %v440 = vunpack.c.h.bf16 %v438
      %v441 = vadd.f32 %v439, 0.0
      %v442 = vadd.f32 %v440, 0.0
      %v443 = vmul.f32 %v439, 2.0
      %v444 = vmul.f32 %v440, 2.0
      %447 = vrot.lane.b32.xlu0 %v443, 127
      %v448 = vpop.permute.xlu0 %447
      %449 = vrot.lane.b32.xlu0 %v444, 127
      %v450 = vpop.permute.xlu0 %449
      %v451 = vrot.slane %v448, 4
      %v452 = vrot.slane %v450, 4
      %vm453 = vcmask 1043456
      %v454 = vsel %vm453, %v451, %v452
      %vm455 = vcmask 1039360
      %v456 = vsel %vm455, %v448, %v454
      %v459 = vadd.f32 %v441, %v456
      %v460 = vadd.f32 %v442, %v450
      %v461 = vmul.f32 %v439, -1.0
      %v462 = vmul.f32 %v440, -1.0
      %465 = vrot.lane.b32.xlu0 %v461, 126
      %v466 = vpop.permute.xlu0 %465
      %467 = vrot.lane.b32.xlu0 %v462, 126
      %v468 = vpop.permute.xlu0 %467
      %v469 = vrot.slane %v466, 4
      %v470 = vrot.slane %v468, 4
      %v471 = vsel %vm453, %v469, %v470
      %vm472 = vcmask 1031168
      %v473 = vsel %vm472, %v466, %v471
      %v476 = vadd.f32 %v441, %v473
      %v477 = vadd.f32 %v442, %v468
      %480 = vrot.lane.b32.xlu0 %v439, 126
      %v481 = vpop.permute.xlu0 %480
      %482 = vrot.lane.b32.xlu0 %v440, 126
      %v483 = vpop.permute.xlu0 %482
      %v484 = vrot.slane %v481, 4
      %v485 = vrot.slane %v483, 4
      %v486 = vsel %vm453, %v484, %v485
      %v487 = vsel %vm472, %v481, %v486
      %v490 = vadd.f32 %v459, %v487
      %v491 = vadd.f32 %v460, %v483
      %492 = vrot.lane.b32.xlu0 %v443, 110
      %v493 = vpop.permute.xlu0 %492
      %494 = vrot.lane.b32.xlu0 %v444, 110
      %v495 = vpop.permute.xlu0 %494
      %v496 = vrot.slane %v493, 4
      %v497 = vrot.slane %v495, 4
      %v498 = vsel %vm453, %v496, %v497
      %vm499 = vcmask 900096
      %v500 = vsel %vm499, %v493, %v498
      %v503 = vadd.f32 %v476, %v500
      %v504 = vadd.f32 %v477, %v495
      %v505 = vmul.f32 %v439, -2.0
      %v506 = vmul.f32 %v440, -2.0
      %509 = vrot.lane.b32.xlu0 %v505, 108
      %v510 = vpop.permute.xlu0 %509
      %511 = vrot.lane.b32.xlu0 %v506, 108
      %v512 = vpop.permute.xlu0 %511
      %v513 = vrot.slane %v510, 4
      %v514 = vrot.slane %v512, 4
      %v515 = vsel %vm453, %v513, %v514
      %vm516 = vcmask 883712
      %v517 = vsel %vm516, %v510, %v515
      %v520 = vadd.f32 %v503, %v517
      %v521 = vadd.f32 %v504, %v512
      %522 = vrot.lane.b32.xlu0 %v439, 92
      %v523 = vpop.permute.xlu0 %522
      %524 = vrot.lane.b32.xlu0 %v440, 92
      %v525 = vpop.permute.xlu0 %524
      %v526 = vrot.slane %v523, 4
      %v527 = vrot.slane %v525, 4
      %v528 = vsel %vm453, %v526, %v527
      %vm529 = vcmask 752640
      %v530 = vsel %vm529, %v523, %v528
      %v533 = vadd.f32 %v520, %v530
      %v534 = vadd.f32 %v521, %v525
      %535 = vrot.lane.b32.xlu0 %v461, 92
      %v536 = vpop.permute.xlu0 %535
      %537 = vrot.lane.b32.xlu0 %v462, 92
      %v538 = vpop.permute.xlu0 %537
      %v539 = vrot.slane %v536, 4
      %v540 = vrot.slane %v538, 4
      %v541 = vsel %vm453, %v539, %v540
      %v542 = vsel %vm529, %v536, %v541
      %v545 = vadd.f32 %v490, %v542
      %v546 = vadd.f32 %v491, %v538
      %547 = vrot.lane.b32.xlu0 %v505, 91
      %v548 = vpop.permute.xlu0 %547
      %549 = vrot.lane.b32.xlu0 %v506, 91
      %v550 = vpop.permute.xlu0 %549
      %v551 = vrot.slane %v548, 4
      %v552 = vrot.slane %v550, 4
      %v553 = vsel %vm453, %v551, %v552
      %vm554 = vcmask 744448
      %v555 = vsel %vm554, %v548, %v553
      %v558 = vadd.f32 %v545, %v555
      %v559 = vadd.f32 %v546, %v550
      %560 = vrot.lane.b32.xlu0 %v461, 90
      %v561 = vpop.permute.xlu0 %560
      %562 = vrot.lane.b32.xlu0 %v462, 90
      %v563 = vpop.permute.xlu0 %562
      %v564 = vrot.slane %v561, 4
      %v565 = vrot.slane %v563, 4
      %v566 = vsel %vm453, %v564, %v565
      %vm567 = vcmask 736256
      %v568 = vsel %vm567, %v561, %v566
      %v571 = vadd.f32 %v533, %v568
      %v572 = vadd.f32 %v534, %v563
      %v573 = vadd.f32 %v558, %v568
      %v574 = vadd.f32 %v559, %v563
      %v575 = vlaneseq
      %v576 = vand.u32 %v575, 127
      %v577 = vadd.s32 %v576, 128
      %v578 = vadd.s32 %v576, 256
      %vm579 = vcmp.lt.s32.totalorder %v576, 0
      %v580 = vsub.s32 0, %v576
      %v581 = vsel %vm579, %v580, %v576
      %v582 = vmul.u32.u64.compose %v581, 3817748708
      %v583 = vextract.low.u32 %v582
      %v584 = vextract.high.u32 %v582
      %v585 = vshrl.u32 %v584, 4
      %v586 = vmul.u32 %v585, 18
      %v587 = vsub.s32 %v581, %v586
      %v588 = vsub.s32 0, %v587
      %v589 = vsel %vm579, %v588, %v587
      %vm590 = vcmp.lt.s32.totalorder %v577, 0
      %v591 = vsub.s32 0, %v577
      %v592 = vsel %vm590, %v591, %v577
      %v593 = vmul.u32.u64.compose %v592, 3817748708
      %v594 = vextract.low.u32 %v593
      %v595 = vextract.high.u32 %v593
      %v596 = vshrl.u32 %v595, 4
      %v597 = vmul.u32 %v596, 18
      %v598 = vsub.s32 %v592, %v597
      %v599 = vsub.s32 0, %v598
      %v600 = vsel %vm590, %v599, %v598
      %vm601 = vcmp.lt.s32.totalorder %v578, 0
      %v602 = vsub.s32 0, %v578
      %v603 = vsel %vm601, %v602, %v578
      %v604 = vmul.u32.u64.compose %v603, 3817748708
      %v605 = vextract.low.u32 %v604
      %v606 = vextract.high.u32 %v604
      %v607 = vshrl.u32 %v606, 4
      %v608 = vmul.u32 %v607, 18
      %v609 = vsub.s32 %v603, %v608
      %v610 = vsub.s32 0, %v609
      %v611 = vsel %vm601, %v610, %v609
      %vm612 = vcmp.ne.s32.totalorder %v589, 0
      %vm613 = vcmp.ne.s32.totalorder %v600, 0
      %vm614 = vcmp.ne.s32.totalorder %v611, 0
      %vm615 = vcmp.lt.s32.totalorder %v589, 0
      %vm616 = vcmp.lt.s32.totalorder %v600, 0
      %vm617 = vcmp.lt.s32.totalorder %v611, 0
      %vm618 = vmand %vm615, %vm612
      %vm619 = vmand %vm616, %vm613
      %vm620 = vmand %vm617, %vm614
      %v621 = vadd.s32 %v589, 18
      %v622 = vadd.s32 %v600, 18
      %v623 = vadd.s32 %v611, 18
      %v624 = vsel %vm618, %v621, %v589
      %v625 = vsel %vm619, %v622, %v600
      %v626 = vsel %vm620, %v623, %v611
      %vm627 = vcmp.lt.s32.totalorder %v624, 16
      %vm628 = vcmp.lt.s32.totalorder %v625, 16
      %vm629 = vcmp.lt.s32.totalorder %v626, 16
      %v630 = vsel %vm627, 1, 0
      %v631 = vsel %vm628, 1, 0
      %v632 = vsel %vm629, 1, 0
      %v633 = vcvt.s32.f32 %v630
      %v634 = vcvt.s32.f32 %v631
      %v635 = vcvt.s32.f32 %v632
      %v639 = vcombine.low %v633, %v634
      %640 = vrot.lane.b32.xlu0 %v639, 19
      %v641 = vpop.permute.xlu0 %640
      %642 = vrot.lane.b32.xlu0 %v635, 19
      %v643 = vpop.permute.xlu0 %642
      %v644 = vrot.slane %v641, 4
      %vm645 = vcmask 154624
      %v646 = vsel %vm645, %v644, %v641
      %v647 = vsel %vm645, %v644, %v643
      %v650 = vmul.f32 %v439, %v646
      %v651 = vmul.f32 %v440, %v647
      %v654 = vcombine.high %v650, %v650
      %655 = vrot.lane.b32.xlu0 %v650, 109
      %v656 = vpop.permute.xlu0 %655
      %657 = vrot.lane.b32.xlu0 %v654, 109
      %v658 = vpop.permute.xlu0 %657
      %659 = vrot.lane.b32.xlu0 %v651, 109
      %v660 = vpop.permute.xlu0 %659
      %vm661 = vcmask 891904
      %v662 = vsel %vm661, %v656, %v658
      %v663 = vsel %vm661, %v658, %v660
      %v667 = vsel %vm453, %v662, 0.0
      %v668 = vsel %vm453, %v663, 0.0
      %v669 = vadd.f32 %v667, %v668
      %vm670 = vcmask 257024
      %v671 = vsel %vm670, %v660, 0.0
      %v672 = vadd.f32 %v669, %v671
      %673 = vadd.xlane.f32.xlu0 %v672
      %v674 = vpop.xlane.xlu0 %673
      %v675 = vmul.f32 %v674, 0.00390625
      %v676 = vmul.f32 %v650, %v650
      %v677 = vmul.f32 %v651, %v651
      %v680 = vcombine.high %v676, %v676
      %681 = vrot.lane.b32.xlu0 %v676, 109
      %v682 = vpop.permute.xlu0 %681
      %683 = vrot.lane.b32.xlu0 %v680, 109
      %v684 = vpop.permute.xlu0 %683
      %685 = vrot.lane.b32.xlu0 %v677, 109
      %v686 = vpop.permute.xlu0 %685
      %v687 = vsel %vm661, %v682, %v684
      %v688 = vsel %vm661, %v684, %v686
      %v692 = vsel %vm453, %v687, 0.0
      %v693 = vsel %vm453, %v688, 0.0
      %v694 = vadd.f32 %v692, %v693
      %v695 = vsel %vm670, %v686, 0.0
      %v696 = vadd.f32 %v694, %v695
      %697 = vadd.xlane.f32.xlu0 %v696
      %v698 = vpop.xlane.xlu0 %697
      %v699 = vmul.f32 %v698, 0.00390625
      %v700 = vmul.f32 %v675, %v675
      %v701 = vsub.f32 %v699, %v700
      %v704 = vunpack.c.l.s4 839922192
      %v705 = vunpack.c.0.s8 %v704
      %v706 = vlaneseq
      %v707 = vshrl.u32 %v706, 7
      %v708 = vsub.s32 %v705, %v707
      %v709 = vrot.slane %v675, %v708
      %v711 = vsub.f32 %v439, %v709
      %v712 = vsub.f32 %v440, %v709
      %v713 = vadd.f32 %v701, 1e-05
      %v714 = vrsqrt.pop %v713
      %v717 = vunpack.c.l.s4 839922192
      %v718 = vunpack.c.0.s8 %v717
      %v719 = vlaneseq
      %v720 = vshrl.u32 %v719, 7
      %v721 = vsub.s32 %v718, %v720
      %v722 = vrot.slane %v714, %v721
      %v724 = vmul.f32 %v711, %v722
      %v725 = vmul.f32 %v712, %v722
      %v726 = vmul.f32 %v724, %v646
      %v727 = vmul.f32 %v725, %v647
      %v728 = vand.u32 2147483647, %v571
      %vm729 = vcmp.le.f32.partialorder %v728, 0.7853982
      %vm730 = vcmp.lt.s32.totalorder %v571, 0
      %v731 = vand.u32 %v571, 2139095040
      %v732 = vshrl.u32 %v731, 23
      %v733 = vsub.s32 %v732, 127
      %v734 = vand.u32 2147483647, %v571
      %v735 = vand.u32 %v734, 8388607
      %v736 = vor.u32 %v735, 8388608
      %v737 = vsub.s32 0, %v736
      %v738 = vadd.s32 %v733, 1
      %vm739 = vcmp.gt.s32.totalorder %v738, 0
      %v740 = vsel %vm739, %v738, 0
      %v741 = vshrl.u32 %v740, 5
      %v742 = vand.u32 %v740, 31
      %v743 = vsub.s32 32, %v742
      %v744 = vshrl.u32 683565275, %v743
      %v745 = vshll.u32 683565275, %v742
      %v746 = vshrl.u32 2475754826, %v743
      %v747 = vor.u32 %v745, %v746
      %v748 = vshll.u32 2475754826, %v742
      %v749 = vshrl.u32 2131351028, %v743
      %v750 = vor.u32 %v748, %v749
      %v751 = vshll.u32 2131351028, %v742
      %v752 = vshrl.u32 2102212464, %v743
      %v753 = vor.u32 %v751, %v752
      %v754 = vshll.u32 2102212464, %v742
      %v755 = vshrl.u32 920167782, %v743
      %v756 = vor.u32 %v754, %v755
      %v757 = vshll.u32 920167782, %v742
      %v758 = vshrl.u32 1326507024, %v743
      %v759 = vor.u32 %v757, %v758
      %vm760 = vcmp.lt.s32.totalorder %v741, 1
      %vm761 = vcmp.lt.s32.totalorder %v741, 2
      %vm762 = vcmp.lt.s32.totalorder %v741, 3
      %vm763 = vcmp.lt.s32.totalorder %v741, 4
      %v764 = vsel %vm760, %v744, %v747
      %v765 = vsel %vm763, %v753, 2102212464
      %v766 = vsel %vm762, %v750, %v765
      %v767 = vsel %vm761, %v764, %v766
      %v768 = vsel %vm760, %v747, %v750
      %v769 = vsel %vm763, %v756, 920167782
      %v770 = vsel %vm762, %v753, %v769
      %v771 = vsel %vm761, %v768, %v770
      %v772 = vsel %vm760, %v750, %v753
      %v773 = vsel %vm763, %v759, 1326507024
      %v774 = vsel %vm762, %v756, %v773
      %v775 = vsel %vm761, %v772, %v774
      %v776 = vshll.u32 %v736, 8
      %v777 = vmul.u32.u64.compose %v776, %v775
      %v778 = vextract.low.u32 %v777
      %v779 = vextract.high.u32 %v777
      %v780 = vmul.u32.u64.compose %v776, %v771
      %v781 = vextract.low.u32 %v780
      %v782 = vextract.high.u32 %v780
      %v783 = vmul.u32 %v776, %v767
      %v784 = vadd.s32 %v779, %v781
      %vm785 = vc.u32 %v779, %v781
      %v786 = vadd.s32 %v782, 1
      %v787 = vsel %vm785, %v786, %v782
      %v788 = vadd.s32 %v783, %v787
      %v789 = vadd.s32 %v788, 536870912
      %v790 = vshrl.u32 %v789, 30
      %v791 = vshll.u32 %v790, 30
      %v792 = vsub.s32 %v788, %v791
      %vm793 = vcmp.lt.s32.totalorder %v792, 0
      %v794 = vsub.s32 0, %v792
      %v795 = vsel %vm793, %v794, %v792
      %v796 = vclz %v795
      %v797 = vsub.s32 %v796, 2
      %vm798 = vcmp.gt.s32.totalorder 0, %v797
      %v799 = vsel %vm798, 0, %v797
      %v800 = vsub.s32 32, %v799
      %v801 = vshll.u32 %v792, %v799
      %v802 = vshrl.u32 %v784, %v800
      %v803 = vor.u32 %v801, %v802
      %v804 = vsub.s32 4294967266, %v799
      %v805 = vadd.s32 %v804, 127
      %v806 = vshll.u32 %v805, 23
      %v807 = vor.u32 4788187, %v806
      %v808 = vand.u32 2147483647, %v807
      %v810 = vcvt.s32.f32 %v803
      %v811 = vmul.f32 %v810, %v808
      %v812 = vxor.u32 %v811, 2147483648
      %v813 = vsel %vm730, %v812, %v811
      %v814 = vsub.s32 4, %v790
      %v815 = vsel %vm730, %v814, %v790
      %v816 = vsel %vm729, %v571, %v813
      %v817 = vsel %vm729, 0, %v815
      %v818 = vcosq.f32.pop %v816
      %v819 = vsinq.f32.pop %v816
      %vm820 = vweird.f32 %v571
      %v821 = vadd.s32 %v817, 3
      %v822 = vand.u32 %v821, 3
      %vm823 = vcmp.lt.s32.totalorder %v822, 2
      %vm824 = vcmp.eq.s32.totalorder %v822, 0
      %v825 = vxor.u32 %v819, 2147483648
      %v826 = vsel %vm824, %v818, %v825
      %vm827 = vcmp.eq.s32.totalorder %v822, 2
      %v828 = vxor.u32 %v818, 2147483648
      %v829 = vsel %vm827, %v828, %v819
      %v830 = vsel %vm823, %v826, %v829
      %v831 = vsel %vm820, nan, %v830
      %v832 = vand.u32 2147483647, %v572
      %vm833 = vcmp.le.f32.partialorder %v832, 0.7853982
      %vm834 = vcmp.lt.s32.totalorder %v572, 0
      %v835 = vand.u32 %v572, 2139095040
      %v836 = vshrl.u32 %v835, 23
      %v837 = vsub.s32 %v836, 127
      %v838 = vand.u32 2147483647, %v572
      %v839 = vand.u32 %v838, 8388607
      %v840 = vor.u32 %v839, 8388608
      %v841 = vsub.s32 0, %v840
      %v842 = vadd.s32 %v837, 1
      %vm843 = vcmp.gt.s32.totalorder %v842, 0
      %v844 = vsel %vm843, %v842, 0
      %v845 = vshrl.u32 %v844, 5
      %v846 = vand.u32 %v844, 31
      %v847 = vsub.s32 32, %v846
      %v848 = vshrl.u32 683565275, %v847
      %v849 = vshll.u32 683565275, %v846
      %v850 = vshrl.u32 2475754826, %v847
      %v851 = vor.u32 %v849, %v850
      %v852 = vshll.u32 2475754826, %v846
      %v853 = vshrl.u32 2131351028, %v847
      %v854 = vor.u32 %v852, %v853
      %v855 = vshll.u32 2131351028, %v846
      %v856 = vshrl.u32 2102212464, %v847
      %v857 = vor.u32 %v855, %v856
      %v858 = vshll.u32 2102212464, %v846
      %v859 = vshrl.u32 920167782, %v847
      %v860 = vor.u32 %v858, %v859
      %v861 = vshll.u32 920167782, %v846
      %v862 = vshrl.u32 1326507024, %v847
      %v863 = vor.u32 %v861, %v862
      %vm864 = vcmp.lt.s32.totalorder %v845, 1
      %vm865 = vcmp.lt.s32.totalorder %v845, 2
      %vm866 = vcmp.lt.s32.totalorder %v845, 3
      %vm867 = vcmp.lt.s32.totalorder %v845, 4
      %v868 = vsel %vm864, %v848, %v851
      %v869 = vsel %vm867, %v857, 2102212464
      %v870 = vsel %vm866, %v854, %v869
      %v871 = vsel %vm865, %v868, %v870
      %v872 = vsel %vm864, %v851, %v854
      %v873 = vsel %vm867, %v860, 920167782
      %v874 = vsel %vm866, %v857, %v873
      %v875 = vsel %vm865, %v872, %v874
      %v876 = vsel %vm864, %v854, %v857
      %v877 = vsel %vm867, %v863, 1326507024
      %v878 = vsel %vm866, %v860, %v877
      %v879 = vsel %vm865, %v876, %v878
      %v880 = vshll.u32 %v840, 8
      %v881 = vmul.u32.u64.compose %v880, %v879
      %v882 = vextract.low.u32 %v881
      %v883 = vextract.high.u32 %v881
      %v884 = vmul.u32.u64.compose %v880, %v875
      %v885 = vextract.low.u32 %v884
      %v886 = vextract.high.u32 %v884
      %v887 = vmul.u32 %v880, %v871
      %v888 = vadd.s32 %v883, %v885
      %vm889 = vc.u32 %v883, %v885
      %v890 = vadd.s32 %v886, 1
      %v891 = vsel %vm889, %v890, %v886
      %v892 = vadd.s32 %v887, %v891
      %v893 = vadd.s32 %v892, 536870912
      %v894 = vshrl.u32 %v893, 30
      %v895 = vshll.u32 %v894, 30
      %v896 = vsub.s32 %v892, %v895
      %vm897 = vcmp.lt.s32.totalorder %v896, 0
      %v898 = vsub.s32 0, %v896
      %v899 = vsel %vm897, %v898, %v896
      %v900 = vclz %v899
      %v901 = vsub.s32 %v900, 2
      %vm902 = vcmp.gt.s32.totalorder 0, %v901
      %v903 = vsel %vm902, 0, %v901
      %v904 = vsub.s32 32, %v903
      %v905 = vshll.u32 %v896, %v903
      %v906 = vshrl.u32 %v888, %v904
      %v907 = vor.u32 %v905, %v906
      %v908 = vsub.s32 4294967266, %v903
      %v909 = vadd.s32 %v908, 127
      %v910 = vshll.u32 %v909, 23
      %v911 = vor.u32 4788187, %v910
      %v912 = vand.u32 2147483647, %v911
      %v914 = vcvt.s32.f32 %v907
      %v915 = vmul.f32 %v914, %v912
      %v916 = vxor.u32 %v915, 2147483648
      %v917 = vsel %vm834, %v916, %v915
      %v918 = vsub.s32 4, %v894
      %v919 = vsel %vm834, %v918, %v894
      %v920 = vsel %vm833, %v572, %v917
      %v921 = vsel %vm833, 0, %v919
      %v922 = vcosq.f32.pop %v920
      %v923 = vsinq.f32.pop %v920
      %vm924 = vweird.f32 %v572
      %v925 = vadd.s32 %v921, 3
      %v926 = vand.u32 %v925, 3
      %vm927 = vcmp.lt.s32.totalorder %v926, 2
      %vm928 = vcmp.eq.s32.totalorder %v926, 0
      %v929 = vxor.u32 %v923, 2147483648
      %v930 = vsel %vm928, %v922, %v929
      %vm931 = vcmp.eq.s32.totalorder %v926, 2
      %v932 = vxor.u32 %v922, 2147483648
      %v933 = vsel %vm931, %v932, %v923
      %v934 = vsel %vm927, %v930, %v933
      %v935 = vsel %vm924, nan, %v934
      %v937 = vmul.f32 %v831, %v639
      %v938 = vmul.f32 %v935, %v635
      %v940 = vcombine.high %v937, %v937
      %v942 = vsel %vm453, %v937, 0.0
      %v943 = vsel %vm453, %v940, 0.0
      %v944 = vadd.f32 %v942, %v943
      %v945 = vsel %vm670, %v938, 0.0
      %v946 = vadd.f32 %v944, %v945
      %947 = vadd.xlane.f32.xlu0 %v946
      %v948 = vpop.xlane.xlu0 %947
      %v949 = vmul.f32 %v948, 0.00390625
      %v950 = vmul.f32 %v937, %v937
      %v951 = vmul.f32 %v938, %v938
      %v953 = vcombine.high %v950, %v950
      %v955 = vsel %vm453, %v950, 0.0
      %v956 = vsel %vm453, %v953, 0.0
      %v957 = vadd.f32 %v955, %v956
      %v958 = vsel %vm670, %v951, 0.0
      %v959 = vadd.f32 %v957, %v958
      %960 = vadd.xlane.f32.xlu0 %v959
      %v961 = vpop.xlane.xlu0 %960
      %v962 = vmul.f32 %v961, 0.00390625
      %v963 = vmul.f32 %v949, %v949
      %v964 = vsub.f32 %v962, %v963
      %v967 = vunpack.c.l.s4 839922192
      %v968 = vunpack.c.0.s8 %v967
      %v969 = vlaneseq
      %v970 = vshrl.u32 %v969, 7
      %v971 = vsub.s32 %v968, %v970
      %v972 = vrot.slane %v949, %v971
      %v974 = vsub.f32 %v831, %v972
      %v975 = vsub.f32 %v935, %v972
      %v976 = vadd.f32 %v964, 1e-05
      %v977 = vrsqrt.pop %v976
      %v980 = vunpack.c.l.s4 839922192
      %v981 = vunpack.c.0.s8 %v980
      %v982 = vlaneseq
      %v983 = vshrl.u32 %v982, 7
      %v984 = vsub.s32 %v981, %v983
      %v985 = vrot.slane %v977, %v984
      %v987 = vmul.f32 %v974, %v985
      %v988 = vmul.f32 %v975, %v985
      %v989 = vmul.f32 %v987, %v639
      %v990 = vmul.f32 %v988, %v635
      %v991 = vand.u32 2147483647, %v573
      %vm992 = vcmp.le.f32.partialorder %v991, 0.7853982
      %vm993 = vcmp.lt.s32.totalorder %v573, 0
      %v994 = vand.u32 %v573, 2139095040
      %v995 = vshrl.u32 %v994, 23
      %v996 = vsub.s32 %v995, 127
      %v997 = vand.u32 2147483647, %v573
      %v998 = vand.u32 %v997, 8388607
      %v999 = vor.u32 %v998, 8388608
      %v1000 = vsub.s32 0, %v999
      %v1001 = vadd.s32 %v996, 1
      %vm1002 = vcmp.gt.s32.totalorder %v1001, 0
      %v1003 = vsel %vm1002, %v1001, 0
      %v1004 = vshrl.u32 %v1003, 5
      %v1005 = vand.u32 %v1003, 31
      %v1006 = vsub.s32 32, %v1005
      %v1007 = vshrl.u32 683565275, %v1006
      %v1008 = vshll.u32 683565275, %v1005
      %v1009 = vshrl.u32 2475754826, %v1006
      %v1010 = vor.u32 %v1008, %v1009
      %v1011 = vshll.u32 2475754826, %v1005
      %v1012 = vshrl.u32 2131351028, %v1006
      %v1013 = vor.u32 %v1011, %v1012
      %v1014 = vshll.u32 2131351028, %v1005
      %v1015 = vshrl.u32 2102212464, %v1006
      %v1016 = vor.u32 %v1014, %v1015
      %v1017 = vshll.u32 2102212464, %v1005
      %v1018 = vshrl.u32 920167782, %v1006
      %v1019 = vor.u32 %v1017, %v1018
      %v1020 = vshll.u32 920167782, %v1005
      %v1021 = vshrl.u32 1326507024, %v1006
      %v1022 = vor.u32 %v1020, %v1021
      %vm1023 = vcmp.lt.s32.totalorder %v1004, 1
      %vm1024 = vcmp.lt.s32.totalorder %v1004, 2
      %vm1025 = vcmp.lt.s32.totalorder %v1004, 3
      %vm1026 = vcmp.lt.s32.totalorder %v1004, 4
      %v1027 = vsel %vm1023, %v1007, %v1010
      %v1028 = vsel %vm1026, %v1016, 2102212464
      %v1029 = vsel %vm1025, %v1013, %v1028
      %v1030 = vsel %vm1024, %v1027, %v1029
      %v1031 = vsel %vm1023, %v1010, %v1013
      %v1032 = vsel %vm1026, %v1019, 920167782
      %v1033 = vsel %vm1025, %v1016, %v1032
      %v1034 = vsel %vm1024, %v1031, %v1033
      %v1035 = vsel %vm1023, %v1013, %v1016
      %v1036 = vsel %vm1026, %v1022, 1326507024
      %v1037 = vsel %vm1025, %v1019, %v1036
      %v1038 = vsel %vm1024, %v1035, %v1037
      %v1039 = vshll.u32 %v999, 8
      %v1040 = vmul.u32.u64.compose %v1039, %v1038
      %v1041 = vextract.low.u32 %v1040
      %v1042 = vextract.high.u32 %v1040
      %v1043 = vmul.u32.u64.compose %v1039, %v1034
      %v1044 = vextract.low.u32 %v1043
      %v1045 = vextract.high.u32 %v1043
      %v1046 = vmul.u32 %v1039, %v1030
      %v1047 = vadd.s32 %v1042, %v1044
      %vm1048 = vc.u32 %v1042, %v1044
      %v1049 = vadd.s32 %v1045, 1
      %v1050 = vsel %vm1048, %v1049, %v1045
      %v1051 = vadd.s32 %v1046, %v1050
      %v1052 = vadd.s32 %v1051, 536870912
      %v1053 = vshrl.u32 %v1052, 30
      %v1054 = vshll.u32 %v1053, 30
      %v1055 = vsub.s32 %v1051, %v1054
      %vm1056 = vcmp.lt.s32.totalorder %v1055, 0
      %v1057 = vsub.s32 0, %v1055
      %v1058 = vsel %vm1056, %v1057, %v1055
      %v1059 = vclz %v1058
      %v1060 = vsub.s32 %v1059, 2
      %vm1061 = vcmp.gt.s32.totalorder 0, %v1060
      %v1062 = vsel %vm1061, 0, %v1060
      %v1063 = vsub.s32 32, %v1062
      %v1064 = vshll.u32 %v1055, %v1062
      %v1065 = vshrl.u32 %v1047, %v1063
      %v1066 = vor.u32 %v1064, %v1065
      %v1067 = vsub.s32 4294967266, %v1062
      %v1068 = vadd.s32 %v1067, 127
      %v1069 = vshll.u32 %v1068, 23
      %v1070 = vor.u32 4788187, %v1069
      %v1071 = vand.u32 2147483647, %v1070
      %v1073 = vcvt.s32.f32 %v1066
      %v1074 = vmul.f32 %v1073, %v1071
      %v1075 = vxor.u32 %v1074, 2147483648
      %v1076 = vsel %vm993, %v1075, %v1074
      %v1077 = vsub.s32 4, %v1053
      %v1078 = vsel %vm993, %v1077, %v1053
      %v1079 = vsel %vm992, %v573, %v1076
      %v1080 = vsel %vm992, 0, %v1078
      %v1081 = vcosq.f32.pop %v1079
      %v1082 = vsinq.f32.pop %v1079
      %vm1083 = vweird.f32 %v573
      %v1084 = vadd.s32 %v1080, 3
      %v1085 = vand.u32 %v1084, 3
      %vm1086 = vcmp.lt.s32.totalorder %v1085, 2
      %vm1087 = vcmp.eq.s32.totalorder %v1085, 0
      %v1088 = vxor.u32 %v1082, 2147483648
      %v1089 = vsel %vm1087, %v1081, %v1088
      %vm1090 = vcmp.eq.s32.totalorder %v1085, 2
      %v1091 = vxor.u32 %v1081, 2147483648
      %v1092 = vsel %vm1090, %v1091, %v1082
      %v1093 = vsel %vm1086, %v1089, %v1092
      %v1094 = vsel %vm1083, nan, %v1093
      %v1095 = vand.u32 2147483647, %v574
      %vm1096 = vcmp.le.f32.partialorder %v1095, 0.7853982
      %vm1097 = vcmp.lt.s32.totalorder %v574, 0
      %v1098 = vand.u32 %v574, 2139095040
      %v1099 = vshrl.u32 %v1098, 23
      %v1100 = vsub.s32 %v1099, 127
      %v1101 = vand.u32 2147483647, %v574
      %v1102 = vand.u32 %v1101, 8388607
      %v1103 = vor.u32 %v1102, 8388608
      %v1104 = vsub.s32 0, %v1103
      %v1105 = vadd.s32 %v1100, 1
      %vm1106 = vcmp.gt.s32.totalorder %v1105, 0
      %v1107 = vsel %vm1106, %v1105, 0
      %v1108 = vshrl.u32 %v1107, 5
      %v1109 = vand.u32 %v1107, 31
      %v1110 = vsub.s32 32, %v1109
      %v1111 = vshrl.u32 683565275, %v1110
      %v1112 = vshll.u32 683565275, %v1109
      %v1113 = vshrl.u32 2475754826, %v1110
      %v1114 = vor.u32 %v1112, %v1113
      %v1115 = vshll.u32 2475754826, %v1109
      %v1116 = vshrl.u32 2131351028, %v1110
      %v1117 = vor.u32 %v1115, %v1116
      %v1118 = vshll.u32 2131351028, %v1109
      %v1119 = vshrl.u32 2102212464, %v1110
      %v1120 = vor.u32 %v1118, %v1119
      %v1121 = vshll.u32 2102212464, %v1109
      %v1122 = vshrl.u32 920167782, %v1110
      %v1123 = vor.u32 %v1121, %v1122
      %v1124 = vshll.u32 920167782, %v1109
      %v1125 = vshrl.u32 1326507024, %v1110
      %v1126 = vor.u32 %v1124, %v1125
      %vm1127 = vcmp.lt.s32.totalorder %v1108, 1
      %vm1128 = vcmp.lt.s32.totalorder %v1108, 2
      %vm1129 = vcmp.lt.s32.totalorder %v1108, 3
      %vm1130 = vcmp.lt.s32.totalorder %v1108, 4
      %v1131 = vsel %vm1127, %v1111, %v1114
      %v1132 = vsel %vm1130, %v1120, 2102212464
      %v1133 = vsel %vm1129, %v1117, %v1132
      %v1134 = vsel %vm1128, %v1131, %v1133
      %v1135 = vsel %vm1127, %v1114, %v1117
      %v1136 = vsel %vm1130, %v1123, 920167782
      %v1137 = vsel %vm1129, %v1120, %v1136
      %v1138 = vsel %vm1128, %v1135, %v1137
      %v1139 = vsel %vm1127, %v1117, %v1120
      %v1140 = vsel %vm1130, %v1126, 1326507024
      %v1141 = vsel %vm1129, %v1123, %v1140
      %v1142 = vsel %vm1128, %v1139, %v1141
      %v1143 = vshll.u32 %v1103, 8
      %v1144 = vmul.u32.u64.compose %v1143, %v1142
      %v1145 = vextract.low.u32 %v1144
      %v1146 = vextract.high.u32 %v1144
      %v1147 = vmul.u32.u64.compose %v1143, %v1138
      %v1148 = vextract.low.u32 %v1147
      %v1149 = vextract.high.u32 %v1147
      %v1150 = vmul.u32 %v1143, %v1134
      %v1151 = vadd.s32 %v1146, %v1148
      %vm1152 = vc.u32 %v1146, %v1148
      %v1153 = vadd.s32 %v1149, 1
      %v1154 = vsel %vm1152, %v1153, %v1149
      %v1155 = vadd.s32 %v1150, %v1154
      %v1156 = vadd.s32 %v1155, 536870912
      %v1157 = vshrl.u32 %v1156, 30
      %v1158 = vshll.u32 %v1157, 30
      %v1159 = vsub.s32 %v1155, %v1158
      %vm1160 = vcmp.lt.s32.totalorder %v1159, 0
      %v1161 = vsub.s32 0, %v1159
      %v1162 = vsel %vm1160, %v1161, %v1159
      %v1163 = vclz %v1162
      %v1164 = vsub.s32 %v1163, 2
      %vm1165 = vcmp.gt.s32.totalorder 0, %v1164
      %v1166 = vsel %vm1165, 0, %v1164
      %v1167 = vsub.s32 32, %v1166
      %v1168 = vshll.u32 %v1159, %v1166
      %v1169 = vshrl.u32 %v1151, %v1167
      %v1170 = vor.u32 %v1168, %v1169
      %v1171 = vsub.s32 4294967266, %v1166
      %v1172 = vadd.s32 %v1171, 127
      %v1173 = vshll.u32 %v1172, 23
      %v1174 = vor.u32 4788187, %v1173
      %v1175 = vand.u32 2147483647, %v1174
      %v1177 = vcvt.s32.f32 %v1170
      %v1178 = vmul.f32 %v1177, %v1175
      %v1179 = vxor.u32 %v1178, 2147483648
      %v1180 = vsel %vm1097, %v1179, %v1178
      %v1181 = vsub.s32 4, %v1157
      %v1182 = vsel %vm1097, %v1181, %v1157
      %v1183 = vsel %vm1096, %v574, %v1180
      %v1184 = vsel %vm1096, 0, %v1182
      %v1185 = vcosq.f32.pop %v1183
      %v1186 = vsinq.f32.pop %v1183
      %vm1187 = vweird.f32 %v574
      %v1188 = vadd.s32 %v1184, 3
      %v1189 = vand.u32 %v1188, 3
      %vm1190 = vcmp.lt.s32.totalorder %v1189, 2
      %vm1191 = vcmp.eq.s32.totalorder %v1189, 0
      %v1192 = vxor.u32 %v1186, 2147483648
      %v1193 = vsel %vm1191, %v1185, %v1192
      %vm1194 = vcmp.eq.s32.totalorder %v1189, 2
      %v1195 = vxor.u32 %v1185, 2147483648
      %v1196 = vsel %vm1194, %v1195, %v1186
      %v1197 = vsel %vm1190, %v1193, %v1196
      %v1198 = vsel %vm1187, nan, %v1197
      %v1199 = vmul.f32 %v1094, %v639
      %v1200 = vmul.f32 %v1198, %v635
      %v1202 = vcombine.high %v1199, %v1199
      %v1204 = vsel %vm453, %v1199, 0.0
      %v1205 = vsel %vm453, %v1202, 0.0
      %v1206 = vadd.f32 %v1204, %v1205
      %v1207 = vsel %vm670, %v1200, 0.0
      %v1208 = vadd.f32 %v1206, %v1207
      %1209 = vadd.xlane.f32.xlu0 %v1208
      %v1210 = vpop.xlane.xlu0 %1209
      %v1211 = vmul.f32 %v1210, 0.00390625
      %v1212 = vmul.f32 %v1199, %v1199
      %v1213 = vmul.f32 %v1200, %v1200
      %v1215 = vcombine.high %v1212, %v1212
      %v1217 = vsel %vm453, %v1212, 0.0
      %v1218 = vsel %vm453, %v1215, 0.0
      %v1219 = vadd.f32 %v1217, %v1218
      %v1220 = vsel %vm670, %v1213, 0.0
      %v1221 = vadd.f32 %v1219, %v1220
      %1222 = vadd.xlane.f32.xlu0 %v1221
      %v1223 = vpop.xlane.xlu0 %1222
      %v1224 = vmul.f32 %v1223, 0.00390625
      %v1225 = vmul.f32 %v1211, %v1211
      %v1226 = vsub.f32 %v1224, %v1225
      %v1229 = vunpack.c.l.s4 839922192
      %v1230 = vunpack.c.0.s8 %v1229
      %v1231 = vlaneseq
      %v1232 = vshrl.u32 %v1231, 7
      %v1233 = vsub.s32 %v1230, %v1232
      %v1234 = vrot.slane %v1211, %v1233
      %v1236 = vsub.f32 %v1094, %v1234
      %v1237 = vsub.f32 %v1198, %v1234
      %v1238 = vadd.f32 %v1226, 1e-05
      %v1239 = vrsqrt.pop %v1238
      %v1242 = vunpack.c.l.s4 839922192
      %v1243 = vunpack.c.0.s8 %v1242
      %v1244 = vlaneseq
      %v1245 = vshrl.u32 %v1244, 7
      %v1246 = vsub.s32 %v1243, %v1245
      %v1247 = vrot.slane %v1239, %v1246
      %v1249 = vmul.f32 %v1236, %v1247
      %v1250 = vmul.f32 %v1237, %v1247
      %v1251 = vmul.f32 %v1249, %v639
      %v1252 = vmul.f32 %v1250, %v635
      %v1254 = vcombine.high %v726, %v726
      %v1258 = vcombine.low %v989, %v989
      %v1259 = vcombine.low %v990, %v990
      %1260 = vrot.lane.b32.xlu0 %v1258, 19
      %v1261 = vpop.permute.xlu0 %1260
      %1262 = vrot.lane.b32.xlu0 %v989, 19
      %v1263 = vpop.permute.xlu0 %1262
      %1264 = vrot.lane.b32.xlu0 %v1259, 19
      %v1265 = vpop.permute.xlu0 %1264
      %v1266 = vsel %vm645, %v1261, %v1263
      %v1267 = vsel %vm645, %v1263, %v1265
      %v1273 = vcombine.high %v1251, %v1251
      %1274 = vrot.lane.b32.xlu0 %v1251, 19
      %v1275 = vpop.permute.xlu0 %1274
      %1276 = vrot.lane.b32.xlu0 %v1273, 19
      %v1277 = vpop.permute.xlu0 %1276
      %1278 = vrot.lane.b32.xlu0 %v1252, 19
      %v1279 = vpop.permute.xlu0 %1278
      %v1280 = vsel %vm645, %v1275, %v1277
      %v1281 = vsel %vm645, %v1277, %v1279
      %v1285 = vsel %vm453, %v726, %v1261
      %v1286 = vsel %vm453, %v1254, %v1266
      %v1287 = vsel %vm453, %v727, %v1267
      %v1288 = vld [vmem:[%s428] sm:$0x1]
      %v1289 = vld [vmem:[%s2] sm:$0xf]
      %v1291 = vlaneseq
      %v1292 = vshrl.u32 %v1291, 7
      %v1293 = vsub.s32 0, %v1292
      %v1294 = vrot.slane %v1288, %v1293
      %v1296 = vmul.f32 %v1289, %v1294
      %v1297 = vsel %vm670, %v1296, 0.0
      %1298 = vadd.xlane.f32.xlu0 %v1297
      %v1299 = vpop.xlane.xlu0 %1298
      %v1300 = vadd.f32 %v1299, 1.0
      %v1301 = vld [vmem:[%s3] sm:$0xf]
      %v1302 = vadd.f32 %v1300, %v1301
      %v1303 = vld [vmem:[%s4] sm:$0xf]
      %v1304 = vmul.f32 %v1303, %v1294
      %v1305 = vsel %vm670, %v1304, 0.0
      %1306 = vadd.xlane.f32.xlu0 %v1305
      %v1307 = vpop.xlane.xlu0 %1306
      %v1308 = vld [vmem:[%s5] sm:$0xf]
      %v1309 = vadd.f32 %v1307, %v1308
      %v1310 = vsel %vm645, 0.0, %v1285
      %v1311 = vsel %vm645, 0.0, %v1275
      %vm1312 = vcmask 416768
      %v1313 = vsel %vm1312, %v1287, 0.0
      %v1314 = vsel %vm1312, %v1281, 0.0
      %v1320 = vrot.slane %v1310, 4
      %v1321 = vrot.slane %v1286, 4
      %v1322 = vrot.slane %v1313, 4
      %v1323 = vrot.slane %v1311, 4
      %v1324 = vsel %vm453, %v1320, %v1323
      %v1325 = vrot.slane %v1280, 4
      %v1326 = vsel %vm453, %v1321, %v1325
      %v1327 = vrot.slane %v1314, 4
      %v1328 = vsel %vm453, %v1322, %v1327
      %1329 = vrot.lane.b32.xlu0 %v1320, 127
      %v1330 = vpop.permute.xlu0 %1329
      %1331 = vrot.lane.b32.xlu0 %v1321, 127
      %v1332 = vpop.permute.xlu0 %1331
      %1333 = vrot.lane.b32.xlu0 %v1322, 127
      %v1334 = vpop.permute.xlu0 %1333
      %1335 = vrot.lane.b32.xlu0 %v1324, 127
      %v1336 = vpop.permute.xlu0 %1335
      %1337 = vrot.lane.b32.xlu0 %v1326, 127
      %v1338 = vpop.permute.xlu0 %1337
      %1339 = vrot.lane.b32.xlu0 %v1328, 127
      %v1340 = vpop.permute.xlu0 %1339
      %v1341 = vsel %vm455, %v1330, %v1332
      %v1342 = vsel %vm455, %v1332, %v1334
      %v1343 = vsel %vm455, %v1336, %v1338
      %v1344 = vsel %vm455, %v1338, %v1340
      %1351 = vrot.lane.b32.xlu0 %v1310, 126
      %v1352 = vpop.permute.xlu0 %1351
      %1353 = vrot.lane.b32.xlu0 %v1286, 126
      %v1354 = vpop.permute.xlu0 %1353
      %1355 = vrot.lane.b32.xlu0 %v1313, 126
      %v1356 = vpop.permute.xlu0 %1355
      %1357 = vrot.lane.b32.xlu0 %v1311, 126
      %v1358 = vpop.permute.xlu0 %1357
      %1359 = vrot.lane.b32.xlu0 %v1280, 126
      %v1360 = vpop.permute.xlu0 %1359
      %1361 = vrot.lane.b32.xlu0 %v1314, 126
      %v1362 = vpop.permute.xlu0 %1361
      %v1363 = vsel %vm472, %v1352, %v1354
      %v1364 = vsel %vm472, %v1354, %v1356
      %v1365 = vsel %vm472, %v1358, %v1360
      %v1366 = vsel %vm472, %v1360, %v1362
      %1373 = vrot.lane.b32.xlu0 %v1320, 110
      %v1374 = vpop.permute.xlu0 %1373
      %1375 = vrot.lane.b32.xlu0 %v1321, 110
      %v1376 = vpop.permute.xlu0 %1375
      %1377 = vrot.lane.b32.xlu0 %v1322, 110
      %v1378 = vpop.permute.xlu0 %1377
      %1379 = vrot.lane.b32.xlu0 %v1324, 110
      %v1380 = vpop.permute.xlu0 %1379
      %1381 = vrot.lane.b32.xlu0 %v1326, 110
      %v1382 = vpop.permute.xlu0 %1381
      %1383 = vrot.lane.b32.xlu0 %v1328, 110
      %v1384 = vpop.permute.xlu0 %1383
      %v1385 = vsel %vm499, %v1374, %v1376
      %v1386 = vsel %vm499, %v1376, %v1378
      %v1387 = vsel %vm499, %v1380, %v1382
      %v1388 = vsel %vm499, %v1382, %v1384
      %1395 = vrot.lane.b32.xlu0 %v1310, 109
      %v1396 = vpop.permute.xlu0 %1395
      %1397 = vrot.lane.b32.xlu0 %v1286, 109
      %v1398 = vpop.permute.xlu0 %1397
      %1399 = vrot.lane.b32.xlu0 %v1313, 109
      %v1400 = vpop.permute.xlu0 %1399
      %1401 = vrot.lane.b32.xlu0 %v1311, 109
      %v1402 = vpop.permute.xlu0 %1401
      %1403 = vrot.lane.b32.xlu0 %v1280, 109
      %v1404 = vpop.permute.xlu0 %1403
      %1405 = vrot.lane.b32.xlu0 %v1314, 109
      %v1406 = vpop.permute.xlu0 %1405
      %v1407 = vsel %vm661, %v1396, %v1398
      %v1408 = vsel %vm661, %v1398, %v1400
      %v1409 = vsel %vm661, %v1402, %v1404
      %v1410 = vsel %vm661, %v1404, %v1406
      %1417 = vrot.lane.b32.xlu0 %v1320, 108
      %v1418 = vpop.permute.xlu0 %1417
      %1419 = vrot.lane.b32.xlu0 %v1321, 108
      %v1420 = vpop.permute.xlu0 %1419
      %1421 = vrot.lane.b32.xlu0 %v1322, 108
      %v1422 = vpop.permute.xlu0 %1421
      %1423 = vrot.lane.b32.xlu0 %v1324, 108
      %v1424 = vpop.permute.xlu0 %1423
      %1425 = vrot.lane.b32.xlu0 %v1326, 108
      %v1426 = vpop.permute.xlu0 %1425
      %1427 = vrot.lane.b32.xlu0 %v1328, 108
      %v1428 = vpop.permute.xlu0 %1427
      %v1429 = vsel %vm516, %v1418, %v1420
      %v1430 = vsel %vm516, %v1420, %v1422
      %v1431 = vsel %vm516, %v1424, %v1426
      %v1432 = vsel %vm516, %v1426, %v1428
      %1439 = vrot.lane.b32.xlu0 %v1310, 92
      %v1440 = vpop.permute.xlu0 %1439
      %1441 = vrot.lane.b32.xlu0 %v1286, 92
      %v1442 = vpop.permute.xlu0 %1441
      %1443 = vrot.lane.b32.xlu0 %v1313, 92
      %v1444 = vpop.permute.xlu0 %1443
      %1445 = vrot.lane.b32.xlu0 %v1311, 92
      %v1446 = vpop.permute.xlu0 %1445
      %1447 = vrot.lane.b32.xlu0 %v1280, 92
      %v1448 = vpop.permute.xlu0 %1447
      %1449 = vrot.lane.b32.xlu0 %v1314, 92
      %v1450 = vpop.permute.xlu0 %1449
      %v1451 = vsel %vm529, %v1440, %v1442
      %v1452 = vsel %vm529, %v1442, %v1444
      %v1453 = vsel %vm529, %v1446, %v1448
      %v1454 = vsel %vm529, %v1448, %v1450
      %1461 = vrot.lane.b32.xlu0 %v1320, 91
      %v1462 = vpop.permute.xlu0 %1461
      %1463 = vrot.lane.b32.xlu0 %v1321, 91
      %v1464 = vpop.permute.xlu0 %1463
      %1465 = vrot.lane.b32.xlu0 %v1322, 91
      %v1466 = vpop.permute.xlu0 %1465
      %1467 = vrot.lane.b32.xlu0 %v1324, 91
      %v1468 = vpop.permute.xlu0 %1467
      %1469 = vrot.lane.b32.xlu0 %v1326, 91
      %v1470 = vpop.permute.xlu0 %1469
      %1471 = vrot.lane.b32.xlu0 %v1328, 91
      %v1472 = vpop.permute.xlu0 %1471
      %v1473 = vsel %vm554, %v1462, %v1464
      %v1474 = vsel %vm554, %v1464, %v1466
      %v1475 = vsel %vm554, %v1468, %v1470
      %v1476 = vsel %vm554, %v1470, %v1472
      %1483 = vrot.lane.b32.xlu0 %v1310, 90
      %v1484 = vpop.permute.xlu0 %1483
      %1485 = vrot.lane.b32.xlu0 %v1286, 90
      %v1486 = vpop.permute.xlu0 %1485
      %1487 = vrot.lane.b32.xlu0 %v1313, 90
      %v1488 = vpop.permute.xlu0 %1487
      %1489 = vrot.lane.b32.xlu0 %v1311, 90
      %v1490 = vpop.permute.xlu0 %1489
      %1491 = vrot.lane.b32.xlu0 %v1280, 90
      %v1492 = vpop.permute.xlu0 %1491
      %1493 = vrot.lane.b32.xlu0 %v1314, 90
      %v1494 = vpop.permute.xlu0 %1493
      %v1495 = vsel %vm567, %v1484, %v1486
      %v1496 = vsel %vm567, %v1486, %v1488
      %v1497 = vsel %vm567, %v1490, %v1492
      %v1498 = vsel %vm567, %v1492, %v1494
      %v1505 = vsel %vm453, %v1311, %v1341
      %v1506 = vsel %vm453, %v1280, %v1342
      %v1507 = vsel %vm453, %v1314, %v1334
      %v1508 = vsel %vm453, %v1365, %v1385
      %v1509 = vsel %vm453, %v1366, %v1386
      %v1510 = vsel %vm453, %v1362, %v1378
      %v1511 = vsel %vm453, %v1409, %v1429
      %v1512 = vsel %vm453, %v1410, %v1430
      %v1513 = vsel %vm453, %v1406, %v1422
      %v1514 = vsel %vm453, %v1453, %v1473
      %v1515 = vsel %vm453, %v1454, %v1474
      %v1516 = vsel %vm453, %v1450, %v1466
      %v1517 = vpack.c.bf16 %v1505, %v1310
      %v1518 = vpack.c.bf16 %v1506, %v1286
      %v1519 = vpack.c.bf16 %v1507, %v1313
      %v1520 = vpack.c.bf16 %v1363, %v1343
      %v1521 = vpack.c.bf16 %v1364, %v1344
      %v1522 = vpack.c.bf16 %v1356, %v1340
      %v1523 = vpack.c.bf16 %v1387, %v1508
      %v1524 = vpack.c.bf16 %v1388, %v1509
      %v1525 = vpack.c.bf16 %v1384, %v1510
      %v1526 = vpack.c.bf16 %v1511, %v1407
      %v1527 = vpack.c.bf16 %v1512, %v1408
      %v1528 = vpack.c.bf16 %v1513, %v1400
      %v1529 = vpack.c.bf16 %v1451, %v1431
      %v1530 = vpack.c.bf16 %v1452, %v1432
      %v1531 = vpack.c.bf16 %v1444, %v1428
      %v1532 = vpack.c.bf16 %v1475, %v1514
      %v1533 = vpack.c.bf16 %v1476, %v1515
      %v1534 = vpack.c.bf16 %v1472, %v1516
      %v1535 = vpack.c.bf16 %v1497, %v1495
      %v1536 = vpack.c.bf16 %v1498, %v1496
      %v1537 = vpack.c.bf16 %v1494, %v1488
      %v1538 = vld [vmem:[%s6] sm:$0x3]
      %v1539 = vld [vmem:[%s7] sm:$0xf]
      %1541 = vset.pattern.permute.xlu0 0
      %1542 = vperm.xlu0 %1541, %v1539
      %v1543 = vpop.permute.xlu0 %1542
      %v1546 = vsel %vm516, %v1538, 0
      %vm1548 = vcmask 1045504
      %v1550 = vsel %vm1548, %v1535, 0
      %v1553 = vsel %vm1548, %v1536, 0
      %v1556 = vsel %vm1548, %v1537, 0
      %1558 = vmatprep.subr.bf16.mxu0 %v1518
      %1559 = vmatpush1.bf16.msra.mxu0 %v1517
      %1560 = vmatprep.subr.bf16.mxu0 %v1521
      %1561 = vmatpush1.bf16.msra.mxu0 %v1520
      %1562 = vmatprep.subr.bf16.mxu0 %v1524
      %1563 = vmatpush1.bf16.msra.mxu0 %v1523
      %1564 = vmatprep.subr.bf16.mxu0 %v1527
      %1565 = vmatpush1.bf16.msra.mxu0 %v1526
      %1566 = vmatprep.subr.bf16.mxu0 %v1530
      %1567 = vmatpush1.bf16.msra.mxu0 %v1529
      %1568 = vmatprep.subr.bf16.mxu0 %v1533
      %1569 = vmatpush1.bf16.msra.mxu0 %v1532
      %1570 = vmatprep.subr.bf16.mxu0 %v1553
      %1571 = vmatpush1.bf16.msra.mxu0 %v1550
      %1572 = vmatprep.subr.bf16.mxu0 0
      %1573 = vmatpush1.bf16.msra.mxu0 0
      %1574 = vmatprep.subr.bf16.mxu0 0
      %1575 = vmatpush1.bf16.msra.mxu0 0
      %1576 = vmatprep.subr.bf16.mxu0 0
      %1577 = vmatpush1.bf16.msra.mxu0 0
      %1578 = vmatprep.subr.bf16.mxu0 0
      %1579 = vmatpush1.bf16.msra.mxu0 0
      %1580 = vmatprep.subr.bf16.mxu0 0
      %1581 = vmatpush1.bf16.msra.mxu0 0
      %1582 = vmatprep.subr.bf16.mxu0 0
      %1583 = vmatpush1.bf16.msra.mxu0 0
      %1584 = vmatprep.subr.bf16.mxu0 0
      %1585 = vmatpush1.bf16.msra.mxu0 0
      %1586 = vmatprep.subr.bf16.mxu0 0
      %1587 = vmatpush1.bf16.msra.mxu0 0
      %1588 = vmatprep.subr.bf16.mxu0 0
      %1589 = vmatpush1.bf16.msra.mxu0 0
      %1590 = vmatprep.mubr.bf16.mxu0 0
      %1591 = vmatmul.mubr.bf16.gmra.mrb[0].mxu0 %v1546
      %v1592 = vpop.f32.mrb[0].mxu0
      %v1593 = vadd.f32 %v1543, %v1592
      %v1594 = vpop.f32.mrb[0].mxu0
      %v1595 = vadd.f32 %v1543, %v1594
      %v1596 = vpop.f32.mrb[0].mxu0
      %v1597 = vpop.f32.mrb[0].mxu0
      %1598 = vdwg.mxu0
      %1599 = vmatprep.subr.bf16.mxu0 0
      %1600 = vmatpush1.bf16.msra.mxu0 %v1519
      %1601 = vmatprep.subr.bf16.mxu0 0
      %1602 = vmatpush1.bf16.msra.mxu0 %v1522
      %1603 = vmatprep.subr.bf16.mxu0 0
      %1604 = vmatpush1.bf16.msra.mxu0 %v1525
      %1605 = vmatprep.subr.bf16.mxu0 0
      %1606 = vmatpush1.bf16.msra.mxu0 %v1528
      %1607 = vmatprep.subr.bf16.mxu0 0
      %1608 = vmatpush1.bf16.msra.mxu0 %v1531
      %1609 = vmatprep.subr.bf16.mxu0 0
      %1610 = vmatpush1.bf16.msra.mxu0 %v1534
      %1611 = vmatprep.subr.bf16.mxu0 0
      %1612 = vmatpush1.bf16.msra.mxu0 %v1556
      %1613 = vmatprep.subr.bf16.mxu0 0
      %1614 = vmatpush1.bf16.msra.mxu0 0
      %1615 = vmatprep.subr.bf16.mxu0 0
      %1616 = vmatpush1.bf16.msra.mxu0 0
      %1617 = vmatprep.subr.bf16.mxu0 0
      %1618 = vmatpush1.bf16.msra.mxu0 0
      %1619 = vmatprep.subr.bf16.mxu0 0
      %1620 = vmatpush1.bf16.msra.mxu0 0
      %1621 = vmatprep.subr.bf16.mxu0 0
      %1622 = vmatpush1.bf16.msra.mxu0 0
      %1623 = vmatprep.subr.bf16.mxu0 0
      %1624 = vmatpush1.bf16.msra.mxu0 0
      %1625 = vmatprep.subr.bf16.mxu0 0
      %1626 = vmatpush1.bf16.msra.mxu0 0
      %1627 = vmatprep.subr.bf16.mxu0 0
      %1628 = vmatpush1.bf16.msra.mxu0 0
      %1629 = vmatprep.subr.bf16.mxu0 0
      %1630 = vmatpush1.bf16.msra.mxu0 0
      %1631 = vmatprep.mubr.bf16.mxu0 0
      %1632 = vmatmul.mubr.bf16.gmra.mrb[0].mxu0 %v1546
      %v1633 = vpop.f32.mrb[0].mxu0
      %v1634 = vadd.f32 %v1543, %v1633
      %v1635 = vpop.f32.mrb[0].mxu0
      %v1636 = vpop.f32.mrb[0].mxu0
      %v1637 = vpop.f32.mrb[0].mxu0
      %1638 = vdwg.mxu0
      %1640 = vset.pattern.permute.xlu0 0
      %1641 = vperm.xlu0 %1640, %v1302
      %v1642 = vpop.permute.xlu0 %1641
      %v1644 = vmul.f32 %v1593, %v1642
      %v1645 = vmul.f32 %v1595, %v1642
      %v1646 = vmul.f32 %v1634, %v1642
      %1648 = vset.pattern.permute.xlu0 0
      %1649 = vperm.xlu0 %1648, %v1309
      %v1650 = vpop.permute.xlu0 %1649
      %v1652 = vadd.f32 %v1644, %v1650
      %v1653 = vadd.f32 %v1645, %v1650
      %v1654 = vadd.f32 %v1646, %v1650
      %vm1655 = vcmp.ge.f32.partialorder %v1652, 0.0
      %vm1656 = vcmp.ge.f32.partialorder %v1653, 0.0
      %vm1657 = vcmp.ge.f32.partialorder %v1654, 0.0
      %v1658 = vmul.f32 %v1652, 0.2
      %v1659 = vmul.f32 %v1653, 0.2
      %v1660 = vmul.f32 %v1654, 0.2
      %v1661 = vsel %vm1655, %v1652, %v1658
      %v1662 = vsel %vm1656, %v1653, %v1659
      %v1663 = vsel %vm1657, %v1654, %v1660
      %v1664 = vmul.f32 %v1661, %v633
      %v1665 = vmul.f32 %v1662, %v634
      %v1666 = vmul.f32 %v1663, %v635
      %1670 = vrot.lane.b32.xlu0 %v1664, 19
      %v1671 = vpop.permute.xlu0 %1670
      %1672 = vrot.lane.b32.xlu0 %v1665, 19
      %v1673 = vpop.permute.xlu0 %1672
      %1674 = vrot.lane.b32.xlu0 %v1666, 19
      %v1675 = vpop.permute.xlu0 %1674
      %v1676 = vsel %vm645, %v1671, %v1673
      %v1677 = vsel %vm645, %v1673, %v1675
      %v1681 = vsel %vm645, 0.0, %v1671
      %v1682 = vsel %vm1312, %v1677, 0.0
      %v1685 = vrot.slane %v1681, 4
      %v1686 = vrot.slane %v1676, 4
      %v1687 = vrot.slane %v1682, 4
      %1688 = vrot.lane.b32.xlu0 %v1685, 127
      %v1689 = vpop.permute.xlu0 %1688
      %1690 = vrot.lane.b32.xlu0 %v1686, 127
      %v1691 = vpop.permute.xlu0 %1690
      %1692 = vrot.lane.b32.xlu0 %v1687, 127
      %v1693 = vpop.permute.xlu0 %1692
      %v1694 = vsel %vm455, %v1689, %v1691
      %v1695 = vsel %vm455, %v1691, %v1693
      %1699 = vrot.lane.b32.xlu0 %v1681, 126
      %v1700 = vpop.permute.xlu0 %1699
      %1701 = vrot.lane.b32.xlu0 %v1676, 126
      %v1702 = vpop.permute.xlu0 %1701
      %1703 = vrot.lane.b32.xlu0 %v1682, 126
      %v1704 = vpop.permute.xlu0 %1703
      %v1705 = vsel %vm472, %v1700, %v1702
      %v1706 = vsel %vm472, %v1702, %v1704
      %1710 = vrot.lane.b32.xlu0 %v1685, 110
      %v1711 = vpop.permute.xlu0 %1710
      %1712 = vrot.lane.b32.xlu0 %v1686, 110
      %v1713 = vpop.permute.xlu0 %1712
      %1714 = vrot.lane.b32.xlu0 %v1687, 110
      %v1715 = vpop.permute.xlu0 %1714
      %v1716 = vsel %vm499, %v1711, %v1713
      %v1717 = vsel %vm499, %v1713, %v1715
      %1721 = vrot.lane.b32.xlu0 %v1681, 109
      %v1722 = vpop.permute.xlu0 %1721
      %1723 = vrot.lane.b32.xlu0 %v1676, 109
      %v1724 = vpop.permute.xlu0 %1723
      %1725 = vrot.lane.b32.xlu0 %v1682, 109
      %v1726 = vpop.permute.xlu0 %1725
      %v1727 = vsel %vm661, %v1722, %v1724
      %v1728 = vsel %vm661, %v1724, %v1726
      %1732 = vrot.lane.b32.xlu0 %v1685, 108
      %v1733 = vpop.permute.xlu0 %1732
      %1734 = vrot.lane.b32.xlu0 %v1686, 108
      %v1735 = vpop.permute.xlu0 %1734
      %1736 = vrot.lane.b32.xlu0 %v1687, 108
      %v1737 = vpop.permute.xlu0 %1736
      %v1738 = vsel %vm516, %v1733, %v1735
      %v1739 = vsel %vm516, %v1735, %v1737
      %1743 = vrot.lane.b32.xlu0 %v1681, 92
      %v1744 = vpop.permute.xlu0 %1743
      %1745 = vrot.lane.b32.xlu0 %v1676, 92
      %v1746 = vpop.permute.xlu0 %1745
      %1747 = vrot.lane.b32.xlu0 %v1682, 92
      %v1748 = vpop.permute.xlu0 %1747
      %v1749 = vsel %vm529, %v1744, %v1746
      %v1750 = vsel %vm529, %v1746, %v1748
      %1754 = vrot.lane.b32.xlu0 %v1685, 91
      %v1755 = vpop.permute.xlu0 %1754
      %1756 = vrot.lane.b32.xlu0 %v1686, 91
      %v1757 = vpop.permute.xlu0 %1756
      %1758 = vrot.lane.b32.xlu0 %v1687, 91
      %v1759 = vpop.permute.xlu0 %1758
      %v1760 = vsel %vm554, %v1755, %v1757
      %v1761 = vsel %vm554, %v1757, %v1759
      %1765 = vrot.lane.b32.xlu0 %v1681, 90
      %v1766 = vpop.permute.xlu0 %1765
      %1767 = vrot.lane.b32.xlu0 %v1676, 90
      %v1768 = vpop.permute.xlu0 %1767
      %1769 = vrot.lane.b32.xlu0 %v1682, 90
      %v1770 = vpop.permute.xlu0 %1769
      %v1771 = vsel %vm567, %v1766, %v1768
      %v1772 = vsel %vm567, %v1768, %v1770
      %v1776 = vsel %vm453, %v1681, %v1694
      %v1777 = vsel %vm453, %v1676, %v1695
      %v1778 = vsel %vm453, %v1682, %v1693
      %v1779 = vsel %vm453, %v1705, %v1716
      %v1780 = vsel %vm453, %v1706, %v1717
      %v1781 = vsel %vm453, %v1704, %v1715
      %v1782 = vsel %vm453, %v1727, %v1738
      %v1783 = vsel %vm453, %v1728, %v1739
      %v1784 = vsel %vm453, %v1726, %v1737
      %v1785 = vsel %vm453, %v1749, %v1760
      %v1786 = vsel %vm453, %v1750, %v1761
      %v1787 = vsel %vm453, %v1748, %v1759
      %v1790 = vrot.slane %v1285, 4
      %v1791 = vrot.slane %v1287, 4
      %v1792 = vrot.slane %v1275, 4
      %v1793 = vsel %vm453, %v1790, %v1792
      %v1794 = vrot.slane %v1281, 4
      %v1795 = vsel %vm453, %v1791, %v1794
      %1796 = vrot.lane.b32.xlu0 %v1790, 109
      %v1797 = vpop.permute.xlu0 %1796
      %1798 = vrot.lane.b32.xlu0 %v1321, 109
      %v1799 = vpop.permute.xlu0 %1798
      %1800 = vrot.lane.b32.xlu0 %v1791, 109
      %v1801 = vpop.permute.xlu0 %1800
      %1802 = vrot.lane.b32.xlu0 %v1793, 109
      %v1803 = vpop.permute.xlu0 %1802
      %1804 = vrot.lane.b32.xlu0 %v1326, 109
      %v1805 = vpop.permute.xlu0 %1804
      %1806 = vrot.lane.b32.xlu0 %v1795, 109
      %v1807 = vpop.permute.xlu0 %1806
      %v1808 = vsel %vm661, %v1797, %v1799
      %v1809 = vsel %vm661, %v1799, %v1801
      %v1810 = vsel %vm661, %v1803, %v1805
      %v1811 = vsel %vm661, %v1805, %v1807
      %v1818 = vsel %vm453, %v1771, %v1808
      %v1819 = vsel %vm453, %v1772, %v1809
      %v1820 = vsel %vm453, %v1770, %v1801
      %v1821 = vpack.c.bf16 %v1779, %v1776
      %v1822 = vpack.c.bf16 %v1780, %v1777
      %v1823 = vpack.c.bf16 %v1781, %v1778
      %v1824 = vpack.c.bf16 %v1785, %v1782
      %v1825 = vpack.c.bf16 %v1786, %v1783
      %v1826 = vpack.c.bf16 %v1787, %v1784
      %v1827 = vpack.c.bf16 %v1810, %v1818
      %v1828 = vpack.c.bf16 %v1811, %v1819
      %v1829 = vpack.c.bf16 %v1807, %v1820
      %v1830 = vld [vmem:[%s8] sm:$0xf]
      %v1831 = vld [vmem:[%s9] sm:$0xff]
      %1833 = vset.pattern.permute.xlu0 0
      %1834 = vperm.xlu0 %1833, %v1831
      %v1835 = vpop.permute.xlu0 %1834
      %vm1837 = vcmask 392192
      %v1839 = vsel %vm1837, %v1830, 0
      %1841 = vmatprep.subr.bf16.mxu0 %v1822
      %1842 = vmatpush1.bf16.msra.mxu0 %v1821
      %1843 = vmatprep.subr.bf16.mxu0 %v1825
      %1844 = vmatpush1.bf16.msra.mxu0 %v1824
      %1845 = vmatprep.subr.bf16.mxu0 %v1828
      %1846 = vmatpush1.bf16.msra.mxu0 %v1827
      %1847 = vmatprep.subr.bf16.mxu0 0
      %1848 = vmatpush1.bf16.msra.mxu0 0
      %1849 = vmatprep.subr.bf16.mxu0 0
      %1850 = vmatpush1.bf16.msra.mxu0 0
      %1851 = vmatprep.subr.bf16.mxu0 0
      %1852 = vmatpush1.bf16.msra.mxu0 0
      %1853 = vmatprep.subr.bf16.mxu0 0
      %1854 = vmatpush1.bf16.msra.mxu0 0
      %1855 = vmatprep.subr.bf16.mxu0 0
      %1856 = vmatpush1.bf16.msra.mxu0 0
      %1857 = vmatprep.subr.bf16.mxu0 0
      %1858 = vmatpush1.bf16.msra.mxu0 0
      %1859 = vmatprep.subr.bf16.mxu0 0
      %1860 = vmatpush1.bf16.msra.mxu0 0
      %1861 = vmatprep.subr.bf16.mxu0 0
      %1862 = vmatpush1.bf16.msra.mxu0 0
      %1863 = vmatprep.subr.bf16.mxu0 0
      %1864 = vmatpush1.bf16.msra.mxu0 0
      %1865 = vmatprep.subr.bf16.mxu0 0
      %1866 = vmatpush1.bf16.msra.mxu0 0
      %1867 = vmatprep.subr.bf16.mxu0 0
      %1868 = vmatpush1.bf16.msra.mxu0 0
      %1869 = vmatprep.subr.bf16.mxu0 0
      %1870 = vmatpush1.bf16.msra.mxu0 0
      %1871 = vmatprep.subr.bf16.mxu0 0
      %1872 = vmatpush1.bf16.msra.mxu0 0
      %1873 = vmatprep.mubr.bf16.mxu0 0
      %1874 = vmatmul.mubr.bf16.gmra.mrb[0].mxu0 %v1839
      %v1875 = vpop.f32.mrb[0].mxu0
      %v1876 = vadd.f32 %v1835, %v1875
      %v1877 = vpop.f32.mrb[0].mxu0
      %v1878 = vadd.f32 %v1835, %v1877
      %v1879 = vpop.f32.mrb[0].mxu0
      %v1880 = vpop.f32.mrb[0].mxu0
      %1881 = vdwg.mxu0
      %1882 = vmatprep.subr.bf16.mxu0 0
      %1883 = vmatpush1.bf16.msra.mxu0 %v1823
      %1884 = vmatprep.subr.bf16.mxu0 0
      %1885 = vmatpush1.bf16.msra.mxu0 %v1826
      %1886 = vmatprep.subr.bf16.mxu0 0
      %1887 = vmatpush1.bf16.msra.mxu0 %v1829
      %1888 = vmatprep.subr.bf16.mxu0 0
      %1889 = vmatpush1.bf16.msra.mxu0 0
      %1890 = vmatprep.subr.bf16.mxu0 0
      %1891 = vmatpush1.bf16.msra.mxu0 0
      %1892 = vmatprep.subr.bf16.mxu0 0
      %1893 = vmatpush1.bf16.msra.mxu0 0
      %1894 = vmatprep.subr.bf16.mxu0 0
      %1895 = vmatpush1.bf16.msra.mxu0 0
      %1896 = vmatprep.subr.bf16.mxu0 0
      %1897 = vmatpush1.bf16.msra.mxu0 0
      %1898 = vmatprep.subr.bf16.mxu0 0
      %1899 = vmatpush1.bf16.msra.mxu0 0
      %1900 = vmatprep.subr.bf16.mxu0 0
      %1901 = vmatpush1.bf16.msra.mxu0 0
      %1902 = vmatprep.subr.bf16.mxu0 0
      %1903 = vmatpush1.bf16.msra.mxu0 0
      %1904 = vmatprep.subr.bf16.mxu0 0
      %1905 = vmatpush1.bf16.msra.mxu0 0
      %1906 = vmatprep.subr.bf16.mxu0 0
      %1907 = vmatpush1.bf16.msra.mxu0 0
      %1908 = vmatprep.subr.bf16.mxu0 0
      %1909 = vmatpush1.bf16.msra.mxu0 0
      %1910 = vmatprep.subr.bf16.mxu0 0
      %1911 = vmatpush1.bf16.msra.mxu0 0
      %1912 = vmatprep.subr.bf16.mxu0 0
      %1913 = vmatpush1.bf16.msra.mxu0 0
      %1914 = vmatprep.mubr.bf16.mxu0 0
      %1915 = vmatmul.mubr.bf16.gmra.mrb[0].mxu0 %v1839
      %v1916 = vpop.f32.mrb[0].mxu0
      %v1917 = vadd.f32 %v1835, %v1916
      %v1918 = vpop.f32.mrb[0].mxu0
      %v1919 = vpop.f32.mrb[0].mxu0
      %v1920 = vpop.f32.mrb[0].mxu0
      %1921 = vdwg.mxu0
      %v1922 = vpack.c.bf16 %v1876, %v1876
      %v1923 = vpack.c.bf16 %v1878, %v1878
      %v1924 = vpack.c.bf16 %v1917, %v1917
      %v1925 = vld [vmem:[%s10] sm:$0xf]
      %v1926 = vld [vmem:[%s10 + $0x4] sm:$0xf]
      %v1927 = vld [vmem:[%s10 + $0x8] sm:$0xf]
      %v1928 = vld [vmem:[%s10 + $0xc] sm:$0xf]
      %v1929 = vld [vmem:[%s10 + $0x10] sm:$0xf]
      %v1930 = vld [vmem:[%s10 + $0x14] sm:$0xf]
      %v1931 = vld [vmem:[%s10 + $0x18] sm:$0xf]
      %v1932 = vld [vmem:[%s10 + $0x1c] sm:$0xf]
      %v1933 = vld [vmem:[%s10 + $0x20] sm:$0xf]
      %v1934 = vld [vmem:[%s10 + $0x24] sm:$0xf]
      %v1935 = vld [vmem:[%s10 + $0x28] sm:$0xf]
      %v1936 = vld [vmem:[%s10 + $0x2c] sm:$0xf]
      %v1937 = vld [vmem:[%s10 + $0x30] sm:$0xf]
      %v1938 = vld [vmem:[%s10 + $0x34] sm:$0xf]
      %v1939 = vld [vmem:[%s10 + $0x38] sm:$0xf]
      %v1940 = vld [vmem:[%s10 + $0x3c] sm:$0xf]
      %v1941 = vld [vmem:[%s10 + $0x40] sm:$0xf]
      %v1942 = vld [vmem:[%s10 + $0x44] sm:$0xf]
      %v1943 = vld [vmem:[%s10 + $0x48] sm:$0xf]
      %v1944 = vld [vmem:[%s10 + $0x4c] sm:$0xf]
      %v1945 = vld [vmem:[%s10 + $0x50] sm:$0xf]
      %v1946 = vld [vmem:[%s10 + $0x54] sm:$0xf]
      %v1947 = vld [vmem:[%s10 + $0x58] sm:$0xf]
      %v1948 = vld [vmem:[%s10 + $0x5c] sm:$0xf]
      %v1949 = vld [vmem:[%s10 + $0x60] sm:$0xf]
      %v1950 = vld [vmem:[%s10 + $0x64] sm:$0xf]
      %v1951 = vld [vmem:[%s10 + $0x68] sm:$0xf]
      %v1952 = vld [vmem:[%s10 + $0x6c] sm:$0xf]
      %v1953 = vld [vmem:[%s10 + $0x70] sm:$0xf]
      %v1954 = vld [vmem:[%s10 + $0x74] sm:$0xf]
      %v1955 = vld [vmem:[%s10 + $0x78] sm:$0xf]
      %v1956 = vld [vmem:[%s10 + $0x7c] sm:$0xf]
      %v1957 = vld [vmem:[%s10 + $0x80] sm:$0xf]
      %v1958 = vld [vmem:[%s10 + $0x84] sm:$0xf]
      %v1959 = vld [vmem:[%s10 + $0x88] sm:$0xf]
      %v1960 = vld [vmem:[%s10 + $0x8c] sm:$0xf]
      %v1997 = vunpack.c.l.b16 %v1925
      %v1998 = vunpack.c.l.b16 %v1926
      %v1999 = vunpack.c.l.b16 %v1927
      %v2000 = vunpack.c.l.b16 %v1928
      %v2001 = vunpack.c.l.b16 %v1929
      %v2002 = vunpack.c.l.b16 %v1930
      %v2003 = vunpack.c.l.b16 %v1931
      %v2004 = vunpack.c.l.b16 %v1932
      %v2005 = vunpack.c.l.b16 %v1933
      %v2006 = vunpack.c.l.b16 %v1934
      %v2007 = vunpack.c.l.b16 %v1935
      %v2008 = vunpack.c.l.b16 %v1936
      %v2009 = vunpack.c.l.b16 %v1937
      %v2010 = vunpack.c.l.b16 %v1938
      %v2011 = vunpack.c.l.b16 %v1939
      %v2012 = vunpack.c.l.b16 %v1940
      %v2013 = vunpack.c.l.b16 %v1941
      %v2014 = vunpack.c.l.b16 %v1942
      %v2015 = vunpack.c.l.b16 %v1943
      %v2016 = vunpack.c.l.b16 %v1944
      %v2017 = vunpack.c.l.b16 %v1945
      %v2018 = vunpack.c.l.b16 %v1946
      %v2019 = vunpack.c.l.b16 %v1947
      %v2020 = vunpack.c.l.b16 %v1948
      %v2021 = vunpack.c.l.b16 %v1949
      %v2022 = vunpack.c.l.b16 %v1950
      %v2023 = vunpack.c.l.b16 %v1951
      %v2024 = vunpack.c.l.b16 %v1952
      %v2025 = vunpack.c.l.b16 %v1953
      %v2026 = vunpack.c.l.b16 %v1954
      %v2027 = vunpack.c.l.b16 %v1955
      %v2028 = vunpack.c.l.b16 %v1956
      %v2029 = vunpack.c.l.b16 %v1957
      %v2030 = vunpack.c.l.b16 %v1958
      %v2031 = vunpack.c.l.b16 %v1959
      %v2032 = vunpack.c.l.b16 %v1960
      %v2033 = vpack.c.b16 %v1998, %v1997
      %v2034 = vpack.c.b16 %v2000, %v1999
      %v2035 = vpack.c.b16 %v2002, %v2001
      %v2036 = vpack.c.b16 %v2004, %v2003
      %v2037 = vpack.c.b16 %v2006, %v2005
      %v2038 = vpack.c.b16 %v2008, %v2007
      %v2039 = vpack.c.b16 %v2010, %v2009
      %v2040 = vpack.c.b16 %v2012, %v2011
      %v2041 = vpack.c.b16 %v2014, %v2013
      %v2042 = vpack.c.b16 %v2016, %v2015
      %v2043 = vpack.c.b16 %v2018, %v2017
      %v2044 = vpack.c.b16 %v2020, %v2019
      %v2045 = vpack.c.b16 %v2022, %v2021
      %v2046 = vpack.c.b16 %v2024, %v2023
      %v2047 = vpack.c.b16 %v2026, %v2025
      %v2048 = vpack.c.b16 %v2028, %v2027
      %v2049 = vpack.c.b16 %v2030, %v2029
      %v2050 = vpack.c.b16 %v2032, %v2031
      %vm2069 = vcmask 261120
      %v2071 = vsel %vm2069, %v1924, 0
      %2073 = vmatprep.subr.bf16.mxu0 0
      %2074 = vmatpush1.bf16.msra.mxu0 %v2033
      %2075 = vmatprep.subr.bf16.mxu0 0
      %2076 = vmatpush1.bf16.msra.mxu0 %v2034
      %2077 = vmatprep.subr.bf16.mxu0 0
      %2078 = vmatpush1.bf16.msra.mxu0 %v2035
      %2079 = vmatprep.subr.bf16.mxu0 0
      %2080 = vmatpush1.bf16.msra.mxu0 %v2036
      %2081 = vmatprep.subr.bf16.mxu0 0
      %2082 = vmatpush1.bf16.msra.mxu0 %v2037
      %2083 = vmatprep.subr.bf16.mxu0 0
      %2084 = vmatpush1.bf16.msra.mxu0 %v2038
      %2085 = vmatprep.subr.bf16.mxu0 0
      %2086 = vmatpush1.bf16.msra.mxu0 %v2039
      %2087 = vmatprep.subr.bf16.mxu0 0
      %2088 = vmatpush1.bf16.msra.mxu0 %v2040
      %2089 = vmatprep.subr.bf16.mxu0 0
      %2090 = vmatpush1.bf16.msra.mxu0 %v2041
      %2091 = vmatprep.subr.bf16.mxu0 0
      %2092 = vmatpush1.bf16.msra.mxu0 %v2042
      %2093 = vmatprep.subr.bf16.mxu0 0
      %2094 = vmatpush1.bf16.msra.mxu0 %v2043
      %2095 = vmatprep.subr.bf16.mxu0 0
      %2096 = vmatpush1.bf16.msra.mxu0 %v2044
      %2097 = vmatprep.subr.bf16.mxu0 0
      %2098 = vmatpush1.bf16.msra.mxu0 %v2045
      %2099 = vmatprep.subr.bf16.mxu0 0
      %2100 = vmatpush1.bf16.msra.mxu0 %v2046
      %2101 = vmatprep.subr.bf16.mxu0 0
      %2102 = vmatpush1.bf16.msra.mxu0 %v2047
      %2103 = vmatprep.subr.bf16.mxu0 0
      %2104 = vmatpush1.bf16.msra.mxu0 %v2048
      %2105 = vmatprep.mubr.bf16.mxu0 %v1923
      %2106 = vmatmul.mubr.bf16.gmra.mrb[0].mxu0 %v1922
      %v2107 = vpop.f32.mrb[0].mxu0
      %v2108 = vadd.f32 0.0, %v2107
      %v2109 = vpop.f32.mrb[0].mxu0
      %v2110 = vpop.f32.mrb[0].mxu0
      %v2111 = vpop.f32.mrb[0].mxu0
      %2112 = vdwg.mxu0
      %2113 = vmatprep.subr.bf16.mxu0 0
      %2114 = vmatpush1.bf16.msra.mxu0 %v2049
      %2115 = vmatprep.subr.bf16.mxu0 0
      %2116 = vmatpush1.bf16.msra.mxu0 %v2050
      %2117 = vmatprep.subr.bf16.mxu0 0
      %2118 = vmatpush1.bf16.msra.mxu0 0
      %2119 = vmatprep.subr.bf16.mxu0 0
      %2120 = vmatpush1.bf16.msra.mxu0 0
      %2121 = vmatprep.subr.bf16.mxu0 0
      %2122 = vmatpush1.bf16.msra.mxu0 0
      %2123 = vmatprep.subr.bf16.mxu0 0
      %2124 = vmatpush1.bf16.msra.mxu0 0
      %2125 = vmatprep.subr.bf16.mxu0 0
      %2126 = vmatpush1.bf16.msra.mxu0 0
      %2127 = vmatprep.subr.bf16.mxu0 0
      %2128 = vmatpush1.bf16.msra.mxu0 0
      %2129 = vmatprep.subr.bf16.mxu0 0
      %2130 = vmatpush1.bf16.msra.mxu0 0
      %2131 = vmatprep.subr.bf16.mxu0 0
      %2132 = vmatpush1.bf16.msra.mxu0 0
      %2133 = vmatprep.subr.bf16.mxu0 0
      %2134 = vmatpush1.bf16.msra.mxu0 0
      %2135 = vmatprep.subr.bf16.mxu0 0
      %2136 = vmatpush1.bf16.msra.mxu0 0
      %2137 = vmatprep.subr.bf16.mxu0 0
      %2138 = vmatpush1.bf16.msra.mxu0 0
      %2139 = vmatprep.subr.bf16.mxu0 0
      %2140 = vmatpush1.bf16.msra.mxu0 0
      %2141 = vmatprep.subr.bf16.mxu0 0
      %2142 = vmatpush1.bf16.msra.mxu0 0
      %2143 = vmatprep.subr.bf16.mxu0 0
      %2144 = vmatpush1.bf16.msra.mxu0 0
      %2145 = vmatprep.mubr.bf16.mxu0 0
      %2146 = vmatmul.mubr.bf16.gmra.mrb[0].mxu0 %v2071
      %v2147 = vpop.f32.mrb[0].mxu0
      %v2148 = vadd.f32 %v2108, %v2147
      %v2149 = vpop.f32.mrb[0].mxu0
      %v2150 = vpop.f32.mrb[0].mxu0
      %v2151 = vpop.f32.mrb[0].mxu0
      %2152 = vdwg.mxu0
      %2153 = vadd.xlane.f32.xlu0 %v2148
      %v2154 = vpop.xlane.xlu0 %2153
      %v2155 = vmul.f32 %v2154, 0.015625
      %vm2156 = vcmask 7168
      %2157 = vst.msk [vmem:[%s436] sm:$0xff] %vm2156, %v2155
      %v2158 = vpack.c.bf16 %v2148, %v2148
      %2159 = vst [vmem:[%s432] sm:$0xf] %v2158
      %p2160 = scmp.lt.s32.totalorder %s24, 1
      %s2161 = scalar_select %p2160, %s24, 1
      %s2162 = smul.addr %s2161, 4
      %s2163 = scalar_lea.vmem %s11, %s2162
      %p2164 = scmp.lt.s32.totalorder %s24, 1
      %s2165 = scalar_select %p2164, %s24, 1
      %s2166 = smul.addr %s2165, 8
      %s2167 = scalar_lea.vmem %s12, %s2166
      // Predicated region
      $region65: #{labs_injected_encoder_forward.8} parent=63 // pred_check
        %p2168 = pneg %p283
      $region66: #{labs_injected_encoder_forward.8} parent=63 // pred_check_branch
        %2170 = sbr.rel (%p2168) target = $region68
      $region67: #{labs_injected_encoder_forward.8} parent=63 // pred_region
        _
      $region68: #{labs_injected_encoder_forward.8} parent=63 // pred_fallthru
        _
      // Predicated region
      $region69: #{labs_injected_encoder_forward.8} parent=63 // pred_check
        %p2171 = pneg %p309
      $region70: #{labs_injected_encoder_forward.8} parent=63 // pred_check_branch
        %2173 = sbr.rel (%p2171) target = $region72
      $region71: #{labs_injected_encoder_forward.8} parent=63 // pred_region
        _
      $region72: #{labs_injected_encoder_forward.8} parent=63 // pred_fallthru
        _
    $region64: #{labs_injected_encoder_forward.8} parent=5 // pred_fallthru
      _
    %p2174 = scmp.le.s32.totalorder 2, %s19
    // Predicated region
    $region73: #{labs_injected_encoder_forward.8} parent=5 // pred_check
      %p2175 = pneg %p2174
    $region74: #{labs_injected_encoder_forward.8} parent=5 // pred_check_branch
      %2177 = sbr.rel (%p2175) target = $region76
    $region75: #{labs_injected_encoder_forward.8} parent=5 // pred_region
      %s2178 = ssub.s32 %s19, 2
      // Predicated region
      $region77: #{labs_injected_encoder_forward.8} parent=75 // pred_check
        %p2179 = pneg %p289
      $region78: #{labs_injected_encoder_forward.8} parent=75 // pred_check_branch
        %2181 = sbr.rel (%p2179) target = $region80
      $region79: #{labs_injected_encoder_forward.8} parent=75 // pred_region
        %p2182 = scmp.lt.s32.totalorder %s25, 1
        %s2183 = scalar_select %p2182, %s25, 1
        %s2184 = smul.addr %s2183, 4
        %s2185 = scalar_lea.vmem %s11, %s2184
      $region80: #{labs_injected_encoder_forward.8} parent=75 // pred_fallthru
        _
      // Predicated region
      $region81: #{labs_injected_encoder_forward.8} parent=75 // pred_check
        %p2186 = pneg %p315
      $region82: #{labs_injected_encoder_forward.8} parent=75 // pred_check_branch
        %2188 = sbr.rel (%p2186) target = $region84
      $region83: #{labs_injected_encoder_forward.8} parent=75 // pred_region
        %p2189 = scmp.lt.s32.totalorder %s25, 1
        %s2190 = scalar_select %p2189, %s25, 1
        %s2191 = smul.addr %s2190, 8
        %s2192 = scalar_lea.vmem %s12, %s2191
      $region84: #{labs_injected_encoder_forward.8} parent=75 // pred_fallthru
        _
    $region76: #{labs_injected_encoder_forward.8} parent=5 // pred_fallthru
      _
  $region6: #{labs_injected_encoder_forward.8} parent=0 // loop_footer
    %s23 = sadd.s32 1, %s19
  $region7: #{labs_injected_encoder_forward.8} parent=0 // loop_footer_branch
    %18 = sbr.rel target = $region3
  $region8: #{labs_injected_encoder_forward.8} parent=0 // loop_exit
    _

// kernel: labs_injected_encoder_forward.10
$region0: #{labs_injected_encoder_forward.10}
  #allocation0 [shape = 'u32[]', space=smem, size = 0x4, offset = 0x4, fixed_abs, tag = 'smem constant byte address 0x4 - core index']
  #allocation1 [shape = 'u32[144,128]{1,0:T(1,128)}', space=vmem, size = 0x12000, scoped, tag = 'internal scratch']
  %s0 = inlined_call_operand.vmem [shape: bf16[2,12,128], index: 0, kind: input, shape index: {}]
  %s1 = inlined_call_operand.vmem [shape: f32[2,1,32], index: 1, kind: input, shape index: {}]
  %s2 = inlined_call_operand.vmem [shape: f32[12,32], index: 2, kind: input, shape index: {}]
  %s3 = inlined_call_operand.vmem [shape: f32[12,1], index: 3, kind: input, shape index: {}, may-alias: {3,5,7}]
  %s4 = inlined_call_operand.vmem [shape: f32[12,32], index: 4, kind: input, shape index: {}]
  %s5 = inlined_call_operand.vmem [shape: f32[12,1], index: 5, kind: input, shape index: {}, may-alias: {3,5,7}]
  %s6 = inlined_call_operand.vmem [shape: bf16[12,324], index: 6, kind: input, shape index: {}]
  %s7 = inlined_call_operand.vmem [shape: f32[12,1], index: 7, kind: input, shape index: {}, may-alias: {3,5,7}]
  %s8 = inlined_call_operand.vmem [shape: bf16[16,144], index: 8, kind: input, shape index: {}]
  %s9 = inlined_call_operand.vmem [shape: f32[16,1], index: 9, kind: input, shape index: {}]
  %s10 = inlined_call_operand.vmem [shape: bf16[24,128], index: 10, kind: input, shape index: {}]
  %s11 = inlined_call_operand.vmem [shape: bf16[2,16,128], index: 11, kind: output, shape index: {0}]
  %s12 = inlined_call_operand.vmem [shape: f32[2,16,1], index: 12, kind: output, shape index: {1}]
  %13 = xla_tuple %s11, %s12
  %s14 = sld [smem:[#allocation0]]
  $region85: #{labs_injected_encoder_forward.10} parent=0
    _
  %s16 = ssub.s32 1, %s14
  %s17 = scalar_select 0, %s16, %s14
  loop: start=0, step=1, limit=4
  $region2: #{labs_injected_encoder_forward.10} parent=0 // loop_pre_header
    _
  $region3: #{labs_injected_encoder_forward.10} parent=0 // loop_header
    %s19 = sphi 0, %s23
    %p20 = scmp.ge.s32.totalorder %s19, 4
    %s29 = sphi 0, %s31
    %s32 = sphi 0, %s29
    %s33 = sphi 0, %s32
    %s49 = sphi 0, %s33
    %s55 = sphi 0, %s57
    %s58 = sphi 0, %s55
    %s59 = sphi 0, %s58
    %s75 = sphi 0, %s59
    %s79 = sphi 0, %s79
    %s81 = sphi 0, %s79
    %s82 = sphi 0, %s81
    %s96 = sphi 0, %s82
    %s100 = sphi 0, %s100
    %s102 = sphi 0, %s100
    %s103 = sphi 0, %s102
    %s117 = sphi 0, %s103
    %s121 = sphi 0, %s121
    %s123 = sphi 0, %s121
    %s124 = sphi 0, %s123
    %s138 = sphi 0, %s124
    %s142 = sphi 0, %s142
    %s144 = sphi 0, %s142
    %s145 = sphi 0, %s144
    %s159 = sphi 0, %s145
    %s163 = sphi 0, %s163
    %s165 = sphi 0, %s163
    %s166 = sphi 0, %s165
    %s180 = sphi 0, %s166
    %s184 = sphi 0, %s184
    %s186 = sphi 0, %s184
    %s187 = sphi 0, %s186
    %s201 = sphi 0, %s187
    %s205 = sphi 0, %s205
    %s207 = sphi 0, %s205
    %s208 = sphi 0, %s207
    %s222 = sphi 0, %s208
    %s226 = sphi 0, %s226
    %s228 = sphi 0, %s226
    %s229 = sphi 0, %s228
    %s243 = sphi 0, %s229
    %s247 = sphi 0, %s247
    %s249 = sphi 0, %s247
    %s250 = sphi 0, %s249
    %s264 = sphi 0, %s250
    %s270 = sphi 0, %s272
    %s273 = sphi 0, %s270
    %s274 = sphi 0, %s273
    %s290 = sphi 0, %s274
    %s296 = sphi 0, %s298
    %s299 = sphi 0, %s296
    %s300 = sphi 0, %s299
    %s316 = sphi 0, %s300
  $region4: #{labs_injected_encoder_forward.10} parent=0 // loop_header_branch
    %22 = sbr.rel (%p20) target = $region8
  $region5: #{labs_injected_encoder_forward.10} parent=0 // loop_body
    %s24 = ssub.s32 %s19, 1
    %s25 = ssub.s32 %s19, 2
    %s26 = sadd.s32 %s19, 1
    %s27 = ssub.s32 %s19, %s26
    %p28 = scmp.eq.s32.totalorder %s27, 0
    %s30 = sadd.s32 %s29, 1
    %s31 = scalar_select %p28, %s29, %s30
    %p34 = pneg %p28
    %p35 = scmp.eq.s32.totalorder %s19, 1
    %p36 = por %p34, %p35
    %p37 = scmp.ne.s32.totalorder %s29, %s32
    %p38 = scmp.eq.s32.totalorder %s19, 0
    %p39 = por %p37, %p38
    %p40 = scmp.ne.s32.totalorder %s29, %s32
    %p41 = scmp.eq.s32.totalorder %s24, 1
    %p42 = por %p40, %p41
    %p43 = scmp.ne.s32.totalorder %s32, %s33
    %p44 = scmp.eq.s32.totalorder %s24, 0
    %p45 = por %p43, %p44
    %p46 = scmp.ne.s32.totalorder %s32, %s33
    %p47 = scmp.eq.s32.totalorder %s25, 1
    %p48 = por %p46, %p47
    %p50 = scmp.ne.s32.totalorder %s33, %s49
    %p51 = scmp.eq.s32.totalorder %s25, 0
    %p52 = por %p50, %p51
    %s53 = ssub.s32 %s19, %s26
    %p54 = scmp.eq.s32.totalorder %s53, 0
    %s56 = sadd.s32 %s55, 1
    %s57 = scalar_select %p54, %s55, %s56
    %p60 = pneg %p54
    %p61 = scmp.eq.s32.totalorder %s19, 1
    %p62 = por %p60, %p61
    %p63 = scmp.ne.s32.totalorder %s55, %s58
    %p64 = scmp.eq.s32.totalorder %s19, 0
    %p65 = por %p63, %p64
    %p66 = scmp.ne.s32.totalorder %s55, %s58
    %p67 = scmp.eq.s32.totalorder %s24, 1
    %p68 = por %p66, %p67
    %p69 = scmp.ne.s32.totalorder %s58, %s59
    %p70 = scmp.eq.s32.totalorder %s24, 0
    %p71 = por %p69, %p70
    %p72 = scmp.ne.s32.totalorder %s58, %s59
    %p73 = scmp.eq.s32.totalorder %s25, 1
    %p74 = por %p72, %p73
    %p76 = scmp.ne.s32.totalorder %s59, %s75
    %p77 = scmp.eq.s32.totalorder %s25, 0
    %p78 = por %p76, %p77
    %s80 = sadd.s32 %s79, 1
    %p83 = scmp.eq.s32.totalorder %s19, 1
    %p84 = scmp.ne.s32.totalorder %s79, %s81
    %p85 = scmp.eq.s32.totalorder %s19, 0
    %p86 = por %p84, %p85
    %p87 = scmp.ne.s32.totalorder %s79, %s81
    %p88 = scmp.eq.s32.totalorder %s24, 1
    %p89 = por %p87, %p88
    %p90 = scmp.ne.s32.totalorder %s81, %s82
    %p91 = scmp.eq.s32.totalorder %s24, 0
    %p92 = por %p90, %p91
    %p93 = scmp.ne.s32.totalorder %s81, %s82
    %p94 = scmp.eq.s32.totalorder %s25, 1
    %p95 = por %p93, %p94
    %p97 = scmp.ne.s32.totalorder %s82, %s96
    %p98 = scmp.eq.s32.totalorder %s25, 0
    %p99 = por %p97, %p98
    %s101 = sadd.s32 %s100, 1
    %p104 = scmp.eq.s32.totalorder %s19, 1
    %p105 = scmp.ne.s32.totalorder %s100, %s102
    %p106 = scmp.eq.s32.totalorder %s19, 0
    %p107 = por %p105, %p106
    %p108 = scmp.ne.s32.totalorder %s100, %s102
    %p109 = scmp.eq.s32.totalorder %s24, 1
    %p110 = por %p108, %p109
    %p111 = scmp.ne.s32.totalorder %s102, %s103
    %p112 = scmp.eq.s32.totalorder %s24, 0
    %p113 = por %p111, %p112
    %p114 = scmp.ne.s32.totalorder %s102, %s103
    %p115 = scmp.eq.s32.totalorder %s25, 1
    %p116 = por %p114, %p115
    %p118 = scmp.ne.s32.totalorder %s103, %s117
    %p119 = scmp.eq.s32.totalorder %s25, 0
    %p120 = por %p118, %p119
    %s122 = sadd.s32 %s121, 1
    %p125 = scmp.eq.s32.totalorder %s19, 1
    %p126 = scmp.ne.s32.totalorder %s121, %s123
    %p127 = scmp.eq.s32.totalorder %s19, 0
    %p128 = por %p126, %p127
    %p129 = scmp.ne.s32.totalorder %s121, %s123
    %p130 = scmp.eq.s32.totalorder %s24, 1
    %p131 = por %p129, %p130
    %p132 = scmp.ne.s32.totalorder %s123, %s124
    %p133 = scmp.eq.s32.totalorder %s24, 0
    %p134 = por %p132, %p133
    %p135 = scmp.ne.s32.totalorder %s123, %s124
    %p136 = scmp.eq.s32.totalorder %s25, 1
    %p137 = por %p135, %p136
    %p139 = scmp.ne.s32.totalorder %s124, %s138
    %p140 = scmp.eq.s32.totalorder %s25, 0
    %p141 = por %p139, %p140
    %s143 = sadd.s32 %s142, 1
    %p146 = scmp.eq.s32.totalorder %s19, 1
    %p147 = scmp.ne.s32.totalorder %s142, %s144
    %p148 = scmp.eq.s32.totalorder %s19, 0
    %p149 = por %p147, %p148
    %p150 = scmp.ne.s32.totalorder %s142, %s144
    %p151 = scmp.eq.s32.totalorder %s24, 1
    %p152 = por %p150, %p151
    %p153 = scmp.ne.s32.totalorder %s144, %s145
    %p154 = scmp.eq.s32.totalorder %s24, 0
    %p155 = por %p153, %p154
    %p156 = scmp.ne.s32.totalorder %s144, %s145
    %p157 = scmp.eq.s32.totalorder %s25, 1
    %p158 = por %p156, %p157
    %p160 = scmp.ne.s32.totalorder %s145, %s159
    %p161 = scmp.eq.s32.totalorder %s25, 0
    %p162 = por %p160, %p161
    %s164 = sadd.s32 %s163, 1
    %p167 = scmp.eq.s32.totalorder %s19, 1
    %p168 = scmp.ne.s32.totalorder %s163, %s165
    %p169 = scmp.eq.s32.totalorder %s19, 0
    %p170 = por %p168, %p169
    %p171 = scmp.ne.s32.totalorder %s163, %s165
    %p172 = scmp.eq.s32.totalorder %s24, 1
    %p173 = por %p171, %p172
    %p174 = scmp.ne.s32.totalorder %s165, %s166
    %p175 = scmp.eq.s32.totalorder %s24, 0
    %p176 = por %p174, %p175
    %p177 = scmp.ne.s32.totalorder %s165, %s166
    %p178 = scmp.eq.s32.totalorder %s25, 1
    %p179 = por %p177, %p178
    %p181 = scmp.ne.s32.totalorder %s166, %s180
    %p182 = scmp.eq.s32.totalorder %s25, 0
    %p183 = por %p181, %p182
    %s185 = sadd.s32 %s184, 1
    %p188 = scmp.eq.s32.totalorder %s19, 1
    %p189 = scmp.ne.s32.totalorder %s184, %s186
    %p190 = scmp.eq.s32.totalorder %s19, 0
    %p191 = por %p189, %p190
    %p192 = scmp.ne.s32.totalorder %s184, %s186
    %p193 = scmp.eq.s32.totalorder %s24, 1
    %p194 = por %p192, %p193
    %p195 = scmp.ne.s32.totalorder %s186, %s187
    %p196 = scmp.eq.s32.totalorder %s24, 0
    %p197 = por %p195, %p196
    %p198 = scmp.ne.s32.totalorder %s186, %s187
    %p199 = scmp.eq.s32.totalorder %s25, 1
    %p200 = por %p198, %p199
    %p202 = scmp.ne.s32.totalorder %s187, %s201
    %p203 = scmp.eq.s32.totalorder %s25, 0
    %p204 = por %p202, %p203
    %s206 = sadd.s32 %s205, 1
    %p209 = scmp.eq.s32.totalorder %s19, 1
    %p210 = scmp.ne.s32.totalorder %s205, %s207
    %p211 = scmp.eq.s32.totalorder %s19, 0
    %p212 = por %p210, %p211
    %p213 = scmp.ne.s32.totalorder %s205, %s207
    %p214 = scmp.eq.s32.totalorder %s24, 1
    %p215 = por %p213, %p214
    %p216 = scmp.ne.s32.totalorder %s207, %s208
    %p217 = scmp.eq.s32.totalorder %s24, 0
    %p218 = por %p216, %p217
    %p219 = scmp.ne.s32.totalorder %s207, %s208
    %p220 = scmp.eq.s32.totalorder %s25, 1
    %p221 = por %p219, %p220
    %p223 = scmp.ne.s32.totalorder %s208, %s222
    %p224 = scmp.eq.s32.totalorder %s25, 0
    %p225 = por %p223, %p224
    %s227 = sadd.s32 %s226, 1
    %p230 = scmp.eq.s32.totalorder %s19, 1
    %p231 = scmp.ne.s32.totalorder %s226, %s228
    %p232 = scmp.eq.s32.totalorder %s19, 0
    %p233 = por %p231, %p232
    %p234 = scmp.ne.s32.totalorder %s226, %s228
    %p235 = scmp.eq.s32.totalorder %s24, 1
    %p236 = por %p234, %p235
    %p237 = scmp.ne.s32.totalorder %s228, %s229
    %p238 = scmp.eq.s32.totalorder %s24, 0
    %p239 = por %p237, %p238
    %p240 = scmp.ne.s32.totalorder %s228, %s229
    %p241 = scmp.eq.s32.totalorder %s25, 1
    %p242 = por %p240, %p241
    %p244 = scmp.ne.s32.totalorder %s229, %s243
    %p245 = scmp.eq.s32.totalorder %s25, 0
    %p246 = por %p244, %p245
    %s248 = sadd.s32 %s247, 1
    %p251 = scmp.eq.s32.totalorder %s19, 1
    %p252 = scmp.ne.s32.totalorder %s247, %s249
    %p253 = scmp.eq.s32.totalorder %s19, 0
    %p254 = por %p252, %p253
    %p255 = scmp.ne.s32.totalorder %s247, %s249
    %p256 = scmp.eq.s32.totalorder %s24, 1
    %p257 = por %p255, %p256
    %p258 = scmp.ne.s32.totalorder %s249, %s250
    %p259 = scmp.eq.s32.totalorder %s24, 0
    %p260 = por %p258, %p259
    %p261 = scmp.ne.s32.totalorder %s249, %s250
    %p262 = scmp.eq.s32.totalorder %s25, 1
    %p263 = por %p261, %p262
    %p265 = scmp.ne.s32.totalorder %s250, %s264
    %p266 = scmp.eq.s32.totalorder %s25, 0
    %p267 = por %p265, %p266
    %s268 = ssub.s32 %s19, %s26
    %p269 = scmp.eq.s32.totalorder %s268, 0
    %s271 = sadd.s32 %s270, 1
    %s272 = scalar_select %p269, %s270, %s271
    %p275 = pneg %p269
    %p276 = scmp.eq.s32.totalorder %s19, 1
    %p277 = por %p275, %p276
    %p278 = scmp.ne.s32.totalorder %s270, %s273
    %p279 = scmp.eq.s32.totalorder %s19, 0
    %p280 = por %p278, %p279
    %p281 = scmp.ne.s32.totalorder %s270, %s273
    %p282 = scmp.eq.s32.totalorder %s24, 1
    %p283 = por %p281, %p282
    %p284 = scmp.ne.s32.totalorder %s273, %s274
    %p285 = scmp.eq.s32.totalorder %s24, 0
    %p286 = por %p284, %p285
    %p287 = scmp.ne.s32.totalorder %s273, %s274
    %p288 = scmp.eq.s32.totalorder %s25, 1
    %p289 = por %p287, %p288
    %p291 = scmp.ne.s32.totalorder %s274, %s290
    %p292 = scmp.eq.s32.totalorder %s25, 0
    %p293 = por %p291, %p292
    %s294 = ssub.s32 %s19, %s26
    %p295 = scmp.eq.s32.totalorder %s294, 0
    %s297 = sadd.s32 %s296, 1
    %s298 = scalar_select %p295, %s296, %s297
    %p301 = pneg %p295
    %p302 = scmp.eq.s32.totalorder %s19, 1
    %p303 = por %p301, %p302
    %p304 = scmp.ne.s32.totalorder %s296, %s299
    %p305 = scmp.eq.s32.totalorder %s19, 0
    %p306 = por %p304, %p305
    %p307 = scmp.ne.s32.totalorder %s296, %s299
    %p308 = scmp.eq.s32.totalorder %s24, 1
    %p309 = por %p307, %p308
    %p310 = scmp.ne.s32.totalorder %s299, %s300
    %p311 = scmp.eq.s32.totalorder %s24, 0
    %p312 = por %p310, %p311
    %p313 = scmp.ne.s32.totalorder %s299, %s300
    %p314 = scmp.eq.s32.totalorder %s25, 1
    %p315 = por %p313, %p314
    %p317 = scmp.ne.s32.totalorder %s300, %s316
    %p318 = scmp.eq.s32.totalorder %s25, 0
    %p319 = por %p317, %p318
    %p320 = scmp.le.s32.totalorder 1, %s19
    %p321 = scmp.lt.s32.totalorder %s19, 3
    %p322 = pnand %p320, %p321
    %p323 = pneg %p322
    // Predicated region
    $region9: #{labs_injected_encoder_forward.10} parent=5 // pred_check
      _
    $region10: #{labs_injected_encoder_forward.10} parent=5 // pred_check_branch
      %325 = sbr.rel (%p322) target = $region12
    $region11: #{labs_injected_encoder_forward.10} parent=5 // pred_region
      %s326 = ssub.s32 %s19, 1
      // Predicated region
      $region13: #{labs_injected_encoder_forward.10} parent=11 // pred_check
        %p327 = pneg %p92
      $region14: #{labs_injected_encoder_forward.10} parent=11 // pred_check_branch
        %329 = sbr.rel (%p327) target = $region16
      $region15: #{labs_injected_encoder_forward.10} parent=11 // pred_region
        _
      $region16: #{labs_injected_encoder_forward.10} parent=11 // pred_fallthru
        _
      // Predicated region
      $region17: #{labs_injected_encoder_forward.10} parent=11 // pred_check
        %p330 = pneg %p113
      $region18: #{labs_injected_encoder_forward.10} parent=11 // pred_check_branch
        %332 = sbr.rel (%p330) target = $region20
      $region19: #{labs_injected_encoder_forward.10} parent=11 // pred_region
        _
      $region20: #{labs_injected_encoder_forward.10} parent=11 // pred_fallthru
        _
      // Predicated region
      $region21: #{labs_injected_encoder_forward.10} parent=11 // pred_check
        %p333 = pneg %p134
      $region22: #{labs_injected_encoder_forward.10} parent=11 // pred_check_branch
        %335 = sbr.rel (%p333) target = $region24
      $region23: #{labs_injected_encoder_forward.10} parent=11 // pred_region
        _
      $region24: #{labs_injected_encoder_forward.10} parent=11 // pred_fallthru
        _
      // Predicated region
      $region25: #{labs_injected_encoder_forward.10} parent=11 // pred_check
        %p336 = pneg %p155
      $region26: #{labs_injected_encoder_forward.10} parent=11 // pred_check_branch
        %338 = sbr.rel (%p336) target = $region28
      $region27: #{labs_injected_encoder_forward.10} parent=11 // pred_region
        _
      $region28: #{labs_injected_encoder_forward.10} parent=11 // pred_fallthru
        _
      // Predicated region
      $region29: #{labs_injected_encoder_forward.10} parent=11 // pred_check
        %p339 = pneg %p176
      $region30: #{labs_injected_encoder_forward.10} parent=11 // pred_check_branch
        %341 = sbr.rel (%p339) target = $region32
      $region31: #{labs_injected_encoder_forward.10} parent=11 // pred_region
        _
      $region32: #{labs_injected_encoder_forward.10} parent=11 // pred_fallthru
        _
      // Predicated region
      $region33: #{labs_injected_encoder_forward.10} parent=11 // pred_check
        %p342 = pneg %p197
      $region34: #{labs_injected_encoder_forward.10} parent=11 // pred_check_branch
        %344 = sbr.rel (%p342) target = $region36
      $region35: #{labs_injected_encoder_forward.10} parent=11 // pred_region
        _
      $region36: #{labs_injected_encoder_forward.10} parent=11 // pred_fallthru
        _
      // Predicated region
      $region37: #{labs_injected_encoder_forward.10} parent=11 // pred_check
        %p345 = pneg %p218
      $region38: #{labs_injected_encoder_forward.10} parent=11 // pred_check_branch
        %347 = sbr.rel (%p345) target = $region40
      $region39: #{labs_injected_encoder_forward.10} parent=11 // pred_region
        _
      $region40: #{labs_injected_encoder_forward.10} parent=11 // pred_fallthru
        _
      // Predicated region
      $region41: #{labs_injected_encoder_forward.10} parent=11 // pred_check
        %p348 = pneg %p239
      $region42: #{labs_injected_encoder_forward.10} parent=11 // pred_check_branch
        %350 = sbr.rel (%p348) target = $region44
      $region43: #{labs_injected_encoder_forward.10} parent=11 // pred_region
        _
      $region44: #{labs_injected_encoder_forward.10} parent=11 // pred_fallthru
        _
      // Predicated region
      $region45: #{labs_injected_encoder_forward.10} parent=11 // pred_check
        %p351 = pneg %p260
      $region46: #{labs_injected_encoder_forward.10} parent=11 // pred_check_branch
        %353 = sbr.rel (%p351) target = $region48
      $region47: #{labs_injected_encoder_forward.10} parent=11 // pred_region
        _
      $region48: #{labs_injected_encoder_forward.10} parent=11 // pred_fallthru
        _
    $region12: #{labs_injected_encoder_forward.10} parent=5 // pred_fallthru
      _
    %p354 = scmp.lt.s32.totalorder %s19, 2
    // Predicated region
    $region49: #{labs_injected_encoder_forward.10} parent=5 // pred_check
      %p355 = pneg %p354
    $region50: #{labs_injected_encoder_forward.10} parent=5 // pred_check_branch
      %357 = sbr.rel (%p355) target = $region52
    $region51: #{labs_injected_encoder_forward.10} parent=5 // pred_region
      // Predicated region
      $region53: #{labs_injected_encoder_forward.10} parent=51 // pred_check
        %p358 = pneg %p39
      $region54: #{labs_injected_encoder_forward.10} parent=51 // pred_check_branch
        %360 = sbr.rel (%p358) target = $region56
      $region55: #{labs_injected_encoder_forward.10} parent=51 // pred_region
        %p361 = scmp.lt.s32.totalorder %s19, 1
        %s362 = scalar_select %p361, %s19, 1
        %s363 = smul.addr %s362, 2
        %s364 = smul.addr %s363, 4
        %s365 = scalar_lea.vmem %s0, %s364
      $region56: #{labs_injected_encoder_forward.10} parent=51 // pred_fallthru
        _
      // Predicated region
      $region57: #{labs_injected_encoder_forward.10} parent=51 // pred_check
        %p366 = pneg %p65
      $region58: #{labs_injected_encoder_forward.10} parent=51 // pred_check_branch
        %368 = sbr.rel (%p366) target = $region60
      $region59: #{labs_injected_encoder_forward.10} parent=51 // pred_region
        %p369 = scmp.lt.s32.totalorder %s19, 1
        %s370 = scalar_select %p369, %s19, 1
        %s371 = scalar_lea.vmem %s1, %s370
      $region60: #{labs_injected_encoder_forward.10} parent=51 // pred_fallthru
        _
    $region52: #{labs_injected_encoder_forward.10} parent=5 // pred_fallthru
      _
    %p372 = scmp.le.s32.totalorder 1, %s19
    %p373 = scmp.lt.s32.totalorder %s19, 3
    %p374 = pnand %p372, %p373
    %p375 = pneg %p374
    // Predicated region
    $region61: #{labs_injected_encoder_forward.10} parent=5 // pred_check
      _
    $region62: #{labs_injected_encoder_forward.10} parent=5 // pred_check_branch
      %377 = sbr.rel (%p374) target = $region64
    $region63: #{labs_injected_encoder_forward.10} parent=5 // pred_region
      %s378 = ssub.s32 %s19, 1
      %p379 = scmp.lt.s32.totalorder %s24, 1
      %s380 = scalar_select %p379, %s24, 1
      %s381 = smul.addr %s380, 2
      %s382 = smul.addr %s381, 4
      %s383 = scalar_lea.vmem %s0, %s382
      %p384 = pneg %p45
      %p385 = pneg %p42
      %p386 = scmp.lt.s32.totalorder %s24, 1
      %s387 = scalar_select %p386, %s24, 1
      %s388 = scalar_lea.vmem %s1, %s387
      %p389 = pneg %p71
      %p390 = pneg %p68
      %p391 = pneg %p92
      %p392 = pneg %p89
      %p393 = pneg %p113
      %p394 = pneg %p110
      %p395 = pneg %p134
      %p396 = pneg %p131
      %p397 = pneg %p155
      %p398 = pneg %p152
      %p399 = pneg %p176
      %p400 = pneg %p173
      %p401 = pneg %p197
      %p402 = pneg %p194
      %p403 = pneg %p218
      %p404 = pneg %p215
      %p405 = pneg %p239
      %p406 = pneg %p236
      %p407 = pneg %p260
      %p408 = pneg %p257
      %p409 = pneg %p286
      %p410 = pneg %p283
      %p411 = scmp.lt.s32.totalorder %s24, 1
      %s412 = scalar_select %p411, %s24, 1
      %s413 = smul.addr %s412, 2
      %s414 = smul.addr %s413, 4
      %s415 = scalar_lea.vmem %s11, %s414
      %p416 = pneg %p312
      %p417 = pneg %p309
      %p418 = scmp.lt.s32.totalorder %s24, 1
      %s419 = scalar_select %p418, %s24, 1
      %s420 = smul.addr %s419, 2
      %s421 = smul.addr %s420, 8
      %s422 = scalar_lea.vmem %s12, %s421
      %p423 = scmp.lt.s32.totalorder %s24, 1
      %s424 = scalar_select %p423, %s24, 1
      %s425 = smul.addr %s424, 2
      %s426 = smul.addr %s425, 4
      %s427 = scalar_lea.vmem %s0, %s426
      %p428 = scmp.lt.s32.totalorder %s24, 1
      %s429 = scalar_select %p428, %s24, 1
      %s430 = scalar_lea.vmem %s1, %s429
      %p431 = scmp.lt.s32.totalorder %s24, 1
      %s432 = scalar_select %p431, %s24, 1
      %s433 = smul.addr %s432, 2
      %s434 = smul.addr %s433, 4
      %s435 = scalar_lea.vmem %s11, %s434
      %p436 = scmp.lt.s32.totalorder %s24, 1
      %s437 = scalar_select %p436, %s24, 1
      %s438 = smul.addr %s437, 2
      %s439 = smul.addr %s438, 8
      %s440 = scalar_lea.vmem %s12, %s439
      %v442 = vld [vmem:[%s427] sm:$0xf]
      %v443 = vld [vmem:[%s427 + $0x4] sm:$0x3]
      %v444 = vunpack.c.l.bf16 %v442
      %v445 = vunpack.c.l.bf16 %v443
      %v446 = vadd.f32 %v444, 0.0
      %v447 = vadd.f32 %v445, 0.0
      %v448 = vmul.f32 %v444, 2.0
      %v449 = vmul.f32 %v445, 2.0
      %452 = vrot.lane.b32.xlu0 %v448, 127
      %v453 = vpop.permute.xlu0 %452
      %454 = vrot.lane.b32.xlu0 %v449, 127
      %v455 = vpop.permute.xlu0 %454
      %v458 = vadd.f32 %v446, %v453
      %v459 = vadd.f32 %v447, %v455
      %v460 = vmul.f32 %v444, -1.0
      %v461 = vmul.f32 %v445, -1.0
      %464 = vrot.lane.b32.xlu0 %v460, 126
      %v465 = vpop.permute.xlu0 %464
      %466 = vrot.lane.b32.xlu0 %v461, 126
      %v467 = vpop.permute.xlu0 %466
      %v470 = vadd.f32 %v446, %v465
      %v471 = vadd.f32 %v447, %v467
      %474 = vrot.lane.b32.xlu0 %v444, 126
      %v475 = vpop.permute.xlu0 %474
      %476 = vrot.lane.b32.xlu0 %v445, 126
      %v477 = vpop.permute.xlu0 %476
      %v480 = vadd.f32 %v458, %v475
      %v481 = vadd.f32 %v459, %v477
      %482 = vrot.lane.b32.xlu0 %v448, 122
      %v483 = vpop.permute.xlu0 %482
      %484 = vrot.lane.b32.xlu0 %v449, 122
      %v485 = vpop.permute.xlu0 %484
      %v488 = vadd.f32 %v470, %v483
      %v489 = vadd.f32 %v471, %v485
      %v490 = vmul.f32 %v444, -2.0
      %v491 = vmul.f32 %v445, -2.0
      %494 = vrot.lane.b32.xlu0 %v490, 120
      %v495 = vpop.permute.xlu0 %494
      %496 = vrot.lane.b32.xlu0 %v491, 120
      %v497 = vpop.permute.xlu0 %496
      %v500 = vadd.f32 %v488, %v495
      %v501 = vadd.f32 %v489, %v497
      %502 = vrot.lane.b32.xlu0 %v444, 116
      %v503 = vpop.permute.xlu0 %502
      %504 = vrot.lane.b32.xlu0 %v445, 116
      %v505 = vpop.permute.xlu0 %504
      %v508 = vadd.f32 %v500, %v503
      %v509 = vadd.f32 %v501, %v505
      %510 = vrot.lane.b32.xlu0 %v460, 116
      %v511 = vpop.permute.xlu0 %510
      %512 = vrot.lane.b32.xlu0 %v461, 116
      %v513 = vpop.permute.xlu0 %512
      %v516 = vadd.f32 %v480, %v511
      %v517 = vadd.f32 %v481, %v513
      %518 = vrot.lane.b32.xlu0 %v490, 115
      %v519 = vpop.permute.xlu0 %518
      %520 = vrot.lane.b32.xlu0 %v491, 115
      %v521 = vpop.permute.xlu0 %520
      %v524 = vadd.f32 %v516, %v519
      %v525 = vadd.f32 %v517, %v521
      %526 = vrot.lane.b32.xlu0 %v460, 114
      %v527 = vpop.permute.xlu0 %526
      %528 = vrot.lane.b32.xlu0 %v461, 114
      %v529 = vpop.permute.xlu0 %528
      %v532 = vadd.f32 %v508, %v527
      %v533 = vadd.f32 %v509, %v529
      %v534 = vadd.f32 %v524, %v527
      %v535 = vadd.f32 %v525, %v529
      %v536 = vlaneseq
      %v537 = vand.u32 %v536, 127
      %vm538 = vcmp.lt.s32.totalorder %v537, 0
      %v539 = vsub.s32 0, %v537
      %v540 = vsel %vm538, %v539, %v537
      %v541 = vmul.u32.u64.compose %v540, 2863311531
      %v542 = vextract.low.u32 %v541
      %v543 = vextract.high.u32 %v541
      %v544 = vshrl.u32 %v543, 2
      %v545 = vmul.u32 %v544, 6
      %v546 = vsub.s32 %v540, %v545
      %v547 = vsub.s32 0, %v546
      %v548 = vsel %vm538, %v547, %v546
      %vm549 = vcmp.ne.s32.totalorder %v548, 0
      %vm550 = vcmp.lt.s32.totalorder %v548, 0
      %vm551 = vmand %vm550, %vm549
      %v552 = vadd.s32 %v548, 6
      %v553 = vsel %vm551, %v552, %v548
      %vm554 = vcmp.lt.s32.totalorder %v553, 4
      %v555 = vsel %vm554, 1, 0
      %v556 = vcvt.s32.f32 %v555
      %558 = vrot.lane.b32.xlu0 %v556, 7
      %v559 = vpop.permute.xlu0 %558
      %v561 = vmul.f32 %v444, %v559
      %v562 = vmul.f32 %v445, %v559
      %565 = vrot.lane.b32.xlu0 %v561, 121
      %v566 = vpop.permute.xlu0 %565
      %567 = vrot.lane.b32.xlu0 %v562, 121
      %v568 = vpop.permute.xlu0 %567
      %vm571 = vcmask 195584
      %v572 = vsel %vm571, %v566, 0.0
      %573 = vadd.xlane.f32.xlu0 %v572
      %v574 = vpop.xlane.xlu0 %573
      %vm575 = vcmask 191488
      %v576 = vsel %vm575, %v568, 0.0
      %577 = vadd.xlane.f32.xlu0 %v576
      %v578 = vpop.xlane.xlu0 %577
      %v579 = vmul.f32 %v574, 0.0625
      %v580 = vmul.f32 %v578, 0.0625
      %v581 = vmul.f32 %v561, %v561
      %v582 = vmul.f32 %v562, %v562
      %585 = vrot.lane.b32.xlu0 %v581, 121
      %v586 = vpop.permute.xlu0 %585
      %587 = vrot.lane.b32.xlu0 %v582, 121
      %v588 = vpop.permute.xlu0 %587
      %v591 = vsel %vm571, %v586, 0.0
      %592 = vadd.xlane.f32.xlu0 %v591
      %v593 = vpop.xlane.xlu0 %592
      %v594 = vsel %vm575, %v588, 0.0
      %595 = vadd.xlane.f32.xlu0 %v594
      %v596 = vpop.xlane.xlu0 %595
      %v597 = vmul.f32 %v593, 0.0625
      %v598 = vmul.f32 %v596, 0.0625
      %v599 = vmul.f32 %v579, %v579
      %v600 = vmul.f32 %v580, %v580
      %v601 = vsub.f32 %v597, %v599
      %v602 = vsub.f32 %v598, %v600
      %v603 = vsub.f32 %v444, %v579
      %v604 = vsub.f32 %v445, %v580
      %v605 = vadd.f32 %v601, 1e-05
      %v606 = vadd.f32 %v602, 1e-05
      %v607 = vrsqrt.pop %v605
      %v608 = vrsqrt.pop %v606
      %v609 = vmul.f32 %v603, %v607
      %v610 = vmul.f32 %v604, %v608
      %v611 = vmul.f32 %v609, %v559
      %v612 = vmul.f32 %v610, %v559
      %v613 = vand.u32 2147483647, %v532
      %vm614 = vcmp.le.f32.partialorder %v613, 0.7853982
      %vm615 = vcmp.lt.s32.totalorder %v532, 0
      %v616 = vand.u32 %v532, 2139095040
      %v617 = vshrl.u32 %v616, 23
      %v618 = vsub.s32 %v617, 127
      %v619 = vand.u32 2147483647, %v532
      %v620 = vand.u32 %v619, 8388607
      %v621 = vor.u32 %v620, 8388608
      %v622 = vsub.s32 0, %v621
      %v623 = vadd.s32 %v618, 1
      %vm624 = vcmp.gt.s32.totalorder %v623, 0
      %v625 = vsel %vm624, %v623, 0
      %v626 = vshrl.u32 %v625, 5
      %v627 = vand.u32 %v625, 31
      %v628 = vsub.s32 32, %v627
      %v629 = vshrl.u32 683565275, %v628
      %v630 = vshll.u32 683565275, %v627
      %v631 = vshrl.u32 2475754826, %v628
      %v632 = vor.u32 %v630, %v631
      %v633 = vshll.u32 2475754826, %v627
      %v634 = vshrl.u32 2131351028, %v628
      %v635 = vor.u32 %v633, %v634
      %v636 = vshll.u32 2131351028, %v627
      %v637 = vshrl.u32 2102212464, %v628
      %v638 = vor.u32 %v636, %v637
      %v639 = vshll.u32 2102212464, %v627
      %v640 = vshrl.u32 920167782, %v628
      %v641 = vor.u32 %v639, %v640
      %v642 = vshll.u32 920167782, %v627
      %v643 = vshrl.u32 1326507024, %v628
      %v644 = vor.u32 %v642, %v643
      %vm645 = vcmp.lt.s32.totalorder %v626, 1
      %vm646 = vcmp.lt.s32.totalorder %v626, 2
      %vm647 = vcmp.lt.s32.totalorder %v626, 3
      %vm648 = vcmp.lt.s32.totalorder %v626, 4
      %v649 = vsel %vm645, %v629, %v632
      %v650 = vsel %vm648, %v638, 2102212464
      %v651 = vsel %vm647, %v635, %v650
      %v652 = vsel %vm646, %v649, %v651
      %v653 = vsel %vm645, %v632, %v635
      %v654 = vsel %vm648, %v641, 920167782
      %v655 = vsel %vm647, %v638, %v654
      %v656 = vsel %vm646, %v653, %v655
      %v657 = vsel %vm645, %v635, %v638
      %v658 = vsel %vm648, %v644, 1326507024
      %v659 = vsel %vm647, %v641, %v658
      %v660 = vsel %vm646, %v657, %v659
      %v661 = vshll.u32 %v621, 8
      %v662 = vmul.u32.u64.compose %v661, %v660
      %v663 = vextract.low.u32 %v662
      %v664 = vextract.high.u32 %v662
      %v665 = vmul.u32.u64.compose %v661, %v656
      %v666 = vextract.low.u32 %v665
      %v667 = vextract.high.u32 %v665
      %v668 = vmul.u32 %v661, %v652
      %v669 = vadd.s32 %v664, %v666
      %vm670 = vc.u32 %v664, %v666
      %v671 = vadd.s32 %v667, 1
      %v672 = vsel %vm670, %v671, %v667
      %v673 = vadd.s32 %v668, %v672
      %v674 = vadd.s32 %v673, 536870912
      %v675 = vshrl.u32 %v674, 30
      %v676 = vshll.u32 %v675, 30
      %v677 = vsub.s32 %v673, %v676
      %vm678 = vcmp.lt.s32.totalorder %v677, 0
      %v679 = vsub.s32 0, %v677
      %v680 = vsel %vm678, %v679, %v677
      %v681 = vclz %v680
      %v682 = vsub.s32 %v681, 2
      %vm683 = vcmp.gt.s32.totalorder 0, %v682
      %v684 = vsel %vm683, 0, %v682
      %v685 = vsub.s32 32, %v684
      %v686 = vshll.u32 %v677, %v684
      %v687 = vshrl.u32 %v669, %v685
      %v688 = vor.u32 %v686, %v687
      %v689 = vsub.s32 4294967266, %v684
      %v690 = vadd.s32 %v689, 127
      %v691 = vshll.u32 %v690, 23
      %v692 = vor.u32 4788187, %v691
      %v693 = vand.u32 2147483647, %v692
      %v695 = vcvt.s32.f32 %v688
      %v696 = vmul.f32 %v695, %v693
      %v697 = vxor.u32 %v696, 2147483648
      %v698 = vsel %vm615, %v697, %v696
      %v699 = vsub.s32 4, %v675
      %v700 = vsel %vm615, %v699, %v675
      %v701 = vsel %vm614, %v532, %v698
      %v702 = vsel %vm614, 0, %v700
      %v703 = vcosq.f32.pop %v701
      %v704 = vsinq.f32.pop %v701
      %vm705 = vweird.f32 %v532
      %v706 = vadd.s32 %v702, 3
      %v707 = vand.u32 %v706, 3
      %vm708 = vcmp.lt.s32.totalorder %v707, 2
      %vm709 = vcmp.eq.s32.totalorder %v707, 0
      %v710 = vxor.u32 %v704, 2147483648
      %v711 = vsel %vm709, %v703, %v710
      %vm712 = vcmp.eq.s32.totalorder %v707, 2
      %v713 = vxor.u32 %v703, 2147483648
      %v714 = vsel %vm712, %v713, %v704
      %v715 = vsel %vm708, %v711, %v714
      %v716 = vsel %vm705, nan, %v715
      %v717 = vand.u32 2147483647, %v533
      %vm718 = vcmp.le.f32.partialorder %v717, 0.7853982
      %vm719 = vcmp.lt.s32.totalorder %v533, 0
      %v720 = vand.u32 %v533, 2139095040
      %v721 = vshrl.u32 %v720, 23
      %v722 = vsub.s32 %v721, 127
      %v723 = vand.u32 2147483647, %v533
      %v724 = vand.u32 %v723, 8388607
      %v725 = vor.u32 %v724, 8388608
      %v726 = vsub.s32 0, %v725
      %v727 = vadd.s32 %v722, 1
      %vm728 = vcmp.gt.s32.totalorder %v727, 0
      %v729 = vsel %vm728, %v727, 0
      %v730 = vshrl.u32 %v729, 5
      %v731 = vand.u32 %v729, 31
      %v732 = vsub.s32 32, %v731
      %v733 = vshrl.u32 683565275, %v732
      %v734 = vshll.u32 683565275, %v731
      %v735 = vshrl.u32 2475754826, %v732
      %v736 = vor.u32 %v734, %v735
      %v737 = vshll.u32 2475754826, %v731
      %v738 = vshrl.u32 2131351028, %v732
      %v739 = vor.u32 %v737, %v738
      %v740 = vshll.u32 2131351028, %v731
      %v741 = vshrl.u32 2102212464, %v732
      %v742 = vor.u32 %v740, %v741
      %v743 = vshll.u32 2102212464, %v731
      %v744 = vshrl.u32 920167782, %v732
      %v745 = vor.u32 %v743, %v744
      %v746 = vshll.u32 920167782, %v731
      %v747 = vshrl.u32 1326507024, %v732
      %v748 = vor.u32 %v746, %v747
      %vm749 = vcmp.lt.s32.totalorder %v730, 1
      %vm750 = vcmp.lt.s32.totalorder %v730, 2
      %vm751 = vcmp.lt.s32.totalorder %v730, 3
      %vm752 = vcmp.lt.s32.totalorder %v730, 4
      %v753 = vsel %vm749, %v733, %v736
      %v754 = vsel %vm752, %v742, 2102212464
      %v755 = vsel %vm751, %v739, %v754
      %v756 = vsel %vm750, %v753, %v755
      %v757 = vsel %vm749, %v736, %v739
      %v758 = vsel %vm752, %v745, 920167782
      %v759 = vsel %vm751, %v742, %v758
      %v760 = vsel %vm750, %v757, %v759
      %v761 = vsel %vm749, %v739, %v742
      %v762 = vsel %vm752, %v748, 1326507024
      %v763 = vsel %vm751, %v745, %v762
      %v764 = vsel %vm750, %v761, %v763
      %v765 = vshll.u32 %v725, 8
      %v766 = vmul.u32.u64.compose %v765, %v764
      %v767 = vextract.low.u32 %v766
      %v768 = vextract.high.u32 %v766
      %v769 = vmul.u32.u64.compose %v765, %v760
      %v770 = vextract.low.u32 %v769
      %v771 = vextract.high.u32 %v769
      %v772 = vmul.u32 %v765, %v756
      %v773 = vadd.s32 %v768, %v770
      %vm774 = vc.u32 %v768, %v770
      %v775 = vadd.s32 %v771, 1
      %v776 = vsel %vm774, %v775, %v771
      %v777 = vadd.s32 %v772, %v776
      %v778 = vadd.s32 %v777, 536870912
      %v779 = vshrl.u32 %v778, 30
      %v780 = vshll.u32 %v779, 30
      %v781 = vsub.s32 %v777, %v780
      %vm782 = vcmp.lt.s32.totalorder %v781, 0
      %v783 = vsub.s32 0, %v781
      %v784 = vsel %vm782, %v783, %v781
      %v785 = vclz %v784
      %v786 = vsub.s32 %v785, 2
      %vm787 = vcmp.gt.s32.totalorder 0, %v786
      %v788 = vsel %vm787, 0, %v786
      %v789 = vsub.s32 32, %v788
      %v790 = vshll.u32 %v781, %v788
      %v791 = vshrl.u32 %v773, %v789
      %v792 = vor.u32 %v790, %v791
      %v793 = vsub.s32 4294967266, %v788
      %v794 = vadd.s32 %v793, 127
      %v795 = vshll.u32 %v794, 23
      %v796 = vor.u32 4788187, %v795
      %v797 = vand.u32 2147483647, %v796
      %v799 = vcvt.s32.f32 %v792
      %v800 = vmul.f32 %v799, %v797
      %v801 = vxor.u32 %v800, 2147483648
      %v802 = vsel %vm719, %v801, %v800
      %v803 = vsub.s32 4, %v779
      %v804 = vsel %vm719, %v803, %v779
      %v805 = vsel %vm718, %v533, %v802
      %v806 = vsel %vm718, 0, %v804
      %v807 = vcosq.f32.pop %v805
      %v808 = vsinq.f32.pop %v805
      %vm809 = vweird.f32 %v533
      %v810 = vadd.s32 %v806, 3
      %v811 = vand.u32 %v810, 3
      %vm812 = vcmp.lt.s32.totalorder %v811, 2
      %vm813 = vcmp.eq.s32.totalorder %v811, 0
      %v814 = vxor.u32 %v808, 2147483648
      %v815 = vsel %vm813, %v807, %v814
      %vm816 = vcmp.eq.s32.totalorder %v811, 2
      %v817 = vxor.u32 %v807, 2147483648
      %v818 = vsel %vm816, %v817, %v808
      %v819 = vsel %vm812, %v815, %v818
      %v820 = vsel %vm809, nan, %v819
      %v821 = vmul.f32 %v716, %v556
      %v822 = vmul.f32 %v820, %v556
      %v823 = vsel %vm571, %v821, 0.0
      %824 = vadd.xlane.f32.xlu0 %v823
      %v825 = vpop.xlane.xlu0 %824
      %v826 = vsel %vm575, %v822, 0.0
      %827 = vadd.xlane.f32.xlu0 %v826
      %v828 = vpop.xlane.xlu0 %827
      %v829 = vmul.f32 %v825, 0.0625
      %v830 = vmul.f32 %v828, 0.0625
      %v831 = vmul.f32 %v821, %v821
      %v832 = vmul.f32 %v822, %v822
      %v833 = vsel %vm571, %v831, 0.0
      %834 = vadd.xlane.f32.xlu0 %v833
      %v835 = vpop.xlane.xlu0 %834
      %v836 = vsel %vm575, %v832, 0.0
      %837 = vadd.xlane.f32.xlu0 %v836
      %v838 = vpop.xlane.xlu0 %837
      %v839 = vmul.f32 %v835, 0.0625
      %v840 = vmul.f32 %v838, 0.0625
      %v841 = vmul.f32 %v829, %v829
      %v842 = vmul.f32 %v830, %v830
      %v843 = vsub.f32 %v839, %v841
      %v844 = vsub.f32 %v840, %v842
      %v845 = vsub.f32 %v716, %v829
      %v846 = vsub.f32 %v820, %v830
      %v847 = vadd.f32 %v843, 1e-05
      %v848 = vadd.f32 %v844, 1e-05
      %v849 = vrsqrt.pop %v847
      %v850 = vrsqrt.pop %v848
      %v851 = vmul.f32 %v845, %v849
      %v852 = vmul.f32 %v846, %v850
      %v853 = vmul.f32 %v851, %v556
      %v854 = vmul.f32 %v852, %v556
      %v855 = vand.u32 2147483647, %v534
      %vm856 = vcmp.le.f32.partialorder %v855, 0.7853982
      %vm857 = vcmp.lt.s32.totalorder %v534, 0
      %v858 = vand.u32 %v534, 2139095040
      %v859 = vshrl.u32 %v858, 23
      %v860 = vsub.s32 %v859, 127
      %v861 = vand.u32 2147483647, %v534
      %v862 = vand.u32 %v861, 8388607
      %v863 = vor.u32 %v862, 8388608
      %v864 = vsub.s32 0, %v863
      %v865 = vadd.s32 %v860, 1
      %vm866 = vcmp.gt.s32.totalorder %v865, 0
      %v867 = vsel %vm866, %v865, 0
      %v868 = vshrl.u32 %v867, 5
      %v869 = vand.u32 %v867, 31
      %v870 = vsub.s32 32, %v869
      %v871 = vshrl.u32 683565275, %v870
      %v872 = vshll.u32 683565275, %v869
      %v873 = vshrl.u32 2475754826, %v870
      %v874 = vor.u32 %v872, %v873
      %v875 = vshll.u32 2475754826, %v869
      %v876 = vshrl.u32 2131351028, %v870
      %v877 = vor.u32 %v875, %v876
      %v878 = vshll.u32 2131351028, %v869
      %v879 = vshrl.u32 2102212464, %v870
      %v880 = vor.u32 %v878, %v879
      %v881 = vshll.u32 2102212464, %v869
      %v882 = vshrl.u32 920167782, %v870
      %v883 = vor.u32 %v881, %v882
      %v884 = vshll.u32 920167782, %v869
      %v885 = vshrl.u32 1326507024, %v870
      %v886 = vor.u32 %v884, %v885
      %vm887 = vcmp.lt.s32.totalorder %v868, 1
      %vm888 = vcmp.lt.s32.totalorder %v868, 2
      %vm889 = vcmp.lt.s32.totalorder %v868, 3
      %vm890 = vcmp.lt.s32.totalorder %v868, 4
      %v891 = vsel %vm887, %v871, %v874
      %v892 = vsel %vm890, %v880, 2102212464
      %v893 = vsel %vm889, %v877, %v892
      %v894 = vsel %vm888, %v891, %v893
      %v895 = vsel %vm887, %v874, %v877
      %v896 = vsel %vm890, %v883, 920167782
      %v897 = vsel %vm889, %v880, %v896
      %v898 = vsel %vm888, %v895, %v897
      %v899 = vsel %vm887, %v877, %v880
      %v900 = vsel %vm890, %v886, 1326507024
      %v901 = vsel %vm889, %v883, %v900
      %v902 = vsel %vm888, %v899, %v901
      %v903 = vshll.u32 %v863, 8
      %v904 = vmul.u32.u64.compose %v903, %v902
      %v905 = vextract.low.u32 %v904
      %v906 = vextract.high.u32 %v904
      %v907 = vmul.u32.u64.compose %v903, %v898
      %v908 = vextract.low.u32 %v907
      %v909 = vextract.high.u32 %v907
      %v910 = vmul.u32 %v903, %v894
      %v911 = vadd.s32 %v906, %v908
      %vm912 = vc.u32 %v906, %v908
      %v913 = vadd.s32 %v909, 1
      %v914 = vsel %vm912, %v913, %v909
      %v915 = vadd.s32 %v910, %v914
      %v916 = vadd.s32 %v915, 536870912
      %v917 = vshrl.u32 %v916, 30
      %v918 = vshll.u32 %v917, 30
      %v919 = vsub.s32 %v915, %v918
      %vm920 = vcmp.lt.s32.totalorder %v919, 0
      %v921 = vsub.s32 0, %v919
      %v922 = vsel %vm920, %v921, %v919
      %v923 = vclz %v922
      %v924 = vsub.s32 %v923, 2
      %vm925 = vcmp.gt.s32.totalorder 0, %v924
      %v926 = vsel %vm925, 0, %v924
      %v927 = vsub.s32 32, %v926
      %v928 = vshll.u32 %v919, %v926
      %v929 = vshrl.u32 %v911, %v927
      %v930 = vor.u32 %v928, %v929
      %v931 = vsub.s32 4294967266, %v926
      %v932 = vadd.s32 %v931, 127
      %v933 = vshll.u32 %v932, 23
      %v934 = vor.u32 4788187, %v933
      %v935 = vand.u32 2147483647, %v934
      %v937 = vcvt.s32.f32 %v930
      %v938 = vmul.f32 %v937, %v935
      %v939 = vxor.u32 %v938, 2147483648
      %v940 = vsel %vm857, %v939, %v938
      %v941 = vsub.s32 4, %v917
      %v942 = vsel %vm857, %v941, %v917
      %v943 = vsel %vm856, %v534, %v940
      %v944 = vsel %vm856, 0, %v942
      %v945 = vcosq.f32.pop %v943
      %v946 = vsinq.f32.pop %v943
      %vm947 = vweird.f32 %v534
      %v948 = vadd.s32 %v944, 3
      %v949 = vand.u32 %v948, 3
      %vm950 = vcmp.lt.s32.totalorder %v949, 2
      %vm951 = vcmp.eq.s32.totalorder %v949, 0
      %v952 = vxor.u32 %v946, 2147483648
      %v953 = vsel %vm951, %v945, %v952
      %vm954 = vcmp.eq.s32.totalorder %v949, 2
      %v955 = vxor.u32 %v945, 2147483648
      %v956 = vsel %vm954, %v955, %v946
      %v957 = vsel %vm950, %v953, %v956
      %v958 = vsel %vm947, nan, %v957
      %v959 = vand.u32 2147483647, %v535
      %vm960 = vcmp.le.f32.partialorder %v959, 0.7853982
      %vm961 = vcmp.lt.s32.totalorder %v535, 0
      %v962 = vand.u32 %v535, 2139095040
      %v963 = vshrl.u32 %v962, 23
      %v964 = vsub.s32 %v963, 127
      %v965 = vand.u32 2147483647, %v535
      %v966 = vand.u32 %v965, 8388607
      %v967 = vor.u32 %v966, 8388608
      %v968 = vsub.s32 0, %v967
      %v969 = vadd.s32 %v964, 1
      %vm970 = vcmp.gt.s32.totalorder %v969, 0
      %v971 = vsel %vm970, %v969, 0
      %v972 = vshrl.u32 %v971, 5
      %v973 = vand.u32 %v971, 31
      %v974 = vsub.s32 32, %v973
      %v975 = vshrl.u32 683565275, %v974
      %v976 = vshll.u32 683565275, %v973
      %v977 = vshrl.u32 2475754826, %v974
      %v978 = vor.u32 %v976, %v977
      %v979 = vshll.u32 2475754826, %v973
      %v980 = vshrl.u32 2131351028, %v974
      %v981 = vor.u32 %v979, %v980
      %v982 = vshll.u32 2131351028, %v973
      %v983 = vshrl.u32 2102212464, %v974
      %v984 = vor.u32 %v982, %v983
      %v985 = vshll.u32 2102212464, %v973
      %v986 = vshrl.u32 920167782, %v974
      %v987 = vor.u32 %v985, %v986
      %v988 = vshll.u32 920167782, %v973
      %v989 = vshrl.u32 1326507024, %v974
      %v990 = vor.u32 %v988, %v989
      %vm991 = vcmp.lt.s32.totalorder %v972, 1
      %vm992 = vcmp.lt.s32.totalorder %v972, 2
      %vm993 = vcmp.lt.s32.totalorder %v972, 3
      %vm994 = vcmp.lt.s32.totalorder %v972, 4
      %v995 = vsel %vm991, %v975, %v978
      %v996 = vsel %vm994, %v984, 2102212464
      %v997 = vsel %vm993, %v981, %v996
      %v998 = vsel %vm992, %v995, %v997
      %v999 = vsel %vm991, %v978, %v981
      %v1000 = vsel %vm994, %v987, 920167782
      %v1001 = vsel %vm993, %v984, %v1000
      %v1002 = vsel %vm992, %v999, %v1001
      %v1003 = vsel %vm991, %v981, %v984
      %v1004 = vsel %vm994, %v990, 1326507024
      %v1005 = vsel %vm993, %v987, %v1004
      %v1006 = vsel %vm992, %v1003, %v1005
      %v1007 = vshll.u32 %v967, 8
      %v1008 = vmul.u32.u64.compose %v1007, %v1006
      %v1009 = vextract.low.u32 %v1008
      %v1010 = vextract.high.u32 %v1008
      %v1011 = vmul.u32.u64.compose %v1007, %v1002
      %v1012 = vextract.low.u32 %v1011
      %v1013 = vextract.high.u32 %v1011
      %v1014 = vmul.u32 %v1007, %v998
      %v1015 = vadd.s32 %v1010, %v1012
      %vm1016 = vc.u32 %v1010, %v1012
      %v1017 = vadd.s32 %v1013, 1
      %v1018 = vsel %vm1016, %v1017, %v1013
      %v1019 = vadd.s32 %v1014, %v1018
      %v1020 = vadd.s32 %v1019, 536870912
      %v1021 = vshrl.u32 %v1020, 30
      %v1022 = vshll.u32 %v1021, 30
      %v1023 = vsub.s32 %v1019, %v1022
      %vm1024 = vcmp.lt.s32.totalorder %v1023, 0
      %v1025 = vsub.s32 0, %v1023
      %v1026 = vsel %vm1024, %v1025, %v1023
      %v1027 = vclz %v1026
      %v1028 = vsub.s32 %v1027, 2
      %vm1029 = vcmp.gt.s32.totalorder 0, %v1028
      %v1030 = vsel %vm1029, 0, %v1028
      %v1031 = vsub.s32 32, %v1030
      %v1032 = vshll.u32 %v1023, %v1030
      %v1033 = vshrl.u32 %v1015, %v1031
      %v1034 = vor.u32 %v1032, %v1033
      %v1035 = vsub.s32 4294967266, %v1030
      %v1036 = vadd.s32 %v1035, 127
      %v1037 = vshll.u32 %v1036, 23
      %v1038 = vor.u32 4788187, %v1037
      %v1039 = vand.u32 2147483647, %v1038
      %v1041 = vcvt.s32.f32 %v1034
      %v1042 = vmul.f32 %v1041, %v1039
      %v1043 = vxor.u32 %v1042, 2147483648
      %v1044 = vsel %vm961, %v1043, %v1042
      %v1045 = vsub.s32 4, %v1021
      %v1046 = vsel %vm961, %v1045, %v1021
      %v1047 = vsel %vm960, %v535, %v1044
      %v1048 = vsel %vm960, 0, %v1046
      %v1049 = vcosq.f32.pop %v1047
      %v1050 = vsinq.f32.pop %v1047
      %vm1051 = vweird.f32 %v535
      %v1052 = vadd.s32 %v1048, 3
      %v1053 = vand.u32 %v1052, 3
      %vm1054 = vcmp.lt.s32.totalorder %v1053, 2
      %vm1055 = vcmp.eq.s32.totalorder %v1053, 0
      %v1056 = vxor.u32 %v1050, 2147483648
      %v1057 = vsel %vm1055, %v1049, %v1056
      %vm1058 = vcmp.eq.s32.totalorder %v1053, 2
      %v1059 = vxor.u32 %v1049, 2147483648
      %v1060 = vsel %vm1058, %v1059, %v1050
      %v1061 = vsel %vm1054, %v1057, %v1060
      %v1062 = vsel %vm1051, nan, %v1061
      %v1063 = vmul.f32 %v958, %v556
      %v1064 = vmul.f32 %v1062, %v556
      %v1065 = vsel %vm571, %v1063, 0.0
      %1066 = vadd.xlane.f32.xlu0 %v1065
      %v1067 = vpop.xlane.xlu0 %1066
      %v1068 = vsel %vm575, %v1064, 0.0
      %1069 = vadd.xlane.f32.xlu0 %v1068
      %v1070 = vpop.xlane.xlu0 %1069
      %v1071 = vmul.f32 %v1067, 0.0625
      %v1072 = vmul.f32 %v1070, 0.0625
      %v1073 = vmul.f32 %v1063, %v1063
      %v1074 = vmul.f32 %v1064, %v1064
      %v1075 = vsel %vm571, %v1073, 0.0
      %1076 = vadd.xlane.f32.xlu0 %v1075
      %v1077 = vpop.xlane.xlu0 %1076
      %v1078 = vsel %vm575, %v1074, 0.0
      %1079 = vadd.xlane.f32.xlu0 %v1078
      %v1080 = vpop.xlane.xlu0 %1079
      %v1081 = vmul.f32 %v1077, 0.0625
      %v1082 = vmul.f32 %v1080, 0.0625
      %v1083 = vmul.f32 %v1071, %v1071
      %v1084 = vmul.f32 %v1072, %v1072
      %v1085 = vsub.f32 %v1081, %v1083
      %v1086 = vsub.f32 %v1082, %v1084
      %v1087 = vsub.f32 %v958, %v1071
      %v1088 = vsub.f32 %v1062, %v1072
      %v1089 = vadd.f32 %v1085, 1e-05
      %v1090 = vadd.f32 %v1086, 1e-05
      %v1091 = vrsqrt.pop %v1089
      %v1092 = vrsqrt.pop %v1090
      %v1093 = vmul.f32 %v1087, %v1091
      %v1094 = vmul.f32 %v1088, %v1092
      %v1095 = vmul.f32 %v1093, %v556
      %v1096 = vmul.f32 %v1094, %v556
      %vm1099 = vcmask 1043456
      %v1100 = vrot.slane %v853, 4
      %v1101 = vrot.slane %v854, 4
      %v1102 = vsel %vm1099, %v1100, %v1101
      %1103 = vrot.lane.b32.xlu0 %v1100, 7
      %v1104 = vpop.permute.xlu0 %1103
      %1105 = vrot.lane.b32.xlu0 %v1102, 7
      %v1106 = vpop.permute.xlu0 %1105
      %1111 = vrot.lane.b32.xlu0 %v1095, 7
      %v1112 = vpop.permute.xlu0 %1111
      %1113 = vrot.lane.b32.xlu0 %v1096, 7
      %v1114 = vpop.permute.xlu0 %1113
      %v1117 = vsel %vm1099, %v612, %v1104
      %v1118 = vld [vmem:[%s430] sm:$0x1]
      %v1119 = vld [vmem:[%s2] sm:$0xff]
      %v1120 = vld [vmem:[%s2 + $0x8] sm:$0xf]
      %v1122 = vlaneseq
      %v1123 = vshrl.u32 %v1122, 7
      %v1124 = vsub.s32 0, %v1123
      %v1125 = vrot.slane %v1118, %v1124
      %v1127 = vmul.f32 %v1119, %v1125
      %v1128 = vmul.f32 %v1120, %v1125
      %vm1129 = vcmask 261120
      %v1130 = vsel %vm1129, %v1127, 0.0
      %1131 = vadd.xlane.f32.xlu0 %v1130
      %v1132 = vpop.xlane.xlu0 %1131
      %vm1133 = vcmask 257024
      %v1134 = vsel %vm1133, %v1128, 0.0
      %1135 = vadd.xlane.f32.xlu0 %v1134
      %v1136 = vpop.xlane.xlu0 %1135
      %v1137 = vadd.f32 %v1132, 1.0
      %v1138 = vadd.f32 %v1136, 1.0
      %v1139 = vld [vmem:[%s3] sm:$0xff]
      %v1140 = vld [vmem:[%s3 + $0x8] sm:$0xf]
      %v1141 = vadd.f32 %v1137, %v1139
      %v1142 = vadd.f32 %v1138, %v1140
      %v1143 = vld [vmem:[%s4] sm:$0xff]
      %v1144 = vld [vmem:[%s4 + $0x8] sm:$0xf]
      %v1145 = vmul.f32 %v1143, %v1125
      %v1146 = vmul.f32 %v1144, %v1125
      %v1147 = vsel %vm1129, %v1145, 0.0
      %1148 = vadd.xlane.f32.xlu0 %v1147
      %v1149 = vpop.xlane.xlu0 %1148
      %v1150 = vsel %vm1133, %v1146, 0.0
      %1151 = vadd.xlane.f32.xlu0 %v1150
      %v1152 = vpop.xlane.xlu0 %1151
      %v1153 = vld [vmem:[%s5] sm:$0xff]
      %v1154 = vld [vmem:[%s5 + $0x8] sm:$0xf]
      %v1155 = vadd.f32 %v1149, %v1153
      %v1156 = vadd.f32 %v1152, %v1154
      %vm1157 = vcmask 56320
      %v1158 = vsel %vm1157, 0.0, %v611
      %v1159 = vsel %vm1157, 0.0, %v1117
      %v1160 = vsel %vm1157, 0.0, %v1106
      %v1161 = vsel %vm1157, 0.0, %v1112
      %v1162 = vsel %vm1157, 0.0, %v1114
      %vm1163 = vcmask 252928
      %v1164 = vsel %vm1163, %v1158, 0.0
      %v1165 = vsel %vm1163, %v1159, 0.0
      %v1166 = vsel %vm1163, %v1160, 0.0
      %v1167 = vsel %vm1163, %v1161, 0.0
      %v1168 = vsel %vm1163, %v1162, 0.0
      %v1174 = vrot.slane %v1164, 4
      %v1175 = vrot.slane %v1165, 4
      %v1176 = vsel %vm1099, %v1174, %v1175
      %v1177 = vrot.slane %v1166, 4
      %v1178 = vsel %vm1099, %v1175, %v1177
      %v1179 = vrot.slane %v1167, 4
      %v1180 = vsel %vm1099, %v1177, %v1179
      %v1181 = vrot.slane %v1168, 4
      %v1182 = vsel %vm1099, %v1179, %v1181
      %1183 = vrot.lane.b32.xlu0 %v1174, 127
      %v1184 = vpop.permute.xlu0 %1183
      %1185 = vrot.lane.b32.xlu0 %v1176, 127
      %v1186 = vpop.permute.xlu0 %1185
      %1187 = vrot.lane.b32.xlu0 %v1178, 127
      %v1188 = vpop.permute.xlu0 %1187
      %1189 = vrot.lane.b32.xlu0 %v1180, 127
      %v1190 = vpop.permute.xlu0 %1189
      %1191 = vrot.lane.b32.xlu0 %v1182, 127
      %v1192 = vpop.permute.xlu0 %1191
      %1198 = vrot.lane.b32.xlu0 %v1164, 126
      %v1199 = vpop.permute.xlu0 %1198
      %1200 = vrot.lane.b32.xlu0 %v1165, 126
      %v1201 = vpop.permute.xlu0 %1200
      %1202 = vrot.lane.b32.xlu0 %v1166, 126
      %v1203 = vpop.permute.xlu0 %1202
      %1204 = vrot.lane.b32.xlu0 %v1167, 126
      %v1205 = vpop.permute.xlu0 %1204
      %1206 = vrot.lane.b32.xlu0 %v1168, 126
      %v1207 = vpop.permute.xlu0 %1206
      %1213 = vrot.lane.b32.xlu0 %v1174, 122
      %v1214 = vpop.permute.xlu0 %1213
      %1215 = vrot.lane.b32.xlu0 %v1176, 122
      %v1216 = vpop.permute.xlu0 %1215
      %1217 = vrot.lane.b32.xlu0 %v1178, 122
      %v1218 = vpop.permute.xlu0 %1217
      %1219 = vrot.lane.b32.xlu0 %v1180, 122
      %v1220 = vpop.permute.xlu0 %1219
      %1221 = vrot.lane.b32.xlu0 %v1182, 122
      %v1222 = vpop.permute.xlu0 %1221
      %1228 = vrot.lane.b32.xlu0 %v1164, 121
      %v1229 = vpop.permute.xlu0 %1228
      %1230 = vrot.lane.b32.xlu0 %v1165, 121
      %v1231 = vpop.permute.xlu0 %1230
      %1232 = vrot.lane.b32.xlu0 %v1166, 121
      %v1233 = vpop.permute.xlu0 %1232
      %1234 = vrot.lane.b32.xlu0 %v1167, 121
      %v1235 = vpop.permute.xlu0 %1234
      %1236 = vrot.lane.b32.xlu0 %v1168, 121
      %v1237 = vpop.permute.xlu0 %1236
      %1243 = vrot.lane.b32.xlu0 %v1174, 120
      %v1244 = vpop.permute.xlu0 %1243
      %1245 = vrot.lane.b32.xlu0 %v1176, 120
      %v1246 = vpop.permute.xlu0 %1245
      %1247 = vrot.lane.b32.xlu0 %v1178, 120
      %v1248 = vpop.permute.xlu0 %1247
      %1249 = vrot.lane.b32.xlu0 %v1180, 120
      %v1250 = vpop.permute.xlu0 %1249
      %1251 = vrot.lane.b32.xlu0 %v1182, 120
      %v1252 = vpop.permute.xlu0 %1251
      %1258 = vrot.lane.b32.xlu0 %v1164, 116
      %v1259 = vpop.permute.xlu0 %1258
      %1260 = vrot.lane.b32.xlu0 %v1165, 116
      %v1261 = vpop.permute.xlu0 %1260
      %1262 = vrot.lane.b32.xlu0 %v1166, 116
      %v1263 = vpop.permute.xlu0 %1262
      %1264 = vrot.lane.b32.xlu0 %v1167, 116
      %v1265 = vpop.permute.xlu0 %1264
      %1266 = vrot.lane.b32.xlu0 %v1168, 116
      %v1267 = vpop.permute.xlu0 %1266
      %1273 = vrot.lane.b32.xlu0 %v1174, 115
      %v1274 = vpop.permute.xlu0 %1273
      %1275 = vrot.lane.b32.xlu0 %v1176, 115
      %v1276 = vpop.permute.xlu0 %1275
      %1277 = vrot.lane.b32.xlu0 %v1178, 115
      %v1278 = vpop.permute.xlu0 %1277
      %1279 = vrot.lane.b32.xlu0 %v1180, 115
      %v1280 = vpop.permute.xlu0 %1279
      %1281 = vrot.lane.b32.xlu0 %v1182, 115
      %v1282 = vpop.permute.xlu0 %1281
      %1288 = vrot.lane.b32.xlu0 %v1164, 114
      %v1289 = vpop.permute.xlu0 %1288
      %1290 = vrot.lane.b32.xlu0 %v1165, 114
      %v1291 = vpop.permute.xlu0 %1290
      %1292 = vrot.lane.b32.xlu0 %v1166, 114
      %v1293 = vpop.permute.xlu0 %1292
      %1294 = vrot.lane.b32.xlu0 %v1167, 114
      %v1295 = vpop.permute.xlu0 %1294
      %1296 = vrot.lane.b32.xlu0 %v1168, 114
      %v1297 = vpop.permute.xlu0 %1296
      %v1303 = vsel %vm1099, %v1168, %v1184
      %v1304 = vsel %vm1099, %v1207, %v1214
      %v1305 = vsel %vm1099, %v1237, %v1244
      %v1306 = vsel %vm1099, %v1267, %v1274
      %v1307 = vpack.c.bf16 %v1165, %v1164
      %v1308 = vpack.c.bf16 %v1167, %v1166
      %v1309 = vpack.c.bf16 %v1186, %v1303
      %v1310 = vpack.c.bf16 %v1190, %v1188
      %v1311 = vpack.c.bf16 %v1199, %v1192
      %v1312 = vpack.c.bf16 %v1203, %v1201
      %v1313 = vpack.c.bf16 %v1304, %v1205
      %v1314 = vpack.c.bf16 %v1218, %v1216
      %v1315 = vpack.c.bf16 %v1222, %v1220
      %v1316 = vpack.c.bf16 %v1231, %v1229
      %v1317 = vpack.c.bf16 %v1235, %v1233
      %v1318 = vpack.c.bf16 %v1246, %v1305
      %v1319 = vpack.c.bf16 %v1250, %v1248
      %v1320 = vpack.c.bf16 %v1259, %v1252
      %v1321 = vpack.c.bf16 %v1263, %v1261
      %v1322 = vpack.c.bf16 %v1306, %v1265
      %v1323 = vpack.c.bf16 %v1278, %v1276
      %v1324 = vpack.c.bf16 %v1282, %v1280
      %v1325 = vpack.c.bf16 %v1291, %v1289
      %v1326 = vpack.c.bf16 %v1295, %v1293
      %v1327 = vpack.c.bf16 %v1297, %v1297
      %v1328 = vld [vmem:[%s6] sm:$0xff]
      %v1329 = vld [vmem:[%s6 + $0x8] sm:$0xf]
      %v1330 = vld [vmem:[%s6 + $0xc] sm:$0x33]
      %v1331 = vld [vmem:[%s6 + $0x14] sm:$0x3]
      %v1332 = vld [vmem:[%s7] sm:$0xff]
      %v1333 = vld [vmem:[%s7 + $0x8] sm:$0xf]
      %1335 = vset.pattern.permute.xlu0 0
      %1336 = vperm.xlu0 %1335, %v1332
      %v1337 = vpop.permute.xlu0 %1336
      %1340 = vset.pattern.permute.xlu0 0
      %1341 = vperm.xlu0 %1340, %v1333
      %v1342 = vpop.permute.xlu0 %1341
      %v1348 = vunpack.c.l.b16 %v1328
      %v1349 = vunpack.c.h.b16 %v1328
      %v1350 = vunpack.c.l.b16 %v1329
      %v1351 = vunpack.c.l.b16 %v1330
      %v1352 = vunpack.c.h.b16 %v1330
      %v1353 = vunpack.c.l.b16 %v1331
      %v1354 = vpack.c.b16 %v1351, %v1348
      %v1355 = vpack.c.b16 %v1352, %v1349
      %v1356 = vpack.c.b16 %v1353, %v1350
      %vm1359 = vcmask 556032
      %v1361 = vsel %vm1359, %v1356, 0
      %vm1363 = vcmask 1041408
      %v1365 = vsel %vm1363, %v1327, 0
      %1367 = vmatprep.subr.bf16.mxu0 0
      %1368 = vmatpush1.bf16.msra.mxu0 %v1307
      %1369 = vmatprep.subr.bf16.mxu0 0
      %1370 = vmatpush1.bf16.msra.mxu0 %v1308
      %1371 = vmatprep.subr.bf16.mxu0 0
      %1372 = vmatpush1.bf16.msra.mxu0 %v1309
      %1373 = vmatprep.subr.bf16.mxu0 0
      %1374 = vmatpush1.bf16.msra.mxu0 %v1310
      %1375 = vmatprep.subr.bf16.mxu0 0
      %1376 = vmatpush1.bf16.msra.mxu0 %v1311
      %1377 = vmatprep.subr.bf16.mxu0 0
      %1378 = vmatpush1.bf16.msra.mxu0 %v1312
      %1379 = vmatprep.subr.bf16.mxu0 0
      %1380 = vmatpush1.bf16.msra.mxu0 %v1313
      %1381 = vmatprep.subr.bf16.mxu0 0
      %1382 = vmatpush1.bf16.msra.mxu0 %v1314
      %1383 = vmatprep.subr.bf16.mxu0 0
      %1384 = vmatpush1.bf16.msra.mxu0 %v1315
      %1385 = vmatprep.subr.bf16.mxu0 0
      %1386 = vmatpush1.bf16.msra.mxu0 %v1316
      %1387 = vmatprep.subr.bf16.mxu0 0
      %1388 = vmatpush1.bf16.msra.mxu0 %v1317
      %1389 = vmatprep.subr.bf16.mxu0 0
      %1390 = vmatpush1.bf16.msra.mxu0 %v1318
      %1391 = vmatprep.subr.bf16.mxu0 0
      %1392 = vmatpush1.bf16.msra.mxu0 %v1319
      %1393 = vmatprep.subr.bf16.mxu0 0
      %1394 = vmatpush1.bf16.msra.mxu0 %v1320
      %1395 = vmatprep.subr.bf16.mxu0 0
      %1396 = vmatpush1.bf16.msra.mxu0 %v1321
      %1397 = vmatprep.subr.bf16.mxu0 0
      %1398 = vmatpush1.bf16.msra.mxu0 %v1322
      %1399 = vmatprep.mubr.bf16.mxu0 %v1355
      %1400 = vmatmul.mubr.bf16.gmra.mrb[0].mxu0 %v1354
      %v1401 = vpop.f32.mrb[0].mxu0
      %v1402 = vadd.f32 %v1337, %v1401
      %v1403 = vpop.f32.mrb[0].mxu0
      %v1404 = vpop.f32.mrb[0].mxu0
      %v1405 = vadd.f32 %v1342, %v1404
      %v1406 = vpop.f32.mrb[0].mxu0
      %1407 = vdwg.mxu0
      %1408 = vmatprep.subr.bf16.mxu0 0
      %1409 = vmatpush1.bf16.msra.mxu0 %v1323
      %1410 = vmatprep.subr.bf16.mxu0 0
      %1411 = vmatpush1.bf16.msra.mxu0 %v1324
      %1412 = vmatprep.subr.bf16.mxu0 0
      %1413 = vmatpush1.bf16.msra.mxu0 %v1325
      %1414 = vmatprep.subr.bf16.mxu0 0
      %1415 = vmatpush1.bf16.msra.mxu0 %v1326
      %1416 = vmatprep.subr.bf16.mxu0 0
      %1417 = vmatpush1.bf16.msra.mxu0 %v1365
      %1418 = vmatprep.subr.bf16.mxu0 0
      %1419 = vmatpush1.bf16.msra.mxu0 0
      %1420 = vmatprep.subr.bf16.mxu0 0
      %1421 = vmatpush1.bf16.msra.mxu0 0
      %1422 = vmatprep.subr.bf16.mxu0 0
      %1423 = vmatpush1.bf16.msra.mxu0 0
      %1424 = vmatprep.subr.bf16.mxu0 0
      %1425 = vmatpush1.bf16.msra.mxu0 0
      %1426 = vmatprep.subr.bf16.mxu0 0
      %1427 = vmatpush1.bf16.msra.mxu0 0
      %1428 = vmatprep.subr.bf16.mxu0 0
      %1429 = vmatpush1.bf16.msra.mxu0 0
      %1430 = vmatprep.subr.bf16.mxu0 0
      %1431 = vmatpush1.bf16.msra.mxu0 0
      %1432 = vmatprep.subr.bf16.mxu0 0
      %1433 = vmatpush1.bf16.msra.mxu0 0
      %1434 = vmatprep.subr.bf16.mxu0 0
      %1435 = vmatpush1.bf16.msra.mxu0 0
      %1436 = vmatprep.subr.bf16.mxu0 0
      %1437 = vmatpush1.bf16.msra.mxu0 0
      %1438 = vmatprep.subr.bf16.mxu0 0
      %1439 = vmatpush1.bf16.msra.mxu0 0
      %1440 = vmatprep.mubr.bf16.mxu0 0
      %1441 = vmatmul.mubr.bf16.gmra.mrb[0].mxu0 %v1361
      %v1442 = vpop.f32.mrb[0].mxu0
      %v1443 = vadd.f32 %v1402, %v1442
      %v1444 = vpop.f32.mrb[0].mxu0
      %v1445 = vpop.f32.mrb[0].mxu0
      %v1446 = vadd.f32 %v1405, %v1445
      %v1447 = vpop.f32.mrb[0].mxu0
      %1448 = vdwg.mxu0
      %1450 = vset.pattern.permute.xlu0 0
      %1451 = vperm.xlu0 %1450, %v1141
      %v1452 = vpop.permute.xlu0 %1451
      %1455 = vset.pattern.permute.xlu0 0
      %1456 = vperm.xlu0 %1455, %v1142
      %v1457 = vpop.permute.xlu0 %1456
      %v1459 = vmul.f32 %v1443, %v1452
      %v1460 = vmul.f32 %v1446, %v1457
      %1462 = vset.pattern.permute.xlu0 0
      %1463 = vperm.xlu0 %1462, %v1155
      %v1464 = vpop.permute.xlu0 %1463
      %1467 = vset.pattern.permute.xlu0 0
      %1468 = vperm.xlu0 %1467, %v1156
      %v1469 = vpop.permute.xlu0 %1468
      %v1471 = vadd.f32 %v1459, %v1464
      %v1472 = vadd.f32 %v1460, %v1469
      %vm1473 = vcmp.ge.f32.partialorder %v1471, 0.0
      %vm1474 = vcmp.ge.f32.partialorder %v1472, 0.0
      %v1475 = vmul.f32 %v1471, 0.2
      %v1476 = vmul.f32 %v1472, 0.2
      %v1477 = vsel %vm1473, %v1471, %v1475
      %v1478 = vsel %vm1474, %v1472, %v1476
      %v1479 = vmul.f32 %v1477, %v556
      %v1480 = vmul.f32 %v1478, %v556
      %1483 = vrot.lane.b32.xlu0 %v1479, 7
      %v1484 = vpop.permute.xlu0 %1483
      %1485 = vrot.lane.b32.xlu0 %v1480, 7
      %v1486 = vpop.permute.xlu0 %1485
      %v1489 = vsel %vm1157, 0.0, %v1484
      %v1490 = vsel %vm1157, 0.0, %v1486
      %v1491 = vsel %vm1163, %v1489, 0.0
      %v1492 = vsel %vm1163, %v1490, 0.0
      %v1495 = vrot.slane %v1491, 4
      %v1496 = vrot.slane %v1492, 4
      %v1497 = vsel %vm1099, %v1495, %v1496
      %1498 = vrot.lane.b32.xlu0 %v1495, 127
      %v1499 = vpop.permute.xlu0 %1498
      %1500 = vrot.lane.b32.xlu0 %v1497, 127
      %v1501 = vpop.permute.xlu0 %1500
      %1504 = vrot.lane.b32.xlu0 %v1491, 126
      %v1505 = vpop.permute.xlu0 %1504
      %1506 = vrot.lane.b32.xlu0 %v1492, 126
      %v1507 = vpop.permute.xlu0 %1506
      %1510 = vrot.lane.b32.xlu0 %v1495, 122
      %v1511 = vpop.permute.xlu0 %1510
      %1512 = vrot.lane.b32.xlu0 %v1497, 122
      %v1513 = vpop.permute.xlu0 %1512
      %1516 = vrot.lane.b32.xlu0 %v1491, 121
      %v1517 = vpop.permute.xlu0 %1516
      %1518 = vrot.lane.b32.xlu0 %v1492, 121
      %v1519 = vpop.permute.xlu0 %1518
      %1522 = vrot.lane.b32.xlu0 %v1495, 120
      %v1523 = vpop.permute.xlu0 %1522
      %1524 = vrot.lane.b32.xlu0 %v1497, 120
      %v1525 = vpop.permute.xlu0 %1524
      %1528 = vrot.lane.b32.xlu0 %v1491, 116
      %v1529 = vpop.permute.xlu0 %1528
      %1530 = vrot.lane.b32.xlu0 %v1492, 116
      %v1531 = vpop.permute.xlu0 %1530
      %1534 = vrot.lane.b32.xlu0 %v1495, 115
      %v1535 = vpop.permute.xlu0 %1534
      %1536 = vrot.lane.b32.xlu0 %v1497, 115
      %v1537 = vpop.permute.xlu0 %1536
      %1540 = vrot.lane.b32.xlu0 %v1491, 114
      %v1541 = vpop.permute.xlu0 %1540
      %1542 = vrot.lane.b32.xlu0 %v1492, 114
      %v1543 = vpop.permute.xlu0 %1542
      %v1546 = vsel %vm1099, %v1492, %v1499
      %v1547 = vsel %vm1099, %v1507, %v1511
      %v1548 = vsel %vm1099, %v1519, %v1523
      %v1549 = vsel %vm1099, %v1531, %v1535
      %v1552 = vrot.slane %v611, 4
      %v1553 = vrot.slane %v1117, 4
      %v1554 = vsel %vm1099, %v1552, %v1553
      %v1555 = vrot.slane %v1106, 4
      %v1556 = vsel %vm1099, %v1553, %v1555
      %v1557 = vrot.slane %v1112, 4
      %v1558 = vsel %vm1099, %v1555, %v1557
      %v1559 = vrot.slane %v1114, 4
      %v1560 = vsel %vm1099, %v1557, %v1559
      %1561 = vrot.lane.b32.xlu0 %v1552, 121
      %v1562 = vpop.permute.xlu0 %1561
      %1563 = vrot.lane.b32.xlu0 %v1554, 121
      %v1564 = vpop.permute.xlu0 %1563
      %1565 = vrot.lane.b32.xlu0 %v1556, 121
      %v1566 = vpop.permute.xlu0 %1565
      %1567 = vrot.lane.b32.xlu0 %v1558, 121
      %v1568 = vpop.permute.xlu0 %1567
      %1569 = vrot.lane.b32.xlu0 %v1560, 121
      %v1570 = vpop.permute.xlu0 %1569
      %v1576 = vsel %vm1099, %v1543, %v1562
      %v1577 = vpack.c.bf16 %v1546, %v1491
      %v1578 = vpack.c.bf16 %v1505, %v1501
      %v1579 = vpack.c.bf16 %v1513, %v1547
      %v1580 = vpack.c.bf16 %v1548, %v1517
      %v1581 = vpack.c.bf16 %v1529, %v1525
      %v1582 = vpack.c.bf16 %v1537, %v1549
      %v1583 = vpack.c.bf16 %v1576, %v1541
      %v1584 = vpack.c.bf16 %v1566, %v1564
      %v1585 = vpack.c.bf16 %v1570, %v1568
      %v1586 = vld [vmem:[%s8] sm:$0xff]
      %v1587 = vld [vmem:[%s8 + $0x8] sm:$0xff]
      %v1588 = vld [vmem:[%s9] sm:$0xff]
      %v1589 = vld [vmem:[%s9 + $0x8] sm:$0xff]
      %1591 = vset.pattern.permute.xlu0 0
      %1592 = vperm.xlu0 %1591, %v1588
      %v1593 = vpop.permute.xlu0 %1592
      %1596 = vset.pattern.permute.xlu0 0
      %1597 = vperm.xlu0 %1596, %v1589
      %v1598 = vpop.permute.xlu0 %1597
      %v1602 = vunpack.c.l.b16 %v1586
      %v1603 = vunpack.c.h.b16 %v1586
      %v1604 = vunpack.c.l.b16 %v1587
      %v1605 = vunpack.c.h.b16 %v1587
      %v1606 = vpack.c.b16 %v1604, %v1602
      %v1607 = vpack.c.b16 %v1605, %v1603
      %vm1609 = vcmask 130048
      %v1611 = vsel %vm1609, %v1607, 0
      %1613 = vmatprep.subr.bf16.mxu0 0
      %1614 = vmatpush1.bf16.msra.mxu0 %v1577
      %1615 = vmatprep.subr.bf16.mxu0 0
      %1616 = vmatpush1.bf16.msra.mxu0 %v1578
      %1617 = vmatprep.subr.bf16.mxu0 0
      %1618 = vmatpush1.bf16.msra.mxu0 %v1579
      %1619 = vmatprep.subr.bf16.mxu0 0
      %1620 = vmatpush1.bf16.msra.mxu0 %v1580
      %1621 = vmatprep.subr.bf16.mxu0 0
      %1622 = vmatpush1.bf16.msra.mxu0 %v1581
      %1623 = vmatprep.subr.bf16.mxu0 0
      %1624 = vmatpush1.bf16.msra.mxu0 %v1582
      %1625 = vmatprep.subr.bf16.mxu0 0
      %1626 = vmatpush1.bf16.msra.mxu0 %v1583
      %1627 = vmatprep.subr.bf16.mxu0 0
      %1628 = vmatpush1.bf16.msra.mxu0 %v1584
      %1629 = vmatprep.subr.bf16.mxu0 0
      %1630 = vmatpush1.bf16.msra.mxu0 %v1585
      %1631 = vmatprep.subr.bf16.mxu0 0
      %1632 = vmatpush1.bf16.msra.mxu0 0
      %1633 = vmatprep.subr.bf16.mxu0 0
      %1634 = vmatpush1.bf16.msra.mxu0 0
      %1635 = vmatprep.subr.bf16.mxu0 0
      %1636 = vmatpush1.bf16.msra.mxu0 0
      %1637 = vmatprep.subr.bf16.mxu0 0
      %1638 = vmatpush1.bf16.msra.mxu0 0
      %1639 = vmatprep.subr.bf16.mxu0 0
      %1640 = vmatpush1.bf16.msra.mxu0 0
      %1641 = vmatprep.subr.bf16.mxu0 0
      %1642 = vmatpush1.bf16.msra.mxu0 0
      %1643 = vmatprep.subr.bf16.mxu0 0
      %1644 = vmatpush1.bf16.msra.mxu0 0
      %1645 = vmatprep.mubr.bf16.mxu0 %v1611
      %1646 = vmatmul.mubr.bf16.gmra.mrb[0].mxu0 %v1606
      %v1647 = vpop.f32.mrb[0].mxu0
      %v1648 = vadd.f32 %v1593, %v1647
      %v1649 = vpop.f32.mrb[0].mxu0
      %v1650 = vpop.f32.mrb[0].mxu0
      %v1651 = vadd.f32 %v1598, %v1650
      %v1652 = vpop.f32.mrb[0].mxu0
      %1653 = vdwg.mxu0
      %v1654 = vpack.c.bf16 %v1651, %v1648
      %v1655 = vld [vmem:[%s10] sm:$0xf]
      %v1656 = vld [vmem:[%s10 + $0x4] sm:$0xf]
      %v1657 = vld [vmem:[%s10 + $0x8] sm:$0xf]
      %v1661 = vunpack.c.l.b16 %v1655
      %v1662 = vunpack.c.l.b16 %v1656
      %v1663 = vunpack.c.l.b16 %v1657
      %v1664 = vpack.c.b16 %v1662, %v1661
      %v1665 = vpack.c.b16 %v1663, %v1663
      %v1668 = vsel %vm571, %v1654, 0
      %v1671 = vsel %vm1099, %v1665, 0
      %1673 = vmatprep.subr.bf16.mxu0 0
      %1674 = vmatpush1.bf16.msra.mxu0 %v1664
      %1675 = vmatprep.subr.bf16.mxu0 0
      %1676 = vmatpush1.bf16.msra.mxu0 %v1671
      %1677 = vmatprep.subr.bf16.mxu0 0
      %1678 = vmatpush1.bf16.msra.mxu0 0
      %1679 = vmatprep.subr.bf16.mxu0 0
      %1680 = vmatpush1.bf16.msra.mxu0 0
      %1681 = vmatprep.subr.bf16.mxu0 0
      %1682 = vmatpush1.bf16.msra.mxu0 0
      %1683 = vmatprep.subr.bf16.mxu0 0
      %1684 = vmatpush1.bf16.msra.mxu0 0
      %1685 = vmatprep.subr.bf16.mxu0 0
      %1686 = vmatpush1.bf16.msra.mxu0 0
      %1687 = vmatprep.subr.bf16.mxu0 0
      %1688 = vmatpush1.bf16.msra.mxu0 0
      %1689 = vmatprep.subr.bf16.mxu0 0
      %1690 = vmatpush1.bf16.msra.mxu0 0
      %1691 = vmatprep.subr.bf16.mxu0 0
      %1692 = vmatpush1.bf16.msra.mxu0 0
      %1693 = vmatprep.subr.bf16.mxu0 0
      %1694 = vmatpush1.bf16.msra.mxu0 0
      %1695 = vmatprep.subr.bf16.mxu0 0
      %1696 = vmatpush1.bf16.msra.mxu0 0
      %1697 = vmatprep.subr.bf16.mxu0 0
      %1698 = vmatpush1.bf16.msra.mxu0 0
      %1699 = vmatprep.subr.bf16.mxu0 0
      %1700 = vmatpush1.bf16.msra.mxu0 0
      %1701 = vmatprep.subr.bf16.mxu0 0
      %1702 = vmatpush1.bf16.msra.mxu0 0
      %1703 = vmatprep.subr.bf16.mxu0 0
      %1704 = vmatpush1.bf16.msra.mxu0 0
      %1705 = vmatprep.mubr.bf16.mxu0 0
      %1706 = vmatmul.mubr.bf16.gmra.mrb[0].mxu0 %v1668
      %v1707 = vpop.f32.mrb[0].mxu0
      %v1708 = vadd.f32 0.0, %v1707
      %v1709 = vpop.f32.mrb[0].mxu0
      %v1710 = vpop.f32.mrb[0].mxu0
      %v1711 = vadd.f32 0.0, %v1710
      %v1712 = vpop.f32.mrb[0].mxu0
      %1713 = vdwg.mxu0
      %1714 = vadd.xlane.f32.xlu0 %v1708
      %v1715 = vpop.xlane.xlu0 %1714
      %1716 = vadd.xlane.f32.xlu0 %v1711
      %v1717 = vpop.xlane.xlu0 %1716
      %v1718 = vmul.f32 %v1715, 0.25
      %v1719 = vmul.f32 %v1717, 0.25
      %vm1720 = vcmask 7168
      %1721 = vst.msk [vmem:[%s440] sm:$0xff] %vm1720, %v1718
      %1722 = vst.msk [vmem:[%s440 + $0x8] sm:$0xff] %vm1720, %v1719
      %v1723 = vpack.c.bf16 %v1711, %v1708
      %v1725 = vunpack.c.l.b16 %v1723
      %v1726 = vunpack.c.h.b16 %v1723
      %v1727 = vpack.c.b16 %v1725, %v1725
      %v1728 = vpack.c.b16 %v1726, %v1726
      %1731 = vst [vmem:[%s435] sm:$0xf] %v1727
      %1732 = vst [vmem:[%s435 + $0x4] sm:$0xf] %v1728
      %p1733 = scmp.lt.s32.totalorder %s24, 1
      %s1734 = scalar_select %p1733, %s24, 1
      %s1735 = smul.addr %s1734, 2
      %s1736 = smul.addr %s1735, 4
      %s1737 = scalar_lea.vmem %s11, %s1736
      %p1738 = scmp.lt.s32.totalorder %s24, 1
      %s1739 = scalar_select %p1738, %s24, 1
      %s1740 = smul.addr %s1739, 2
      %s1741 = smul.addr %s1740, 8
      %s1742 = scalar_lea.vmem %s12, %s1741
      // Predicated region
      $region65: #{labs_injected_encoder_forward.10} parent=63 // pred_check
        %p1743 = pneg %p283
      $region66: #{labs_injected_encoder_forward.10} parent=63 // pred_check_branch
        %1745 = sbr.rel (%p1743) target = $region68
      $region67: #{labs_injected_encoder_forward.10} parent=63 // pred_region
        _
      $region68: #{labs_injected_encoder_forward.10} parent=63 // pred_fallthru
        _
      // Predicated region
      $region69: #{labs_injected_encoder_forward.10} parent=63 // pred_check
        %p1746 = pneg %p309
      $region70: #{labs_injected_encoder_forward.10} parent=63 // pred_check_branch
        %1748 = sbr.rel (%p1746) target = $region72
      $region71: #{labs_injected_encoder_forward.10} parent=63 // pred_region
        _
      $region72: #{labs_injected_encoder_forward.10} parent=63 // pred_fallthru
        _
    $region64: #{labs_injected_encoder_forward.10} parent=5 // pred_fallthru
      _
    %p1749 = scmp.le.s32.totalorder 2, %s19
    // Predicated region
    $region73: #{labs_injected_encoder_forward.10} parent=5 // pred_check
      %p1750 = pneg %p1749
    $region74: #{labs_injected_encoder_forward.10} parent=5 // pred_check_branch
      %1752 = sbr.rel (%p1750) target = $region76
    $region75: #{labs_injected_encoder_forward.10} parent=5 // pred_region
      %s1753 = ssub.s32 %s19, 2
      // Predicated region
      $region77: #{labs_injected_encoder_forward.10} parent=75 // pred_check
        %p1754 = pneg %p289
      $region78: #{labs_injected_encoder_forward.10} parent=75 // pred_check_branch
        %1756 = sbr.rel (%p1754) target = $region80
      $region79: #{labs_injected_encoder_forward.10} parent=75 // pred_region
        %p1757 = scmp.lt.s32.totalorder %s25, 1
        %s1758 = scalar_select %p1757, %s25, 1
        %s1759 = smul.addr %s1758, 2
        %s1760 = smul.addr %s1759, 4
        %s1761 = scalar_lea.vmem %s11, %s1760
      $region80: #{labs_injected_encoder_forward.10} parent=75 // pred_fallthru
        _
      // Predicated region
      $region81: #{labs_injected_encoder_forward.10} parent=75 // pred_check
        %p1762 = pneg %p315
      $region82: #{labs_injected_encoder_forward.10} parent=75 // pred_check_branch
        %1764 = sbr.rel (%p1762) target = $region84
      $region83: #{labs_injected_encoder_forward.10} parent=75 // pred_region
        %p1765 = scmp.lt.s32.totalorder %s25, 1
        %s1766 = scalar_select %p1765, %s25, 1
        %s1767 = smul.addr %s1766, 2
        %s1768 = smul.addr %s1767, 8
        %s1769 = scalar_lea.vmem %s12, %s1768
      $region84: #{labs_injected_encoder_forward.10} parent=75 // pred_fallthru
        _
    $region76: #{labs_injected_encoder_forward.10} parent=5 // pred_fallthru
      _
  $region6: #{labs_injected_encoder_forward.10} parent=0 // loop_footer
    %s23 = sadd.s32 1, %s19
  $region7: #{labs_injected_encoder_forward.10} parent=0 // loop_footer_branch
    %18 = sbr.rel target = $region3
  $region8: #{labs_injected_encoder_forward.10} parent=0 // loop_exit
    _

// kernel: labs_injected_encoder_forward.11
$region0: #{labs_injected_encoder_forward.11}
  #allocation0 [shape = 'u32[]', space=smem, size = 0x4, offset = 0x4, fixed_abs, tag = 'smem constant byte address 0x4 - core index']
  #allocation1 [shape = 'u32[144,128]{1,0:T(1,128)}', space=vmem, size = 0x12000, scoped, tag = 'internal scratch']
  %s0 = inlined_call_operand.vmem [shape: f32[8,64], index: 0, kind: input, shape index: {}]
  %s1 = inlined_call_operand.vmem [shape: bf16[64,64], index: 1, kind: input, shape index: {}]
  %s2 = inlined_call_operand.vmem [shape: f32[1,64], index: 2, kind: input, shape index: {}]
  %s3 = inlined_call_operand.vmem [shape: bf16[64,32], index: 3, kind: input, shape index: {}]
  %s4 = inlined_call_operand.vmem [shape: f32[1,32], index: 4, kind: input, shape index: {}, may-alias: {4,6}]
  %s5 = inlined_call_operand.vmem [shape: bf16[64,32], index: 5, kind: input, shape index: {}]
  %s6 = inlined_call_operand.vmem [shape: f32[1,32], index: 6, kind: input, shape index: {}, may-alias: {4,6}]
  %s7 = inlined_call_operand.vmem [shape: f32[8,32], index: 7, kind: output, shape index: {}]
  %s8 = sld [smem:[#allocation0]]
  $region38: #{labs_injected_encoder_forward.11} parent=0
    _
  %s10 = ssub.s32 1, %s8
  %s11 = scalar_select 0, %s10, %s8
  // Predicated region
  $region2: #{labs_injected_encoder_forward.11} parent=0 // pred_check
    _
  $region3: #{labs_injected_encoder_forward.11} parent=0 // pred_check_branch
    %13 = sbr.rel (0) target = $region5
  $region4: #{labs_injected_encoder_forward.11} parent=0 // pred_region
    _
  $region5: #{labs_injected_encoder_forward.11} parent=0 // pred_fallthru
    _
  // Predicated region
  $region6: #{labs_injected_encoder_forward.11} parent=0 // pred_check
    _
  $region7: #{labs_injected_encoder_forward.11} parent=0 // pred_check_branch
    %15 = sbr.rel (0) target = $region9
  $region8: #{labs_injected_encoder_forward.11} parent=0 // pred_region
    _
  $region9: #{labs_injected_encoder_forward.11} parent=0 // pred_fallthru
    _
  // Predicated region
  $region10: #{labs_injected_encoder_forward.11} parent=0 // pred_check
    _
  $region11: #{labs_injected_encoder_forward.11} parent=0 // pred_check_branch
    %17 = sbr.rel (0) target = $region13
  $region12: #{labs_injected_encoder_forward.11} parent=0 // pred_region
    _
  $region13: #{labs_injected_encoder_forward.11} parent=0 // pred_fallthru
    _
  // Predicated region
  $region14: #{labs_injected_encoder_forward.11} parent=0 // pred_check
    _
  $region15: #{labs_injected_encoder_forward.11} parent=0 // pred_check_branch
    %19 = sbr.rel (0) target = $region17
  $region16: #{labs_injected_encoder_forward.11} parent=0 // pred_region
    _
  $region17: #{labs_injected_encoder_forward.11} parent=0 // pred_fallthru
    _
  // Predicated region
  $region18: #{labs_injected_encoder_forward.11} parent=0 // pred_check
    _
  $region19: #{labs_injected_encoder_forward.11} parent=0 // pred_check_branch
    %21 = sbr.rel (0) target = $region21
  $region20: #{labs_injected_encoder_forward.11} parent=0 // pred_region
    _
  $region21: #{labs_injected_encoder_forward.11} parent=0 // pred_fallthru
    _
  // Predicated region
  $region22: #{labs_injected_encoder_forward.11} parent=0 // pred_check
    _
  $region23: #{labs_injected_encoder_forward.11} parent=0 // pred_check_branch
    %23 = sbr.rel (0) target = $region25
  $region24: #{labs_injected_encoder_forward.11} parent=0 // pred_region
    _
  $region25: #{labs_injected_encoder_forward.11} parent=0 // pred_fallthru
    _
  // Predicated region
  $region26: #{labs_injected_encoder_forward.11} parent=0 // pred_check
    _
  $region27: #{labs_injected_encoder_forward.11} parent=0 // pred_check_branch
    %25 = sbr.rel (0) target = $region29
  $region28: #{labs_injected_encoder_forward.11} parent=0 // pred_region
    _
  $region29: #{labs_injected_encoder_forward.11} parent=0 // pred_fallthru
    _
  %v27 = vld [vmem:[%s0] sm:$0xff]
  %v28 = vpack.c.bf16 %v27, %v27
  %v29 = vld [vmem:[%s1] sm:$0xf]
  %v30 = vld [vmem:[%s1 + $0x4] sm:$0xf]
  %v31 = vld [vmem:[%s1 + $0x8] sm:$0xf]
  %v32 = vld [vmem:[%s1 + $0xc] sm:$0xf]
  %v33 = vld [vmem:[%s1 + $0x10] sm:$0xf]
  %v34 = vld [vmem:[%s1 + $0x14] sm:$0xf]
  %v35 = vld [vmem:[%s1 + $0x18] sm:$0xf]
  %v36 = vld [vmem:[%s1 + $0x1c] sm:$0xf]
  %v37 = vld [vmem:[%s2] sm:$0x1]
  %v39 = vlaneseq
  %v40 = vshrl.u32 %v39, 7
  %v41 = vsub.s32 0, %v40
  %v42 = vrot.slane %v37, %v41
  %v52 = vunpack.c.l.b16 %v29
  %v53 = vunpack.c.l.b16 %v30
  %v54 = vunpack.c.l.b16 %v31
  %v55 = vunpack.c.l.b16 %v32
  %v56 = vunpack.c.l.b16 %v33
  %v57 = vunpack.c.l.b16 %v34
  %v58 = vunpack.c.l.b16 %v35
  %v59 = vunpack.c.l.b16 %v36
  %v60 = vpack.c.b16 %v53, %v52
  %v61 = vpack.c.b16 %v55, %v54
  %v62 = vpack.c.b16 %v57, %v56
  %v63 = vpack.c.b16 %v59, %v58
  %vm68 = vcmask 523264
  %v70 = vsel %vm68, %v28, 0
  %72 = vmatprep.subr.bf16.mxu0 0
  %73 = vmatpush1.bf16.msra.mxu0 %v60
  %74 = vmatprep.subr.bf16.mxu0 0
  %75 = vmatpush1.bf16.msra.mxu0 %v61
  %76 = vmatprep.subr.bf16.mxu0 0
  %77 = vmatpush1.bf16.msra.mxu0 %v62
  %78 = vmatprep.subr.bf16.mxu0 0
  %79 = vmatpush1.bf16.msra.mxu0 %v63
  %80 = vmatprep.subr.bf16.mxu0 0
  %81 = vmatpush1.bf16.msra.mxu0 0
  %82 = vmatprep.subr.bf16.mxu0 0
  %83 = vmatpush1.bf16.msra.mxu0 0
  %84 = vmatprep.subr.bf16.mxu0 0
  %85 = vmatpush1.bf16.msra.mxu0 0
  %86 = vmatprep.subr.bf16.mxu0 0
  %87 = vmatpush1.bf16.msra.mxu0 0
  %88 = vmatprep.subr.bf16.mxu0 0
  %89 = vmatpush1.bf16.msra.mxu0 0
  %90 = vmatprep.subr.bf16.mxu0 0
  %91 = vmatpush1.bf16.msra.mxu0 0
  %92 = vmatprep.subr.bf16.mxu0 0
  %93 = vmatpush1.bf16.msra.mxu0 0
  %94 = vmatprep.subr.bf16.mxu0 0
  %95 = vmatpush1.bf16.msra.mxu0 0
  %96 = vmatprep.subr.bf16.mxu0 0
  %97 = vmatpush1.bf16.msra.mxu0 0
  %98 = vmatprep.subr.bf16.mxu0 0
  %99 = vmatpush1.bf16.msra.mxu0 0
  %100 = vmatprep.subr.bf16.mxu0 0
  %101 = vmatpush1.bf16.msra.mxu0 0
  %102 = vmatprep.subr.bf16.mxu0 0
  %103 = vmatpush1.bf16.msra.mxu0 0
  %104 = vmatprep.mubr.bf16.mxu0 0
  %105 = vmatmul.mubr.bf16.gmra.mrb[0].mxu0 %v70
  %v106 = vpop.f32.mrb[0].mxu0
  %v107 = vadd.f32 %v42, %v106
  %v108 = vpop.f32.mrb[0].mxu0
  %v109 = vpop.f32.mrb[0].mxu0
  %v110 = vpop.f32.mrb[0].mxu0
  %111 = vdwg.mxu0
  %vm112 = vcmp.ge.f32.partialorder %v107, 0.0
  %v113 = vmul.f32 %v107, 0.2
  %v114 = vsel %vm112, %v107, %v113
  %v115 = vpack.c.bf16 %v114, %v114
  %v116 = vld [vmem:[%s3] sm:$0xf]
  %v117 = vld [vmem:[%s3 + $0x4] sm:$0xf]
  %v118 = vld [vmem:[%s3 + $0x8] sm:$0xf]
  %v119 = vld [vmem:[%s3 + $0xc] sm:$0xf]
  %v120 = vld [vmem:[%s3 + $0x10] sm:$0xf]
  %v121 = vld [vmem:[%s3 + $0x14] sm:$0xf]
  %v122 = vld [vmem:[%s3 + $0x18] sm:$0xf]
  %v123 = vld [vmem:[%s3 + $0x1c] sm:$0xf]
  %v124 = vld [vmem:[%s4] sm:$0x1]
  %v126 = vlaneseq
  %v127 = vshrl.u32 %v126, 7
  %v128 = vsub.s32 0, %v127
  %v129 = vrot.slane %v124, %v128
  %v139 = vunpack.c.l.b16 %v116
  %v140 = vunpack.c.l.b16 %v117
  %v141 = vunpack.c.l.b16 %v118
  %v142 = vunpack.c.l.b16 %v119
  %v143 = vunpack.c.l.b16 %v120
  %v144 = vunpack.c.l.b16 %v121
  %v145 = vunpack.c.l.b16 %v122
  %v146 = vunpack.c.l.b16 %v123
  %v147 = vpack.c.b16 %v140, %v139
  %v148 = vpack.c.b16 %v142, %v141
  %v149 = vpack.c.b16 %v144, %v143
  %v150 = vpack.c.b16 %v146, %v145
  %v156 = vsel %vm68, %v115, 0
  %158 = vmatprep.subr.bf16.mxu0 0
  %159 = vmatpush1.bf16.msra.mxu0 %v147
  %160 = vmatprep.subr.bf16.mxu0 0
  %161 = vmatpush1.bf16.msra.mxu0 %v148
  %162 = vmatprep.subr.bf16.mxu0 0
  %163 = vmatpush1.bf16.msra.mxu0 %v149
  %164 = vmatprep.subr.bf16.mxu0 0
  %165 = vmatpush1.bf16.msra.mxu0 %v150
  %166 = vmatprep.subr.bf16.mxu0 0
  %167 = vmatpush1.bf16.msra.mxu0 0
  %168 = vmatprep.subr.bf16.mxu0 0
  %169 = vmatpush1.bf16.msra.mxu0 0
  %170 = vmatprep.subr.bf16.mxu0 0
  %171 = vmatpush1.bf16.msra.mxu0 0
  %172 = vmatprep.subr.bf16.mxu0 0
  %173 = vmatpush1.bf16.msra.mxu0 0
  %174 = vmatprep.subr.bf16.mxu0 0
  %175 = vmatpush1.bf16.msra.mxu0 0
  %176 = vmatprep.subr.bf16.mxu0 0
  %177 = vmatpush1.bf16.msra.mxu0 0
  %178 = vmatprep.subr.bf16.mxu0 0
  %179 = vmatpush1.bf16.msra.mxu0 0
  %180 = vmatprep.subr.bf16.mxu0 0
  %181 = vmatpush1.bf16.msra.mxu0 0
  %182 = vmatprep.subr.bf16.mxu0 0
  %183 = vmatpush1.bf16.msra.mxu0 0
  %184 = vmatprep.subr.bf16.mxu0 0
  %185 = vmatpush1.bf16.msra.mxu0 0
  %186 = vmatprep.subr.bf16.mxu0 0
  %187 = vmatpush1.bf16.msra.mxu0 0
  %188 = vmatprep.subr.bf16.mxu0 0
  %189 = vmatpush1.bf16.msra.mxu0 0
  %190 = vmatprep.mubr.bf16.mxu0 0
  %191 = vmatmul.mubr.bf16.gmra.mrb[0].mxu0 %v156
  %v192 = vpop.f32.mrb[0].mxu0
  %v193 = vadd.f32 %v129, %v192
  %v194 = vpop.f32.mrb[0].mxu0
  %v195 = vpop.f32.mrb[0].mxu0
  %v196 = vpop.f32.mrb[0].mxu0
  %197 = vdwg.mxu0
  %v198 = vld [vmem:[%s5] sm:$0xf]
  %v199 = vld [vmem:[%s5 + $0x4] sm:$0xf]
  %v200 = vld [vmem:[%s5 + $0x8] sm:$0xf]
  %v201 = vld [vmem:[%s5 + $0xc] sm:$0xf]
  %v202 = vld [vmem:[%s5 + $0x10] sm:$0xf]
  %v203 = vld [vmem:[%s5 + $0x14] sm:$0xf]
  %v204 = vld [vmem:[%s5 + $0x18] sm:$0xf]
  %v205 = vld [vmem:[%s5 + $0x1c] sm:$0xf]
  %v206 = vld [vmem:[%s6] sm:$0x1]
  %v208 = vlaneseq
  %v209 = vshrl.u32 %v208, 7
  %v210 = vsub.s32 0, %v209
  %v211 = vrot.slane %v206, %v210
  %v221 = vunpack.c.l.b16 %v198
  %v222 = vunpack.c.l.b16 %v199
  %v223 = vunpack.c.l.b16 %v200
  %v224 = vunpack.c.l.b16 %v201
  %v225 = vunpack.c.l.b16 %v202
  %v226 = vunpack.c.l.b16 %v203
  %v227 = vunpack.c.l.b16 %v204
  %v228 = vunpack.c.l.b16 %v205
  %v229 = vpack.c.b16 %v222, %v221
  %v230 = vpack.c.b16 %v224, %v223
  %v231 = vpack.c.b16 %v226, %v225
  %v232 = vpack.c.b16 %v228, %v227
  %237 = vmatprep.subr.bf16.mxu0 0
  %238 = vmatpush1.bf16.msra.mxu0 %v229
  %239 = vmatprep.subr.bf16.mxu0 0
  %240 = vmatpush1.bf16.msra.mxu0 %v230
  %241 = vmatprep.subr.bf16.mxu0 0
  %242 = vmatpush1.bf16.msra.mxu0 %v231
  %243 = vmatprep.subr.bf16.mxu0 0
  %244 = vmatpush1.bf16.msra.mxu0 %v232
  %245 = vmatprep.subr.bf16.mxu0 0
  %246 = vmatpush1.bf16.msra.mxu0 0
  %247 = vmatprep.subr.bf16.mxu0 0
  %248 = vmatpush1.bf16.msra.mxu0 0
  %249 = vmatprep.subr.bf16.mxu0 0
  %250 = vmatpush1.bf16.msra.mxu0 0
  %251 = vmatprep.subr.bf16.mxu0 0
  %252 = vmatpush1.bf16.msra.mxu0 0
  %253 = vmatprep.subr.bf16.mxu0 0
  %254 = vmatpush1.bf16.msra.mxu0 0
  %255 = vmatprep.subr.bf16.mxu0 0
  %256 = vmatpush1.bf16.msra.mxu0 0
  %257 = vmatprep.subr.bf16.mxu0 0
  %258 = vmatpush1.bf16.msra.mxu0 0
  %259 = vmatprep.subr.bf16.mxu0 0
  %260 = vmatpush1.bf16.msra.mxu0 0
  %261 = vmatprep.subr.bf16.mxu0 0
  %262 = vmatpush1.bf16.msra.mxu0 0
  %263 = vmatprep.subr.bf16.mxu0 0
  %264 = vmatpush1.bf16.msra.mxu0 0
  %265 = vmatprep.subr.bf16.mxu0 0
  %266 = vmatpush1.bf16.msra.mxu0 0
  %267 = vmatprep.subr.bf16.mxu0 0
  %268 = vmatpush1.bf16.msra.mxu0 0
  %269 = vmatprep.mubr.bf16.mxu0 0
  %270 = vmatmul.mubr.bf16.gmra.mrb[0].mxu0 %v70
  %v271 = vpop.f32.mrb[0].mxu0
  %v272 = vadd.f32 %v211, %v271
  %v273 = vpop.f32.mrb[0].mxu0
  %v274 = vpop.f32.mrb[0].mxu0
  %v275 = vpop.f32.mrb[0].mxu0
  %276 = vdwg.mxu0
  %v277 = vadd.f32 %v272, %v193
  %vm278 = vcmask 261120
  %279 = vst.msk [vmem:[%s7] sm:$0xff] %vm278, %v277
  // Predicated region
  $region30: #{labs_injected_encoder_forward.11} parent=0 // pred_check
    _
  $region31: #{labs_injected_encoder_forward.11} parent=0 // pred_check_branch
    %281 = sbr.rel (0) target = $region33
  $region32: #{labs_injected_encoder_forward.11} parent=0 // pred_region
    _
  $region33: #{labs_injected_encoder_forward.11} parent=0 // pred_fallthru
    _
  // Predicated region
  $region34: #{labs_injected_encoder_forward.11} parent=0 // pred_check
    _
  $region35: #{labs_injected_encoder_forward.11} parent=0 // pred_check_branch
    %283 = sbr.rel (0) target = $region37
  $region36: #{labs_injected_encoder_forward.11} parent=0 // pred_region
    _
  $region37: #{labs_injected_encoder_forward.11} parent=0 // pred_fallthru
    _

</llo_original>
